<compile_context>
chip_gen: v7x
topology: tpu7x:2x2x1
jax: 0.10.0
libtpu: 0.0.40
codegen_flags: <defaults>
</compile_context>

<pallas_src>
from functools import partial

import jax
import jax.numpy as jnp
from jax.experimental import pallas as pl
from jax.experimental.pallas import tpu as pltpu


# ----------------------------- Pallas kernels ------------------------------

def _flat_tapconv_kernel(*refs, tap_offsets, out_rows, relu, two_inputs):
    """Fused tap-accumulating conv on a flattened padded image.

    refs: x1[, x2], w, b, o
      x*: (1, Rp, Cin)   bf16  flattened padded activation (one image)
      w : (T, Cin, Cout) bf16  per-tap matmul weights
      b : (1, Cout)      f32
      o : (1, out_rows, Cout)
    """
    if two_inputs:
        x1_ref, x2_ref, w_ref, b_ref, o_ref = refs
        xsum = x1_ref[0] + x2_ref[0]                     # fused skip add (once)
        get = lambda s: xsum[s:s + out_rows, :]
    else:
        x1_ref, w_ref, b_ref, o_ref = refs
        get = lambda s: x1_ref[0, s:s + out_rows, :]

    acc = None
    for t, s in enumerate(tap_offsets):                  # static unroll (4 or 9 taps)
        part = jnp.dot(get(s), w_ref[t], preferred_element_type=jnp.float32)
        acc = part if acc is None else acc + part
    acc = acc + b_ref[...]                               # f32 epilogue
    if relu:
        acc = jnp.maximum(acc, 0.0)
    o_ref[0] = acc.astype(o_ref.dtype)


def _cout1_conv_kernel(x1_ref, x2_ref, w_ref, b_ref, o_ref, *, taps, oh, ow):
    """Final 3x3 conv with Cout=1 on (x1 + x2); writes a lane-dense (oh, ow) tile.

      x*: (1, Hp, Wp, Cin) bf16 ;  w: (9, 1, Cin) f32 ;  b: (1, 1) f32
      o : (1, oh, ow) f32
    """
    x = x1_ref[0].astype(jnp.float32) + x2_ref[0].astype(jnp.float32)
    acc = jnp.zeros((oh, ow), jnp.float32)
    for t, (dy, dx) in enumerate(taps):
        sl = x[dy:dy + oh, dx:dx + ow, :]                # (oh, ow, Cin)
        acc = acc + jnp.sum(sl * w_ref[t], axis=-1)      # lane reduction over Cin
    o_ref[0] = acc + b_ref[...]


# --------------------------- pallas_call wrappers ----------------------------

def _tap_conv_flat(xs, w, b, tap_offsets, out_rows, relu, out_dtype):
    """xs: 1 or 2 flattened padded inputs (N, Rp, Cin); returns (N, out_rows, Cout)."""
    n, rp, cin = xs[0].shape
    t, _, cout = w.shape
    kern = partial(_flat_tapconv_kernel,
                   tap_offsets=tuple(int(s) for s in tap_offsets),
                   out_rows=int(out_rows), relu=relu, two_inputs=(len(xs) == 2))
    in_specs = [pl.BlockSpec((1, rp, cin), lambda i: (i, 0, 0)) for _ in xs]
    in_specs += [pl.BlockSpec((t, cin, cout), lambda i: (0, 0, 0)),
                 pl.BlockSpec((1, cout), lambda i: (0, 0))]
    return pl.pallas_call(
        kern,
        out_shape=jax.ShapeDtypeStruct((n, out_rows, cout), out_dtype),
        grid=(n,),
        in_specs=in_specs,
        out_specs=pl.BlockSpec((1, out_rows, cout), lambda i: (i, 0, 0)),
        compiler_params=pltpu.CompilerParams(dimension_semantics=("parallel",)),
    )(*xs, w, b)


def _final_conv(x1, x2, w, b):
    """3x3 / stride 1 / pad 1 conv (Cin -> 1) on (x1 + x2); x*: (N, Hp, Wp, Cin) padded."""
    n, hp, wp, cin = x1.shape
    oh, ow = hp - 2, wp - 2
    taps = tuple((dy, dx) for dy in range(3) for dx in range(3))
    return pl.pallas_call(
        partial(_cout1_conv_kernel, taps=taps, oh=oh, ow=ow),
        out_shape=jax.ShapeDtypeStruct((n, oh, ow), jnp.float32),
        grid=(n,),
        in_specs=[pl.BlockSpec((1, hp, wp, cin), lambda i: (i, 0, 0, 0)),
                  pl.BlockSpec((1, hp, wp, cin), lambda i: (i, 0, 0, 0)),
                  pl.BlockSpec((9, 1, cin), lambda i: (0, 0, 0)),
                  pl.BlockSpec((1, 1), lambda i: (0, 0))],
        out_specs=pl.BlockSpec((1, oh, ow), lambda i: (i, 0, 0)),
        compiler_params=pltpu.CompilerParams(dimension_semantics=("parallel",)),
    )(x1, x2, w, b)


# ------------------------------- JAX glue -----------------------------------

def _unflatten(y, ho, wo, wp):
    """(N, L, C) flat conv output -> (N, ho, wo, C) (drop padded/wrap columns)."""
    n, l, c = y.shape
    y = jnp.pad(y, ((0, 0), (0, ho * wp - l), (0, 0)))
    return y.reshape(n, ho, wp, c)[:, :, :wo, :]


def conv3x3_s1(xs, w, b, relu, out_dtype=jnp.bfloat16):
    """3x3 conv, stride 1, pad 1.  xs: 1 or 2 NHWC inputs (added before conv)."""
    n, h, wd, cin = xs[0].shape
    wp = wd + 2
    flats = [jnp.pad(x, ((0, 0), (1, 1), (1, 1), (0, 0))).reshape(n, (h + 2) * wp, cin)
             for x in xs]
    taps = [dy * wp + dx for dy in range(3) for dx in range(3)]
    l = (h - 1) * wp + wd
    out = _tap_conv_flat(flats, w, b, taps, l, relu, out_dtype)
    return _unflatten(out, h, wd, wp)


def conv3x3_s2(x, w4, b, relu):
    """3x3 conv, stride 2, pad 1 via space-to-depth -> 4-tap stride-1 conv."""
    n, h, wd, cin = x.shape
    xp = jnp.pad(x, ((0, 0), (1, 1), (1, 1), (0, 0)))
    s2d = jnp.concatenate([xp[:, 0::2, 0::2, :], xp[:, 0::2, 1::2, :],
                           xp[:, 1::2, 0::2, :], xp[:, 1::2, 1::2, :]], axis=-1)
    hs, ws = h // 2 + 1, wd // 2 + 1
    flat = s2d.reshape(n, hs * ws, 4 * cin)
    ho, wo = h // 2, wd // 2
    taps = [0, 1, ws, ws + 1]
    l = (ho - 1) * ws + wo
    out = _tap_conv_flat([flat], w4, b, taps, l, relu, jnp.bfloat16)
    return _unflatten(out, ho, wo, ws)


def deconv3x3_s2(xs, w4, b4, relu):
    """ConvTranspose2d(3x3, stride 2, pad 1, output_pad 1) via 4-parity decomposition.
    xs: 1 or 2 NHWC inputs (added before the deconv)."""
    n, hi, wi, cin = xs[0].shape
    cout = w4.shape[2] // 4
    wp = wi + 1
    flats = [jnp.pad(x, ((0, 0), (0, 1), (0, 1), (0, 0))).reshape(n, (hi + 1) * wp, cin)
             for x in xs]
    taps = [0, 1, wp, wp + 1]
    l = (hi - 1) * wp + wi
    out = _tap_conv_flat(flats, w4, b4, taps, l, relu, jnp.bfloat16)
    p = _unflatten(out, hi, wi, wp)                          # (N, Hi, Wi, 4*Cout)
    p = p.reshape(n, hi, wi, 2, 2, cout)
    return jnp.transpose(p, (0, 1, 3, 2, 4, 5)).reshape(n, 2 * hi, 2 * wi, cout)


# -------------------- weight preparation (hoisted, done once) ----------------

def _prep_w_s1(w):
    """torch Conv2d weight (Cout, Cin, 3, 3) -> (9, Cin, Cout)."""
    return jnp.transpose(w, (2, 3, 1, 0)).reshape(9, w.shape[1], w.shape[0])


def _prep_w_s2(w):
    """torch Conv2d weight (Cout, Cin, 3, 3) -> (4, 4*Cin, Cout) for the
    space-to-depth (phase order ee, eo, oe, oo) 4-tap stride-1 form."""
    cout, cin = w.shape[0], w.shape[1]
    wt = jnp.transpose(w, (2, 3, 1, 0))                       # (3, 3, Cin, Cout)
    w4 = jnp.zeros((4, 4 * cin, cout), jnp.float32)
    # (kh, kw) -> (tap = dy*2+dx, phase)
    mapping = {(0, 0): (0, 0), (0, 1): (0, 1), (0, 2): (1, 0),
               (1, 0): (0, 2), (1, 1): (0, 3), (1, 2): (1, 2),
               (2, 0): (2, 0), (2, 1): (2, 1), (2, 2): (3, 0)}
    for (kh, kw), (tap, ph) in mapping.items():
        w4 = w4.at[tap, ph * cin:(ph + 1) * cin, :].set(wt[kh, kw])
    return w4


def _prep_w_deconv(w):
    """torch ConvTranspose2d weight (Cin, Cout, 3, 3) -> (4, Cin, 4*Cout) for the
    4-parity (p = py*2+px) 2x2-tap decomposition."""
    cin, cout = w.shape[0], w.shape[1]
    wf = jnp.transpose(w[:, :, ::-1, ::-1], (2, 3, 0, 1))     # flipped, (3,3,Cin,Cout)
    w4 = jnp.zeros((4, cin, 4 * cout), jnp.float32)
    assign = [  # (tap, parity, (kh, kw) of flipped kernel)
        (0, 0, (1, 1)),
        (0, 1, (1, 0)), (1, 1, (1, 2)),
        (0, 2, (0, 1)), (2, 2, (2, 1)),
        (0, 3, (0, 0)), (1, 3, (0, 2)), (2, 3, (2, 0)), (3, 3, (2, 2)),
    ]
    for tap, p, (kh, kw) in assign:
        w4 = w4.at[tap, :, p * cout:(p + 1) * cout].set(wf[kh, kw])
    return w4


def prepare_params(p):
    """Convert torch-layout params to matmul-ready tap form (bf16) once, outside jit."""
    f = lambda a: jnp.asarray(a, jnp.float32)
    return {
        "w0": _prep_w_s1(f(p["w0"])).astype(jnp.bfloat16),
        "b0": f(p["b0"]).reshape(1, -1),
        "w1": _prep_w_s2(f(p["w1"])).astype(jnp.bfloat16),
        "b1": f(p["b1"]).reshape(1, -1),
        "w2": _prep_w_s2(f(p["w2"])).astype(jnp.bfloat16),
        "b2": f(p["b2"]).reshape(1, -1),
        "w3": _prep_w_deconv(f(p["w3"])).astype(jnp.bfloat16),
        "b3": jnp.tile(f(p["b3"]).reshape(1, -1), (1, 4)),
        "w4": _prep_w_deconv(f(p["w4"])).astype(jnp.bfloat16),
        "b4": jnp.tile(f(p["b4"]).reshape(1, -1), (1, 4)),
        "ws": jnp.transpose(f(p["ws"]), (2, 3, 0, 1)).reshape(9, 1, -1),
        "bs": f(p["bs"]).reshape(1, 1),
    }


# --------------------------------- forward -----------------------------------

def similarity_regnet_forward(x, pp):
    """x: (B, G, D, H, W) -> (B, D, H, W), matching the PyTorch forward exactly:
    ReLU only after c0/c1/c2; c3, c4, s_bar have no activation."""
    B, G, D, H, W = x.shape
    x1 = jnp.transpose(x, (0, 2, 3, 4, 1)).reshape(B * D, H, W, G).astype(jnp.bfloat16)
    c0 = conv3x3_s1([x1], pp["w0"], pp["b0"], relu=True)                 # (N,H,W,8)
    c1 = conv3x3_s2(c0, pp["w1"], pp["b1"], relu=True)                   # (N,H/2,W/2,16)
    c2 = conv3x3_s2(c1, pp["w2"], pp["b2"], relu=True)                   # (N,H/4,W/4,32)
    c3 = deconv3x3_s2([c2], pp["w3"], pp["b3"], relu=False)              # (N,H/2,W/2,16)
    c4 = deconv3x3_s2([c3, c1], pp["w4"], pp["b4"], relu=False)          # c4l(c3 + c1)
    x_a = jnp.pad(c4, ((0, 0), (1, 1), (1, 1), (0, 0)))
    x_b = jnp.pad(c0, ((0, 0), (1, 1), (1, 1), (0, 0)))
    s = _final_conv(x_a, x_b, pp["ws"], pp["bs"])                        # s_barl(c4 + c0)
    return s.reshape(B, D, H, W)


# ------------------------- pure-JAX reference (check) -----------------------

def _ref_conv(x, w, b, stride):
    w_hwio = jnp.transpose(w, (2, 3, 1, 0))
    out = jax.lax.conv_general_dilated(
        x, w_hwio, (stride, stride), [(1, 1), (1, 1)],
        dimension_numbers=("NHWC", "HWIO", "NHWC"))
    return out + b.reshape(1, 1, 1, -1)


def _ref_deconv(x, w, b):
    w_hwio = jnp.transpose(w[:, :, ::-1, ::-1], (2, 3, 0, 1))
    out = jax.lax.conv_general_dilated(
        x, w_hwio, (1, 1), [(1, 2), (1, 2)], lhs_dilation=(2, 2),
        dimension_numbers=("NHWC", "HWIO", "NHWC"))
    return out + b.reshape(1, 1, 1, -1)


def ref_forward(x, params):
    B, G, D, H, W = x.shape
    x1 = jnp.transpose(x, (0, 2, 3, 4, 1)).reshape(B * D, H, W, G).astype(jnp.float32)
    c0 = jax.nn.relu(_ref_conv(x1, params["w0"], params["b0"], 1))
    c1 = jax.nn.relu(_ref_conv(c0, params["w1"], params["b1"], 2))
    c2 = jax.nn.relu(_ref_conv(c1, params["w2"], params["b2"], 2))
    c3 = _ref_deconv(c2, params["w3"], params["b3"])         # no ReLU (matches module)
    c4 = _ref_deconv(c3 + c1, params["w4"], params["b4"])
    s = _ref_conv(c4 + c0, params["ws"], params["bs"], 1)
    return s.reshape(B, D, H, W)


# ---------------------------------- main -------------------------------------

if __name__ == "__main__":
    key = jax.random.PRNGKey(0)
    B, G, D, H, W = 2, 4, 4, 16, 16
    keys = jax.random.split(key, 13)

    params = {
        "w0": jax.random.normal(keys[0], (8, G, 3, 3), jnp.float32) * 0.1,
        "b0": jax.random.normal(keys[1], (8,), jnp.float32) * 0.01,
        "w1": jax.random.normal(keys[2], (16, 8, 3, 3), jnp.float32) * 0.1,
        "b1": jax.random.normal(keys[3], (16,), jnp.float32) * 0.01,
        "w2": jax.random.normal(keys[4], (32, 16, 3, 3), jnp.float32) * 0.1,
        "b2": jax.random.normal(keys[5], (32,), jnp.float32) * 0.01,
        "w3": jax.random.normal(keys[6], (32, 16, 3, 3), jnp.float32) * 0.1,  # ConvT(32->16)
        "b3": jax.random.normal(keys[7], (16,), jnp.float32) * 0.01,
        "w4": jax.random.normal(keys[8], (16, 8, 3, 3), jnp.float32) * 0.1,   # ConvT(16->8)
        "b4": jax.random.normal(keys[9], (8,), jnp.float32) * 0.01,
        "ws": jax.random.normal(keys[10], (1, 8, 3, 3), jnp.float32) * 0.1,
        "bs": jax.random.normal(keys[11], (1,), jnp.float32) * 0.01,
    }
    x = jax.random.normal(keys[12], (B, G, D, H, W), jnp.float32)

    pp = prepare_params(params)                       # weight re-layout hoisted (once)
    fwd = jax.jit(similarity_regnet_forward)
    out = jax.block_until_ready(fwd(x, pp))
    assert out.shape == (B, D, H, W), out.shape

    ref = ref_forward(x, params)
    err = float(jnp.max(jnp.abs(out - ref)))
    # Tolerance accounts for bf16 activation/weight storage; any structural bug
    # (tap/parity/phase mix-up, wrong ReLU placement) produces O(0.1-1) errors.
    if not bool(jnp.allclose(out, ref, atol=3e-2, rtol=3e-2)):
        raise AssertionError(f"Pallas output mismatch vs reference, max abs err = {err}")

    print("KERNEL_OK")
</pallas_src>

<mosaic_0001>
module attributes {stable_mosaic.version = 11 : i64} {
  func.func @_flat_tapconv_kernel(%arg0: i32, %arg1: memref<1x324x4xbf16, #tpu.memory_space<vmem>>, %arg2: memref<9x4x8xbf16, #tpu.memory_space<vmem>>, %arg3: memref<1x8xf32, #tpu.memory_space<vmem>>, %arg4: memref<1x286x8xbf16, #tpu.memory_space<vmem>>) attributes {dimension_semantics = [#tpu.dimension_semantics<parallel>], iteration_bounds = array<i64: 8>, scalar_prefetch = 0 : i64, scratch_operands = 0 : i64, tpu.core_type = #tpu.core_type<tc>, window_params = [{transform_indices = @transform_0, window_bounds = array<i64: 1, 324, 4>}, {pipeline_mode = #tpu.pipeline_mode<synchronous>, transform_indices = @transform_1, window_bounds = array<i64: 9, 4, 8>}, {pipeline_mode = #tpu.pipeline_mode<synchronous>, transform_indices = @transform_2, window_bounds = array<i64: 1, 8>}, {transform_indices = @transform_3, window_bounds = array<i64: 1, 286, 8>}]} {
    %c0 = arith.constant 0 : index
    %c0_0 = arith.constant 0 : index
    %c0_1 = arith.constant 0 : index
    %0 = vector.load %arg1[%c0, %c0_0, %c0_1] : memref<1x324x4xbf16, #tpu.memory_space<vmem>>, vector<1x286x4xbf16>
    %1 = vector.shape_cast %0 : vector<1x286x4xbf16> to vector<286x4xbf16>
    %c0_2 = arith.constant 0 : index
    %c0_3 = arith.constant 0 : index
    %c0_4 = arith.constant 0 : index
    %2 = vector.load %arg2[%c0_2, %c0_3, %c0_4] : memref<9x4x8xbf16, #tpu.memory_space<vmem>>, vector<1x4x8xbf16>
    %3 = vector.shape_cast %2 : vector<1x4x8xbf16> to vector<4x8xbf16>
    %cst = arith.constant dense<0.000000e+00> : vector<286x8xf32>
    %4 = tpu.matmul %1, %3, %cst {dimension_numbers = #tpu.dot_dimension_numbers<[1], [0], [0], [1], [0, 0, 1, 1], [], []>} : vector<286x4xbf16>, vector<4x8xbf16>, vector<286x8xf32> -> vector<286x8xf32>
    %c0_5 = arith.constant 0 : index
    %c1 = arith.constant 1 : index
    %c0_6 = arith.constant 0 : index
    %5 = vector.load %arg1[%c0_5, %c1, %c0_6] : memref<1x324x4xbf16, #tpu.memory_space<vmem>>, vector<1x286x4xbf16>
    %6 = vector.shape_cast %5 : vector<1x286x4xbf16> to vector<286x4xbf16>
    %c1_7 = arith.constant 1 : index
    %c0_8 = arith.constant 0 : index
    %c0_9 = arith.constant 0 : index
    %7 = vector.load %arg2[%c1_7, %c0_8, %c0_9] : memref<9x4x8xbf16, #tpu.memory_space<vmem>>, vector<1x4x8xbf16>
    %8 = vector.shape_cast %7 : vector<1x4x8xbf16> to vector<4x8xbf16>
    %cst_10 = arith.constant dense<0.000000e+00> : vector<286x8xf32>
    %9 = tpu.matmul %6, %8, %cst_10 {dimension_numbers = #tpu.dot_dimension_numbers<[1], [0], [0], [1], [0, 0, 1, 1], [], []>} : vector<286x4xbf16>, vector<4x8xbf16>, vector<286x8xf32> -> vector<286x8xf32>
    %10 = arith.addf %4, %9 : vector<286x8xf32>
    %c0_11 = arith.constant 0 : index
    %c2 = arith.constant 2 : index
    %c0_12 = arith.constant 0 : index
    %11 = vector.load %arg1[%c0_11, %c2, %c0_12] : memref<1x324x4xbf16, #tpu.memory_space<vmem>>, vector<1x286x4xbf16>
    %12 = vector.shape_cast %11 : vector<1x286x4xbf16> to vector<286x4xbf16>
    %c2_13 = arith.constant 2 : index
    %c0_14 = arith.constant 0 : index
    %c0_15 = arith.constant 0 : index
    %13 = vector.load %arg2[%c2_13, %c0_14, %c0_15] : memref<9x4x8xbf16, #tpu.memory_space<vmem>>, vector<1x4x8xbf16>
    %14 = vector.shape_cast %13 : vector<1x4x8xbf16> to vector<4x8xbf16>
    %cst_16 = arith.constant dense<0.000000e+00> : vector<286x8xf32>
    %15 = tpu.matmul %12, %14, %cst_16 {dimension_numbers = #tpu.dot_dimension_numbers<[1], [0], [0], [1], [0, 0, 1, 1], [], []>} : vector<286x4xbf16>, vector<4x8xbf16>, vector<286x8xf32> -> vector<286x8xf32>
    %16 = arith.addf %10, %15 : vector<286x8xf32>
    %c0_17 = arith.constant 0 : index
    %c18 = arith.constant 18 : index
    %c0_18 = arith.constant 0 : index
    %17 = vector.load %arg1[%c0_17, %c18, %c0_18] : memref<1x324x4xbf16, #tpu.memory_space<vmem>>, vector<1x286x4xbf16>
    %18 = vector.shape_cast %17 : vector<1x286x4xbf16> to vector<286x4xbf16>
    %c3 = arith.constant 3 : index
    %c0_19 = arith.constant 0 : index
    %c0_20 = arith.constant 0 : index
    %19 = vector.load %arg2[%c3, %c0_19, %c0_20] : memref<9x4x8xbf16, #tpu.memory_space<vmem>>, vector<1x4x8xbf16>
    %20 = vector.shape_cast %19 : vector<1x4x8xbf16> to vector<4x8xbf16>
    %cst_21 = arith.constant dense<0.000000e+00> : vector<286x8xf32>
    %21 = tpu.matmul %18, %20, %cst_21 {dimension_numbers = #tpu.dot_dimension_numbers<[1], [0], [0], [1], [0, 0, 1, 1], [], []>} : vector<286x4xbf16>, vector<4x8xbf16>, vector<286x8xf32> -> vector<286x8xf32>
    %22 = arith.addf %16, %21 : vector<286x8xf32>
    %c0_22 = arith.constant 0 : index
    %c19 = arith.constant 19 : index
    %c0_23 = arith.constant 0 : index
    %23 = vector.load %arg1[%c0_22, %c19, %c0_23] : memref<1x324x4xbf16, #tpu.memory_space<vmem>>, vector<1x286x4xbf16>
    %24 = vector.shape_cast %23 : vector<1x286x4xbf16> to vector<286x4xbf16>
    %c4 = arith.constant 4 : index
    %c0_24 = arith.constant 0 : index
    %c0_25 = arith.constant 0 : index
    %25 = vector.load %arg2[%c4, %c0_24, %c0_25] : memref<9x4x8xbf16, #tpu.memory_space<vmem>>, vector<1x4x8xbf16>
    %26 = vector.shape_cast %25 : vector<1x4x8xbf16> to vector<4x8xbf16>
    %cst_26 = arith.constant dense<0.000000e+00> : vector<286x8xf32>
    %27 = tpu.matmul %24, %26, %cst_26 {dimension_numbers = #tpu.dot_dimension_numbers<[1], [0], [0], [1], [0, 0, 1, 1], [], []>} : vector<286x4xbf16>, vector<4x8xbf16>, vector<286x8xf32> -> vector<286x8xf32>
    %28 = arith.addf %22, %27 : vector<286x8xf32>
    %c0_27 = arith.constant 0 : index
    %c20 = arith.constant 20 : index
    %c0_28 = arith.constant 0 : index
    %29 = vector.load %arg1[%c0_27, %c20, %c0_28] : memref<1x324x4xbf16, #tpu.memory_space<vmem>>, vector<1x286x4xbf16>
    %30 = vector.shape_cast %29 : vector<1x286x4xbf16> to vector<286x4xbf16>
    %c5 = arith.constant 5 : index
    %c0_29 = arith.constant 0 : index
    %c0_30 = arith.constant 0 : index
    %31 = vector.load %arg2[%c5, %c0_29, %c0_30] : memref<9x4x8xbf16, #tpu.memory_space<vmem>>, vector<1x4x8xbf16>
    %32 = vector.shape_cast %31 : vector<1x4x8xbf16> to vector<4x8xbf16>
    %cst_31 = arith.constant dense<0.000000e+00> : vector<286x8xf32>
    %33 = tpu.matmul %30, %32, %cst_31 {dimension_numbers = #tpu.dot_dimension_numbers<[1], [0], [0], [1], [0, 0, 1, 1], [], []>} : vector<286x4xbf16>, vector<4x8xbf16>, vector<286x8xf32> -> vector<286x8xf32>
    %34 = arith.addf %28, %33 : vector<286x8xf32>
    %c0_32 = arith.constant 0 : index
    %c36 = arith.constant 36 : index
    %c0_33 = arith.constant 0 : index
    %35 = vector.load %arg1[%c0_32, %c36, %c0_33] : memref<1x324x4xbf16, #tpu.memory_space<vmem>>, vector<1x286x4xbf16>
    %36 = vector.shape_cast %35 : vector<1x286x4xbf16> to vector<286x4xbf16>
    %c6 = arith.constant 6 : index
    %c0_34 = arith.constant 0 : index
    %c0_35 = arith.constant 0 : index
    %37 = vector.load %arg2[%c6, %c0_34, %c0_35] : memref<9x4x8xbf16, #tpu.memory_space<vmem>>, vector<1x4x8xbf16>
    %38 = vector.shape_cast %37 : vector<1x4x8xbf16> to vector<4x8xbf16>
    %cst_36 = arith.constant dense<0.000000e+00> : vector<286x8xf32>
    %39 = tpu.matmul %36, %38, %cst_36 {dimension_numbers = #tpu.dot_dimension_numbers<[1], [0], [0], [1], [0, 0, 1, 1], [], []>} : vector<286x4xbf16>, vector<4x8xbf16>, vector<286x8xf32> -> vector<286x8xf32>
    %40 = arith.addf %34, %39 : vector<286x8xf32>
    %c0_37 = arith.constant 0 : index
    %c37 = arith.constant 37 : index
    %c0_38 = arith.constant 0 : index
    %41 = vector.load %arg1[%c0_37, %c37, %c0_38] : memref<1x324x4xbf16, #tpu.memory_space<vmem>>, vector<1x286x4xbf16>
    %42 = vector.shape_cast %41 : vector<1x286x4xbf16> to vector<286x4xbf16>
    %c7 = arith.constant 7 : index
    %c0_39 = arith.constant 0 : index
    %c0_40 = arith.constant 0 : index
    %43 = vector.load %arg2[%c7, %c0_39, %c0_40] : memref<9x4x8xbf16, #tpu.memory_space<vmem>>, vector<1x4x8xbf16>
    %44 = vector.shape_cast %43 : vector<1x4x8xbf16> to vector<4x8xbf16>
    %cst_41 = arith.constant dense<0.000000e+00> : vector<286x8xf32>
    %45 = tpu.matmul %42, %44, %cst_41 {dimension_numbers = #tpu.dot_dimension_numbers<[1], [0], [0], [1], [0, 0, 1, 1], [], []>} : vector<286x4xbf16>, vector<4x8xbf16>, vector<286x8xf32> -> vector<286x8xf32>
    %46 = arith.addf %40, %45 : vector<286x8xf32>
    %c0_42 = arith.constant 0 : index
    %c38 = arith.constant 38 : index
    %c0_43 = arith.constant 0 : index
    %47 = vector.load %arg1[%c0_42, %c38, %c0_43] : memref<1x324x4xbf16, #tpu.memory_space<vmem>>, vector<1x286x4xbf16>
    %48 = vector.shape_cast %47 : vector<1x286x4xbf16> to vector<286x4xbf16>
    %c8 = arith.constant 8 : index
    %c0_44 = arith.constant 0 : index
    %c0_45 = arith.constant 0 : index
    %49 = vector.load %arg2[%c8, %c0_44, %c0_45] : memref<9x4x8xbf16, #tpu.memory_space<vmem>>, vector<1x4x8xbf16>
    %50 = vector.shape_cast %49 : vector<1x4x8xbf16> to vector<4x8xbf16>
    %cst_46 = arith.constant dense<0.000000e+00> : vector<286x8xf32>
    %51 = tpu.matmul %48, %50, %cst_46 {dimension_numbers = #tpu.dot_dimension_numbers<[1], [0], [0], [1], [0, 0, 1, 1], [], []>} : vector<286x4xbf16>, vector<4x8xbf16>, vector<286x8xf32> -> vector<286x8xf32>
    %52 = arith.addf %46, %51 : vector<286x8xf32>
    %c0_47 = arith.constant 0 : index
    %c0_48 = arith.constant 0 : index
    %53 = vector.load %arg3[%c0_47, %c0_48] : memref<1x8xf32, #tpu.memory_space<vmem>>, vector<1x8xf32>
    %54 = vector.broadcast %53 : vector<1x8xf32> to vector<286x8xf32>
    %55 = arith.addf %52, %54 : vector<286x8xf32>
    %cst_49 = arith.constant 0.000000e+00 : f32
    %56 = vector.broadcast %cst_49 : f32 to vector<286x8xf32>
    %57 = arith.maximumf %55, %56 : vector<286x8xf32>
    %58 = arith.truncf %57 : vector<286x8xf32> to vector<286x8xbf16>
    %c0_50 = arith.constant 0 : index
    %c0_51 = arith.constant 0 : index
    %c0_52 = arith.constant 0 : index
    %59 = vector.load %arg4[%c0_50, %c0_51, %c0_52] : memref<1x286x8xbf16, #tpu.memory_space<vmem>>, vector<1x286x8xbf16>
    %60 = vector.shape_cast %59 : vector<1x286x8xbf16> to vector<286x8xbf16>
    %61 = vector.shape_cast %58 : vector<286x8xbf16> to vector<1x286x8xbf16>
    tpu.vector_store %arg4[%c0_50, %c0_51, %c0_52], %61 {strides = array<i32>} : memref<1x286x8xbf16, #tpu.memory_space<vmem>>, vector<1x286x8xbf16>,
    return
  }
  func.func @transform_0(%arg0: i32) -> (i32, i32, i32) {
    %c0_i32 = arith.constant 0 : i32
    %c0_i32_0 = arith.constant 0 : i32
    %c0_i32_1 = arith.constant 0 : i32
    return %arg0, %c0_i32, %c0_i32_0 : i32, i32, i32
  }
  func.func @transform_1(%arg0: i32) -> (i32, i32, i32) {
    %c0_i32 = arith.constant 0 : i32
    %c0_i32_0 = arith.constant 0 : i32
    %c0_i32_1 = arith.constant 0 : i32
    %c0_i32_2 = arith.constant 0 : i32
    return %c0_i32, %c0_i32_0, %c0_i32_1 : i32, i32, i32
  }
  func.func @transform_2(%arg0: i32) -> (i32, i32) {
    %c0_i32 = arith.constant 0 : i32
    %c0_i32_0 = arith.constant 0 : i32
    %c0_i32_1 = arith.constant 0 : i32
    return %c0_i32, %c0_i32_0 : i32, i32
  }
  func.func @transform_3(%arg0: i32) -> (i32, i32, i32) {
    %c0_i32 = arith.constant 0 : i32
    %c0_i32_0 = arith.constant 0 : i32
    %c0_i32_1 = arith.constant 0 : i32
    return %arg0, %c0_i32, %c0_i32_0 : i32, i32, i32
  }
}

module attributes {stable_mosaic.version = 11 : i64} {
  func.func @_flat_tapconv_kernel(%arg0: i32, %arg1: memref<1x81x32xbf16, #tpu.memory_space<vmem>>, %arg2: memref<4x32x16xbf16, #tpu.memory_space<vmem>>, %arg3: memref<1x16xf32, #tpu.memory_space<vmem>>, %arg4: memref<1x71x16xbf16, #tpu.memory_space<vmem>>) attributes {dimension_semantics = [#tpu.dimension_semantics<parallel>], iteration_bounds = array<i64: 8>, scalar_prefetch = 0 : i64, scratch_operands = 0 : i64, tpu.core_type = #tpu.core_type<tc>, window_params = [{transform_indices = @transform_0, window_bounds = array<i64: 1, 81, 32>}, {pipeline_mode = #tpu.pipeline_mode<synchronous>, transform_indices = @transform_1, window_bounds = array<i64: 4, 32, 16>}, {pipeline_mode = #tpu.pipeline_mode<synchronous>, transform_indices = @transform_2, window_bounds = array<i64: 1, 16>}, {transform_indices = @transform_3, window_bounds = array<i64: 1, 71, 16>}]} {
    %c0 = arith.constant 0 : index
    %c0_0 = arith.constant 0 : index
    %c0_1 = arith.constant 0 : index
    %0 = vector.load %arg1[%c0, %c0_0, %c0_1] : memref<1x81x32xbf16, #tpu.memory_space<vmem>>, vector<1x71x32xbf16>
    %1 = vector.shape_cast %0 : vector<1x71x32xbf16> to vector<71x32xbf16>
    %c0_2 = arith.constant 0 : index
    %c0_3 = arith.constant 0 : index
    %c0_4 = arith.constant 0 : index
    %2 = vector.load %arg2[%c0_2, %c0_3, %c0_4] : memref<4x32x16xbf16, #tpu.memory_space<vmem>>, vector<1x32x16xbf16>
    %3 = vector.shape_cast %2 : vector<1x32x16xbf16> to vector<32x16xbf16>
    %cst = arith.constant dense<0.000000e+00> : vector<71x16xf32>
    %4 = tpu.matmul %1, %3, %cst {dimension_numbers = #tpu.dot_dimension_numbers<[1], [0], [0], [1], [0, 0, 1, 1], [], []>} : vector<71x32xbf16>, vector<32x16xbf16>, vector<71x16xf32> -> vector<71x16xf32>
    %c0_5 = arith.constant 0 : index
    %c1 = arith.constant 1 : index
    %c0_6 = arith.constant 0 : index
    %5 = vector.load %arg1[%c0_5, %c1, %c0_6] : memref<1x81x32xbf16, #tpu.memory_space<vmem>>, vector<1x71x32xbf16>
    %6 = vector.shape_cast %5 : vector<1x71x32xbf16> to vector<71x32xbf16>
    %c1_7 = arith.constant 1 : index
    %c0_8 = arith.constant 0 : index
    %c0_9 = arith.constant 0 : index
    %7 = vector.load %arg2[%c1_7, %c0_8, %c0_9] : memref<4x32x16xbf16, #tpu.memory_space<vmem>>, vector<1x32x16xbf16>
    %8 = vector.shape_cast %7 : vector<1x32x16xbf16> to vector<32x16xbf16>
    %cst_10 = arith.constant dense<0.000000e+00> : vector<71x16xf32>
    %9 = tpu.matmul %6, %8, %cst_10 {dimension_numbers = #tpu.dot_dimension_numbers<[1], [0], [0], [1], [0, 0, 1, 1], [], []>} : vector<71x32xbf16>, vector<32x16xbf16>, vector<71x16xf32> -> vector<71x16xf32>
    %10 = arith.addf %4, %9 : vector<71x16xf32>
    %c0_11 = arith.constant 0 : index
    %c9 = arith.constant 9 : index
    %c0_12 = arith.constant 0 : index
    %11 = vector.load %arg1[%c0_11, %c9, %c0_12] : memref<1x81x32xbf16, #tpu.memory_space<vmem>>, vector<1x71x32xbf16>
    %12 = vector.shape_cast %11 : vector<1x71x32xbf16> to vector<71x32xbf16>
    %c2 = arith.constant 2 : index
    %c0_13 = arith.constant 0 : index
    %c0_14 = arith.constant 0 : index
    %13 = vector.load %arg2[%c2, %c0_13, %c0_14] : memref<4x32x16xbf16, #tpu.memory_space<vmem>>, vector<1x32x16xbf16>
    %14 = vector.shape_cast %13 : vector<1x32x16xbf16> to vector<32x16xbf16>
    %cst_15 = arith.constant dense<0.000000e+00> : vector<71x16xf32>
    %15 = tpu.matmul %12, %14, %cst_15 {dimension_numbers = #tpu.dot_dimension_numbers<[1], [0], [0], [1], [0, 0, 1, 1], [], []>} : vector<71x32xbf16>, vector<32x16xbf16>, vector<71x16xf32> -> vector<71x16xf32>
    %16 = arith.addf %10, %15 : vector<71x16xf32>
    %c0_16 = arith.constant 0 : index
    %c10 = arith.constant 10 : index
    %c0_17 = arith.constant 0 : index
    %17 = vector.load %arg1[%c0_16, %c10, %c0_17] : memref<1x81x32xbf16, #tpu.memory_space<vmem>>, vector<1x71x32xbf16>
    %18 = vector.shape_cast %17 : vector<1x71x32xbf16> to vector<71x32xbf16>
    %c3 = arith.constant 3 : index
    %c0_18 = arith.constant 0 : index
    %c0_19 = arith.constant 0 : index
    %19 = vector.load %arg2[%c3, %c0_18, %c0_19] : memref<4x32x16xbf16, #tpu.memory_space<vmem>>, vector<1x32x16xbf16>
    %20 = vector.shape_cast %19 : vector<1x32x16xbf16> to vector<32x16xbf16>
    %cst_20 = arith.constant dense<0.000000e+00> : vector<71x16xf32>
    %21 = tpu.matmul %18, %20, %cst_20 {dimension_numbers = #tpu.dot_dimension_numbers<[1], [0], [0], [1], [0, 0, 1, 1], [], []>} : vector<71x32xbf16>, vector<32x16xbf16>, vector<71x16xf32> -> vector<71x16xf32>
    %22 = arith.addf %16, %21 : vector<71x16xf32>
    %c0_21 = arith.constant 0 : index
    %c0_22 = arith.constant 0 : index
    %23 = vector.load %arg3[%c0_21, %c0_22] : memref<1x16xf32, #tpu.memory_space<vmem>>, vector<1x16xf32>
    %24 = vector.broadcast %23 : vector<1x16xf32> to vector<71x16xf32>
    %25 = arith.addf %22, %24 : vector<71x16xf32>
    %cst_23 = arith.constant 0.000000e+00 : f32
    %26 = vector.broadcast %cst_23 : f32 to vector<71x16xf32>
    %27 = arith.maximumf %25, %26 : vector<71x16xf32>
    %28 = arith.truncf %27 : vector<71x16xf32> to vector<71x16xbf16>
    %c0_24 = arith.constant 0 : index
    %c0_25 = arith.constant 0 : index
    %c0_26 = arith.constant 0 : index
    %29 = vector.load %arg4[%c0_24, %c0_25, %c0_26] : memref<1x71x16xbf16, #tpu.memory_space<vmem>>, vector<1x71x16xbf16>
    %30 = vector.shape_cast %29 : vector<1x71x16xbf16> to vector<71x16xbf16>
    %31 = vector.shape_cast %28 : vector<71x16xbf16> to vector<1x71x16xbf16>
    tpu.vector_store %arg4[%c0_24, %c0_25, %c0_26], %31 {strides = array<i32>} : memref<1x71x16xbf16, #tpu.memory_space<vmem>>, vector<1x71x16xbf16>,
    return
  }
  func.func @transform_0(%arg0: i32) -> (i32, i32, i32) {
    %c0_i32 = arith.constant 0 : i32
    %c0_i32_0 = arith.constant 0 : i32
    %c0_i32_1 = arith.constant 0 : i32
    return %arg0, %c0_i32, %c0_i32_0 : i32, i32, i32
  }
  func.func @transform_1(%arg0: i32) -> (i32, i32, i32) {
    %c0_i32 = arith.constant 0 : i32
    %c0_i32_0 = arith.constant 0 : i32
    %c0_i32_1 = arith.constant 0 : i32
    %c0_i32_2 = arith.constant 0 : i32
    return %c0_i32, %c0_i32_0, %c0_i32_1 : i32, i32, i32
  }
  func.func @transform_2(%arg0: i32) -> (i32, i32) {
    %c0_i32 = arith.constant 0 : i32
    %c0_i32_0 = arith.constant 0 : i32
    %c0_i32_1 = arith.constant 0 : i32
    return %c0_i32, %c0_i32_0 : i32, i32
  }
  func.func @transform_3(%arg0: i32) -> (i32, i32, i32) {
    %c0_i32 = arith.constant 0 : i32
    %c0_i32_0 = arith.constant 0 : i32
    %c0_i32_1 = arith.constant 0 : i32
    return %arg0, %c0_i32, %c0_i32_0 : i32, i32, i32
  }
}

module attributes {stable_mosaic.version = 11 : i64} {
  func.func @_flat_tapconv_kernel(%arg0: i32, %arg1: memref<1x25x64xbf16, #tpu.memory_space<vmem>>, %arg2: memref<4x64x32xbf16, #tpu.memory_space<vmem>>, %arg3: memref<1x32xf32, #tpu.memory_space<vmem>>, %arg4: memref<1x19x32xbf16, #tpu.memory_space<vmem>>) attributes {dimension_semantics = [#tpu.dimension_semantics<parallel>], iteration_bounds = array<i64: 8>, scalar_prefetch = 0 : i64, scratch_operands = 0 : i64, tpu.core_type = #tpu.core_type<tc>, window_params = [{transform_indices = @transform_0, window_bounds = array<i64: 1, 25, 64>}, {pipeline_mode = #tpu.pipeline_mode<synchronous>, transform_indices = @transform_1, window_bounds = array<i64: 4, 64, 32>}, {pipeline_mode = #tpu.pipeline_mode<synchronous>, transform_indices = @transform_2, window_bounds = array<i64: 1, 32>}, {transform_indices = @transform_3, window_bounds = array<i64: 1, 19, 32>}]} {
    %c0 = arith.constant 0 : index
    %c0_0 = arith.constant 0 : index
    %c0_1 = arith.constant 0 : index
    %0 = vector.load %arg1[%c0, %c0_0, %c0_1] : memref<1x25x64xbf16, #tpu.memory_space<vmem>>, vector<1x19x64xbf16>
    %1 = vector.shape_cast %0 : vector<1x19x64xbf16> to vector<19x64xbf16>
    %c0_2 = arith.constant 0 : index
    %c0_3 = arith.constant 0 : index
    %c0_4 = arith.constant 0 : index
    %2 = vector.load %arg2[%c0_2, %c0_3, %c0_4] : memref<4x64x32xbf16, #tpu.memory_space<vmem>>, vector<1x64x32xbf16>
    %3 = vector.shape_cast %2 : vector<1x64x32xbf16> to vector<64x32xbf16>
    %cst = arith.constant dense<0.000000e+00> : vector<19x32xf32>
    %4 = tpu.matmul %1, %3, %cst {dimension_numbers = #tpu.dot_dimension_numbers<[1], [0], [0], [1], [0, 0, 1, 1], [], []>} : vector<19x64xbf16>, vector<64x32xbf16>, vector<19x32xf32> -> vector<19x32xf32>
    %c0_5 = arith.constant 0 : index
    %c1 = arith.constant 1 : index
    %c0_6 = arith.constant 0 : index
    %5 = vector.load %arg1[%c0_5, %c1, %c0_6] : memref<1x25x64xbf16, #tpu.memory_space<vmem>>, vector<1x19x64xbf16>
    %6 = vector.shape_cast %5 : vector<1x19x64xbf16> to vector<19x64xbf16>
    %c1_7 = arith.constant 1 : index
    %c0_8 = arith.constant 0 : index
    %c0_9 = arith.constant 0 : index
    %7 = vector.load %arg2[%c1_7, %c0_8, %c0_9] : memref<4x64x32xbf16, #tpu.memory_space<vmem>>, vector<1x64x32xbf16>
    %8 = vector.shape_cast %7 : vector<1x64x32xbf16> to vector<64x32xbf16>
    %cst_10 = arith.constant dense<0.000000e+00> : vector<19x32xf32>
    %9 = tpu.matmul %6, %8, %cst_10 {dimension_numbers = #tpu.dot_dimension_numbers<[1], [0], [0], [1], [0, 0, 1, 1], [], []>} : vector<19x64xbf16>, vector<64x32xbf16>, vector<19x32xf32> -> vector<19x32xf32>
    %10 = arith.addf %4, %9 : vector<19x32xf32>
    %c0_11 = arith.constant 0 : index
    %c5 = arith.constant 5 : index
    %c0_12 = arith.constant 0 : index
    %11 = vector.load %arg1[%c0_11, %c5, %c0_12] : memref<1x25x64xbf16, #tpu.memory_space<vmem>>, vector<1x19x64xbf16>
    %12 = vector.shape_cast %11 : vector<1x19x64xbf16> to vector<19x64xbf16>
    %c2 = arith.constant 2 : index
    %c0_13 = arith.constant 0 : index
    %c0_14 = arith.constant 0 : index
    %13 = vector.load %arg2[%c2, %c0_13, %c0_14] : memref<4x64x32xbf16, #tpu.memory_space<vmem>>, vector<1x64x32xbf16>
    %14 = vector.shape_cast %13 : vector<1x64x32xbf16> to vector<64x32xbf16>
    %cst_15 = arith.constant dense<0.000000e+00> : vector<19x32xf32>
    %15 = tpu.matmul %12, %14, %cst_15 {dimension_numbers = #tpu.dot_dimension_numbers<[1], [0], [0], [1], [0, 0, 1, 1], [], []>} : vector<19x64xbf16>, vector<64x32xbf16>, vector<19x32xf32> -> vector<19x32xf32>
    %16 = arith.addf %10, %15 : vector<19x32xf32>
    %c0_16 = arith.constant 0 : index
    %c6 = arith.constant 6 : index
    %c0_17 = arith.constant 0 : index
    %17 = vector.load %arg1[%c0_16, %c6, %c0_17] : memref<1x25x64xbf16, #tpu.memory_space<vmem>>, vector<1x19x64xbf16>
    %18 = vector.shape_cast %17 : vector<1x19x64xbf16> to vector<19x64xbf16>
    %c3 = arith.constant 3 : index
    %c0_18 = arith.constant 0 : index
    %c0_19 = arith.constant 0 : index
    %19 = vector.load %arg2[%c3, %c0_18, %c0_19] : memref<4x64x32xbf16, #tpu.memory_space<vmem>>, vector<1x64x32xbf16>
    %20 = vector.shape_cast %19 : vector<1x64x32xbf16> to vector<64x32xbf16>
    %cst_20 = arith.constant dense<0.000000e+00> : vector<19x32xf32>
    %21 = tpu.matmul %18, %20, %cst_20 {dimension_numbers = #tpu.dot_dimension_numbers<[1], [0], [0], [1], [0, 0, 1, 1], [], []>} : vector<19x64xbf16>, vector<64x32xbf16>, vector<19x32xf32> -> vector<19x32xf32>
    %22 = arith.addf %16, %21 : vector<19x32xf32>
    %c0_21 = arith.constant 0 : index
    %c0_22 = arith.constant 0 : index
    %23 = vector.load %arg3[%c0_21, %c0_22] : memref<1x32xf32, #tpu.memory_space<vmem>>, vector<1x32xf32>
    %24 = vector.broadcast %23 : vector<1x32xf32> to vector<19x32xf32>
    %25 = arith.addf %22, %24 : vector<19x32xf32>
    %cst_23 = arith.constant 0.000000e+00 : f32
    %26 = vector.broadcast %cst_23 : f32 to vector<19x32xf32>
    %27 = arith.maximumf %25, %26 : vector<19x32xf32>
    %28 = arith.truncf %27 : vector<19x32xf32> to vector<19x32xbf16>
    %c0_24 = arith.constant 0 : index
    %c0_25 = arith.constant 0 : index
    %c0_26 = arith.constant 0 : index
    %29 = vector.load %arg4[%c0_24, %c0_25, %c0_26] : memref<1x19x32xbf16, #tpu.memory_space<vmem>>, vector<1x19x32xbf16>
    %30 = vector.shape_cast %29 : vector<1x19x32xbf16> to vector<19x32xbf16>
    %31 = vector.shape_cast %28 : vector<19x32xbf16> to vector<1x19x32xbf16>
    tpu.vector_store %arg4[%c0_24, %c0_25, %c0_26], %31 {strides = array<i32>} : memref<1x19x32xbf16, #tpu.memory_space<vmem>>, vector<1x19x32xbf16>,
    return
  }
  func.func @transform_0(%arg0: i32) -> (i32, i32, i32) {
    %c0_i32 = arith.constant 0 : i32
    %c0_i32_0 = arith.constant 0 : i32
    %c0_i32_1 = arith.constant 0 : i32
    return %arg0, %c0_i32, %c0_i32_0 : i32, i32, i32
  }
  func.func @transform_1(%arg0: i32) -> (i32, i32, i32) {
    %c0_i32 = arith.constant 0 : i32
    %c0_i32_0 = arith.constant 0 : i32
    %c0_i32_1 = arith.constant 0 : i32
    %c0_i32_2 = arith.constant 0 : i32
    return %c0_i32, %c0_i32_0, %c0_i32_1 : i32, i32, i32
  }
  func.func @transform_2(%arg0: i32) -> (i32, i32) {
    %c0_i32 = arith.constant 0 : i32
    %c0_i32_0 = arith.constant 0 : i32
    %c0_i32_1 = arith.constant 0 : i32
    return %c0_i32, %c0_i32_0 : i32, i32
  }
  func.func @transform_3(%arg0: i32) -> (i32, i32, i32) {
    %c0_i32 = arith.constant 0 : i32
    %c0_i32_0 = arith.constant 0 : i32
    %c0_i32_1 = arith.constant 0 : i32
    return %arg0, %c0_i32, %c0_i32_0 : i32, i32, i32
  }
}

module attributes {stable_mosaic.version = 11 : i64} {
  func.func @_flat_tapconv_kernel(%arg0: i32, %arg1: memref<1x25x32xbf16, #tpu.memory_space<vmem>>, %arg2: memref<4x32x64xbf16, #tpu.memory_space<vmem>>, %arg3: memref<1x64xf32, #tpu.memory_space<vmem>>, %arg4: memref<1x19x64xbf16, #tpu.memory_space<vmem>>) attributes {dimension_semantics = [#tpu.dimension_semantics<parallel>], iteration_bounds = array<i64: 8>, scalar_prefetch = 0 : i64, scratch_operands = 0 : i64, tpu.core_type = #tpu.core_type<tc>, window_params = [{transform_indices = @transform_0, window_bounds = array<i64: 1, 25, 32>}, {pipeline_mode = #tpu.pipeline_mode<synchronous>, transform_indices = @transform_1, window_bounds = array<i64: 4, 32, 64>}, {pipeline_mode = #tpu.pipeline_mode<synchronous>, transform_indices = @transform_2, window_bounds = array<i64: 1, 64>}, {transform_indices = @transform_3, window_bounds = array<i64: 1, 19, 64>}]} {
    %c0 = arith.constant 0 : index
    %c0_0 = arith.constant 0 : index
    %c0_1 = arith.constant 0 : index
    %0 = vector.load %arg1[%c0, %c0_0, %c0_1] : memref<1x25x32xbf16, #tpu.memory_space<vmem>>, vector<1x19x32xbf16>
    %1 = vector.shape_cast %0 : vector<1x19x32xbf16> to vector<19x32xbf16>
    %c0_2 = arith.constant 0 : index
    %c0_3 = arith.constant 0 : index
    %c0_4 = arith.constant 0 : index
    %2 = vector.load %arg2[%c0_2, %c0_3, %c0_4] : memref<4x32x64xbf16, #tpu.memory_space<vmem>>, vector<1x32x64xbf16>
    %3 = vector.shape_cast %2 : vector<1x32x64xbf16> to vector<32x64xbf16>
    %cst = arith.constant dense<0.000000e+00> : vector<19x64xf32>
    %4 = tpu.matmul %1, %3, %cst {dimension_numbers = #tpu.dot_dimension_numbers<[1], [0], [0], [1], [0, 0, 1, 1], [], []>} : vector<19x32xbf16>, vector<32x64xbf16>, vector<19x64xf32> -> vector<19x64xf32>
    %c0_5 = arith.constant 0 : index
    %c1 = arith.constant 1 : index
    %c0_6 = arith.constant 0 : index
    %5 = vector.load %arg1[%c0_5, %c1, %c0_6] : memref<1x25x32xbf16, #tpu.memory_space<vmem>>, vector<1x19x32xbf16>
    %6 = vector.shape_cast %5 : vector<1x19x32xbf16> to vector<19x32xbf16>
    %c1_7 = arith.constant 1 : index
    %c0_8 = arith.constant 0 : index
    %c0_9 = arith.constant 0 : index
    %7 = vector.load %arg2[%c1_7, %c0_8, %c0_9] : memref<4x32x64xbf16, #tpu.memory_space<vmem>>, vector<1x32x64xbf16>
    %8 = vector.shape_cast %7 : vector<1x32x64xbf16> to vector<32x64xbf16>
    %cst_10 = arith.constant dense<0.000000e+00> : vector<19x64xf32>
    %9 = tpu.matmul %6, %8, %cst_10 {dimension_numbers = #tpu.dot_dimension_numbers<[1], [0], [0], [1], [0, 0, 1, 1], [], []>} : vector<19x32xbf16>, vector<32x64xbf16>, vector<19x64xf32> -> vector<19x64xf32>
    %10 = arith.addf %4, %9 : vector<19x64xf32>
    %c0_11 = arith.constant 0 : index
    %c5 = arith.constant 5 : index
    %c0_12 = arith.constant 0 : index
    %11 = vector.load %arg1[%c0_11, %c5, %c0_12] : memref<1x25x32xbf16, #tpu.memory_space<vmem>>, vector<1x19x32xbf16>
    %12 = vector.shape_cast %11 : vector<1x19x32xbf16> to vector<19x32xbf16>
    %c2 = arith.constant 2 : index
    %c0_13 = arith.constant 0 : index
    %c0_14 = arith.constant 0 : index
    %13 = vector.load %arg2[%c2, %c0_13, %c0_14] : memref<4x32x64xbf16, #tpu.memory_space<vmem>>, vector<1x32x64xbf16>
    %14 = vector.shape_cast %13 : vector<1x32x64xbf16> to vector<32x64xbf16>
    %cst_15 = arith.constant dense<0.000000e+00> : vector<19x64xf32>
    %15 = tpu.matmul %12, %14, %cst_15 {dimension_numbers = #tpu.dot_dimension_numbers<[1], [0], [0], [1], [0, 0, 1, 1], [], []>} : vector<19x32xbf16>, vector<32x64xbf16>, vector<19x64xf32> -> vector<19x64xf32>
    %16 = arith.addf %10, %15 : vector<19x64xf32>
    %c0_16 = arith.constant 0 : index
    %c6 = arith.constant 6 : index
    %c0_17 = arith.constant 0 : index
    %17 = vector.load %arg1[%c0_16, %c6, %c0_17] : memref<1x25x32xbf16, #tpu.memory_space<vmem>>, vector<1x19x32xbf16>
    %18 = vector.shape_cast %17 : vector<1x19x32xbf16> to vector<19x32xbf16>
    %c3 = arith.constant 3 : index
    %c0_18 = arith.constant 0 : index
    %c0_19 = arith.constant 0 : index
    %19 = vector.load %arg2[%c3, %c0_18, %c0_19] : memref<4x32x64xbf16, #tpu.memory_space<vmem>>, vector<1x32x64xbf16>
    %20 = vector.shape_cast %19 : vector<1x32x64xbf16> to vector<32x64xbf16>
    %cst_20 = arith.constant dense<0.000000e+00> : vector<19x64xf32>
    %21 = tpu.matmul %18, %20, %cst_20 {dimension_numbers = #tpu.dot_dimension_numbers<[1], [0], [0], [1], [0, 0, 1, 1], [], []>} : vector<19x32xbf16>, vector<32x64xbf16>, vector<19x64xf32> -> vector<19x64xf32>
    %22 = arith.addf %16, %21 : vector<19x64xf32>
    %c0_21 = arith.constant 0 : index
    %c0_22 = arith.constant 0 : index
    %23 = vector.load %arg3[%c0_21, %c0_22] : memref<1x64xf32, #tpu.memory_space<vmem>>, vector<1x64xf32>
    %24 = vector.broadcast %23 : vector<1x64xf32> to vector<19x64xf32>
    %25 = arith.addf %22, %24 : vector<19x64xf32>
    %26 = arith.truncf %25 : vector<19x64xf32> to vector<19x64xbf16>
    %c0_23 = arith.constant 0 : index
    %c0_24 = arith.constant 0 : index
    %c0_25 = arith.constant 0 : index
    %27 = vector.load %arg4[%c0_23, %c0_24, %c0_25] : memref<1x19x64xbf16, #tpu.memory_space<vmem>>, vector<1x19x64xbf16>
    %28 = vector.shape_cast %27 : vector<1x19x64xbf16> to vector<19x64xbf16>
    %29 = vector.shape_cast %26 : vector<19x64xbf16> to vector<1x19x64xbf16>
    tpu.vector_store %arg4[%c0_23, %c0_24, %c0_25], %29 {strides = array<i32>} : memref<1x19x64xbf16, #tpu.memory_space<vmem>>, vector<1x19x64xbf16>,
    return
  }
  func.func @transform_0(%arg0: i32) -> (i32, i32, i32) {
    %c0_i32 = arith.constant 0 : i32
    %c0_i32_0 = arith.constant 0 : i32
    %c0_i32_1 = arith.constant 0 : i32
    return %arg0, %c0_i32, %c0_i32_0 : i32, i32, i32
  }
  func.func @transform_1(%arg0: i32) -> (i32, i32, i32) {
    %c0_i32 = arith.constant 0 : i32
    %c0_i32_0 = arith.constant 0 : i32
    %c0_i32_1 = arith.constant 0 : i32
    %c0_i32_2 = arith.constant 0 : i32
    return %c0_i32, %c0_i32_0, %c0_i32_1 : i32, i32, i32
  }
  func.func @transform_2(%arg0: i32) -> (i32, i32) {
    %c0_i32 = arith.constant 0 : i32
    %c0_i32_0 = arith.constant 0 : i32
    %c0_i32_1 = arith.constant 0 : i32
    return %c0_i32, %c0_i32_0 : i32, i32
  }
  func.func @transform_3(%arg0: i32) -> (i32, i32, i32) {
    %c0_i32 = arith.constant 0 : i32
    %c0_i32_0 = arith.constant 0 : i32
    %c0_i32_1 = arith.constant 0 : i32
    return %arg0, %c0_i32, %c0_i32_0 : i32, i32, i32
  }
}

module attributes {stable_mosaic.version = 11 : i64} {
  func.func @_flat_tapconv_kernel(%arg0: i32, %arg1: memref<1x81x16xbf16, #tpu.memory_space<vmem>>, %arg2: memref<1x81x16xbf16, #tpu.memory_space<vmem>>, %arg3: memref<4x16x32xbf16, #tpu.memory_space<vmem>>, %arg4: memref<1x32xf32, #tpu.memory_space<vmem>>, %arg5: memref<1x71x32xbf16, #tpu.memory_space<vmem>>) attributes {dimension_semantics = [#tpu.dimension_semantics<parallel>], iteration_bounds = array<i64: 8>, scalar_prefetch = 0 : i64, scratch_operands = 0 : i64, tpu.core_type = #tpu.core_type<tc>, window_params = [{transform_indices = @transform_0, window_bounds = array<i64: 1, 81, 16>}, {transform_indices = @transform_1, window_bounds = array<i64: 1, 81, 16>}, {pipeline_mode = #tpu.pipeline_mode<synchronous>, transform_indices = @transform_2, window_bounds = array<i64: 4, 16, 32>}, {pipeline_mode = #tpu.pipeline_mode<synchronous>, transform_indices = @transform_3, window_bounds = array<i64: 1, 32>}, {transform_indices = @transform_4, window_bounds = array<i64: 1, 71, 32>}]} {
    %c0 = arith.constant 0 : index
    %c0_0 = arith.constant 0 : index
    %c0_1 = arith.constant 0 : index
    %0 = vector.load %arg1[%c0, %c0_0, %c0_1] : memref<1x81x16xbf16, #tpu.memory_space<vmem>>, vector<1x81x16xbf16>
    %1 = vector.shape_cast %0 : vector<1x81x16xbf16> to vector<81x16xbf16>
    %c0_2 = arith.constant 0 : index
    %c0_3 = arith.constant 0 : index
    %c0_4 = arith.constant 0 : index
    %2 = vector.load %arg2[%c0_2, %c0_3, %c0_4] : memref<1x81x16xbf16, #tpu.memory_space<vmem>>, vector<1x81x16xbf16>
    %3 = vector.shape_cast %2 : vector<1x81x16xbf16> to vector<81x16xbf16>
    %4 = arith.addf %1, %3 : vector<81x16xbf16>
    %5 = vector.extract_strided_slice %4 {offsets = [0, 0], sizes = [71, 16], strides = [1, 1]} : vector<81x16xbf16> to vector<71x16xbf16>
    %c0_5 = arith.constant 0 : index
    %c0_6 = arith.constant 0 : index
    %c0_7 = arith.constant 0 : index
    %6 = vector.load %arg3[%c0_5, %c0_6, %c0_7] : memref<4x16x32xbf16, #tpu.memory_space<vmem>>, vector<1x16x32xbf16>
    %7 = vector.shape_cast %6 : vector<1x16x32xbf16> to vector<16x32xbf16>
    %cst = arith.constant dense<0.000000e+00> : vector<71x32xf32>
    %8 = tpu.matmul %5, %7, %cst {dimension_numbers = #tpu.dot_dimension_numbers<[1], [0], [0], [1], [0, 0, 1, 1], [], []>} : vector<71x16xbf16>, vector<16x32xbf16>, vector<71x32xf32> -> vector<71x32xf32>
    %9 = vector.extract_strided_slice %4 {offsets = [1, 0], sizes = [71, 16], strides = [1, 1]} : vector<81x16xbf16> to vector<71x16xbf16>
    %c1 = arith.constant 1 : index
    %c0_8 = arith.constant 0 : index
    %c0_9 = arith.constant 0 : index
    %10 = vector.load %arg3[%c1, %c0_8, %c0_9] : memref<4x16x32xbf16, #tpu.memory_space<vmem>>, vector<1x16x32xbf16>
    %11 = vector.shape_cast %10 : vector<1x16x32xbf16> to vector<16x32xbf16>
    %cst_10 = arith.constant dense<0.000000e+00> : vector<71x32xf32>
    %12 = tpu.matmul %9, %11, %cst_10 {dimension_numbers = #tpu.dot_dimension_numbers<[1], [0], [0], [1], [0, 0, 1, 1], [], []>} : vector<71x16xbf16>, vector<16x32xbf16>, vector<71x32xf32> -> vector<71x32xf32>
    %13 = arith.addf %8, %12 : vector<71x32xf32>
    %14 = vector.extract_strided_slice %4 {offsets = [9, 0], sizes = [71, 16], strides = [1, 1]} : vector<81x16xbf16> to vector<71x16xbf16>
    %c2 = arith.constant 2 : index
    %c0_11 = arith.constant 0 : index
    %c0_12 = arith.constant 0 : index
    %15 = vector.load %arg3[%c2, %c0_11, %c0_12] : memref<4x16x32xbf16, #tpu.memory_space<vmem>>, vector<1x16x32xbf16>
    %16 = vector.shape_cast %15 : vector<1x16x32xbf16> to vector<16x32xbf16>
    %cst_13 = arith.constant dense<0.000000e+00> : vector<71x32xf32>
    %17 = tpu.matmul %14, %16, %cst_13 {dimension_numbers = #tpu.dot_dimension_numbers<[1], [0], [0], [1], [0, 0, 1, 1], [], []>} : vector<71x16xbf16>, vector<16x32xbf16>, vector<71x32xf32> -> vector<71x32xf32>
    %18 = arith.addf %13, %17 : vector<71x32xf32>
    %19 = vector.extract_strided_slice %4 {offsets = [10, 0], sizes = [71, 16], strides = [1, 1]} : vector<81x16xbf16> to vector<71x16xbf16>
    %c3 = arith.constant 3 : index
    %c0_14 = arith.constant 0 : index
    %c0_15 = arith.constant 0 : index
    %20 = vector.load %arg3[%c3, %c0_14, %c0_15] : memref<4x16x32xbf16, #tpu.memory_space<vmem>>, vector<1x16x32xbf16>
    %21 = vector.shape_cast %20 : vector<1x16x32xbf16> to vector<16x32xbf16>
    %cst_16 = arith.constant dense<0.000000e+00> : vector<71x32xf32>
    %22 = tpu.matmul %19, %21, %cst_16 {dimension_numbers = #tpu.dot_dimension_numbers<[1], [0], [0], [1], [0, 0, 1, 1], [], []>} : vector<71x16xbf16>, vector<16x32xbf16>, vector<71x32xf32> -> vector<71x32xf32>
    %23 = arith.addf %18, %22 : vector<71x32xf32>
    %c0_17 = arith.constant 0 : index
    %c0_18 = arith.constant 0 : index
    %24 = vector.load %arg4[%c0_17, %c0_18] : memref<1x32xf32, #tpu.memory_space<vmem>>, vector<1x32xf32>
    %25 = vector.broadcast %24 : vector<1x32xf32> to vector<71x32xf32>
    %26 = arith.addf %23, %25 : vector<71x32xf32>
    %27 = arith.truncf %26 : vector<71x32xf32> to vector<71x32xbf16>
    %c0_19 = arith.constant 0 : index
    %c0_20 = arith.constant 0 : index
    %c0_21 = arith.constant 0 : index
    %28 = vector.load %arg5[%c0_19, %c0_20, %c0_21] : memref<1x71x32xbf16, #tpu.memory_space<vmem>>, vector<1x71x32xbf16>
    %29 = vector.shape_cast %28 : vector<1x71x32xbf16> to vector<71x32xbf16>
    %30 = vector.shape_cast %27 : vector<71x32xbf16> to vector<1x71x32xbf16>
    tpu.vector_store %arg5[%c0_19, %c0_20, %c0_21], %30 {strides = array<i32>} : memref<1x71x32xbf16, #tpu.memory_space<vmem>>, vector<1x71x32xbf16>,
    return
  }
  func.func @transform_0(%arg0: i32) -> (i32, i32, i32) {
    %c0_i32 = arith.constant 0 : i32
    %c0_i32_0 = arith.constant 0 : i32
    %c0_i32_1 = arith.constant 0 : i32
    return %arg0, %c0_i32, %c0_i32_0 : i32, i32, i32
  }
  func.func @transform_1(%arg0: i32) -> (i32, i32, i32) {
    %c0_i32 = arith.constant 0 : i32
    %c0_i32_0 = arith.constant 0 : i32
    %c0_i32_1 = arith.constant 0 : i32
    return %arg0, %c0_i32, %c0_i32_0 : i32, i32, i32
  }
  func.func @transform_2(%arg0: i32) -> (i32, i32, i32) {
    %c0_i32 = arith.constant 0 : i32
    %c0_i32_0 = arith.constant 0 : i32
    %c0_i32_1 = arith.constant 0 : i32
    %c0_i32_2 = arith.constant 0 : i32
    return %c0_i32, %c0_i32_0, %c0_i32_1 : i32, i32, i32
  }
  func.func @transform_3(%arg0: i32) -> (i32, i32) {
    %c0_i32 = arith.constant 0 : i32
    %c0_i32_0 = arith.constant 0 : i32
    %c0_i32_1 = arith.constant 0 : i32
    return %c0_i32, %c0_i32_0 : i32, i32
  }
  func.func @transform_4(%arg0: i32) -> (i32, i32, i32) {
    %c0_i32 = arith.constant 0 : i32
    %c0_i32_0 = arith.constant 0 : i32
    %c0_i32_1 = arith.constant 0 : i32
    return %arg0, %c0_i32, %c0_i32_0 : i32, i32, i32
  }
}

module attributes {stable_mosaic.version = 11 : i64} {
  func.func @_cout1_conv_kernel(%arg0: i32, %arg1: memref<1x18x18x8xbf16, #tpu.memory_space<vmem>>, %arg2: memref<1x18x18x8xbf16, #tpu.memory_space<vmem>>, %arg3: memref<9x1x8xf32, #tpu.memory_space<vmem>>, %arg4: memref<1x1xf32, #tpu.memory_space<vmem>>, %arg5: memref<1x16x16xf32, #tpu.memory_space<vmem>>) attributes {dimension_semantics = [#tpu.dimension_semantics<parallel>], iteration_bounds = array<i64: 8>, scalar_prefetch = 0 : i64, scratch_operands = 0 : i64, tpu.core_type = #tpu.core_type<tc>, window_params = [{transform_indices = @transform_0, window_bounds = array<i64: 1, 18, 18, 8>}, {transform_indices = @transform_1, window_bounds = array<i64: 1, 18, 18, 8>}, {pipeline_mode = #tpu.pipeline_mode<synchronous>, transform_indices = @transform_2, window_bounds = array<i64: 9, 1, 8>}, {pipeline_mode = #tpu.pipeline_mode<synchronous>, transform_indices = @transform_3, window_bounds = array<i64: 1, 1>}, {transform_indices = @transform_4, window_bounds = array<i64: 1, 16, 16>}]} {
    %c0 = arith.constant 0 : index
    %c0_0 = arith.constant 0 : index
    %c0_1 = arith.constant 0 : index
    %c0_2 = arith.constant 0 : index
    %0 = vector.load %arg1[%c0, %c0_0, %c0_1, %c0_2] : memref<1x18x18x8xbf16, #tpu.memory_space<vmem>>, vector<1x18x18x8xbf16>
    %1 = vector.shape_cast %0 : vector<1x18x18x8xbf16> to vector<18x18x8xbf16>
    %2 = arith.extf %1 : vector<18x18x8xbf16> to vector<18x18x8xf32>
    %c0_3 = arith.constant 0 : index
    %c0_4 = arith.constant 0 : index
    %c0_5 = arith.constant 0 : index
    %c0_6 = arith.constant 0 : index
    %3 = vector.load %arg2[%c0_3, %c0_4, %c0_5, %c0_6] : memref<1x18x18x8xbf16, #tpu.memory_space<vmem>>, vector<1x18x18x8xbf16>
    %4 = vector.shape_cast %3 : vector<1x18x18x8xbf16> to vector<18x18x8xbf16>
    %5 = arith.extf %4 : vector<18x18x8xbf16> to vector<18x18x8xf32>
    %6 = arith.addf %2, %5 : vector<18x18x8xf32>
    %cst = arith.constant 0.000000e+00 : f32
    %7 = vector.broadcast %cst : f32 to vector<16x16xf32>
    %8 = vector.extract_strided_slice %6 {offsets = [0, 0, 0], sizes = [16, 16, 8], strides = [1, 1, 1]} : vector<18x18x8xf32> to vector<16x16x8xf32>
    %c0_7 = arith.constant 0 : index
    %c0_8 = arith.constant 0 : index
    %c0_9 = arith.constant 0 : index
    %9 = vector.load %arg3[%c0_7, %c0_8, %c0_9] : memref<9x1x8xf32, #tpu.memory_space<vmem>>, vector<1x1x8xf32>
    %10 = vector.shape_cast %9 : vector<1x1x8xf32> to vector<1x8xf32>
    %11 = vector.shape_cast %10 : vector<1x8xf32> to vector<1x1x8xf32>
    %12 = vector.broadcast %11 : vector<1x1x8xf32> to vector<16x16x8xf32>
    %13 = arith.mulf %8, %12 : vector<16x16x8xf32>
    %cst_10 = arith.constant dense<0.000000e+00> : vector<16x16xf32>
    %14 = vector.multi_reduction <add>, %13, %cst_10 [2] : vector<16x16x8xf32> to vector<16x16xf32>
    %15 = arith.addf %7, %14 : vector<16x16xf32>
    %16 = vector.extract_strided_slice %6 {offsets = [0, 1, 0], sizes = [16, 16, 8], strides = [1, 1, 1]} : vector<18x18x8xf32> to vector<16x16x8xf32>
    %c1 = arith.constant 1 : index
    %c0_11 = arith.constant 0 : index
    %c0_12 = arith.constant 0 : index
    %17 = vector.load %arg3[%c1, %c0_11, %c0_12] : memref<9x1x8xf32, #tpu.memory_space<vmem>>, vector<1x1x8xf32>
    %18 = vector.shape_cast %17 : vector<1x1x8xf32> to vector<1x8xf32>
    %19 = vector.shape_cast %18 : vector<1x8xf32> to vector<1x1x8xf32>
    %20 = vector.broadcast %19 : vector<1x1x8xf32> to vector<16x16x8xf32>
    %21 = arith.mulf %16, %20 : vector<16x16x8xf32>
    %cst_13 = arith.constant dense<0.000000e+00> : vector<16x16xf32>
    %22 = vector.multi_reduction <add>, %21, %cst_13 [2] : vector<16x16x8xf32> to vector<16x16xf32>
    %23 = arith.addf %15, %22 : vector<16x16xf32>
    %24 = vector.extract_strided_slice %6 {offsets = [0, 2, 0], sizes = [16, 16, 8], strides = [1, 1, 1]} : vector<18x18x8xf32> to vector<16x16x8xf32>
    %c2 = arith.constant 2 : index
    %c0_14 = arith.constant 0 : index
    %c0_15 = arith.constant 0 : index
    %25 = vector.load %arg3[%c2, %c0_14, %c0_15] : memref<9x1x8xf32, #tpu.memory_space<vmem>>, vector<1x1x8xf32>
    %26 = vector.shape_cast %25 : vector<1x1x8xf32> to vector<1x8xf32>
    %27 = vector.shape_cast %26 : vector<1x8xf32> to vector<1x1x8xf32>
    %28 = vector.broadcast %27 : vector<1x1x8xf32> to vector<16x16x8xf32>
    %29 = arith.mulf %24, %28 : vector<16x16x8xf32>
    %cst_16 = arith.constant dense<0.000000e+00> : vector<16x16xf32>
    %30 = vector.multi_reduction <add>, %29, %cst_16 [2] : vector<16x16x8xf32> to vector<16x16xf32>
    %31 = arith.addf %23, %30 : vector<16x16xf32>
    %32 = vector.extract_strided_slice %6 {offsets = [1, 0, 0], sizes = [16, 16, 8], strides = [1, 1, 1]} : vector<18x18x8xf32> to vector<16x16x8xf32>
    %c3 = arith.constant 3 : index
    %c0_17 = arith.constant 0 : index
    %c0_18 = arith.constant 0 : index
    %33 = vector.load %arg3[%c3, %c0_17, %c0_18] : memref<9x1x8xf32, #tpu.memory_space<vmem>>, vector<1x1x8xf32>
    %34 = vector.shape_cast %33 : vector<1x1x8xf32> to vector<1x8xf32>
    %35 = vector.shape_cast %34 : vector<1x8xf32> to vector<1x1x8xf32>
    %36 = vector.broadcast %35 : vector<1x1x8xf32> to vector<16x16x8xf32>
    %37 = arith.mulf %32, %36 : vector<16x16x8xf32>
    %cst_19 = arith.constant dense<0.000000e+00> : vector<16x16xf32>
    %38 = vector.multi_reduction <add>, %37, %cst_19 [2] : vector<16x16x8xf32> to vector<16x16xf32>
    %39 = arith.addf %31, %38 : vector<16x16xf32>
    %40 = vector.extract_strided_slice %6 {offsets = [1, 1, 0], sizes = [16, 16, 8], strides = [1, 1, 1]} : vector<18x18x8xf32> to vector<16x16x8xf32>
    %c4 = arith.constant 4 : index
    %c0_20 = arith.constant 0 : index
    %c0_21 = arith.constant 0 : index
    %41 = vector.load %arg3[%c4, %c0_20, %c0_21] : memref<9x1x8xf32, #tpu.memory_space<vmem>>, vector<1x1x8xf32>
    %42 = vector.shape_cast %41 : vector<1x1x8xf32> to vector<1x8xf32>
    %43 = vector.shape_cast %42 : vector<1x8xf32> to vector<1x1x8xf32>
    %44 = vector.broadcast %43 : vector<1x1x8xf32> to vector<16x16x8xf32>
    %45 = arith.mulf %40, %44 : vector<16x16x8xf32>
    %cst_22 = arith.constant dense<0.000000e+00> : vector<16x16xf32>
    %46 = vector.multi_reduction <add>, %45, %cst_22 [2] : vector<16x16x8xf32> to vector<16x16xf32>
    %47 = arith.addf %39, %46 : vector<16x16xf32>
    %48 = vector.extract_strided_slice %6 {offsets = [1, 2, 0], sizes = [16, 16, 8], strides = [1, 1, 1]} : vector<18x18x8xf32> to vector<16x16x8xf32>
    %c5 = arith.constant 5 : index
    %c0_23 = arith.constant 0 : index
    %c0_24 = arith.constant 0 : index
    %49 = vector.load %arg3[%c5, %c0_23, %c0_24] : memref<9x1x8xf32, #tpu.memory_space<vmem>>, vector<1x1x8xf32>
    %50 = vector.shape_cast %49 : vector<1x1x8xf32> to vector<1x8xf32>
    %51 = vector.shape_cast %50 : vector<1x8xf32> to vector<1x1x8xf32>
    %52 = vector.broadcast %51 : vector<1x1x8xf32> to vector<16x16x8xf32>
    %53 = arith.mulf %48, %52 : vector<16x16x8xf32>
    %cst_25 = arith.constant dense<0.000000e+00> : vector<16x16xf32>
    %54 = vector.multi_reduction <add>, %53, %cst_25 [2] : vector<16x16x8xf32> to vector<16x16xf32>
    %55 = arith.addf %47, %54 : vector<16x16xf32>
    %56 = vector.extract_strided_slice %6 {offsets = [2, 0, 0], sizes = [16, 16, 8], strides = [1, 1, 1]} : vector<18x18x8xf32> to vector<16x16x8xf32>
    %c6 = arith.constant 6 : index
    %c0_26 = arith.constant 0 : index
    %c0_27 = arith.constant 0 : index
    %57 = vector.load %arg3[%c6, %c0_26, %c0_27] : memref<9x1x8xf32, #tpu.memory_space<vmem>>, vector<1x1x8xf32>
    %58 = vector.shape_cast %57 : vector<1x1x8xf32> to vector<1x8xf32>
    %59 = vector.shape_cast %58 : vector<1x8xf32> to vector<1x1x8xf32>
    %60 = vector.broadcast %59 : vector<1x1x8xf32> to vector<16x16x8xf32>
    %61 = arith.mulf %56, %60 : vector<16x16x8xf32>
    %cst_28 = arith.constant dense<0.000000e+00> : vector<16x16xf32>
    %62 = vector.multi_reduction <add>, %61, %cst_28 [2] : vector<16x16x8xf32> to vector<16x16xf32>
    %63 = arith.addf %55, %62 : vector<16x16xf32>
    %64 = vector.extract_strided_slice %6 {offsets = [2, 1, 0], sizes = [16, 16, 8], strides = [1, 1, 1]} : vector<18x18x8xf32> to vector<16x16x8xf32>
    %c7 = arith.constant 7 : index
    %c0_29 = arith.constant 0 : index
    %c0_30 = arith.constant 0 : index
    %65 = vector.load %arg3[%c7, %c0_29, %c0_30] : memref<9x1x8xf32, #tpu.memory_space<vmem>>, vector<1x1x8xf32>
    %66 = vector.shape_cast %65 : vector<1x1x8xf32> to vector<1x8xf32>
    %67 = vector.shape_cast %66 : vector<1x8xf32> to vector<1x1x8xf32>
    %68 = vector.broadcast %67 : vector<1x1x8xf32> to vector<16x16x8xf32>
    %69 = arith.mulf %64, %68 : vector<16x16x8xf32>
    %cst_31 = arith.constant dense<0.000000e+00> : vector<16x16xf32>
    %70 = vector.multi_reduction <add>, %69, %cst_31 [2] : vector<16x16x8xf32> to vector<16x16xf32>
    %71 = arith.addf %63, %70 : vector<16x16xf32>
    %72 = vector.extract_strided_slice %6 {offsets = [2, 2, 0], sizes = [16, 16, 8], strides = [1, 1, 1]} : vector<18x18x8xf32> to vector<16x16x8xf32>
    %c8 = arith.constant 8 : index
    %c0_32 = arith.constant 0 : index
    %c0_33 = arith.constant 0 : index
    %73 = vector.load %arg3[%c8, %c0_32, %c0_33] : memref<9x1x8xf32, #tpu.memory_space<vmem>>, vector<1x1x8xf32>
    %74 = vector.shape_cast %73 : vector<1x1x8xf32> to vector<1x8xf32>
    %75 = vector.shape_cast %74 : vector<1x8xf32> to vector<1x1x8xf32>
    %76 = vector.broadcast %75 : vector<1x1x8xf32> to vector<16x16x8xf32>
    %77 = arith.mulf %72, %76 : vector<16x16x8xf32>
    %cst_34 = arith.constant dense<0.000000e+00> : vector<16x16xf32>
    %78 = vector.multi_reduction <add>, %77, %cst_34 [2] : vector<16x16x8xf32> to vector<16x16xf32>
    %79 = arith.addf %71, %78 : vector<16x16xf32>
    %c0_35 = arith.constant 0 : index
    %c0_36 = arith.constant 0 : index
    %80 = vector.load %arg4[%c0_35, %c0_36] : memref<1x1xf32, #tpu.memory_space<vmem>>, vector<1x1xf32>
    %81 = vector.broadcast %80 : vector<1x1xf32> to vector<16x16xf32>
    %82 = arith.addf %79, %81 : vector<16x16xf32>
    %c0_37 = arith.constant 0 : index
    %c0_38 = arith.constant 0 : index
    %c0_39 = arith.constant 0 : index
    %83 = vector.load %arg5[%c0_37, %c0_38, %c0_39] : memref<1x16x16xf32, #tpu.memory_space<vmem>>, vector<1x16x16xf32>
    %84 = vector.shape_cast %83 : vector<1x16x16xf32> to vector<16x16xf32>
    %85 = vector.shape_cast %82 : vector<16x16xf32> to vector<1x16x16xf32>
    tpu.vector_store %arg5[%c0_37, %c0_38, %c0_39], %85 {strides = array<i32>} : memref<1x16x16xf32, #tpu.memory_space<vmem>>, vector<1x16x16xf32>,
    return
  }
  func.func @transform_0(%arg0: i32) -> (i32, i32, i32, i32) {
    %c0_i32 = arith.constant 0 : i32
    %c0_i32_0 = arith.constant 0 : i32
    %c0_i32_1 = arith.constant 0 : i32
    %c0_i32_2 = arith.constant 0 : i32
    return %arg0, %c0_i32, %c0_i32_0, %c0_i32_1 : i32, i32, i32, i32
  }
  func.func @transform_1(%arg0: i32) -> (i32, i32, i32, i32) {
    %c0_i32 = arith.constant 0 : i32
    %c0_i32_0 = arith.constant 0 : i32
    %c0_i32_1 = arith.constant 0 : i32
    %c0_i32_2 = arith.constant 0 : i32
    return %arg0, %c0_i32, %c0_i32_0, %c0_i32_1 : i32, i32, i32, i32
  }
  func.func @transform_2(%arg0: i32) -> (i32, i32, i32) {
    %c0_i32 = arith.constant 0 : i32
    %c0_i32_0 = arith.constant 0 : i32
    %c0_i32_1 = arith.constant 0 : i32
    %c0_i32_2 = arith.constant 0 : i32
    return %c0_i32, %c0_i32_0, %c0_i32_1 : i32, i32, i32
  }
  func.func @transform_3(%arg0: i32) -> (i32, i32) {
    %c0_i32 = arith.constant 0 : i32
    %c0_i32_0 = arith.constant 0 : i32
    %c0_i32_1 = arith.constant 0 : i32
    return %c0_i32, %c0_i32_0 : i32, i32
  }
  func.func @transform_4(%arg0: i32) -> (i32, i32, i32) {
    %c0_i32 = arith.constant 0 : i32
    %c0_i32_0 = arith.constant 0 : i32
    %c0_i32_1 = arith.constant 0 : i32
    return %arg0, %c0_i32, %c0_i32_0 : i32, i32, i32
  }
}

</mosaic_0001>

<llo_original>
// kernel: similarity_regnet_forward.6
$region0: #{similarity_regnet_forward.6}
  #allocation0 [shape = 'u32[]', space=smem, size = 0x4, offset = 0x4, fixed_abs, tag = 'smem constant byte address 0x4 - core index']
  #allocation1 [shape = 'u32[144,128]{1,0:T(1,128)}', space=vmem, size = 0x12000, scoped, tag = 'internal scratch']
  %s0 = inlined_call_operand.vmem [shape: bf16[8,324,4], index: 0, kind: input, shape index: {}]
  %s1 = inlined_call_operand.vmem [shape: bf16[9,4,8], index: 1, kind: input, shape index: {}]
  %s2 = inlined_call_operand.vmem [shape: f32[1,8], index: 2, kind: input, shape index: {}]
  %s3 = inlined_call_operand.vmem [shape: bf16[8,286,8], index: 3, kind: output, shape index: {}]
  %s4 = sld [smem:[#allocation0]]
  $region45: #{similarity_regnet_forward.6} parent=0
    _
  %s6 = ssub.s32 1, %s4
  %s7 = scalar_select 0, %s6, %s4
  loop: start=0, step=1, limit=10
  $region2: #{similarity_regnet_forward.6} parent=0 // loop_pre_header
    _
  $region3: #{similarity_regnet_forward.6} parent=0 // loop_header
    %s9 = sphi 0, %s13
    %p10 = scmp.ge.s32.totalorder %s9, 10
    %s19 = sphi 0, %s21
    %s22 = sphi 0, %s19
    %s23 = sphi 0, %s22
    %s39 = sphi 0, %s23
    %s43 = sphi 0, %s43
    %s45 = sphi 0, %s43
    %s46 = sphi 0, %s45
    %s60 = sphi 0, %s46
    %s64 = sphi 0, %s64
    %s66 = sphi 0, %s64
    %s67 = sphi 0, %s66
    %s81 = sphi 0, %s67
    %s87 = sphi 0, %s89
    %s90 = sphi 0, %s87
    %s91 = sphi 0, %s90
    %s107 = sphi 0, %s91
  $region4: #{similarity_regnet_forward.6} parent=0 // loop_header_branch
    %12 = sbr.rel (%p10) target = $region8
  $region5: #{similarity_regnet_forward.6} parent=0 // loop_body
    %s14 = ssub.s32 %s9, 1
    %s15 = ssub.s32 %s9, 2
    %s16 = sadd.s32 %s9, 1
    %s17 = ssub.s32 %s9, %s16
    %p18 = scmp.eq.s32.totalorder %s17, 0
    %s20 = sadd.s32 %s19, 1
    %s21 = scalar_select %p18, %s19, %s20
    %p24 = pneg %p18
    %p25 = scmp.eq.s32.totalorder %s9, 7
    %p26 = por %p24, %p25
    %p27 = scmp.ne.s32.totalorder %s19, %s22
    %p28 = scmp.eq.s32.totalorder %s9, 0
    %p29 = por %p27, %p28
    %p30 = scmp.ne.s32.totalorder %s19, %s22
    %p31 = scmp.eq.s32.totalorder %s14, 7
    %p32 = por %p30, %p31
    %p33 = scmp.ne.s32.totalorder %s22, %s23
    %p34 = scmp.eq.s32.totalorder %s14, 0
    %p35 = por %p33, %p34
    %p36 = scmp.ne.s32.totalorder %s22, %s23
    %p37 = scmp.eq.s32.totalorder %s15, 7
    %p38 = por %p36, %p37
    %p40 = scmp.ne.s32.totalorder %s23, %s39
    %p41 = scmp.eq.s32.totalorder %s15, 0
    %p42 = por %p40, %p41
    %s44 = sadd.s32 %s43, 1
    %p47 = scmp.eq.s32.totalorder %s9, 7
    %p48 = scmp.ne.s32.totalorder %s43, %s45
    %p49 = scmp.eq.s32.totalorder %s9, 0
    %p50 = por %p48, %p49
    %p51 = scmp.ne.s32.totalorder %s43, %s45
    %p52 = scmp.eq.s32.totalorder %s14, 7
    %p53 = por %p51, %p52
    %p54 = scmp.ne.s32.totalorder %s45, %s46
    %p55 = scmp.eq.s32.totalorder %s14, 0
    %p56 = por %p54, %p55
    %p57 = scmp.ne.s32.totalorder %s45, %s46
    %p58 = scmp.eq.s32.totalorder %s15, 7
    %p59 = por %p57, %p58
    %p61 = scmp.ne.s32.totalorder %s46, %s60
    %p62 = scmp.eq.s32.totalorder %s15, 0
    %p63 = por %p61, %p62
    %s65 = sadd.s32 %s64, 1
    %p68 = scmp.eq.s32.totalorder %s9, 7
    %p69 = scmp.ne.s32.totalorder %s64, %s66
    %p70 = scmp.eq.s32.totalorder %s9, 0
    %p71 = por %p69, %p70
    %p72 = scmp.ne.s32.totalorder %s64, %s66
    %p73 = scmp.eq.s32.totalorder %s14, 7
    %p74 = por %p72, %p73
    %p75 = scmp.ne.s32.totalorder %s66, %s67
    %p76 = scmp.eq.s32.totalorder %s14, 0
    %p77 = por %p75, %p76
    %p78 = scmp.ne.s32.totalorder %s66, %s67
    %p79 = scmp.eq.s32.totalorder %s15, 7
    %p80 = por %p78, %p79
    %p82 = scmp.ne.s32.totalorder %s67, %s81
    %p83 = scmp.eq.s32.totalorder %s15, 0
    %p84 = por %p82, %p83
    %s85 = ssub.s32 %s9, %s16
    %p86 = scmp.eq.s32.totalorder %s85, 0
    %s88 = sadd.s32 %s87, 1
    %s89 = scalar_select %p86, %s87, %s88
    %p92 = pneg %p86
    %p93 = scmp.eq.s32.totalorder %s9, 7
    %p94 = por %p92, %p93
    %p95 = scmp.ne.s32.totalorder %s87, %s90
    %p96 = scmp.eq.s32.totalorder %s9, 0
    %p97 = por %p95, %p96
    %p98 = scmp.ne.s32.totalorder %s87, %s90
    %p99 = scmp.eq.s32.totalorder %s14, 7
    %p100 = por %p98, %p99
    %p101 = scmp.ne.s32.totalorder %s90, %s91
    %p102 = scmp.eq.s32.totalorder %s14, 0
    %p103 = por %p101, %p102
    %p104 = scmp.ne.s32.totalorder %s90, %s91
    %p105 = scmp.eq.s32.totalorder %s15, 7
    %p106 = por %p104, %p105
    %p108 = scmp.ne.s32.totalorder %s91, %s107
    %p109 = scmp.eq.s32.totalorder %s15, 0
    %p110 = por %p108, %p109
    %p111 = scmp.le.s32.totalorder 1, %s9
    %p112 = scmp.lt.s32.totalorder %s9, 9
    %p113 = pnand %p111, %p112
    %p114 = pneg %p113
    // Predicated region
    $region9: #{similarity_regnet_forward.6} parent=5 // pred_check
      _
    $region10: #{similarity_regnet_forward.6} parent=5 // pred_check_branch
      %116 = sbr.rel (%p113) target = $region12
    $region11: #{similarity_regnet_forward.6} parent=5 // pred_region
      %s117 = ssub.s32 %s9, 1
      // Predicated region
      $region13: #{similarity_regnet_forward.6} parent=11 // pred_check
        %p118 = pneg %p56
      $region14: #{similarity_regnet_forward.6} parent=11 // pred_check_branch
        %120 = sbr.rel (%p118) target = $region16
      $region15: #{similarity_regnet_forward.6} parent=11 // pred_region
        _
      $region16: #{similarity_regnet_forward.6} parent=11 // pred_fallthru
        _
      // Predicated region
      $region17: #{similarity_regnet_forward.6} parent=11 // pred_check
        %p121 = pneg %p77
      $region18: #{similarity_regnet_forward.6} parent=11 // pred_check_branch
        %123 = sbr.rel (%p121) target = $region20
      $region19: #{similarity_regnet_forward.6} parent=11 // pred_region
        _
      $region20: #{similarity_regnet_forward.6} parent=11 // pred_fallthru
        _
    $region12: #{similarity_regnet_forward.6} parent=5 // pred_fallthru
      _
    %p124 = scmp.lt.s32.totalorder %s9, 8
    // Predicated region
    $region21: #{similarity_regnet_forward.6} parent=5 // pred_check
      %p125 = pneg %p124
    $region22: #{similarity_regnet_forward.6} parent=5 // pred_check_branch
      %127 = sbr.rel (%p125) target = $region24
    $region23: #{similarity_regnet_forward.6} parent=5 // pred_region
      // Predicated region
      $region25: #{similarity_regnet_forward.6} parent=23 // pred_check
        %p128 = pneg %p29
      $region26: #{similarity_regnet_forward.6} parent=23 // pred_check_branch
        %130 = sbr.rel (%p128) target = $region28
      $region27: #{similarity_regnet_forward.6} parent=23 // pred_region
        %p131 = scmp.lt.s32.totalorder %s9, 7
        %s132 = scalar_select %p131, %s9, 7
        %s133 = smul.addr %s132, 41
        %s134 = smul.addr %s133, 4
        %s135 = scalar_lea.vmem %s0, %s134
      $region28: #{similarity_regnet_forward.6} parent=23 // pred_fallthru
        _
    $region24: #{similarity_regnet_forward.6} parent=5 // pred_fallthru
      _
    %p136 = scmp.le.s32.totalorder 1, %s9
    %p137 = scmp.lt.s32.totalorder %s9, 9
    %p138 = pnand %p136, %p137
    %p139 = pneg %p138
    // Predicated region
    $region29: #{similarity_regnet_forward.6} parent=5 // pred_check
      _
    $region30: #{similarity_regnet_forward.6} parent=5 // pred_check_branch
      %141 = sbr.rel (%p138) target = $region32
    $region31: #{similarity_regnet_forward.6} parent=5 // pred_region
      %s142 = ssub.s32 %s9, 1
      %p143 = scmp.lt.s32.totalorder %s14, 7
      %s144 = scalar_select %p143, %s14, 7
      %s145 = smul.addr %s144, 41
      %s146 = smul.addr %s145, 4
      %s147 = scalar_lea.vmem %s0, %s146
      %p148 = pneg %p35
      %p149 = pneg %p32
      %p150 = pneg %p56
      %p151 = pneg %p53
      %p152 = pneg %p77
      %p153 = pneg %p74
      %p154 = pneg %p103
      %p155 = pneg %p100
      %p156 = scmp.lt.s32.totalorder %s14, 7
      %s157 = scalar_select %p156, %s14, 7
      %s158 = smul.addr %s157, 36
      %s159 = smul.addr %s158, 4
      %s160 = scalar_lea.vmem %s3, %s159
      %p161 = scmp.lt.s32.totalorder %s14, 7
      %s162 = scalar_select %p161, %s14, 7
      %s163 = smul.addr %s162, 41
      %s164 = smul.addr %s163, 4
      %s165 = scalar_lea.vmem %s0, %s164
      %p166 = scmp.lt.s32.totalorder %s14, 7
      %s167 = scalar_select %p166, %s14, 7
      %s168 = smul.addr %s167, 36
      %s169 = smul.addr %s168, 4
      %s170 = scalar_lea.vmem %s3, %s169
      %v172 = vld [vmem:[%s165] sm:$0xf]
      %v173 = vld [vmem:[%s165 + $0x4] sm:$0xf]
      %v174 = vld [vmem:[%s165 + $0x8] sm:$0xf]
      %v175 = vld [vmem:[%s165 + $0xc] sm:$0xf]
      %v176 = vld [vmem:[%s165 + $0x10] sm:$0xf]
      %v177 = vld [vmem:[%s165 + $0x14] sm:$0xf]
      %v178 = vld [vmem:[%s165 + $0x18] sm:$0xf]
      %v179 = vld [vmem:[%s165 + $0x1c] sm:$0xf]
      %v180 = vld [vmem:[%s165 + $0x20] sm:$0xf]
      %v181 = vld [vmem:[%s165 + $0x24] sm:$0xf]
      %v182 = vld [vmem:[%s165 + $0x28] sm:$0xf]
      %v183 = vld [vmem:[%s165 + $0x2c] sm:$0xf]
      %v184 = vld [vmem:[%s165 + $0x30] sm:$0xf]
      %v185 = vld [vmem:[%s165 + $0x34] sm:$0xf]
      %v186 = vld [vmem:[%s165 + $0x38] sm:$0xf]
      %v187 = vld [vmem:[%s165 + $0x3c] sm:$0xf]
      %v188 = vld [vmem:[%s165 + $0x40] sm:$0xf]
      %v189 = vld [vmem:[%s165 + $0x44] sm:$0xf]
      %v190 = vld [vmem:[%s165 + $0x48] sm:$0xf]
      %v191 = vld [vmem:[%s165 + $0x4c] sm:$0xf]
      %v192 = vld [vmem:[%s165 + $0x50] sm:$0xf]
      %v193 = vld [vmem:[%s165 + $0x54] sm:$0xf]
      %v194 = vld [vmem:[%s165 + $0x58] sm:$0xf]
      %v195 = vld [vmem:[%s165 + $0x5c] sm:$0xf]
      %v196 = vld [vmem:[%s165 + $0x60] sm:$0xf]
      %v197 = vld [vmem:[%s165 + $0x64] sm:$0xf]
      %v198 = vld [vmem:[%s165 + $0x68] sm:$0xf]
      %v199 = vld [vmem:[%s165 + $0x6c] sm:$0xf]
      %v200 = vld [vmem:[%s165 + $0x70] sm:$0xf]
      %v201 = vld [vmem:[%s165 + $0x74] sm:$0xf]
      %v202 = vld [vmem:[%s165 + $0x78] sm:$0xf]
      %v203 = vld [vmem:[%s165 + $0x7c] sm:$0xf]
      %v204 = vld [vmem:[%s165 + $0x80] sm:$0xf]
      %v205 = vld [vmem:[%s165 + $0x84] sm:$0xf]
      %v206 = vld [vmem:[%s165 + $0x88] sm:$0xf]
      %v207 = vld [vmem:[%s165 + $0x8c] sm:$0x7]
      %v208 = vld [vmem:[%s1] sm:$0x3]
      %v209 = vld [vmem:[%s165 + $0x8c] sm:$0xf]
      %s210 = scalar_lea.vmem %s1, 2
      %v211 = vld [vmem:[%s210] sm:$0x3]
      %v248 = vunpack.c.l.b16 %v172
      %v249 = vunpack.c.l.b16 %v173
      %v250 = vunpack.c.l.b16 %v174
      %v251 = vunpack.c.l.b16 %v175
      %v252 = vunpack.c.l.b16 %v176
      %v253 = vunpack.c.l.b16 %v177
      %v254 = vunpack.c.l.b16 %v178
      %v255 = vunpack.c.l.b16 %v179
      %v256 = vunpack.c.l.b16 %v180
      %v257 = vunpack.c.l.b16 %v181
      %v258 = vunpack.c.l.b16 %v182
      %v259 = vunpack.c.l.b16 %v183
      %v260 = vunpack.c.l.b16 %v184
      %v261 = vunpack.c.l.b16 %v185
      %v262 = vunpack.c.l.b16 %v186
      %v263 = vunpack.c.l.b16 %v187
      %v264 = vunpack.c.l.b16 %v188
      %v265 = vunpack.c.l.b16 %v189
      %v266 = vunpack.c.l.b16 %v190
      %v267 = vunpack.c.l.b16 %v191
      %v268 = vunpack.c.l.b16 %v192
      %v269 = vunpack.c.l.b16 %v193
      %v270 = vunpack.c.l.b16 %v194
      %v271 = vunpack.c.l.b16 %v195
      %v272 = vunpack.c.l.b16 %v196
      %v273 = vunpack.c.l.b16 %v197
      %v274 = vunpack.c.l.b16 %v198
      %v275 = vunpack.c.l.b16 %v199
      %v276 = vunpack.c.l.b16 %v200
      %v277 = vunpack.c.l.b16 %v201
      %v278 = vunpack.c.l.b16 %v202
      %v279 = vunpack.c.l.b16 %v203
      %v280 = vunpack.c.l.b16 %v204
      %v281 = vunpack.c.l.b16 %v205
      %v282 = vunpack.c.l.b16 %v206
      %v283 = vunpack.c.l.b16 %v209
      %v284 = vpack.c.b16 %v249, %v248
      %v285 = vpack.c.b16 %v251, %v250
      %v286 = vpack.c.b16 %v253, %v252
      %v287 = vpack.c.b16 %v255, %v254
      %v288 = vpack.c.b16 %v257, %v256
      %v289 = vpack.c.b16 %v259, %v258
      %v290 = vpack.c.b16 %v261, %v260
      %v291 = vpack.c.b16 %v263, %v262
      %v292 = vpack.c.b16 %v265, %v264
      %v293 = vpack.c.b16 %v267, %v266
      %v294 = vpack.c.b16 %v269, %v268
      %v295 = vpack.c.b16 %v271, %v270
      %v296 = vpack.c.b16 %v273, %v272
      %v297 = vpack.c.b16 %v275, %v274
      %v298 = vpack.c.b16 %v277, %v276
      %v299 = vpack.c.b16 %v279, %v278
      %v300 = vpack.c.b16 %v281, %v280
      %v301 = vpack.c.b16 %v283, %v282
      %vm302 = vsmask.f32 7424
      %v304 = vshrl.u32 %v284, 16
      %v306 = vshll.u32 %v284, 16
      %v308 = vrot.slane %v306, 1
      %v309 = vor.u32 %v304, %v308
      %v311 = vshll.u32 %v285, 16
      %v313 = vrot.slane %v311, 1
      %v314 = vsel %vm302, %v309, %v313
      %v315 = vshrl.u32 %v285, 16
      %v317 = vor.u32 %v315, %v313
      %v319 = vshll.u32 %v286, 16
      %v321 = vrot.slane %v319, 1
      %v322 = vsel %vm302, %v317, %v321
      %v323 = vshrl.u32 %v286, 16
      %v325 = vor.u32 %v323, %v321
      %v327 = vshll.u32 %v287, 16
      %v329 = vrot.slane %v327, 1
      %v330 = vsel %vm302, %v325, %v329
      %v331 = vshrl.u32 %v287, 16
      %v333 = vor.u32 %v331, %v329
      %v335 = vshll.u32 %v288, 16
      %v337 = vrot.slane %v335, 1
      %v338 = vsel %vm302, %v333, %v337
      %v339 = vshrl.u32 %v288, 16
      %v341 = vor.u32 %v339, %v337
      %v343 = vshll.u32 %v289, 16
      %v345 = vrot.slane %v343, 1
      %v346 = vsel %vm302, %v341, %v345
      %v347 = vshrl.u32 %v289, 16
      %v349 = vor.u32 %v347, %v345
      %v351 = vshll.u32 %v290, 16
      %v353 = vrot.slane %v351, 1
      %v354 = vsel %vm302, %v349, %v353
      %v355 = vshrl.u32 %v290, 16
      %v357 = vor.u32 %v355, %v353
      %v359 = vshll.u32 %v291, 16
      %v361 = vrot.slane %v359, 1
      %v362 = vsel %vm302, %v357, %v361
      %v363 = vshrl.u32 %v291, 16
      %v365 = vor.u32 %v363, %v361
      %v367 = vshll.u32 %v292, 16
      %v369 = vrot.slane %v367, 1
      %v370 = vsel %vm302, %v365, %v369
      %v371 = vshrl.u32 %v292, 16
      %v373 = vor.u32 %v371, %v369
      %v375 = vshll.u32 %v293, 16
      %v377 = vrot.slane %v375, 1
      %v378 = vsel %vm302, %v373, %v377
      %v379 = vshrl.u32 %v293, 16
      %v381 = vor.u32 %v379, %v377
      %v383 = vshll.u32 %v294, 16
      %v385 = vrot.slane %v383, 1
      %v386 = vsel %vm302, %v381, %v385
      %v387 = vshrl.u32 %v294, 16
      %v389 = vor.u32 %v387, %v385
      %v391 = vshll.u32 %v295, 16
      %v393 = vrot.slane %v391, 1
      %v394 = vsel %vm302, %v389, %v393
      %v395 = vshrl.u32 %v295, 16
      %v397 = vor.u32 %v395, %v393
      %v399 = vshll.u32 %v296, 16
      %v401 = vrot.slane %v399, 1
      %v402 = vsel %vm302, %v397, %v401
      %v403 = vshrl.u32 %v296, 16
      %v405 = vor.u32 %v403, %v401
      %v407 = vshll.u32 %v297, 16
      %v409 = vrot.slane %v407, 1
      %v410 = vsel %vm302, %v405, %v409
      %v411 = vshrl.u32 %v297, 16
      %v413 = vor.u32 %v411, %v409
      %v415 = vshll.u32 %v298, 16
      %v417 = vrot.slane %v415, 1
      %v418 = vsel %vm302, %v413, %v417
      %v419 = vshrl.u32 %v298, 16
      %v421 = vor.u32 %v419, %v417
      %v423 = vshll.u32 %v299, 16
      %v425 = vrot.slane %v423, 1
      %v426 = vsel %vm302, %v421, %v425
      %v427 = vshrl.u32 %v299, 16
      %v429 = vor.u32 %v427, %v425
      %v431 = vshll.u32 %v300, 16
      %v433 = vrot.slane %v431, 1
      %v434 = vsel %vm302, %v429, %v433
      %v435 = vshrl.u32 %v300, 16
      %v437 = vor.u32 %v435, %v433
      %v439 = vshll.u32 %v301, 16
      %v441 = vrot.slane %v439, 1
      %v442 = vsel %vm302, %v437, %v441
      %v443 = vshrl.u32 %v301, 16
      %v445 = vor.u32 %v443, %v441
      %vm446 = vcmask 31744
      %v448 = vsel %vm446, %v314, 0
      %v451 = vsel %vm446, %v322, 0
      %v454 = vsel %vm446, %v330, 0
      %v457 = vsel %vm446, %v338, 0
      %v460 = vsel %vm446, %v346, 0
      %v463 = vsel %vm446, %v354, 0
      %v466 = vsel %vm446, %v362, 0
      %v469 = vsel %vm446, %v370, 0
      %v472 = vsel %vm446, %v378, 0
      %v475 = vsel %vm446, %v386, 0
      %v478 = vsel %vm446, %v394, 0
      %v481 = vsel %vm446, %v402, 0
      %v484 = vsel %vm446, %v410, 0
      %v487 = vsel %vm446, %v418, 0
      %v490 = vsel %vm446, %v426, 0
      %v493 = vsel %vm446, %v434, 0
      %v496 = vsel %vm446, %v442, 0
      %v499 = vsel %vm446, %v445, 0
      %vm501 = vcmask 1041408
      %v503 = vsel %vm501, %v211, 0
      %505 = vmatprep.subr.bf16.mxu0 0
      %506 = vmatpush1.bf16.msra.mxu0 %v503
      %507 = vmatprep.subr.bf16.mxu0 0
      %508 = vmatpush1.bf16.msra.mxu0 0
      %509 = vmatprep.subr.bf16.mxu0 0
      %510 = vmatpush1.bf16.msra.mxu0 0
      %511 = vmatprep.subr.bf16.mxu0 0
      %512 = vmatpush1.bf16.msra.mxu0 0
      %513 = vmatprep.subr.bf16.mxu0 0
      %514 = vmatpush1.bf16.msra.mxu0 0
      %515 = vmatprep.subr.bf16.mxu0 0
      %516 = vmatpush1.bf16.msra.mxu0 0
      %517 = vmatprep.subr.bf16.mxu0 0
      %518 = vmatpush1.bf16.msra.mxu0 0
      %519 = vmatprep.subr.bf16.mxu0 0
      %520 = vmatpush1.bf16.msra.mxu0 0
      %521 = vmatprep.subr.bf16.mxu0 0
      %522 = vmatpush1.bf16.msra.mxu0 0
      %523 = vmatprep.subr.bf16.mxu0 0
      %524 = vmatpush1.bf16.msra.mxu0 0
      %525 = vmatprep.subr.bf16.mxu0 0
      %526 = vmatpush1.bf16.msra.mxu0 0
      %527 = vmatprep.subr.bf16.mxu0 0
      %528 = vmatpush1.bf16.msra.mxu0 0
      %529 = vmatprep.subr.bf16.mxu0 0
      %530 = vmatpush1.bf16.msra.mxu0 0
      %531 = vmatprep.subr.bf16.mxu0 0
      %532 = vmatpush1.bf16.msra.mxu0 0
      %533 = vmatprep.subr.bf16.mxu0 0
      %534 = vmatpush1.bf16.msra.mxu0 0
      %535 = vmatprep.subr.bf16.mxu0 0
      %536 = vmatpush1.bf16.msra.mxu0 0
      %537 = vmatprep.mubr.bf16.mxu0 0
      %538 = vmatmul.mubr.bf16.gmra.mrb[0].mxu0 %v448
      %v539 = vpop.f32.mrb[0].mxu0
      %v540 = vadd.f32 0.0, %v539
      %v541 = vpop.f32.mrb[0].mxu0
      %v542 = vpop.f32.mrb[0].mxu0
      %v543 = vadd.f32 0.0, %v542
      %v544 = vpop.f32.mrb[0].mxu0
      %545 = vmatprep.mubr.bf16.mxu0 0
      %546 = vmatmul.mubr.bf16.gmra.mrb[0].mxu0 %v451
      %v547 = vpop.f32.mrb[0].mxu0
      %v548 = vadd.f32 0.0, %v547
      %v549 = vpop.f32.mrb[0].mxu0
      %v550 = vpop.f32.mrb[0].mxu0
      %v551 = vadd.f32 0.0, %v550
      %v552 = vpop.f32.mrb[0].mxu0
      %553 = vmatprep.mubr.bf16.mxu0 0
      %554 = vmatmul.mubr.bf16.gmra.mrb[0].mxu0 %v454
      %v555 = vpop.f32.mrb[0].mxu0
      %v556 = vadd.f32 0.0, %v555
      %v557 = vpop.f32.mrb[0].mxu0
      %v558 = vpop.f32.mrb[0].mxu0
      %v559 = vadd.f32 0.0, %v558
      %v560 = vpop.f32.mrb[0].mxu0
      %561 = vmatprep.mubr.bf16.mxu0 0
      %562 = vmatmul.mubr.bf16.gmra.mrb[0].mxu0 %v457
      %v563 = vpop.f32.mrb[0].mxu0
      %v564 = vadd.f32 0.0, %v563
      %v565 = vpop.f32.mrb[0].mxu0
      %v566 = vpop.f32.mrb[0].mxu0
      %v567 = vadd.f32 0.0, %v566
      %v568 = vpop.f32.mrb[0].mxu0
      %569 = vmatprep.mubr.bf16.mxu0 0
      %570 = vmatmul.mubr.bf16.gmra.mrb[0].mxu0 %v460
      %v571 = vpop.f32.mrb[0].mxu0
      %v572 = vadd.f32 0.0, %v571
      %v573 = vpop.f32.mrb[0].mxu0
      %v574 = vpop.f32.mrb[0].mxu0
      %v575 = vadd.f32 0.0, %v574
      %v576 = vpop.f32.mrb[0].mxu0
      %577 = vmatprep.mubr.bf16.mxu0 0
      %578 = vmatmul.mubr.bf16.gmra.mrb[0].mxu0 %v463
      %v579 = vpop.f32.mrb[0].mxu0
      %v580 = vadd.f32 0.0, %v579
      %v581 = vpop.f32.mrb[0].mxu0
      %v582 = vpop.f32.mrb[0].mxu0
      %v583 = vadd.f32 0.0, %v582
      %v584 = vpop.f32.mrb[0].mxu0
      %585 = vmatprep.mubr.bf16.mxu0 0
      %586 = vmatmul.mubr.bf16.gmra.mrb[0].mxu0 %v466
      %v587 = vpop.f32.mrb[0].mxu0
      %v588 = vadd.f32 0.0, %v587
      %v589 = vpop.f32.mrb[0].mxu0
      %v590 = vpop.f32.mrb[0].mxu0
      %v591 = vadd.f32 0.0, %v590
      %v592 = vpop.f32.mrb[0].mxu0
      %593 = vmatprep.mubr.bf16.mxu0 0
      %594 = vmatmul.mubr.bf16.gmra.mrb[0].mxu0 %v469
      %v595 = vpop.f32.mrb[0].mxu0
      %v596 = vadd.f32 0.0, %v595
      %v597 = vpop.f32.mrb[0].mxu0
      %v598 = vpop.f32.mrb[0].mxu0
      %v599 = vadd.f32 0.0, %v598
      %v600 = vpop.f32.mrb[0].mxu0
      %601 = vmatprep.mubr.bf16.mxu0 0
      %602 = vmatmul.mubr.bf16.gmra.mrb[0].mxu0 %v472
      %v603 = vpop.f32.mrb[0].mxu0
      %v604 = vadd.f32 0.0, %v603
      %v605 = vpop.f32.mrb[0].mxu0
      %v606 = vpop.f32.mrb[0].mxu0
      %v607 = vadd.f32 0.0, %v606
      %v608 = vpop.f32.mrb[0].mxu0
      %609 = vmatprep.mubr.bf16.mxu0 0
      %610 = vmatmul.mubr.bf16.gmra.mrb[0].mxu0 %v475
      %v611 = vpop.f32.mrb[0].mxu0
      %v612 = vadd.f32 0.0, %v611
      %v613 = vpop.f32.mrb[0].mxu0
      %v614 = vpop.f32.mrb[0].mxu0
      %v615 = vadd.f32 0.0, %v614
      %v616 = vpop.f32.mrb[0].mxu0
      %617 = vmatprep.mubr.bf16.mxu0 0
      %618 = vmatmul.mubr.bf16.gmra.mrb[0].mxu0 %v478
      %v619 = vpop.f32.mrb[0].mxu0
      %v620 = vadd.f32 0.0, %v619
      %v621 = vpop.f32.mrb[0].mxu0
      %v622 = vpop.f32.mrb[0].mxu0
      %v623 = vadd.f32 0.0, %v622
      %v624 = vpop.f32.mrb[0].mxu0
      %625 = vmatprep.mubr.bf16.mxu0 0
      %626 = vmatmul.mubr.bf16.gmra.mrb[0].mxu0 %v481
      %v627 = vpop.f32.mrb[0].mxu0
      %v628 = vadd.f32 0.0, %v627
      %v629 = vpop.f32.mrb[0].mxu0
      %v630 = vpop.f32.mrb[0].mxu0
      %v631 = vadd.f32 0.0, %v630
      %v632 = vpop.f32.mrb[0].mxu0
      %633 = vmatprep.mubr.bf16.mxu0 0
      %634 = vmatmul.mubr.bf16.gmra.mrb[0].mxu0 %v484
      %v635 = vpop.f32.mrb[0].mxu0
      %v636 = vadd.f32 0.0, %v635
      %v637 = vpop.f32.mrb[0].mxu0
      %v638 = vpop.f32.mrb[0].mxu0
      %v639 = vadd.f32 0.0, %v638
      %v640 = vpop.f32.mrb[0].mxu0
      %641 = vmatprep.mubr.bf16.mxu0 0
      %642 = vmatmul.mubr.bf16.gmra.mrb[0].mxu0 %v487
      %v643 = vpop.f32.mrb[0].mxu0
      %v644 = vadd.f32 0.0, %v643
      %v645 = vpop.f32.mrb[0].mxu0
      %v646 = vpop.f32.mrb[0].mxu0
      %v647 = vadd.f32 0.0, %v646
      %v648 = vpop.f32.mrb[0].mxu0
      %649 = vmatprep.mubr.bf16.mxu0 0
      %650 = vmatmul.mubr.bf16.gmra.mrb[0].mxu0 %v490
      %v651 = vpop.f32.mrb[0].mxu0
      %v652 = vadd.f32 0.0, %v651
      %v653 = vpop.f32.mrb[0].mxu0
      %v654 = vpop.f32.mrb[0].mxu0
      %v655 = vadd.f32 0.0, %v654
      %v656 = vpop.f32.mrb[0].mxu0
      %657 = vmatprep.mubr.bf16.mxu0 0
      %658 = vmatmul.mubr.bf16.gmra.mrb[0].mxu0 %v493
      %v659 = vpop.f32.mrb[0].mxu0
      %v660 = vadd.f32 0.0, %v659
      %v661 = vpop.f32.mrb[0].mxu0
      %v662 = vpop.f32.mrb[0].mxu0
      %v663 = vadd.f32 0.0, %v662
      %v664 = vpop.f32.mrb[0].mxu0
      %665 = vmatprep.mubr.bf16.mxu0 0
      %666 = vmatmul.mubr.bf16.gmra.mrb[0].mxu0 %v496
      %v667 = vpop.f32.mrb[0].mxu0
      %v668 = vadd.f32 0.0, %v667
      %v669 = vpop.f32.mrb[0].mxu0
      %v670 = vpop.f32.mrb[0].mxu0
      %v671 = vadd.f32 0.0, %v670
      %v672 = vpop.f32.mrb[0].mxu0
      %673 = vmatprep.mubr.bf16.mxu0 0
      %674 = vmatmul.mubr.bf16.gmra.mrb[0].mxu0 %v499
      %v675 = vpop.f32.mrb[0].mxu0
      %v676 = vadd.f32 0.0, %v675
      %v677 = vpop.f32.mrb[0].mxu0
      %v678 = vpop.f32.mrb[0].mxu0
      %v679 = vadd.f32 0.0, %v678
      %v680 = vpop.f32.mrb[0].mxu0
      %681 = vdwg.mxu0
      %v683 = vunpack.c.l.b16 %v207
      %v684 = vpack.c.b16 %v683, %v282
      %v685 = vsel %vm446, %v284, 0
      %v687 = vsel %vm446, %v285, 0
      %v689 = vsel %vm446, %v286, 0
      %v691 = vsel %vm446, %v287, 0
      %v693 = vsel %vm446, %v288, 0
      %v695 = vsel %vm446, %v289, 0
      %v697 = vsel %vm446, %v290, 0
      %v699 = vsel %vm446, %v291, 0
      %v701 = vsel %vm446, %v292, 0
      %v703 = vsel %vm446, %v293, 0
      %v705 = vsel %vm446, %v294, 0
      %v707 = vsel %vm446, %v295, 0
      %v709 = vsel %vm446, %v296, 0
      %v711 = vsel %vm446, %v297, 0
      %v713 = vsel %vm446, %v298, 0
      %v715 = vsel %vm446, %v299, 0
      %v717 = vsel %vm446, %v300, 0
      %v720 = vsel %vm446, %v684, 0
      %v723 = vsel %vm501, %v208, 0
      %725 = vmatprep.subr.bf16.mxu0 0
      %726 = vmatpush1.bf16.msra.mxu0 %v723
      %727 = vmatprep.subr.bf16.mxu0 0
      %728 = vmatpush1.bf16.msra.mxu0 0
      %729 = vmatprep.subr.bf16.mxu0 0
      %730 = vmatpush1.bf16.msra.mxu0 0
      %731 = vmatprep.subr.bf16.mxu0 0
      %732 = vmatpush1.bf16.msra.mxu0 0
      %733 = vmatprep.subr.bf16.mxu0 0
      %734 = vmatpush1.bf16.msra.mxu0 0
      %735 = vmatprep.subr.bf16.mxu0 0
      %736 = vmatpush1.bf16.msra.mxu0 0
      %737 = vmatprep.subr.bf16.mxu0 0
      %738 = vmatpush1.bf16.msra.mxu0 0
      %739 = vmatprep.subr.bf16.mxu0 0
      %740 = vmatpush1.bf16.msra.mxu0 0
      %741 = vmatprep.subr.bf16.mxu0 0
      %742 = vmatpush1.bf16.msra.mxu0 0
      %743 = vmatprep.subr.bf16.mxu0 0
      %744 = vmatpush1.bf16.msra.mxu0 0
      %745 = vmatprep.subr.bf16.mxu0 0
      %746 = vmatpush1.bf16.msra.mxu0 0
      %747 = vmatprep.subr.bf16.mxu0 0
      %748 = vmatpush1.bf16.msra.mxu0 0
      %749 = vmatprep.subr.bf16.mxu0 0
      %750 = vmatpush1.bf16.msra.mxu0 0
      %751 = vmatprep.subr.bf16.mxu0 0
      %752 = vmatpush1.bf16.msra.mxu0 0
      %753 = vmatprep.subr.bf16.mxu0 0
      %754 = vmatpush1.bf16.msra.mxu0 0
      %755 = vmatprep.subr.bf16.mxu0 0
      %756 = vmatpush1.bf16.msra.mxu0 0
      %757 = vmatprep.mubr.bf16.mxu0 0
      %758 = vmatmul.mubr.bf16.gmra.mrb[0].mxu0 %v685
      %v759 = vpop.f32.mrb[0].mxu0
      %v760 = vadd.f32 %v540, %v759
      %v761 = vpop.f32.mrb[0].mxu0
      %v762 = vpop.f32.mrb[0].mxu0
      %v763 = vadd.f32 %v543, %v762
      %v764 = vpop.f32.mrb[0].mxu0
      %765 = vmatprep.mubr.bf16.mxu0 0
      %766 = vmatmul.mubr.bf16.gmra.mrb[0].mxu0 %v687
      %v767 = vpop.f32.mrb[0].mxu0
      %v768 = vadd.f32 %v548, %v767
      %v769 = vpop.f32.mrb[0].mxu0
      %v770 = vpop.f32.mrb[0].mxu0
      %v771 = vadd.f32 %v551, %v770
      %v772 = vpop.f32.mrb[0].mxu0
      %773 = vmatprep.mubr.bf16.mxu0 0
      %774 = vmatmul.mubr.bf16.gmra.mrb[0].mxu0 %v689
      %v775 = vpop.f32.mrb[0].mxu0
      %v776 = vadd.f32 %v556, %v775
      %v777 = vpop.f32.mrb[0].mxu0
      %v778 = vpop.f32.mrb[0].mxu0
      %v779 = vadd.f32 %v559, %v778
      %v780 = vpop.f32.mrb[0].mxu0
      %781 = vmatprep.mubr.bf16.mxu0 0
      %782 = vmatmul.mubr.bf16.gmra.mrb[0].mxu0 %v691
      %v783 = vpop.f32.mrb[0].mxu0
      %v784 = vadd.f32 %v564, %v783
      %v785 = vpop.f32.mrb[0].mxu0
      %v786 = vpop.f32.mrb[0].mxu0
      %v787 = vadd.f32 %v567, %v786
      %v788 = vpop.f32.mrb[0].mxu0
      %789 = vmatprep.mubr.bf16.mxu0 0
      %790 = vmatmul.mubr.bf16.gmra.mrb[0].mxu0 %v693
      %v791 = vpop.f32.mrb[0].mxu0
      %v792 = vadd.f32 %v572, %v791
      %v793 = vpop.f32.mrb[0].mxu0
      %v794 = vpop.f32.mrb[0].mxu0
      %v795 = vadd.f32 %v575, %v794
      %v796 = vpop.f32.mrb[0].mxu0
      %797 = vmatprep.mubr.bf16.mxu0 0
      %798 = vmatmul.mubr.bf16.gmra.mrb[0].mxu0 %v695
      %v799 = vpop.f32.mrb[0].mxu0
      %v800 = vadd.f32 %v580, %v799
      %v801 = vpop.f32.mrb[0].mxu0
      %v802 = vpop.f32.mrb[0].mxu0
      %v803 = vadd.f32 %v583, %v802
      %v804 = vpop.f32.mrb[0].mxu0
      %805 = vmatprep.mubr.bf16.mxu0 0
      %806 = vmatmul.mubr.bf16.gmra.mrb[0].mxu0 %v697
      %v807 = vpop.f32.mrb[0].mxu0
      %v808 = vadd.f32 %v588, %v807
      %v809 = vpop.f32.mrb[0].mxu0
      %v810 = vpop.f32.mrb[0].mxu0
      %v811 = vadd.f32 %v591, %v810
      %v812 = vpop.f32.mrb[0].mxu0
      %813 = vmatprep.mubr.bf16.mxu0 0
      %814 = vmatmul.mubr.bf16.gmra.mrb[0].mxu0 %v699
      %v815 = vpop.f32.mrb[0].mxu0
      %v816 = vadd.f32 %v596, %v815
      %v817 = vpop.f32.mrb[0].mxu0
      %v818 = vpop.f32.mrb[0].mxu0
      %v819 = vadd.f32 %v599, %v818
      %v820 = vpop.f32.mrb[0].mxu0
      %821 = vmatprep.mubr.bf16.mxu0 0
      %822 = vmatmul.mubr.bf16.gmra.mrb[0].mxu0 %v701
      %v823 = vpop.f32.mrb[0].mxu0
      %v824 = vadd.f32 %v604, %v823
      %v825 = vpop.f32.mrb[0].mxu0
      %v826 = vpop.f32.mrb[0].mxu0
      %v827 = vadd.f32 %v607, %v826
      %v828 = vpop.f32.mrb[0].mxu0
      %829 = vmatprep.mubr.bf16.mxu0 0
      %830 = vmatmul.mubr.bf16.gmra.mrb[0].mxu0 %v703
      %v831 = vpop.f32.mrb[0].mxu0
      %v832 = vadd.f32 %v612, %v831
      %v833 = vpop.f32.mrb[0].mxu0
      %v834 = vpop.f32.mrb[0].mxu0
      %v835 = vadd.f32 %v615, %v834
      %v836 = vpop.f32.mrb[0].mxu0
      %837 = vmatprep.mubr.bf16.mxu0 0
      %838 = vmatmul.mubr.bf16.gmra.mrb[0].mxu0 %v705
      %v839 = vpop.f32.mrb[0].mxu0
      %v840 = vadd.f32 %v620, %v839
      %v841 = vpop.f32.mrb[0].mxu0
      %v842 = vpop.f32.mrb[0].mxu0
      %v843 = vadd.f32 %v623, %v842
      %v844 = vpop.f32.mrb[0].mxu0
      %845 = vmatprep.mubr.bf16.mxu0 0
      %846 = vmatmul.mubr.bf16.gmra.mrb[0].mxu0 %v707
      %v847 = vpop.f32.mrb[0].mxu0
      %v848 = vadd.f32 %v628, %v847
      %v849 = vpop.f32.mrb[0].mxu0
      %v850 = vpop.f32.mrb[0].mxu0
      %v851 = vadd.f32 %v631, %v850
      %v852 = vpop.f32.mrb[0].mxu0
      %853 = vmatprep.mubr.bf16.mxu0 0
      %854 = vmatmul.mubr.bf16.gmra.mrb[0].mxu0 %v709
      %v855 = vpop.f32.mrb[0].mxu0
      %v856 = vadd.f32 %v636, %v855
      %v857 = vpop.f32.mrb[0].mxu0
      %v858 = vpop.f32.mrb[0].mxu0
      %v859 = vadd.f32 %v639, %v858
      %v860 = vpop.f32.mrb[0].mxu0
      %861 = vmatprep.mubr.bf16.mxu0 0
      %862 = vmatmul.mubr.bf16.gmra.mrb[0].mxu0 %v711
      %v863 = vpop.f32.mrb[0].mxu0
      %v864 = vadd.f32 %v644, %v863
      %v865 = vpop.f32.mrb[0].mxu0
      %v866 = vpop.f32.mrb[0].mxu0
      %v867 = vadd.f32 %v647, %v866
      %v868 = vpop.f32.mrb[0].mxu0
      %869 = vmatprep.mubr.bf16.mxu0 0
      %870 = vmatmul.mubr.bf16.gmra.mrb[0].mxu0 %v713
      %v871 = vpop.f32.mrb[0].mxu0
      %v872 = vadd.f32 %v652, %v871
      %v873 = vpop.f32.mrb[0].mxu0
      %v874 = vpop.f32.mrb[0].mxu0
      %v875 = vadd.f32 %v655, %v874
      %v876 = vpop.f32.mrb[0].mxu0
      %877 = vmatprep.mubr.bf16.mxu0 0
      %878 = vmatmul.mubr.bf16.gmra.mrb[0].mxu0 %v715
      %v879 = vpop.f32.mrb[0].mxu0
      %v880 = vadd.f32 %v660, %v879
      %v881 = vpop.f32.mrb[0].mxu0
      %v882 = vpop.f32.mrb[0].mxu0
      %v883 = vadd.f32 %v663, %v882
      %v884 = vpop.f32.mrb[0].mxu0
      %885 = vmatprep.mubr.bf16.mxu0 0
      %886 = vmatmul.mubr.bf16.gmra.mrb[0].mxu0 %v717
      %v887 = vpop.f32.mrb[0].mxu0
      %v888 = vadd.f32 %v668, %v887
      %v889 = vpop.f32.mrb[0].mxu0
      %v890 = vpop.f32.mrb[0].mxu0
      %v891 = vadd.f32 %v671, %v890
      %v892 = vpop.f32.mrb[0].mxu0
      %893 = vmatprep.mubr.bf16.mxu0 0
      %894 = vmatmul.mubr.bf16.gmra.mrb[0].mxu0 %v720
      %v895 = vpop.f32.mrb[0].mxu0
      %v896 = vadd.f32 %v676, %v895
      %v897 = vpop.f32.mrb[0].mxu0
      %v898 = vpop.f32.mrb[0].mxu0
      %v899 = vadd.f32 %v679, %v898
      %v900 = vpop.f32.mrb[0].mxu0
      %901 = vdwg.mxu0
      %v902 = vld [vmem:[%s165] sm:$0xe]
      %s903 = scalar_lea.vmem %s1, 4
      %v904 = vld [vmem:[%s903] sm:$0x3]
      %v906 = vunpack.c.l.b16 %v902
      %v907 = vpack.c.b16 %v249, %v906
      %vm908 = vcmask 1046528
      %v909 = vrot.slane %v907, 1
      %v910 = vrot.slane %v285, 1
      %v911 = vsel %vm908, %v909, %v910
      %v912 = vrot.slane %v286, 1
      %v913 = vsel %vm908, %v910, %v912
      %v914 = vrot.slane %v287, 1
      %v915 = vsel %vm908, %v912, %v914
      %v916 = vrot.slane %v288, 1
      %v917 = vsel %vm908, %v914, %v916
      %v918 = vrot.slane %v289, 1
      %v919 = vsel %vm908, %v916, %v918
      %v920 = vrot.slane %v290, 1
      %v921 = vsel %vm908, %v918, %v920
      %v922 = vrot.slane %v291, 1
      %v923 = vsel %vm908, %v920, %v922
      %v924 = vrot.slane %v292, 1
      %v925 = vsel %vm908, %v922, %v924
      %v926 = vrot.slane %v293, 1
      %v927 = vsel %vm908, %v924, %v926
      %v928 = vrot.slane %v294, 1
      %v929 = vsel %vm908, %v926, %v928
      %v930 = vrot.slane %v295, 1
      %v931 = vsel %vm908, %v928, %v930
      %v932 = vrot.slane %v296, 1
      %v933 = vsel %vm908, %v930, %v932
      %v934 = vrot.slane %v297, 1
      %v935 = vsel %vm908, %v932, %v934
      %v936 = vrot.slane %v298, 1
      %v937 = vsel %vm908, %v934, %v936
      %v938 = vrot.slane %v299, 1
      %v939 = vsel %vm908, %v936, %v938
      %v940 = vrot.slane %v300, 1
      %v941 = vsel %vm908, %v938, %v940
      %v942 = vrot.slane %v301, 1
      %v943 = vsel %vm908, %v940, %v942
      %v945 = vsel %vm446, %v911, 0
      %v948 = vsel %vm446, %v913, 0
      %v951 = vsel %vm446, %v915, 0
      %v954 = vsel %vm446, %v917, 0
      %v957 = vsel %vm446, %v919, 0
      %v960 = vsel %vm446, %v921, 0
      %v963 = vsel %vm446, %v923, 0
      %v966 = vsel %vm446, %v925, 0
      %v969 = vsel %vm446, %v927, 0
      %v972 = vsel %vm446, %v929, 0
      %v975 = vsel %vm446, %v931, 0
      %v978 = vsel %vm446, %v933, 0
      %v981 = vsel %vm446, %v935, 0
      %v984 = vsel %vm446, %v937, 0
      %v987 = vsel %vm446, %v939, 0
      %v990 = vsel %vm446, %v941, 0
      %v993 = vsel %vm446, %v943, 0
      %v996 = vsel %vm446, %v942, 0
      %v999 = vsel %vm501, %v904, 0
      %1001 = vmatprep.subr.bf16.mxu0 0
      %1002 = vmatpush1.bf16.msra.mxu0 %v999
      %1003 = vmatprep.subr.bf16.mxu0 0
      %1004 = vmatpush1.bf16.msra.mxu0 0
      %1005 = vmatprep.subr.bf16.mxu0 0
      %1006 = vmatpush1.bf16.msra.mxu0 0
      %1007 = vmatprep.subr.bf16.mxu0 0
      %1008 = vmatpush1.bf16.msra.mxu0 0
      %1009 = vmatprep.subr.bf16.mxu0 0
      %1010 = vmatpush1.bf16.msra.mxu0 0
      %1011 = vmatprep.subr.bf16.mxu0 0
      %1012 = vmatpush1.bf16.msra.mxu0 0
      %1013 = vmatprep.subr.bf16.mxu0 0
      %1014 = vmatpush1.bf16.msra.mxu0 0
      %1015 = vmatprep.subr.bf16.mxu0 0
      %1016 = vmatpush1.bf16.msra.mxu0 0
      %1017 = vmatprep.subr.bf16.mxu0 0
      %1018 = vmatpush1.bf16.msra.mxu0 0
      %1019 = vmatprep.subr.bf16.mxu0 0
      %1020 = vmatpush1.bf16.msra.mxu0 0
      %1021 = vmatprep.subr.bf16.mxu0 0
      %1022 = vmatpush1.bf16.msra.mxu0 0
      %1023 = vmatprep.subr.bf16.mxu0 0
      %1024 = vmatpush1.bf16.msra.mxu0 0
      %1025 = vmatprep.subr.bf16.mxu0 0
      %1026 = vmatpush1.bf16.msra.mxu0 0
      %1027 = vmatprep.subr.bf16.mxu0 0
      %1028 = vmatpush1.bf16.msra.mxu0 0
      %1029 = vmatprep.subr.bf16.mxu0 0
      %1030 = vmatpush1.bf16.msra.mxu0 0
      %1031 = vmatprep.subr.bf16.mxu0 0
      %1032 = vmatpush1.bf16.msra.mxu0 0
      %1033 = vmatprep.mubr.bf16.mxu0 0
      %1034 = vmatmul.mubr.bf16.gmra.mrb[0].mxu0 %v945
      %v1035 = vpop.f32.mrb[0].mxu0
      %v1036 = vadd.f32 0.0, %v1035
      %v1037 = vpop.f32.mrb[0].mxu0
      %v1038 = vpop.f32.mrb[0].mxu0
      %v1039 = vadd.f32 0.0, %v1038
      %v1040 = vpop.f32.mrb[0].mxu0
      %1041 = vmatprep.mubr.bf16.mxu0 0
      %1042 = vmatmul.mubr.bf16.gmra.mrb[0].mxu0 %v948
      %v1043 = vpop.f32.mrb[0].mxu0
      %v1044 = vadd.f32 0.0, %v1043
      %v1045 = vpop.f32.mrb[0].mxu0
      %v1046 = vpop.f32.mrb[0].mxu0
      %v1047 = vadd.f32 0.0, %v1046
      %v1048 = vpop.f32.mrb[0].mxu0
      %1049 = vmatprep.mubr.bf16.mxu0 0
      %1050 = vmatmul.mubr.bf16.gmra.mrb[0].mxu0 %v951
      %v1051 = vpop.f32.mrb[0].mxu0
      %v1052 = vadd.f32 0.0, %v1051
      %v1053 = vpop.f32.mrb[0].mxu0
      %v1054 = vpop.f32.mrb[0].mxu0
      %v1055 = vadd.f32 0.0, %v1054
      %v1056 = vpop.f32.mrb[0].mxu0
      %1057 = vmatprep.mubr.bf16.mxu0 0
      %1058 = vmatmul.mubr.bf16.gmra.mrb[0].mxu0 %v954
      %v1059 = vpop.f32.mrb[0].mxu0
      %v1060 = vadd.f32 0.0, %v1059
      %v1061 = vpop.f32.mrb[0].mxu0
      %v1062 = vpop.f32.mrb[0].mxu0
      %v1063 = vadd.f32 0.0, %v1062
      %v1064 = vpop.f32.mrb[0].mxu0
      %1065 = vmatprep.mubr.bf16.mxu0 0
      %1066 = vmatmul.mubr.bf16.gmra.mrb[0].mxu0 %v957
      %v1067 = vpop.f32.mrb[0].mxu0
      %v1068 = vadd.f32 0.0, %v1067
      %v1069 = vpop.f32.mrb[0].mxu0
      %v1070 = vpop.f32.mrb[0].mxu0
      %v1071 = vadd.f32 0.0, %v1070
      %v1072 = vpop.f32.mrb[0].mxu0
      %1073 = vmatprep.mubr.bf16.mxu0 0
      %1074 = vmatmul.mubr.bf16.gmra.mrb[0].mxu0 %v960
      %v1075 = vpop.f32.mrb[0].mxu0
      %v1076 = vadd.f32 0.0, %v1075
      %v1077 = vpop.f32.mrb[0].mxu0
      %v1078 = vpop.f32.mrb[0].mxu0
      %v1079 = vadd.f32 0.0, %v1078
      %v1080 = vpop.f32.mrb[0].mxu0
      %1081 = vmatprep.mubr.bf16.mxu0 0
      %1082 = vmatmul.mubr.bf16.gmra.mrb[0].mxu0 %v963
      %v1083 = vpop.f32.mrb[0].mxu0
      %v1084 = vadd.f32 0.0, %v1083
      %v1085 = vpop.f32.mrb[0].mxu0
      %v1086 = vpop.f32.mrb[0].mxu0
      %v1087 = vadd.f32 0.0, %v1086
      %v1088 = vpop.f32.mrb[0].mxu0
      %1089 = vmatprep.mubr.bf16.mxu0 0
      %1090 = vmatmul.mubr.bf16.gmra.mrb[0].mxu0 %v966
      %v1091 = vpop.f32.mrb[0].mxu0
      %v1092 = vadd.f32 0.0, %v1091
      %v1093 = vpop.f32.mrb[0].mxu0
      %v1094 = vpop.f32.mrb[0].mxu0
      %v1095 = vadd.f32 0.0, %v1094
      %v1096 = vpop.f32.mrb[0].mxu0
      %1097 = vmatprep.mubr.bf16.mxu0 0
      %1098 = vmatmul.mubr.bf16.gmra.mrb[0].mxu0 %v969
      %v1099 = vpop.f32.mrb[0].mxu0
      %v1100 = vadd.f32 0.0, %v1099
      %v1101 = vpop.f32.mrb[0].mxu0
      %v1102 = vpop.f32.mrb[0].mxu0
      %v1103 = vadd.f32 0.0, %v1102
      %v1104 = vpop.f32.mrb[0].mxu0
      %1105 = vmatprep.mubr.bf16.mxu0 0
      %1106 = vmatmul.mubr.bf16.gmra.mrb[0].mxu0 %v972
      %v1107 = vpop.f32.mrb[0].mxu0
      %v1108 = vadd.f32 0.0, %v1107
      %v1109 = vpop.f32.mrb[0].mxu0
      %v1110 = vpop.f32.mrb[0].mxu0
      %v1111 = vadd.f32 0.0, %v1110
      %v1112 = vpop.f32.mrb[0].mxu0
      %1113 = vmatprep.mubr.bf16.mxu0 0
      %1114 = vmatmul.mubr.bf16.gmra.mrb[0].mxu0 %v975
      %v1115 = vpop.f32.mrb[0].mxu0
      %v1116 = vadd.f32 0.0, %v1115
      %v1117 = vpop.f32.mrb[0].mxu0
      %v1118 = vpop.f32.mrb[0].mxu0
      %v1119 = vadd.f32 0.0, %v1118
      %v1120 = vpop.f32.mrb[0].mxu0
      %1121 = vmatprep.mubr.bf16.mxu0 0
      %1122 = vmatmul.mubr.bf16.gmra.mrb[0].mxu0 %v978
      %v1123 = vpop.f32.mrb[0].mxu0
      %v1124 = vadd.f32 0.0, %v1123
      %v1125 = vpop.f32.mrb[0].mxu0
      %v1126 = vpop.f32.mrb[0].mxu0
      %v1127 = vadd.f32 0.0, %v1126
      %v1128 = vpop.f32.mrb[0].mxu0
      %1129 = vmatprep.mubr.bf16.mxu0 0
      %1130 = vmatmul.mubr.bf16.gmra.mrb[0].mxu0 %v981
      %v1131 = vpop.f32.mrb[0].mxu0
      %v1132 = vadd.f32 0.0, %v1131
      %v1133 = vpop.f32.mrb[0].mxu0
      %v1134 = vpop.f32.mrb[0].mxu0
      %v1135 = vadd.f32 0.0, %v1134
      %v1136 = vpop.f32.mrb[0].mxu0
      %1137 = vmatprep.mubr.bf16.mxu0 0
      %1138 = vmatmul.mubr.bf16.gmra.mrb[0].mxu0 %v984
      %v1139 = vpop.f32.mrb[0].mxu0
      %v1140 = vadd.f32 0.0, %v1139
      %v1141 = vpop.f32.mrb[0].mxu0
      %v1142 = vpop.f32.mrb[0].mxu0
      %v1143 = vadd.f32 0.0, %v1142
      %v1144 = vpop.f32.mrb[0].mxu0
      %1145 = vmatprep.mubr.bf16.mxu0 0
      %1146 = vmatmul.mubr.bf16.gmra.mrb[0].mxu0 %v987
      %v1147 = vpop.f32.mrb[0].mxu0
      %v1148 = vadd.f32 0.0, %v1147
      %v1149 = vpop.f32.mrb[0].mxu0
      %v1150 = vpop.f32.mrb[0].mxu0
      %v1151 = vadd.f32 0.0, %v1150
      %v1152 = vpop.f32.mrb[0].mxu0
      %1153 = vmatprep.mubr.bf16.mxu0 0
      %1154 = vmatmul.mubr.bf16.gmra.mrb[0].mxu0 %v990
      %v1155 = vpop.f32.mrb[0].mxu0
      %v1156 = vadd.f32 0.0, %v1155
      %v1157 = vpop.f32.mrb[0].mxu0
      %v1158 = vpop.f32.mrb[0].mxu0
      %v1159 = vadd.f32 0.0, %v1158
      %v1160 = vpop.f32.mrb[0].mxu0
      %1161 = vmatprep.mubr.bf16.mxu0 0
      %1162 = vmatmul.mubr.bf16.gmra.mrb[0].mxu0 %v993
      %v1163 = vpop.f32.mrb[0].mxu0
      %v1164 = vadd.f32 0.0, %v1163
      %v1165 = vpop.f32.mrb[0].mxu0
      %v1166 = vpop.f32.mrb[0].mxu0
      %v1167 = vadd.f32 0.0, %v1166
      %v1168 = vpop.f32.mrb[0].mxu0
      %1169 = vmatprep.mubr.bf16.mxu0 0
      %1170 = vmatmul.mubr.bf16.gmra.mrb[0].mxu0 %v996
      %v1171 = vpop.f32.mrb[0].mxu0
      %v1172 = vadd.f32 0.0, %v1171
      %v1173 = vpop.f32.mrb[0].mxu0
      %v1174 = vpop.f32.mrb[0].mxu0
      %v1175 = vadd.f32 0.0, %v1174
      %v1176 = vpop.f32.mrb[0].mxu0
      %1177 = vdwg.mxu0
      %v1178 = vadd.f32 %v760, %v1036
      %v1179 = vadd.f32 %v763, %v1039
      %v1180 = vadd.f32 %v768, %v1044
      %v1181 = vadd.f32 %v771, %v1047
      %v1182 = vadd.f32 %v776, %v1052
      %v1183 = vadd.f32 %v779, %v1055
      %v1184 = vadd.f32 %v784, %v1060
      %v1185 = vadd.f32 %v787, %v1063
      %v1186 = vadd.f32 %v792, %v1068
      %v1187 = vadd.f32 %v795, %v1071
      %v1188 = vadd.f32 %v800, %v1076
      %v1189 = vadd.f32 %v803, %v1079
      %v1190 = vadd.f32 %v808, %v1084
      %v1191 = vadd.f32 %v811, %v1087
      %v1192 = vadd.f32 %v816, %v1092
      %v1193 = vadd.f32 %v819, %v1095
      %v1194 = vadd.f32 %v824, %v1100
      %v1195 = vadd.f32 %v827, %v1103
      %v1196 = vadd.f32 %v832, %v1108
      %v1197 = vadd.f32 %v835, %v1111
      %v1198 = vadd.f32 %v840, %v1116
      %v1199 = vadd.f32 %v843, %v1119
      %v1200 = vadd.f32 %v848, %v1124
      %v1201 = vadd.f32 %v851, %v1127
      %v1202 = vadd.f32 %v856, %v1132
      %v1203 = vadd.f32 %v859, %v1135
      %v1204 = vadd.f32 %v864, %v1140
      %v1205 = vadd.f32 %v867, %v1143
      %v1206 = vadd.f32 %v872, %v1148
      %v1207 = vadd.f32 %v875, %v1151
      %v1208 = vadd.f32 %v880, %v1156
      %v1209 = vadd.f32 %v883, %v1159
      %v1210 = vadd.f32 %v888, %v1164
      %v1211 = vadd.f32 %v891, %v1167
      %v1212 = vadd.f32 %v896, %v1172
      %v1213 = vadd.f32 %v899, %v1175
      %v1214 = vld [vmem:[%s165 + $0x8] sm:$0xe]
      %v1215 = vld [vmem:[%s165 + $0xc] sm:$0xf]
      %v1216 = vld [vmem:[%s165 + $0x10] sm:$0xf]
      %v1217 = vld [vmem:[%s165 + $0x14] sm:$0xf]
      %v1218 = vld [vmem:[%s165 + $0x18] sm:$0xf]
      %v1219 = vld [vmem:[%s165 + $0x1c] sm:$0xf]
      %v1220 = vld [vmem:[%s165 + $0x20] sm:$0xf]
      %v1221 = vld [vmem:[%s165 + $0x24] sm:$0xf]
      %v1222 = vld [vmem:[%s165 + $0x28] sm:$0xf]
      %v1223 = vld [vmem:[%s165 + $0x2c] sm:$0xf]
      %v1224 = vld [vmem:[%s165 + $0x30] sm:$0xf]
      %v1225 = vld [vmem:[%s165 + $0x34] sm:$0xf]
      %v1226 = vld [vmem:[%s165 + $0x38] sm:$0xf]
      %v1227 = vld [vmem:[%s165 + $0x3c] sm:$0xf]
      %v1228 = vld [vmem:[%s165 + $0x40] sm:$0xf]
      %v1229 = vld [vmem:[%s165 + $0x44] sm:$0xf]
      %v1230 = vld [vmem:[%s165 + $0x48] sm:$0xf]
      %v1231 = vld [vmem:[%s165 + $0x4c] sm:$0xf]
      %v1232 = vld [vmem:[%s165 + $0x50] sm:$0xf]
      %v1233 = vld [vmem:[%s165 + $0x54] sm:$0xf]
      %v1234 = vld [vmem:[%s165 + $0x58] sm:$0xf]
      %v1235 = vld [vmem:[%s165 + $0x5c] sm:$0xf]
      %v1236 = vld [vmem:[%s165 + $0x60] sm:$0xf]
      %v1237 = vld [vmem:[%s165 + $0x64] sm:$0xf]
      %v1238 = vld [vmem:[%s165 + $0x68] sm:$0xf]
      %v1239 = vld [vmem:[%s165 + $0x6c] sm:$0xf]
      %v1240 = vld [vmem:[%s165 + $0x70] sm:$0xf]
      %v1241 = vld [vmem:[%s165 + $0x74] sm:$0xf]
      %v1242 = vld [vmem:[%s165 + $0x78] sm:$0xf]
      %v1243 = vld [vmem:[%s165 + $0x7c] sm:$0xf]
      %v1244 = vld [vmem:[%s165 + $0x80] sm:$0xf]
      %v1245 = vld [vmem:[%s165 + $0x84] sm:$0xf]
      %v1246 = vld [vmem:[%s165 + $0x88] sm:$0xf]
      %v1247 = vld [vmem:[%s165 + $0x8c] sm:$0xf]
      %v1248 = vld [vmem:[%s165 + $0x90] sm:$0xf]
      %v1249 = vld [vmem:[%s165 + $0x94] sm:$0xf]
      %s1250 = scalar_lea.vmem %s1, 6
      %v1251 = vld [vmem:[%s1250] sm:$0x3]
      %v1288 = vunpack.c.l.b16 %v1214
      %v1289 = vunpack.c.l.b16 %v1215
      %v1290 = vunpack.c.l.b16 %v1216
      %v1291 = vunpack.c.l.b16 %v1217
      %v1292 = vunpack.c.l.b16 %v1218
      %v1293 = vunpack.c.l.b16 %v1219
      %v1294 = vunpack.c.l.b16 %v1220
      %v1295 = vunpack.c.l.b16 %v1221
      %v1296 = vunpack.c.l.b16 %v1222
      %v1297 = vunpack.c.l.b16 %v1223
      %v1298 = vunpack.c.l.b16 %v1224
      %v1299 = vunpack.c.l.b16 %v1225
      %v1300 = vunpack.c.l.b16 %v1226
      %v1301 = vunpack.c.l.b16 %v1227
      %v1302 = vunpack.c.l.b16 %v1228
      %v1303 = vunpack.c.l.b16 %v1229
      %v1304 = vunpack.c.l.b16 %v1230
      %v1305 = vunpack.c.l.b16 %v1231
      %v1306 = vunpack.c.l.b16 %v1232
      %v1307 = vunpack.c.l.b16 %v1233
      %v1308 = vunpack.c.l.b16 %v1234
      %v1309 = vunpack.c.l.b16 %v1235
      %v1310 = vunpack.c.l.b16 %v1236
      %v1311 = vunpack.c.l.b16 %v1237
      %v1312 = vunpack.c.l.b16 %v1238
      %v1313 = vunpack.c.l.b16 %v1239
      %v1314 = vunpack.c.l.b16 %v1240
      %v1315 = vunpack.c.l.b16 %v1241
      %v1316 = vunpack.c.l.b16 %v1242
      %v1317 = vunpack.c.l.b16 %v1243
      %v1318 = vunpack.c.l.b16 %v1244
      %v1319 = vunpack.c.l.b16 %v1245
      %v1320 = vunpack.c.l.b16 %v1246
      %v1321 = vunpack.c.l.b16 %v1247
      %v1322 = vunpack.c.l.b16 %v1248
      %v1323 = vunpack.c.l.b16 %v1249
      %v1324 = vpack.c.b16 %v1289, %v1288
      %v1325 = vpack.c.b16 %v1291, %v1290
      %v1326 = vpack.c.b16 %v1293, %v1292
      %v1327 = vpack.c.b16 %v1295, %v1294
      %v1328 = vpack.c.b16 %v1297, %v1296
      %v1329 = vpack.c.b16 %v1299, %v1298
      %v1330 = vpack.c.b16 %v1301, %v1300
      %v1331 = vpack.c.b16 %v1303, %v1302
      %v1332 = vpack.c.b16 %v1305, %v1304
      %v1333 = vpack.c.b16 %v1307, %v1306
      %v1334 = vpack.c.b16 %v1309, %v1308
      %v1335 = vpack.c.b16 %v1311, %v1310
      %v1336 = vpack.c.b16 %v1313, %v1312
      %v1337 = vpack.c.b16 %v1315, %v1314
      %v1338 = vpack.c.b16 %v1317, %v1316
      %v1339 = vpack.c.b16 %v1319, %v1318
      %v1340 = vpack.c.b16 %v1321, %v1320
      %v1341 = vpack.c.b16 %v1323, %v1322
      %v1342 = vrot.slane %v1324, 1
      %v1343 = vrot.slane %v1325, 1
      %v1344 = vsel %vm908, %v1342, %v1343
      %v1345 = vrot.slane %v1326, 1
      %v1346 = vsel %vm908, %v1343, %v1345
      %v1347 = vrot.slane %v1327, 1
      %v1348 = vsel %vm908, %v1345, %v1347
      %v1349 = vrot.slane %v1328, 1
      %v1350 = vsel %vm908, %v1347, %v1349
      %v1351 = vrot.slane %v1329, 1
      %v1352 = vsel %vm908, %v1349, %v1351
      %v1353 = vrot.slane %v1330, 1
      %v1354 = vsel %vm908, %v1351, %v1353
      %v1355 = vrot.slane %v1331, 1
      %v1356 = vsel %vm908, %v1353, %v1355
      %v1357 = vrot.slane %v1332, 1
      %v1358 = vsel %vm908, %v1355, %v1357
      %v1359 = vrot.slane %v1333, 1
      %v1360 = vsel %vm908, %v1357, %v1359
      %v1361 = vrot.slane %v1334, 1
      %v1362 = vsel %vm908, %v1359, %v1361
      %v1363 = vrot.slane %v1335, 1
      %v1364 = vsel %vm908, %v1361, %v1363
      %v1365 = vrot.slane %v1336, 1
      %v1366 = vsel %vm908, %v1363, %v1365
      %v1367 = vrot.slane %v1337, 1
      %v1368 = vsel %vm908, %v1365, %v1367
      %v1369 = vrot.slane %v1338, 1
      %v1370 = vsel %vm908, %v1367, %v1369
      %v1371 = vrot.slane %v1339, 1
      %v1372 = vsel %vm908, %v1369, %v1371
      %v1373 = vrot.slane %v1340, 1
      %v1374 = vsel %vm908, %v1371, %v1373
      %v1375 = vrot.slane %v1341, 1
      %v1376 = vsel %vm908, %v1373, %v1375
      %v1378 = vsel %vm446, %v1344, 0
      %v1381 = vsel %vm446, %v1346, 0
      %v1384 = vsel %vm446, %v1348, 0
      %v1387 = vsel %vm446, %v1350, 0
      %v1390 = vsel %vm446, %v1352, 0
      %v1393 = vsel %vm446, %v1354, 0
      %v1396 = vsel %vm446, %v1356, 0
      %v1399 = vsel %vm446, %v1358, 0
      %v1402 = vsel %vm446, %v1360, 0
      %v1405 = vsel %vm446, %v1362, 0
      %v1408 = vsel %vm446, %v1364, 0
      %v1411 = vsel %vm446, %v1366, 0
      %v1414 = vsel %vm446, %v1368, 0
      %v1417 = vsel %vm446, %v1370, 0
      %v1420 = vsel %vm446, %v1372, 0
      %v1423 = vsel %vm446, %v1374, 0
      %v1426 = vsel %vm446, %v1376, 0
      %v1429 = vsel %vm446, %v1375, 0
      %v1432 = vsel %vm501, %v1251, 0
      %1434 = vmatprep.subr.bf16.mxu0 0
      %1435 = vmatpush1.bf16.msra.mxu0 %v1432
      %1436 = vmatprep.subr.bf16.mxu0 0
      %1437 = vmatpush1.bf16.msra.mxu0 0
      %1438 = vmatprep.subr.bf16.mxu0 0
      %1439 = vmatpush1.bf16.msra.mxu0 0
      %1440 = vmatprep.subr.bf16.mxu0 0
      %1441 = vmatpush1.bf16.msra.mxu0 0
      %1442 = vmatprep.subr.bf16.mxu0 0
      %1443 = vmatpush1.bf16.msra.mxu0 0
      %1444 = vmatprep.subr.bf16.mxu0 0
      %1445 = vmatpush1.bf16.msra.mxu0 0
      %1446 = vmatprep.subr.bf16.mxu0 0
      %1447 = vmatpush1.bf16.msra.mxu0 0
      %1448 = vmatprep.subr.bf16.mxu0 0
      %1449 = vmatpush1.bf16.msra.mxu0 0
      %1450 = vmatprep.subr.bf16.mxu0 0
      %1451 = vmatpush1.bf16.msra.mxu0 0
      %1452 = vmatprep.subr.bf16.mxu0 0
      %1453 = vmatpush1.bf16.msra.mxu0 0
      %1454 = vmatprep.subr.bf16.mxu0 0
      %1455 = vmatpush1.bf16.msra.mxu0 0
      %1456 = vmatprep.subr.bf16.mxu0 0
      %1457 = vmatpush1.bf16.msra.mxu0 0
      %1458 = vmatprep.subr.bf16.mxu0 0
      %1459 = vmatpush1.bf16.msra.mxu0 0
      %1460 = vmatprep.subr.bf16.mxu0 0
      %1461 = vmatpush1.bf16.msra.mxu0 0
      %1462 = vmatprep.subr.bf16.mxu0 0
      %1463 = vmatpush1.bf16.msra.mxu0 0
      %1464 = vmatprep.subr.bf16.mxu0 0
      %1465 = vmatpush1.bf16.msra.mxu0 0
      %1466 = vmatprep.mubr.bf16.mxu0 0
      %1467 = vmatmul.mubr.bf16.gmra.mrb[0].mxu0 %v1378
      %v1468 = vpop.f32.mrb[0].mxu0
      %v1469 = vadd.f32 0.0, %v1468
      %v1470 = vpop.f32.mrb[0].mxu0
      %v1471 = vpop.f32.mrb[0].mxu0
      %v1472 = vadd.f32 0.0, %v1471
      %v1473 = vpop.f32.mrb[0].mxu0
      %1474 = vmatprep.mubr.bf16.mxu0 0
      %1475 = vmatmul.mubr.bf16.gmra.mrb[0].mxu0 %v1381
      %v1476 = vpop.f32.mrb[0].mxu0
      %v1477 = vadd.f32 0.0, %v1476
      %v1478 = vpop.f32.mrb[0].mxu0
      %v1479 = vpop.f32.mrb[0].mxu0
      %v1480 = vadd.f32 0.0, %v1479
      %v1481 = vpop.f32.mrb[0].mxu0
      %1482 = vmatprep.mubr.bf16.mxu0 0
      %1483 = vmatmul.mubr.bf16.gmra.mrb[0].mxu0 %v1384
      %v1484 = vpop.f32.mrb[0].mxu0
      %v1485 = vadd.f32 0.0, %v1484
      %v1486 = vpop.f32.mrb[0].mxu0
      %v1487 = vpop.f32.mrb[0].mxu0
      %v1488 = vadd.f32 0.0, %v1487
      %v1489 = vpop.f32.mrb[0].mxu0
      %1490 = vmatprep.mubr.bf16.mxu0 0
      %1491 = vmatmul.mubr.bf16.gmra.mrb[0].mxu0 %v1387
      %v1492 = vpop.f32.mrb[0].mxu0
      %v1493 = vadd.f32 0.0, %v1492
      %v1494 = vpop.f32.mrb[0].mxu0
      %v1495 = vpop.f32.mrb[0].mxu0
      %v1496 = vadd.f32 0.0, %v1495
      %v1497 = vpop.f32.mrb[0].mxu0
      %1498 = vmatprep.mubr.bf16.mxu0 0
      %1499 = vmatmul.mubr.bf16.gmra.mrb[0].mxu0 %v1390
      %v1500 = vpop.f32.mrb[0].mxu0
      %v1501 = vadd.f32 0.0, %v1500
      %v1502 = vpop.f32.mrb[0].mxu0
      %v1503 = vpop.f32.mrb[0].mxu0
      %v1504 = vadd.f32 0.0, %v1503
      %v1505 = vpop.f32.mrb[0].mxu0
      %1506 = vmatprep.mubr.bf16.mxu0 0
      %1507 = vmatmul.mubr.bf16.gmra.mrb[0].mxu0 %v1393
      %v1508 = vpop.f32.mrb[0].mxu0
      %v1509 = vadd.f32 0.0, %v1508
      %v1510 = vpop.f32.mrb[0].mxu0
      %v1511 = vpop.f32.mrb[0].mxu0
      %v1512 = vadd.f32 0.0, %v1511
      %v1513 = vpop.f32.mrb[0].mxu0
      %1514 = vmatprep.mubr.bf16.mxu0 0
      %1515 = vmatmul.mubr.bf16.gmra.mrb[0].mxu0 %v1396
      %v1516 = vpop.f32.mrb[0].mxu0
      %v1517 = vadd.f32 0.0, %v1516
      %v1518 = vpop.f32.mrb[0].mxu0
      %v1519 = vpop.f32.mrb[0].mxu0
      %v1520 = vadd.f32 0.0, %v1519
      %v1521 = vpop.f32.mrb[0].mxu0
      %1522 = vmatprep.mubr.bf16.mxu0 0
      %1523 = vmatmul.mubr.bf16.gmra.mrb[0].mxu0 %v1399
      %v1524 = vpop.f32.mrb[0].mxu0
      %v1525 = vadd.f32 0.0, %v1524
      %v1526 = vpop.f32.mrb[0].mxu0
      %v1527 = vpop.f32.mrb[0].mxu0
      %v1528 = vadd.f32 0.0, %v1527
      %v1529 = vpop.f32.mrb[0].mxu0
      %1530 = vmatprep.mubr.bf16.mxu0 0
      %1531 = vmatmul.mubr.bf16.gmra.mrb[0].mxu0 %v1402
      %v1532 = vpop.f32.mrb[0].mxu0
      %v1533 = vadd.f32 0.0, %v1532
      %v1534 = vpop.f32.mrb[0].mxu0
      %v1535 = vpop.f32.mrb[0].mxu0
      %v1536 = vadd.f32 0.0, %v1535
      %v1537 = vpop.f32.mrb[0].mxu0
      %1538 = vmatprep.mubr.bf16.mxu0 0
      %1539 = vmatmul.mubr.bf16.gmra.mrb[0].mxu0 %v1405
      %v1540 = vpop.f32.mrb[0].mxu0
      %v1541 = vadd.f32 0.0, %v1540
      %v1542 = vpop.f32.mrb[0].mxu0
      %v1543 = vpop.f32.mrb[0].mxu0
      %v1544 = vadd.f32 0.0, %v1543
      %v1545 = vpop.f32.mrb[0].mxu0
      %1546 = vmatprep.mubr.bf16.mxu0 0
      %1547 = vmatmul.mubr.bf16.gmra.mrb[0].mxu0 %v1408
      %v1548 = vpop.f32.mrb[0].mxu0
      %v1549 = vadd.f32 0.0, %v1548
      %v1550 = vpop.f32.mrb[0].mxu0
      %v1551 = vpop.f32.mrb[0].mxu0
      %v1552 = vadd.f32 0.0, %v1551
      %v1553 = vpop.f32.mrb[0].mxu0
      %1554 = vmatprep.mubr.bf16.mxu0 0
      %1555 = vmatmul.mubr.bf16.gmra.mrb[0].mxu0 %v1411
      %v1556 = vpop.f32.mrb[0].mxu0
      %v1557 = vadd.f32 0.0, %v1556
      %v1558 = vpop.f32.mrb[0].mxu0
      %v1559 = vpop.f32.mrb[0].mxu0
      %v1560 = vadd.f32 0.0, %v1559
      %v1561 = vpop.f32.mrb[0].mxu0
      %1562 = vmatprep.mubr.bf16.mxu0 0
      %1563 = vmatmul.mubr.bf16.gmra.mrb[0].mxu0 %v1414
      %v1564 = vpop.f32.mrb[0].mxu0
      %v1565 = vadd.f32 0.0, %v1564
      %v1566 = vpop.f32.mrb[0].mxu0
      %v1567 = vpop.f32.mrb[0].mxu0
      %v1568 = vadd.f32 0.0, %v1567
      %v1569 = vpop.f32.mrb[0].mxu0
      %1570 = vmatprep.mubr.bf16.mxu0 0
      %1571 = vmatmul.mubr.bf16.gmra.mrb[0].mxu0 %v1417
      %v1572 = vpop.f32.mrb[0].mxu0
      %v1573 = vadd.f32 0.0, %v1572
      %v1574 = vpop.f32.mrb[0].mxu0
      %v1575 = vpop.f32.mrb[0].mxu0
      %v1576 = vadd.f32 0.0, %v1575
      %v1577 = vpop.f32.mrb[0].mxu0
      %1578 = vmatprep.mubr.bf16.mxu0 0
      %1579 = vmatmul.mubr.bf16.gmra.mrb[0].mxu0 %v1420
      %v1580 = vpop.f32.mrb[0].mxu0
      %v1581 = vadd.f32 0.0, %v1580
      %v1582 = vpop.f32.mrb[0].mxu0
      %v1583 = vpop.f32.mrb[0].mxu0
      %v1584 = vadd.f32 0.0, %v1583
      %v1585 = vpop.f32.mrb[0].mxu0
      %1586 = vmatprep.mubr.bf16.mxu0 0
      %1587 = vmatmul.mubr.bf16.gmra.mrb[0].mxu0 %v1423
      %v1588 = vpop.f32.mrb[0].mxu0
      %v1589 = vadd.f32 0.0, %v1588
      %v1590 = vpop.f32.mrb[0].mxu0
      %v1591 = vpop.f32.mrb[0].mxu0
      %v1592 = vadd.f32 0.0, %v1591
      %v1593 = vpop.f32.mrb[0].mxu0
      %1594 = vmatprep.mubr.bf16.mxu0 0
      %1595 = vmatmul.mubr.bf16.gmra.mrb[0].mxu0 %v1426
      %v1596 = vpop.f32.mrb[0].mxu0
      %v1597 = vadd.f32 0.0, %v1596
      %v1598 = vpop.f32.mrb[0].mxu0
      %v1599 = vpop.f32.mrb[0].mxu0
      %v1600 = vadd.f32 0.0, %v1599
      %v1601 = vpop.f32.mrb[0].mxu0
      %1602 = vmatprep.mubr.bf16.mxu0 0
      %1603 = vmatmul.mubr.bf16.gmra.mrb[0].mxu0 %v1429
      %v1604 = vpop.f32.mrb[0].mxu0
      %v1605 = vadd.f32 0.0, %v1604
      %v1606 = vpop.f32.mrb[0].mxu0
      %v1607 = vpop.f32.mrb[0].mxu0
      %v1608 = vadd.f32 0.0, %v1607
      %v1609 = vpop.f32.mrb[0].mxu0
      %1610 = vdwg.mxu0
      %v1611 = vadd.f32 %v1178, %v1469
      %v1612 = vadd.f32 %v1179, %v1472
      %v1613 = vadd.f32 %v1180, %v1477
      %v1614 = vadd.f32 %v1181, %v1480
      %v1615 = vadd.f32 %v1182, %v1485
      %v1616 = vadd.f32 %v1183, %v1488
      %v1617 = vadd.f32 %v1184, %v1493
      %v1618 = vadd.f32 %v1185, %v1496
      %v1619 = vadd.f32 %v1186, %v1501
      %v1620 = vadd.f32 %v1187, %v1504
      %v1621 = vadd.f32 %v1188, %v1509
      %v1622 = vadd.f32 %v1189, %v1512
      %v1623 = vadd.f32 %v1190, %v1517
      %v1624 = vadd.f32 %v1191, %v1520
      %v1625 = vadd.f32 %v1192, %v1525
      %v1626 = vadd.f32 %v1193, %v1528
      %v1627 = vadd.f32 %v1194, %v1533
      %v1628 = vadd.f32 %v1195, %v1536
      %v1629 = vadd.f32 %v1196, %v1541
      %v1630 = vadd.f32 %v1197, %v1544
      %v1631 = vadd.f32 %v1198, %v1549
      %v1632 = vadd.f32 %v1199, %v1552
      %v1633 = vadd.f32 %v1200, %v1557
      %v1634 = vadd.f32 %v1201, %v1560
      %v1635 = vadd.f32 %v1202, %v1565
      %v1636 = vadd.f32 %v1203, %v1568
      %v1637 = vadd.f32 %v1204, %v1573
      %v1638 = vadd.f32 %v1205, %v1576
      %v1639 = vadd.f32 %v1206, %v1581
      %v1640 = vadd.f32 %v1207, %v1584
      %v1641 = vadd.f32 %v1208, %v1589
      %v1642 = vadd.f32 %v1209, %v1592
      %v1643 = vadd.f32 %v1210, %v1597
      %v1644 = vadd.f32 %v1211, %v1600
      %v1645 = vadd.f32 %v1212, %v1605
      %v1646 = vadd.f32 %v1213, %v1608
      %v1647 = vld [vmem:[%s165 + $0x8] sm:$0xe]
      %v1648 = vld [vmem:[%s165 + $0xc] sm:$0xf]
      %v1649 = vld [vmem:[%s165 + $0x10] sm:$0xf]
      %v1650 = vld [vmem:[%s165 + $0x14] sm:$0xf]
      %v1651 = vld [vmem:[%s165 + $0x18] sm:$0xf]
      %v1652 = vld [vmem:[%s165 + $0x1c] sm:$0xf]
      %v1653 = vld [vmem:[%s165 + $0x20] sm:$0xf]
      %v1654 = vld [vmem:[%s165 + $0x24] sm:$0xf]
      %v1655 = vld [vmem:[%s165 + $0x28] sm:$0xf]
      %v1656 = vld [vmem:[%s165 + $0x2c] sm:$0xf]
      %v1657 = vld [vmem:[%s165 + $0x30] sm:$0xf]
      %v1658 = vld [vmem:[%s165 + $0x34] sm:$0xf]
      %v1659 = vld [vmem:[%s165 + $0x38] sm:$0xf]
      %v1660 = vld [vmem:[%s165 + $0x3c] sm:$0xf]
      %v1661 = vld [vmem:[%s165 + $0x40] sm:$0xf]
      %v1662 = vld [vmem:[%s165 + $0x44] sm:$0xf]
      %v1663 = vld [vmem:[%s165 + $0x48] sm:$0xf]
      %v1664 = vld [vmem:[%s165 + $0x4c] sm:$0xf]
      %v1665 = vld [vmem:[%s165 + $0x50] sm:$0xf]
      %v1666 = vld [vmem:[%s165 + $0x54] sm:$0xf]
      %v1667 = vld [vmem:[%s165 + $0x58] sm:$0xf]
      %v1668 = vld [vmem:[%s165 + $0x5c] sm:$0xf]
      %v1669 = vld [vmem:[%s165 + $0x60] sm:$0xf]
      %v1670 = vld [vmem:[%s165 + $0x64] sm:$0xf]
      %v1671 = vld [vmem:[%s165 + $0x68] sm:$0xf]
      %v1672 = vld [vmem:[%s165 + $0x6c] sm:$0xf]
      %v1673 = vld [vmem:[%s165 + $0x70] sm:$0xf]
      %v1674 = vld [vmem:[%s165 + $0x74] sm:$0xf]
      %v1675 = vld [vmem:[%s165 + $0x78] sm:$0xf]
      %v1676 = vld [vmem:[%s165 + $0x7c] sm:$0xf]
      %v1677 = vld [vmem:[%s165 + $0x80] sm:$0xf]
      %v1678 = vld [vmem:[%s165 + $0x84] sm:$0xf]
      %v1679 = vld [vmem:[%s165 + $0x88] sm:$0xf]
      %v1680 = vld [vmem:[%s165 + $0x8c] sm:$0xf]
      %v1681 = vld [vmem:[%s165 + $0x90] sm:$0xf]
      %v1682 = vld [vmem:[%s165 + $0x94] sm:$0xf]
      %v1683 = vld [vmem:[%s165 + $0x98] sm:$0x1]
      %s1684 = scalar_lea.vmem %s1, 8
      %v1685 = vld [vmem:[%s1684] sm:$0x3]
      %v1723 = vunpack.c.l.b16 %v1647
      %v1724 = vunpack.c.l.b16 %v1648
      %v1725 = vunpack.c.l.b16 %v1649
      %v1726 = vunpack.c.l.b16 %v1650
      %v1727 = vunpack.c.l.b16 %v1651
      %v1728 = vunpack.c.l.b16 %v1652
      %v1729 = vunpack.c.l.b16 %v1653
      %v1730 = vunpack.c.l.b16 %v1654
      %v1731 = vunpack.c.l.b16 %v1655
      %v1732 = vunpack.c.l.b16 %v1656
      %v1733 = vunpack.c.l.b16 %v1657
      %v1734 = vunpack.c.l.b16 %v1658
      %v1735 = vunpack.c.l.b16 %v1659
      %v1736 = vunpack.c.l.b16 %v1660
      %v1737 = vunpack.c.l.b16 %v1661
      %v1738 = vunpack.c.l.b16 %v1662
      %v1739 = vunpack.c.l.b16 %v1663
      %v1740 = vunpack.c.l.b16 %v1664
      %v1741 = vunpack.c.l.b16 %v1665
      %v1742 = vunpack.c.l.b16 %v1666
      %v1743 = vunpack.c.l.b16 %v1667
      %v1744 = vunpack.c.l.b16 %v1668
      %v1745 = vunpack.c.l.b16 %v1669
      %v1746 = vunpack.c.l.b16 %v1670
      %v1747 = vunpack.c.l.b16 %v1671
      %v1748 = vunpack.c.l.b16 %v1672
      %v1749 = vunpack.c.l.b16 %v1673
      %v1750 = vunpack.c.l.b16 %v1674
      %v1751 = vunpack.c.l.b16 %v1675
      %v1752 = vunpack.c.l.b16 %v1676
      %v1753 = vunpack.c.l.b16 %v1677
      %v1754 = vunpack.c.l.b16 %v1678
      %v1755 = vunpack.c.l.b16 %v1679
      %v1756 = vunpack.c.l.b16 %v1680
      %v1757 = vunpack.c.l.b16 %v1681
      %v1758 = vunpack.c.l.b16 %v1682
      %v1759 = vunpack.c.l.b16 %v1683
      %v1760 = vpack.c.b16 %v1724, %v1723
      %v1761 = vpack.c.b16 %v1726, %v1725
      %v1762 = vpack.c.b16 %v1728, %v1727
      %v1763 = vpack.c.b16 %v1730, %v1729
      %v1764 = vpack.c.b16 %v1732, %v1731
      %v1765 = vpack.c.b16 %v1734, %v1733
      %v1766 = vpack.c.b16 %v1736, %v1735
      %v1767 = vpack.c.b16 %v1738, %v1737
      %v1768 = vpack.c.b16 %v1740, %v1739
      %v1769 = vpack.c.b16 %v1742, %v1741
      %v1770 = vpack.c.b16 %v1744, %v1743
      %v1771 = vpack.c.b16 %v1746, %v1745
      %v1772 = vpack.c.b16 %v1748, %v1747
      %v1773 = vpack.c.b16 %v1750, %v1749
      %v1774 = vpack.c.b16 %v1752, %v1751
      %v1775 = vpack.c.b16 %v1754, %v1753
      %v1776 = vpack.c.b16 %v1756, %v1755
      %v1777 = vpack.c.b16 %v1758, %v1757
      %v1778 = vpack.c.b16 %v1759, %v1759
      %vm1779 = vsmask.f32 6400
      %v1781 = vshrl.u32 %v1760, 16
      %v1783 = vrot.slane %v1781, 1
      %v1784 = vshll.u32 %v1760, 16
      %v1786 = vrot.slane %v1784, 2
      %v1787 = vor.u32 %v1783, %v1786
      %v1789 = vshrl.u32 %v1761, 16
      %v1791 = vrot.slane %v1789, 1
      %v1792 = vshll.u32 %v1761, 16
      %v1794 = vrot.slane %v1792, 2
      %v1795 = vor.u32 %v1791, %v1794
      %v1796 = vsel %vm1779, %v1787, %v1795
      %v1798 = vshrl.u32 %v1762, 16
      %v1800 = vrot.slane %v1798, 1
      %v1801 = vshll.u32 %v1762, 16
      %v1803 = vrot.slane %v1801, 2
      %v1804 = vor.u32 %v1800, %v1803
      %v1805 = vsel %vm1779, %v1795, %v1804
      %v1807 = vshrl.u32 %v1763, 16
      %v1809 = vrot.slane %v1807, 1
      %v1810 = vshll.u32 %v1763, 16
      %v1812 = vrot.slane %v1810, 2
      %v1813 = vor.u32 %v1809, %v1812
      %v1814 = vsel %vm1779, %v1804, %v1813
      %v1816 = vshrl.u32 %v1764, 16
      %v1818 = vrot.slane %v1816, 1
      %v1819 = vshll.u32 %v1764, 16
      %v1821 = vrot.slane %v1819, 2
      %v1822 = vor.u32 %v1818, %v1821
      %v1823 = vsel %vm1779, %v1813, %v1822
      %v1825 = vshrl.u32 %v1765, 16
      %v1827 = vrot.slane %v1825, 1
      %v1828 = vshll.u32 %v1765, 16
      %v1830 = vrot.slane %v1828, 2
      %v1831 = vor.u32 %v1827, %v1830
      %v1832 = vsel %vm1779, %v1822, %v1831
      %v1834 = vshrl.u32 %v1766, 16
      %v1836 = vrot.slane %v1834, 1
      %v1837 = vshll.u32 %v1766, 16
      %v1839 = vrot.slane %v1837, 2
      %v1840 = vor.u32 %v1836, %v1839
      %v1841 = vsel %vm1779, %v1831, %v1840
      %v1843 = vshrl.u32 %v1767, 16
      %v1845 = vrot.slane %v1843, 1
      %v1846 = vshll.u32 %v1767, 16
      %v1848 = vrot.slane %v1846, 2
      %v1849 = vor.u32 %v1845, %v1848
      %v1850 = vsel %vm1779, %v1840, %v1849
      %v1852 = vshrl.u32 %v1768, 16
      %v1854 = vrot.slane %v1852, 1
      %v1855 = vshll.u32 %v1768, 16
      %v1857 = vrot.slane %v1855, 2
      %v1858 = vor.u32 %v1854, %v1857
      %v1859 = vsel %vm1779, %v1849, %v1858
      %v1861 = vshrl.u32 %v1769, 16
      %v1863 = vrot.slane %v1861, 1
      %v1864 = vshll.u32 %v1769, 16
      %v1866 = vrot.slane %v1864, 2
      %v1867 = vor.u32 %v1863, %v1866
      %v1868 = vsel %vm1779, %v1858, %v1867
      %v1870 = vshrl.u32 %v1770, 16
      %v1872 = vrot.slane %v1870, 1
      %v1873 = vshll.u32 %v1770, 16
      %v1875 = vrot.slane %v1873, 2
      %v1876 = vor.u32 %v1872, %v1875
      %v1877 = vsel %vm1779, %v1867, %v1876
      %v1879 = vshrl.u32 %v1771, 16
      %v1881 = vrot.slane %v1879, 1
      %v1882 = vshll.u32 %v1771, 16
      %v1884 = vrot.slane %v1882, 2
      %v1885 = vor.u32 %v1881, %v1884
      %v1886 = vsel %vm1779, %v1876, %v1885
      %v1888 = vshrl.u32 %v1772, 16
      %v1890 = vrot.slane %v1888, 1
      %v1891 = vshll.u32 %v1772, 16
      %v1893 = vrot.slane %v1891, 2
      %v1894 = vor.u32 %v1890, %v1893
      %v1895 = vsel %vm1779, %v1885, %v1894
      %v1897 = vshrl.u32 %v1773, 16
      %v1899 = vrot.slane %v1897, 1
      %v1900 = vshll.u32 %v1773, 16
      %v1902 = vrot.slane %v1900, 2
      %v1903 = vor.u32 %v1899, %v1902
      %v1904 = vsel %vm1779, %v1894, %v1903
      %v1906 = vshrl.u32 %v1774, 16
      %v1908 = vrot.slane %v1906, 1
      %v1909 = vshll.u32 %v1774, 16
      %v1911 = vrot.slane %v1909, 2
      %v1912 = vor.u32 %v1908, %v1911
      %v1913 = vsel %vm1779, %v1903, %v1912
      %v1915 = vshrl.u32 %v1775, 16
      %v1917 = vrot.slane %v1915, 1
      %v1918 = vshll.u32 %v1775, 16
      %v1920 = vrot.slane %v1918, 2
      %v1921 = vor.u32 %v1917, %v1920
      %v1922 = vsel %vm1779, %v1912, %v1921
      %v1924 = vshrl.u32 %v1776, 16
      %v1926 = vrot.slane %v1924, 1
      %v1927 = vshll.u32 %v1776, 16
      %v1929 = vrot.slane %v1927, 2
      %v1930 = vor.u32 %v1926, %v1929
      %v1931 = vsel %vm1779, %v1921, %v1930
      %v1933 = vshrl.u32 %v1777, 16
      %v1935 = vrot.slane %v1933, 1
      %v1936 = vshll.u32 %v1777, 16
      %v1938 = vrot.slane %v1936, 2
      %v1939 = vor.u32 %v1935, %v1938
      %v1940 = vsel %vm1779, %v1930, %v1939
      %v1942 = vshll.u32 %v1778, 16
      %v1944 = vrot.slane %v1942, 2
      %v1945 = vsel %vm1779, %v1939, %v1944
      %v1947 = vsel %vm446, %v1796, 0
      %v1950 = vsel %vm446, %v1805, 0
      %v1953 = vsel %vm446, %v1814, 0
      %v1956 = vsel %vm446, %v1823, 0
      %v1959 = vsel %vm446, %v1832, 0
      %v1962 = vsel %vm446, %v1841, 0
      %v1965 = vsel %vm446, %v1850, 0
      %v1968 = vsel %vm446, %v1859, 0
      %v1971 = vsel %vm446, %v1868, 0
      %v1974 = vsel %vm446, %v1877, 0
      %v1977 = vsel %vm446, %v1886, 0
      %v1980 = vsel %vm446, %v1895, 0
      %v1983 = vsel %vm446, %v1904, 0
      %v1986 = vsel %vm446, %v1913, 0
      %v1989 = vsel %vm446, %v1922, 0
      %v1992 = vsel %vm446, %v1931, 0
      %v1995 = vsel %vm446, %v1940, 0
      %v1998 = vsel %vm446, %v1945, 0
      %v2001 = vsel %vm501, %v1685, 0
      %2003 = vmatprep.subr.bf16.mxu0 0
      %2004 = vmatpush1.bf16.msra.mxu0 %v2001
      %2005 = vmatprep.subr.bf16.mxu0 0
      %2006 = vmatpush1.bf16.msra.mxu0 0
      %2007 = vmatprep.subr.bf16.mxu0 0
      %2008 = vmatpush1.bf16.msra.mxu0 0
      %2009 = vmatprep.subr.bf16.mxu0 0
      %2010 = vmatpush1.bf16.msra.mxu0 0
      %2011 = vmatprep.subr.bf16.mxu0 0
      %2012 = vmatpush1.bf16.msra.mxu0 0
      %2013 = vmatprep.subr.bf16.mxu0 0
      %2014 = vmatpush1.bf16.msra.mxu0 0
      %2015 = vmatprep.subr.bf16.mxu0 0
      %2016 = vmatpush1.bf16.msra.mxu0 0
      %2017 = vmatprep.subr.bf16.mxu0 0
      %2018 = vmatpush1.bf16.msra.mxu0 0
      %2019 = vmatprep.subr.bf16.mxu0 0
      %2020 = vmatpush1.bf16.msra.mxu0 0
      %2021 = vmatprep.subr.bf16.mxu0 0
      %2022 = vmatpush1.bf16.msra.mxu0 0
      %2023 = vmatprep.subr.bf16.mxu0 0
      %2024 = vmatpush1.bf16.msra.mxu0 0
      %2025 = vmatprep.subr.bf16.mxu0 0
      %2026 = vmatpush1.bf16.msra.mxu0 0
      %2027 = vmatprep.subr.bf16.mxu0 0
      %2028 = vmatpush1.bf16.msra.mxu0 0
      %2029 = vmatprep.subr.bf16.mxu0 0
      %2030 = vmatpush1.bf16.msra.mxu0 0
      %2031 = vmatprep.subr.bf16.mxu0 0
      %2032 = vmatpush1.bf16.msra.mxu0 0
      %2033 = vmatprep.subr.bf16.mxu0 0
      %2034 = vmatpush1.bf16.msra.mxu0 0
      %2035 = vmatprep.mubr.bf16.mxu0 0
      %2036 = vmatmul.mubr.bf16.gmra.mrb[0].mxu0 %v1947
      %v2037 = vpop.f32.mrb[0].mxu0
      %v2038 = vadd.f32 0.0, %v2037
      %v2039 = vpop.f32.mrb[0].mxu0
      %v2040 = vpop.f32.mrb[0].mxu0
      %v2041 = vadd.f32 0.0, %v2040
      %v2042 = vpop.f32.mrb[0].mxu0
      %2043 = vmatprep.mubr.bf16.mxu0 0
      %2044 = vmatmul.mubr.bf16.gmra.mrb[0].mxu0 %v1950
      %v2045 = vpop.f32.mrb[0].mxu0
      %v2046 = vadd.f32 0.0, %v2045
      %v2047 = vpop.f32.mrb[0].mxu0
      %v2048 = vpop.f32.mrb[0].mxu0
      %v2049 = vadd.f32 0.0, %v2048
      %v2050 = vpop.f32.mrb[0].mxu0
      %2051 = vmatprep.mubr.bf16.mxu0 0
      %2052 = vmatmul.mubr.bf16.gmra.mrb[0].mxu0 %v1953
      %v2053 = vpop.f32.mrb[0].mxu0
      %v2054 = vadd.f32 0.0, %v2053
      %v2055 = vpop.f32.mrb[0].mxu0
      %v2056 = vpop.f32.mrb[0].mxu0
      %v2057 = vadd.f32 0.0, %v2056
      %v2058 = vpop.f32.mrb[0].mxu0
      %2059 = vmatprep.mubr.bf16.mxu0 0
      %2060 = vmatmul.mubr.bf16.gmra.mrb[0].mxu0 %v1956
      %v2061 = vpop.f32.mrb[0].mxu0
      %v2062 = vadd.f32 0.0, %v2061
      %v2063 = vpop.f32.mrb[0].mxu0
      %v2064 = vpop.f32.mrb[0].mxu0
      %v2065 = vadd.f32 0.0, %v2064
      %v2066 = vpop.f32.mrb[0].mxu0
      %2067 = vmatprep.mubr.bf16.mxu0 0
      %2068 = vmatmul.mubr.bf16.gmra.mrb[0].mxu0 %v1959
      %v2069 = vpop.f32.mrb[0].mxu0
      %v2070 = vadd.f32 0.0, %v2069
      %v2071 = vpop.f32.mrb[0].mxu0
      %v2072 = vpop.f32.mrb[0].mxu0
      %v2073 = vadd.f32 0.0, %v2072
      %v2074 = vpop.f32.mrb[0].mxu0
      %2075 = vmatprep.mubr.bf16.mxu0 0
      %2076 = vmatmul.mubr.bf16.gmra.mrb[0].mxu0 %v1962
      %v2077 = vpop.f32.mrb[0].mxu0
      %v2078 = vadd.f32 0.0, %v2077
      %v2079 = vpop.f32.mrb[0].mxu0
      %v2080 = vpop.f32.mrb[0].mxu0
      %v2081 = vadd.f32 0.0, %v2080
      %v2082 = vpop.f32.mrb[0].mxu0
      %2083 = vmatprep.mubr.bf16.mxu0 0
      %2084 = vmatmul.mubr.bf16.gmra.mrb[0].mxu0 %v1965
      %v2085 = vpop.f32.mrb[0].mxu0
      %v2086 = vadd.f32 0.0, %v2085
      %v2087 = vpop.f32.mrb[0].mxu0
      %v2088 = vpop.f32.mrb[0].mxu0
      %v2089 = vadd.f32 0.0, %v2088
      %v2090 = vpop.f32.mrb[0].mxu0
      %2091 = vmatprep.mubr.bf16.mxu0 0
      %2092 = vmatmul.mubr.bf16.gmra.mrb[0].mxu0 %v1968
      %v2093 = vpop.f32.mrb[0].mxu0
      %v2094 = vadd.f32 0.0, %v2093
      %v2095 = vpop.f32.mrb[0].mxu0
      %v2096 = vpop.f32.mrb[0].mxu0
      %v2097 = vadd.f32 0.0, %v2096
      %v2098 = vpop.f32.mrb[0].mxu0
      %2099 = vmatprep.mubr.bf16.mxu0 0
      %2100 = vmatmul.mubr.bf16.gmra.mrb[0].mxu0 %v1971
      %v2101 = vpop.f32.mrb[0].mxu0
      %v2102 = vadd.f32 0.0, %v2101
      %v2103 = vpop.f32.mrb[0].mxu0
      %v2104 = vpop.f32.mrb[0].mxu0
      %v2105 = vadd.f32 0.0, %v2104
      %v2106 = vpop.f32.mrb[0].mxu0
      %2107 = vmatprep.mubr.bf16.mxu0 0
      %2108 = vmatmul.mubr.bf16.gmra.mrb[0].mxu0 %v1974
      %v2109 = vpop.f32.mrb[0].mxu0
      %v2110 = vadd.f32 0.0, %v2109
      %v2111 = vpop.f32.mrb[0].mxu0
      %v2112 = vpop.f32.mrb[0].mxu0
      %v2113 = vadd.f32 0.0, %v2112
      %v2114 = vpop.f32.mrb[0].mxu0
      %2115 = vmatprep.mubr.bf16.mxu0 0
      %2116 = vmatmul.mubr.bf16.gmra.mrb[0].mxu0 %v1977
      %v2117 = vpop.f32.mrb[0].mxu0
      %v2118 = vadd.f32 0.0, %v2117
      %v2119 = vpop.f32.mrb[0].mxu0
      %v2120 = vpop.f32.mrb[0].mxu0
      %v2121 = vadd.f32 0.0, %v2120
      %v2122 = vpop.f32.mrb[0].mxu0
      %2123 = vmatprep.mubr.bf16.mxu0 0
      %2124 = vmatmul.mubr.bf16.gmra.mrb[0].mxu0 %v1980
      %v2125 = vpop.f32.mrb[0].mxu0
      %v2126 = vadd.f32 0.0, %v2125
      %v2127 = vpop.f32.mrb[0].mxu0
      %v2128 = vpop.f32.mrb[0].mxu0
      %v2129 = vadd.f32 0.0, %v2128
      %v2130 = vpop.f32.mrb[0].mxu0
      %2131 = vmatprep.mubr.bf16.mxu0 0
      %2132 = vmatmul.mubr.bf16.gmra.mrb[0].mxu0 %v1983
      %v2133 = vpop.f32.mrb[0].mxu0
      %v2134 = vadd.f32 0.0, %v2133
      %v2135 = vpop.f32.mrb[0].mxu0
      %v2136 = vpop.f32.mrb[0].mxu0
      %v2137 = vadd.f32 0.0, %v2136
      %v2138 = vpop.f32.mrb[0].mxu0
      %2139 = vmatprep.mubr.bf16.mxu0 0
      %2140 = vmatmul.mubr.bf16.gmra.mrb[0].mxu0 %v1986
      %v2141 = vpop.f32.mrb[0].mxu0
      %v2142 = vadd.f32 0.0, %v2141
      %v2143 = vpop.f32.mrb[0].mxu0
      %v2144 = vpop.f32.mrb[0].mxu0
      %v2145 = vadd.f32 0.0, %v2144
      %v2146 = vpop.f32.mrb[0].mxu0
      %2147 = vmatprep.mubr.bf16.mxu0 0
      %2148 = vmatmul.mubr.bf16.gmra.mrb[0].mxu0 %v1989
      %v2149 = vpop.f32.mrb[0].mxu0
      %v2150 = vadd.f32 0.0, %v2149
      %v2151 = vpop.f32.mrb[0].mxu0
      %v2152 = vpop.f32.mrb[0].mxu0
      %v2153 = vadd.f32 0.0, %v2152
      %v2154 = vpop.f32.mrb[0].mxu0
      %2155 = vmatprep.mubr.bf16.mxu0 0
      %2156 = vmatmul.mubr.bf16.gmra.mrb[0].mxu0 %v1992
      %v2157 = vpop.f32.mrb[0].mxu0
      %v2158 = vadd.f32 0.0, %v2157
      %v2159 = vpop.f32.mrb[0].mxu0
      %v2160 = vpop.f32.mrb[0].mxu0
      %v2161 = vadd.f32 0.0, %v2160
      %v2162 = vpop.f32.mrb[0].mxu0
      %2163 = vmatprep.mubr.bf16.mxu0 0
      %2164 = vmatmul.mubr.bf16.gmra.mrb[0].mxu0 %v1995
      %v2165 = vpop.f32.mrb[0].mxu0
      %v2166 = vadd.f32 0.0, %v2165
      %v2167 = vpop.f32.mrb[0].mxu0
      %v2168 = vpop.f32.mrb[0].mxu0
      %v2169 = vadd.f32 0.0, %v2168
      %v2170 = vpop.f32.mrb[0].mxu0
      %2171 = vmatprep.mubr.bf16.mxu0 0
      %2172 = vmatmul.mubr.bf16.gmra.mrb[0].mxu0 %v1998
      %v2173 = vpop.f32.mrb[0].mxu0
      %v2174 = vadd.f32 0.0, %v2173
      %v2175 = vpop.f32.mrb[0].mxu0
      %v2176 = vpop.f32.mrb[0].mxu0
      %v2177 = vadd.f32 0.0, %v2176
      %v2178 = vpop.f32.mrb[0].mxu0
      %2179 = vdwg.mxu0
      %v2180 = vadd.f32 %v1611, %v2038
      %v2181 = vadd.f32 %v1612, %v2041
      %v2182 = vadd.f32 %v1613, %v2046
      %v2183 = vadd.f32 %v1614, %v2049
      %v2184 = vadd.f32 %v1615, %v2054
      %v2185 = vadd.f32 %v1616, %v2057
      %v2186 = vadd.f32 %v1617, %v2062
      %v2187 = vadd.f32 %v1618, %v2065
      %v2188 = vadd.f32 %v1619, %v2070
      %v2189 = vadd.f32 %v1620, %v2073
      %v2190 = vadd.f32 %v1621, %v2078
      %v2191 = vadd.f32 %v1622, %v2081
      %v2192 = vadd.f32 %v1623, %v2086
      %v2193 = vadd.f32 %v1624, %v2089
      %v2194 = vadd.f32 %v1625, %v2094
      %v2195 = vadd.f32 %v1626, %v2097
      %v2196 = vadd.f32 %v1627, %v2102
      %v2197 = vadd.f32 %v1628, %v2105
      %v2198 = vadd.f32 %v1629, %v2110
      %v2199 = vadd.f32 %v1630, %v2113
      %v2200 = vadd.f32 %v1631, %v2118
      %v2201 = vadd.f32 %v1632, %v2121
      %v2202 = vadd.f32 %v1633, %v2126
      %v2203 = vadd.f32 %v1634, %v2129
      %v2204 = vadd.f32 %v1635, %v2134
      %v2205 = vadd.f32 %v1636, %v2137
      %v2206 = vadd.f32 %v1637, %v2142
      %v2207 = vadd.f32 %v1638, %v2145
      %v2208 = vadd.f32 %v1639, %v2150
      %v2209 = vadd.f32 %v1640, %v2153
      %v2210 = vadd.f32 %v1641, %v2158
      %v2211 = vadd.f32 %v1642, %v2161
      %v2212 = vadd.f32 %v1643, %v2166
      %v2213 = vadd.f32 %v1644, %v2169
      %v2214 = vadd.f32 %v1645, %v2174
      %v2215 = vadd.f32 %v1646, %v2177
      %v2216 = vld [vmem:[%s165 + $0x8] sm:$0xc]
      %s2217 = scalar_lea.vmem %s1, 10
      %v2218 = vld [vmem:[%s2217] sm:$0x3]
      %v2220 = vunpack.c.l.b16 %v2216
      %v2221 = vpack.c.b16 %v1724, %v2220
      %vm2222 = vcmask 1045504
      %v2223 = vrot.slane %v2221, 2
      %v2224 = vrot.slane %v1761, 2
      %v2225 = vsel %vm2222, %v2223, %v2224
      %v2226 = vrot.slane %v1762, 2
      %v2227 = vsel %vm2222, %v2224, %v2226
      %v2228 = vrot.slane %v1763, 2
      %v2229 = vsel %vm2222, %v2226, %v2228
      %v2230 = vrot.slane %v1764, 2
      %v2231 = vsel %vm2222, %v2228, %v2230
      %v2232 = vrot.slane %v1765, 2
      %v2233 = vsel %vm2222, %v2230, %v2232
      %v2234 = vrot.slane %v1766, 2
      %v2235 = vsel %vm2222, %v2232, %v2234
      %v2236 = vrot.slane %v1767, 2
      %v2237 = vsel %vm2222, %v2234, %v2236
      %v2238 = vrot.slane %v1768, 2
      %v2239 = vsel %vm2222, %v2236, %v2238
      %v2240 = vrot.slane %v1769, 2
      %v2241 = vsel %vm2222, %v2238, %v2240
      %v2242 = vrot.slane %v1770, 2
      %v2243 = vsel %vm2222, %v2240, %v2242
      %v2244 = vrot.slane %v1771, 2
      %v2245 = vsel %vm2222, %v2242, %v2244
      %v2246 = vrot.slane %v1772, 2
      %v2247 = vsel %vm2222, %v2244, %v2246
      %v2248 = vrot.slane %v1773, 2
      %v2249 = vsel %vm2222, %v2246, %v2248
      %v2250 = vrot.slane %v1774, 2
      %v2251 = vsel %vm2222, %v2248, %v2250
      %v2252 = vrot.slane %v1775, 2
      %v2253 = vsel %vm2222, %v2250, %v2252
      %v2254 = vrot.slane %v1776, 2
      %v2255 = vsel %vm2222, %v2252, %v2254
      %v2256 = vrot.slane %v1777, 2
      %v2257 = vsel %vm2222, %v2254, %v2256
      %v2258 = vrot.slane %v1778, 2
      %v2259 = vsel %vm2222, %v2256, %v2258
      %v2261 = vsel %vm446, %v2225, 0
      %v2264 = vsel %vm446, %v2227, 0
      %v2267 = vsel %vm446, %v2229, 0
      %v2270 = vsel %vm446, %v2231, 0
      %v2273 = vsel %vm446, %v2233, 0
      %v2276 = vsel %vm446, %v2235, 0
      %v2279 = vsel %vm446, %v2237, 0
      %v2282 = vsel %vm446, %v2239, 0
      %v2285 = vsel %vm446, %v2241, 0
      %v2288 = vsel %vm446, %v2243, 0
      %v2291 = vsel %vm446, %v2245, 0
      %v2294 = vsel %vm446, %v2247, 0
      %v2297 = vsel %vm446, %v2249, 0
      %v2300 = vsel %vm446, %v2251, 0
      %v2303 = vsel %vm446, %v2253, 0
      %v2306 = vsel %vm446, %v2255, 0
      %v2309 = vsel %vm446, %v2257, 0
      %v2312 = vsel %vm446, %v2259, 0
      %v2315 = vsel %vm501, %v2218, 0
      %2317 = vmatprep.subr.bf16.mxu0 0
      %2318 = vmatpush1.bf16.msra.mxu0 %v2315
      %2319 = vmatprep.subr.bf16.mxu0 0
      %2320 = vmatpush1.bf16.msra.mxu0 0
      %2321 = vmatprep.subr.bf16.mxu0 0
      %2322 = vmatpush1.bf16.msra.mxu0 0
      %2323 = vmatprep.subr.bf16.mxu0 0
      %2324 = vmatpush1.bf16.msra.mxu0 0
      %2325 = vmatprep.subr.bf16.mxu0 0
      %2326 = vmatpush1.bf16.msra.mxu0 0
      %2327 = vmatprep.subr.bf16.mxu0 0
      %2328 = vmatpush1.bf16.msra.mxu0 0
      %2329 = vmatprep.subr.bf16.mxu0 0
      %2330 = vmatpush1.bf16.msra.mxu0 0
      %2331 = vmatprep.subr.bf16.mxu0 0
      %2332 = vmatpush1.bf16.msra.mxu0 0
      %2333 = vmatprep.subr.bf16.mxu0 0
      %2334 = vmatpush1.bf16.msra.mxu0 0
      %2335 = vmatprep.subr.bf16.mxu0 0
      %2336 = vmatpush1.bf16.msra.mxu0 0
      %2337 = vmatprep.subr.bf16.mxu0 0
      %2338 = vmatpush1.bf16.msra.mxu0 0
      %2339 = vmatprep.subr.bf16.mxu0 0
      %2340 = vmatpush1.bf16.msra.mxu0 0
      %2341 = vmatprep.subr.bf16.mxu0 0
      %2342 = vmatpush1.bf16.msra.mxu0 0
      %2343 = vmatprep.subr.bf16.mxu0 0
      %2344 = vmatpush1.bf16.msra.mxu0 0
      %2345 = vmatprep.subr.bf16.mxu0 0
      %2346 = vmatpush1.bf16.msra.mxu0 0
      %2347 = vmatprep.subr.bf16.mxu0 0
      %2348 = vmatpush1.bf16.msra.mxu0 0
      %2349 = vmatprep.mubr.bf16.mxu0 0
      %2350 = vmatmul.mubr.bf16.gmra.mrb[0].mxu0 %v2261
      %v2351 = vpop.f32.mrb[0].mxu0
      %v2352 = vadd.f32 0.0, %v2351
      %v2353 = vpop.f32.mrb[0].mxu0
      %v2354 = vpop.f32.mrb[0].mxu0
      %v2355 = vadd.f32 0.0, %v2354
      %v2356 = vpop.f32.mrb[0].mxu0
      %2357 = vmatprep.mubr.bf16.mxu0 0
      %2358 = vmatmul.mubr.bf16.gmra.mrb[0].mxu0 %v2264
      %v2359 = vpop.f32.mrb[0].mxu0
      %v2360 = vadd.f32 0.0, %v2359
      %v2361 = vpop.f32.mrb[0].mxu0
      %v2362 = vpop.f32.mrb[0].mxu0
      %v2363 = vadd.f32 0.0, %v2362
      %v2364 = vpop.f32.mrb[0].mxu0
      %2365 = vmatprep.mubr.bf16.mxu0 0
      %2366 = vmatmul.mubr.bf16.gmra.mrb[0].mxu0 %v2267
      %v2367 = vpop.f32.mrb[0].mxu0
      %v2368 = vadd.f32 0.0, %v2367
      %v2369 = vpop.f32.mrb[0].mxu0
      %v2370 = vpop.f32.mrb[0].mxu0
      %v2371 = vadd.f32 0.0, %v2370
      %v2372 = vpop.f32.mrb[0].mxu0
      %2373 = vmatprep.mubr.bf16.mxu0 0
      %2374 = vmatmul.mubr.bf16.gmra.mrb[0].mxu0 %v2270
      %v2375 = vpop.f32.mrb[0].mxu0
      %v2376 = vadd.f32 0.0, %v2375
      %v2377 = vpop.f32.mrb[0].mxu0
      %v2378 = vpop.f32.mrb[0].mxu0
      %v2379 = vadd.f32 0.0, %v2378
      %v2380 = vpop.f32.mrb[0].mxu0
      %2381 = vmatprep.mubr.bf16.mxu0 0
      %2382 = vmatmul.mubr.bf16.gmra.mrb[0].mxu0 %v2273
      %v2383 = vpop.f32.mrb[0].mxu0
      %v2384 = vadd.f32 0.0, %v2383
      %v2385 = vpop.f32.mrb[0].mxu0
      %v2386 = vpop.f32.mrb[0].mxu0
      %v2387 = vadd.f32 0.0, %v2386
      %v2388 = vpop.f32.mrb[0].mxu0
      %2389 = vmatprep.mubr.bf16.mxu0 0
      %2390 = vmatmul.mubr.bf16.gmra.mrb[0].mxu0 %v2276
      %v2391 = vpop.f32.mrb[0].mxu0
      %v2392 = vadd.f32 0.0, %v2391
      %v2393 = vpop.f32.mrb[0].mxu0
      %v2394 = vpop.f32.mrb[0].mxu0
      %v2395 = vadd.f32 0.0, %v2394
      %v2396 = vpop.f32.mrb[0].mxu0
      %2397 = vmatprep.mubr.bf16.mxu0 0
      %2398 = vmatmul.mubr.bf16.gmra.mrb[0].mxu0 %v2279
      %v2399 = vpop.f32.mrb[0].mxu0
      %v2400 = vadd.f32 0.0, %v2399
      %v2401 = vpop.f32.mrb[0].mxu0
      %v2402 = vpop.f32.mrb[0].mxu0
      %v2403 = vadd.f32 0.0, %v2402
      %v2404 = vpop.f32.mrb[0].mxu0
      %2405 = vmatprep.mubr.bf16.mxu0 0
      %2406 = vmatmul.mubr.bf16.gmra.mrb[0].mxu0 %v2282
      %v2407 = vpop.f32.mrb[0].mxu0
      %v2408 = vadd.f32 0.0, %v2407
      %v2409 = vpop.f32.mrb[0].mxu0
      %v2410 = vpop.f32.mrb[0].mxu0
      %v2411 = vadd.f32 0.0, %v2410
      %v2412 = vpop.f32.mrb[0].mxu0
      %2413 = vmatprep.mubr.bf16.mxu0 0
      %2414 = vmatmul.mubr.bf16.gmra.mrb[0].mxu0 %v2285
      %v2415 = vpop.f32.mrb[0].mxu0
      %v2416 = vadd.f32 0.0, %v2415
      %v2417 = vpop.f32.mrb[0].mxu0
      %v2418 = vpop.f32.mrb[0].mxu0
      %v2419 = vadd.f32 0.0, %v2418
      %v2420 = vpop.f32.mrb[0].mxu0
      %2421 = vmatprep.mubr.bf16.mxu0 0
      %2422 = vmatmul.mubr.bf16.gmra.mrb[0].mxu0 %v2288
      %v2423 = vpop.f32.mrb[0].mxu0
      %v2424 = vadd.f32 0.0, %v2423
      %v2425 = vpop.f32.mrb[0].mxu0
      %v2426 = vpop.f32.mrb[0].mxu0
      %v2427 = vadd.f32 0.0, %v2426
      %v2428 = vpop.f32.mrb[0].mxu0
      %2429 = vmatprep.mubr.bf16.mxu0 0
      %2430 = vmatmul.mubr.bf16.gmra.mrb[0].mxu0 %v2291
      %v2431 = vpop.f32.mrb[0].mxu0
      %v2432 = vadd.f32 0.0, %v2431
      %v2433 = vpop.f32.mrb[0].mxu0
      %v2434 = vpop.f32.mrb[0].mxu0
      %v2435 = vadd.f32 0.0, %v2434
      %v2436 = vpop.f32.mrb[0].mxu0
      %2437 = vmatprep.mubr.bf16.mxu0 0
      %2438 = vmatmul.mubr.bf16.gmra.mrb[0].mxu0 %v2294
      %v2439 = vpop.f32.mrb[0].mxu0
      %v2440 = vadd.f32 0.0, %v2439
      %v2441 = vpop.f32.mrb[0].mxu0
      %v2442 = vpop.f32.mrb[0].mxu0
      %v2443 = vadd.f32 0.0, %v2442
      %v2444 = vpop.f32.mrb[0].mxu0
      %2445 = vmatprep.mubr.bf16.mxu0 0
      %2446 = vmatmul.mubr.bf16.gmra.mrb[0].mxu0 %v2297
      %v2447 = vpop.f32.mrb[0].mxu0
      %v2448 = vadd.f32 0.0, %v2447
      %v2449 = vpop.f32.mrb[0].mxu0
      %v2450 = vpop.f32.mrb[0].mxu0
      %v2451 = vadd.f32 0.0, %v2450
      %v2452 = vpop.f32.mrb[0].mxu0
      %2453 = vmatprep.mubr.bf16.mxu0 0
      %2454 = vmatmul.mubr.bf16.gmra.mrb[0].mxu0 %v2300
      %v2455 = vpop.f32.mrb[0].mxu0
      %v2456 = vadd.f32 0.0, %v2455
      %v2457 = vpop.f32.mrb[0].mxu0
      %v2458 = vpop.f32.mrb[0].mxu0
      %v2459 = vadd.f32 0.0, %v2458
      %v2460 = vpop.f32.mrb[0].mxu0
      %2461 = vmatprep.mubr.bf16.mxu0 0
      %2462 = vmatmul.mubr.bf16.gmra.mrb[0].mxu0 %v2303
      %v2463 = vpop.f32.mrb[0].mxu0
      %v2464 = vadd.f32 0.0, %v2463
      %v2465 = vpop.f32.mrb[0].mxu0
      %v2466 = vpop.f32.mrb[0].mxu0
      %v2467 = vadd.f32 0.0, %v2466
      %v2468 = vpop.f32.mrb[0].mxu0
      %2469 = vmatprep.mubr.bf16.mxu0 0
      %2470 = vmatmul.mubr.bf16.gmra.mrb[0].mxu0 %v2306
      %v2471 = vpop.f32.mrb[0].mxu0
      %v2472 = vadd.f32 0.0, %v2471
      %v2473 = vpop.f32.mrb[0].mxu0
      %v2474 = vpop.f32.mrb[0].mxu0
      %v2475 = vadd.f32 0.0, %v2474
      %v2476 = vpop.f32.mrb[0].mxu0
      %2477 = vmatprep.mubr.bf16.mxu0 0
      %2478 = vmatmul.mubr.bf16.gmra.mrb[0].mxu0 %v2309
      %v2479 = vpop.f32.mrb[0].mxu0
      %v2480 = vadd.f32 0.0, %v2479
      %v2481 = vpop.f32.mrb[0].mxu0
      %v2482 = vpop.f32.mrb[0].mxu0
      %v2483 = vadd.f32 0.0, %v2482
      %v2484 = vpop.f32.mrb[0].mxu0
      %2485 = vmatprep.mubr.bf16.mxu0 0
      %2486 = vmatmul.mubr.bf16.gmra.mrb[0].mxu0 %v2312
      %v2487 = vpop.f32.mrb[0].mxu0
      %v2488 = vadd.f32 0.0, %v2487
      %v2489 = vpop.f32.mrb[0].mxu0
      %v2490 = vpop.f32.mrb[0].mxu0
      %v2491 = vadd.f32 0.0, %v2490
      %v2492 = vpop.f32.mrb[0].mxu0
      %2493 = vdwg.mxu0
      %v2494 = vadd.f32 %v2180, %v2352
      %v2495 = vadd.f32 %v2181, %v2355
      %v2496 = vadd.f32 %v2182, %v2360
      %v2497 = vadd.f32 %v2183, %v2363
      %v2498 = vadd.f32 %v2184, %v2368
      %v2499 = vadd.f32 %v2185, %v2371
      %v2500 = vadd.f32 %v2186, %v2376
      %v2501 = vadd.f32 %v2187, %v2379
      %v2502 = vadd.f32 %v2188, %v2384
      %v2503 = vadd.f32 %v2189, %v2387
      %v2504 = vadd.f32 %v2190, %v2392
      %v2505 = vadd.f32 %v2191, %v2395
      %v2506 = vadd.f32 %v2192, %v2400
      %v2507 = vadd.f32 %v2193, %v2403
      %v2508 = vadd.f32 %v2194, %v2408
      %v2509 = vadd.f32 %v2195, %v2411
      %v2510 = vadd.f32 %v2196, %v2416
      %v2511 = vadd.f32 %v2197, %v2419
      %v2512 = vadd.f32 %v2198, %v2424
      %v2513 = vadd.f32 %v2199, %v2427
      %v2514 = vadd.f32 %v2200, %v2432
      %v2515 = vadd.f32 %v2201, %v2435
      %v2516 = vadd.f32 %v2202, %v2440
      %v2517 = vadd.f32 %v2203, %v2443
      %v2518 = vadd.f32 %v2204, %v2448
      %v2519 = vadd.f32 %v2205, %v2451
      %v2520 = vadd.f32 %v2206, %v2456
      %v2521 = vadd.f32 %v2207, %v2459
      %v2522 = vadd.f32 %v2208, %v2464
      %v2523 = vadd.f32 %v2209, %v2467
      %v2524 = vadd.f32 %v2210, %v2472
      %v2525 = vadd.f32 %v2211, %v2475
      %v2526 = vadd.f32 %v2212, %v2480
      %v2527 = vadd.f32 %v2213, %v2483
      %v2528 = vadd.f32 %v2214, %v2488
      %v2529 = vadd.f32 %v2215, %v2491
      %v2530 = vld [vmem:[%s165 + $0x10] sm:$0xc]
      %v2531 = vld [vmem:[%s165 + $0x14] sm:$0xf]
      %v2532 = vld [vmem:[%s165 + $0x18] sm:$0xf]
      %v2533 = vld [vmem:[%s165 + $0x1c] sm:$0xf]
      %v2534 = vld [vmem:[%s165 + $0x20] sm:$0xf]
      %v2535 = vld [vmem:[%s165 + $0x24] sm:$0xf]
      %v2536 = vld [vmem:[%s165 + $0x28] sm:$0xf]
      %v2537 = vld [vmem:[%s165 + $0x2c] sm:$0xf]
      %v2538 = vld [vmem:[%s165 + $0x30] sm:$0xf]
      %v2539 = vld [vmem:[%s165 + $0x34] sm:$0xf]
      %v2540 = vld [vmem:[%s165 + $0x38] sm:$0xf]
      %v2541 = vld [vmem:[%s165 + $0x3c] sm:$0xf]
      %v2542 = vld [vmem:[%s165 + $0x40] sm:$0xf]
      %v2543 = vld [vmem:[%s165 + $0x44] sm:$0xf]
      %v2544 = vld [vmem:[%s165 + $0x48] sm:$0xf]
      %v2545 = vld [vmem:[%s165 + $0x4c] sm:$0xf]
      %v2546 = vld [vmem:[%s165 + $0x50] sm:$0xf]
      %v2547 = vld [vmem:[%s165 + $0x54] sm:$0xf]
      %v2548 = vld [vmem:[%s165 + $0x58] sm:$0xf]
      %v2549 = vld [vmem:[%s165 + $0x5c] sm:$0xf]
      %v2550 = vld [vmem:[%s165 + $0x60] sm:$0xf]
      %v2551 = vld [vmem:[%s165 + $0x64] sm:$0xf]
      %v2552 = vld [vmem:[%s165 + $0x68] sm:$0xf]
      %v2553 = vld [vmem:[%s165 + $0x6c] sm:$0xf]
      %v2554 = vld [vmem:[%s165 + $0x70] sm:$0xf]
      %v2555 = vld [vmem:[%s165 + $0x74] sm:$0xf]
      %v2556 = vld [vmem:[%s165 + $0x78] sm:$0xf]
      %v2557 = vld [vmem:[%s165 + $0x7c] sm:$0xf]
      %v2558 = vld [vmem:[%s165 + $0x80] sm:$0xf]
      %v2559 = vld [vmem:[%s165 + $0x84] sm:$0xf]
      %v2560 = vld [vmem:[%s165 + $0x88] sm:$0xf]
      %v2561 = vld [vmem:[%s165 + $0x8c] sm:$0xf]
      %v2562 = vld [vmem:[%s165 + $0x90] sm:$0xf]
      %v2563 = vld [vmem:[%s165 + $0x94] sm:$0xf]
      %v2564 = vld [vmem:[%s165 + $0x98] sm:$0xf]
      %v2565 = vld [vmem:[%s165 + $0x9c] sm:$0xf]
      %v2566 = vld [vmem:[%s165 + $0xa0] sm:$0x1]
      %s2567 = scalar_lea.vmem %s1, 12
      %v2568 = vld [vmem:[%s2567] sm:$0x3]
      %v2606 = vunpack.c.l.b16 %v2530
      %v2607 = vunpack.c.l.b16 %v2531
      %v2608 = vunpack.c.l.b16 %v2532
      %v2609 = vunpack.c.l.b16 %v2533
      %v2610 = vunpack.c.l.b16 %v2534
      %v2611 = vunpack.c.l.b16 %v2535
      %v2612 = vunpack.c.l.b16 %v2536
      %v2613 = vunpack.c.l.b16 %v2537
      %v2614 = vunpack.c.l.b16 %v2538
      %v2615 = vunpack.c.l.b16 %v2539
      %v2616 = vunpack.c.l.b16 %v2540
      %v2617 = vunpack.c.l.b16 %v2541
      %v2618 = vunpack.c.l.b16 %v2542
      %v2619 = vunpack.c.l.b16 %v2543
      %v2620 = vunpack.c.l.b16 %v2544
      %v2621 = vunpack.c.l.b16 %v2545
      %v2622 = vunpack.c.l.b16 %v2546
      %v2623 = vunpack.c.l.b16 %v2547
      %v2624 = vunpack.c.l.b16 %v2548
      %v2625 = vunpack.c.l.b16 %v2549
      %v2626 = vunpack.c.l.b16 %v2550
      %v2627 = vunpack.c.l.b16 %v2551
      %v2628 = vunpack.c.l.b16 %v2552
      %v2629 = vunpack.c.l.b16 %v2553
      %v2630 = vunpack.c.l.b16 %v2554
      %v2631 = vunpack.c.l.b16 %v2555
      %v2632 = vunpack.c.l.b16 %v2556
      %v2633 = vunpack.c.l.b16 %v2557
      %v2634 = vunpack.c.l.b16 %v2558
      %v2635 = vunpack.c.l.b16 %v2559
      %v2636 = vunpack.c.l.b16 %v2560
      %v2637 = vunpack.c.l.b16 %v2561
      %v2638 = vunpack.c.l.b16 %v2562
      %v2639 = vunpack.c.l.b16 %v2563
      %v2640 = vunpack.c.l.b16 %v2564
      %v2641 = vunpack.c.l.b16 %v2565
      %v2642 = vunpack.c.l.b16 %v2566
      %v2643 = vpack.c.b16 %v2607, %v2606
      %v2644 = vpack.c.b16 %v2609, %v2608
      %v2645 = vpack.c.b16 %v2611, %v2610
      %v2646 = vpack.c.b16 %v2613, %v2612
      %v2647 = vpack.c.b16 %v2615, %v2614
      %v2648 = vpack.c.b16 %v2617, %v2616
      %v2649 = vpack.c.b16 %v2619, %v2618
      %v2650 = vpack.c.b16 %v2621, %v2620
      %v2651 = vpack.c.b16 %v2623, %v2622
      %v2652 = vpack.c.b16 %v2625, %v2624
      %v2653 = vpack.c.b16 %v2627, %v2626
      %v2654 = vpack.c.b16 %v2629, %v2628
      %v2655 = vpack.c.b16 %v2631, %v2630
      %v2656 = vpack.c.b16 %v2633, %v2632
      %v2657 = vpack.c.b16 %v2635, %v2634
      %v2658 = vpack.c.b16 %v2637, %v2636
      %v2659 = vpack.c.b16 %v2639, %v2638
      %v2660 = vpack.c.b16 %v2641, %v2640
      %v2661 = vpack.c.b16 %v2642, %v2642
      %v2662 = vrot.slane %v2643, 2
      %v2663 = vrot.slane %v2644, 2
      %v2664 = vsel %vm2222, %v2662, %v2663
      %v2665 = vrot.slane %v2645, 2
      %v2666 = vsel %vm2222, %v2663, %v2665
      %v2667 = vrot.slane %v2646, 2
      %v2668 = vsel %vm2222, %v2665, %v2667
      %v2669 = vrot.slane %v2647, 2
      %v2670 = vsel %vm2222, %v2667, %v2669
      %v2671 = vrot.slane %v2648, 2
      %v2672 = vsel %vm2222, %v2669, %v2671
      %v2673 = vrot.slane %v2649, 2
      %v2674 = vsel %vm2222, %v2671, %v2673
      %v2675 = vrot.slane %v2650, 2
      %v2676 = vsel %vm2222, %v2673, %v2675
      %v2677 = vrot.slane %v2651, 2
      %v2678 = vsel %vm2222, %v2675, %v2677
      %v2679 = vrot.slane %v2652, 2
      %v2680 = vsel %vm2222, %v2677, %v2679
      %v2681 = vrot.slane %v2653, 2
      %v2682 = vsel %vm2222, %v2679, %v2681
      %v2683 = vrot.slane %v2654, 2
      %v2684 = vsel %vm2222, %v2681, %v2683
      %v2685 = vrot.slane %v2655, 2
      %v2686 = vsel %vm2222, %v2683, %v2685
      %v2687 = vrot.slane %v2656, 2
      %v2688 = vsel %vm2222, %v2685, %v2687
      %v2689 = vrot.slane %v2657, 2
      %v2690 = vsel %vm2222, %v2687, %v2689
      %v2691 = vrot.slane %v2658, 2
      %v2692 = vsel %vm2222, %v2689, %v2691
      %v2693 = vrot.slane %v2659, 2
      %v2694 = vsel %vm2222, %v2691, %v2693
      %v2695 = vrot.slane %v2660, 2
      %v2696 = vsel %vm2222, %v2693, %v2695
      %v2697 = vrot.slane %v2661, 2
      %v2698 = vsel %vm2222, %v2695, %v2697
      %v2700 = vsel %vm446, %v2664, 0
      %v2703 = vsel %vm446, %v2666, 0
      %v2706 = vsel %vm446, %v2668, 0
      %v2709 = vsel %vm446, %v2670, 0
      %v2712 = vsel %vm446, %v2672, 0
      %v2715 = vsel %vm446, %v2674, 0
      %v2718 = vsel %vm446, %v2676, 0
      %v2721 = vsel %vm446, %v2678, 0
      %v2724 = vsel %vm446, %v2680, 0
      %v2727 = vsel %vm446, %v2682, 0
      %v2730 = vsel %vm446, %v2684, 0
      %v2733 = vsel %vm446, %v2686, 0
      %v2736 = vsel %vm446, %v2688, 0
      %v2739 = vsel %vm446, %v2690, 0
      %v2742 = vsel %vm446, %v2692, 0
      %v2745 = vsel %vm446, %v2694, 0
      %v2748 = vsel %vm446, %v2696, 0
      %v2751 = vsel %vm446, %v2698, 0
      %v2754 = vsel %vm501, %v2568, 0
      %2756 = vmatprep.subr.bf16.mxu0 0
      %2757 = vmatpush1.bf16.msra.mxu0 %v2754
      %2758 = vmatprep.subr.bf16.mxu0 0
      %2759 = vmatpush1.bf16.msra.mxu0 0
      %2760 = vmatprep.subr.bf16.mxu0 0
      %2761 = vmatpush1.bf16.msra.mxu0 0
      %2762 = vmatprep.subr.bf16.mxu0 0
      %2763 = vmatpush1.bf16.msra.mxu0 0
      %2764 = vmatprep.subr.bf16.mxu0 0
      %2765 = vmatpush1.bf16.msra.mxu0 0
      %2766 = vmatprep.subr.bf16.mxu0 0
      %2767 = vmatpush1.bf16.msra.mxu0 0
      %2768 = vmatprep.subr.bf16.mxu0 0
      %2769 = vmatpush1.bf16.msra.mxu0 0
      %2770 = vmatprep.subr.bf16.mxu0 0
      %2771 = vmatpush1.bf16.msra.mxu0 0
      %2772 = vmatprep.subr.bf16.mxu0 0
      %2773 = vmatpush1.bf16.msra.mxu0 0
      %2774 = vmatprep.subr.bf16.mxu0 0
      %2775 = vmatpush1.bf16.msra.mxu0 0
      %2776 = vmatprep.subr.bf16.mxu0 0
      %2777 = vmatpush1.bf16.msra.mxu0 0
      %2778 = vmatprep.subr.bf16.mxu0 0
      %2779 = vmatpush1.bf16.msra.mxu0 0
      %2780 = vmatprep.subr.bf16.mxu0 0
      %2781 = vmatpush1.bf16.msra.mxu0 0
      %2782 = vmatprep.subr.bf16.mxu0 0
      %2783 = vmatpush1.bf16.msra.mxu0 0
      %2784 = vmatprep.subr.bf16.mxu0 0
      %2785 = vmatpush1.bf16.msra.mxu0 0
      %2786 = vmatprep.subr.bf16.mxu0 0
      %2787 = vmatpush1.bf16.msra.mxu0 0
      %2788 = vmatprep.mubr.bf16.mxu0 0
      %2789 = vmatmul.mubr.bf16.gmra.mrb[0].mxu0 %v2700
      %v2790 = vpop.f32.mrb[0].mxu0
      %v2791 = vadd.f32 0.0, %v2790
      %v2792 = vpop.f32.mrb[0].mxu0
      %v2793 = vpop.f32.mrb[0].mxu0
      %v2794 = vadd.f32 0.0, %v2793
      %v2795 = vpop.f32.mrb[0].mxu0
      %2796 = vmatprep.mubr.bf16.mxu0 0
      %2797 = vmatmul.mubr.bf16.gmra.mrb[0].mxu0 %v2703
      %v2798 = vpop.f32.mrb[0].mxu0
      %v2799 = vadd.f32 0.0, %v2798
      %v2800 = vpop.f32.mrb[0].mxu0
      %v2801 = vpop.f32.mrb[0].mxu0
      %v2802 = vadd.f32 0.0, %v2801
      %v2803 = vpop.f32.mrb[0].mxu0
      %2804 = vmatprep.mubr.bf16.mxu0 0
      %2805 = vmatmul.mubr.bf16.gmra.mrb[0].mxu0 %v2706
      %v2806 = vpop.f32.mrb[0].mxu0
      %v2807 = vadd.f32 0.0, %v2806
      %v2808 = vpop.f32.mrb[0].mxu0
      %v2809 = vpop.f32.mrb[0].mxu0
      %v2810 = vadd.f32 0.0, %v2809
      %v2811 = vpop.f32.mrb[0].mxu0
      %2812 = vmatprep.mubr.bf16.mxu0 0
      %2813 = vmatmul.mubr.bf16.gmra.mrb[0].mxu0 %v2709
      %v2814 = vpop.f32.mrb[0].mxu0
      %v2815 = vadd.f32 0.0, %v2814
      %v2816 = vpop.f32.mrb[0].mxu0
      %v2817 = vpop.f32.mrb[0].mxu0
      %v2818 = vadd.f32 0.0, %v2817
      %v2819 = vpop.f32.mrb[0].mxu0
      %2820 = vmatprep.mubr.bf16.mxu0 0
      %2821 = vmatmul.mubr.bf16.gmra.mrb[0].mxu0 %v2712
      %v2822 = vpop.f32.mrb[0].mxu0
      %v2823 = vadd.f32 0.0, %v2822
      %v2824 = vpop.f32.mrb[0].mxu0
      %v2825 = vpop.f32.mrb[0].mxu0
      %v2826 = vadd.f32 0.0, %v2825
      %v2827 = vpop.f32.mrb[0].mxu0
      %2828 = vmatprep.mubr.bf16.mxu0 0
      %2829 = vmatmul.mubr.bf16.gmra.mrb[0].mxu0 %v2715
      %v2830 = vpop.f32.mrb[0].mxu0
      %v2831 = vadd.f32 0.0, %v2830
      %v2832 = vpop.f32.mrb[0].mxu0
      %v2833 = vpop.f32.mrb[0].mxu0
      %v2834 = vadd.f32 0.0, %v2833
      %v2835 = vpop.f32.mrb[0].mxu0
      %2836 = vmatprep.mubr.bf16.mxu0 0
      %2837 = vmatmul.mubr.bf16.gmra.mrb[0].mxu0 %v2718
      %v2838 = vpop.f32.mrb[0].mxu0
      %v2839 = vadd.f32 0.0, %v2838
      %v2840 = vpop.f32.mrb[0].mxu0
      %v2841 = vpop.f32.mrb[0].mxu0
      %v2842 = vadd.f32 0.0, %v2841
      %v2843 = vpop.f32.mrb[0].mxu0
      %2844 = vmatprep.mubr.bf16.mxu0 0
      %2845 = vmatmul.mubr.bf16.gmra.mrb[0].mxu0 %v2721
      %v2846 = vpop.f32.mrb[0].mxu0
      %v2847 = vadd.f32 0.0, %v2846
      %v2848 = vpop.f32.mrb[0].mxu0
      %v2849 = vpop.f32.mrb[0].mxu0
      %v2850 = vadd.f32 0.0, %v2849
      %v2851 = vpop.f32.mrb[0].mxu0
      %2852 = vmatprep.mubr.bf16.mxu0 0
      %2853 = vmatmul.mubr.bf16.gmra.mrb[0].mxu0 %v2724
      %v2854 = vpop.f32.mrb[0].mxu0
      %v2855 = vadd.f32 0.0, %v2854
      %v2856 = vpop.f32.mrb[0].mxu0
      %v2857 = vpop.f32.mrb[0].mxu0
      %v2858 = vadd.f32 0.0, %v2857
      %v2859 = vpop.f32.mrb[0].mxu0
      %2860 = vmatprep.mubr.bf16.mxu0 0
      %2861 = vmatmul.mubr.bf16.gmra.mrb[0].mxu0 %v2727
      %v2862 = vpop.f32.mrb[0].mxu0
      %v2863 = vadd.f32 0.0, %v2862
      %v2864 = vpop.f32.mrb[0].mxu0
      %v2865 = vpop.f32.mrb[0].mxu0
      %v2866 = vadd.f32 0.0, %v2865
      %v2867 = vpop.f32.mrb[0].mxu0
      %2868 = vmatprep.mubr.bf16.mxu0 0
      %2869 = vmatmul.mubr.bf16.gmra.mrb[0].mxu0 %v2730
      %v2870 = vpop.f32.mrb[0].mxu0
      %v2871 = vadd.f32 0.0, %v2870
      %v2872 = vpop.f32.mrb[0].mxu0
      %v2873 = vpop.f32.mrb[0].mxu0
      %v2874 = vadd.f32 0.0, %v2873
      %v2875 = vpop.f32.mrb[0].mxu0
      %2876 = vmatprep.mubr.bf16.mxu0 0
      %2877 = vmatmul.mubr.bf16.gmra.mrb[0].mxu0 %v2733
      %v2878 = vpop.f32.mrb[0].mxu0
      %v2879 = vadd.f32 0.0, %v2878
      %v2880 = vpop.f32.mrb[0].mxu0
      %v2881 = vpop.f32.mrb[0].mxu0
      %v2882 = vadd.f32 0.0, %v2881
      %v2883 = vpop.f32.mrb[0].mxu0
      %2884 = vmatprep.mubr.bf16.mxu0 0
      %2885 = vmatmul.mubr.bf16.gmra.mrb[0].mxu0 %v2736
      %v2886 = vpop.f32.mrb[0].mxu0
      %v2887 = vadd.f32 0.0, %v2886
      %v2888 = vpop.f32.mrb[0].mxu0
      %v2889 = vpop.f32.mrb[0].mxu0
      %v2890 = vadd.f32 0.0, %v2889
      %v2891 = vpop.f32.mrb[0].mxu0
      %2892 = vmatprep.mubr.bf16.mxu0 0
      %2893 = vmatmul.mubr.bf16.gmra.mrb[0].mxu0 %v2739
      %v2894 = vpop.f32.mrb[0].mxu0
      %v2895 = vadd.f32 0.0, %v2894
      %v2896 = vpop.f32.mrb[0].mxu0
      %v2897 = vpop.f32.mrb[0].mxu0
      %v2898 = vadd.f32 0.0, %v2897
      %v2899 = vpop.f32.mrb[0].mxu0
      %2900 = vmatprep.mubr.bf16.mxu0 0
      %2901 = vmatmul.mubr.bf16.gmra.mrb[0].mxu0 %v2742
      %v2902 = vpop.f32.mrb[0].mxu0
      %v2903 = vadd.f32 0.0, %v2902
      %v2904 = vpop.f32.mrb[0].mxu0
      %v2905 = vpop.f32.mrb[0].mxu0
      %v2906 = vadd.f32 0.0, %v2905
      %v2907 = vpop.f32.mrb[0].mxu0
      %2908 = vmatprep.mubr.bf16.mxu0 0
      %2909 = vmatmul.mubr.bf16.gmra.mrb[0].mxu0 %v2745
      %v2910 = vpop.f32.mrb[0].mxu0
      %v2911 = vadd.f32 0.0, %v2910
      %v2912 = vpop.f32.mrb[0].mxu0
      %v2913 = vpop.f32.mrb[0].mxu0
      %v2914 = vadd.f32 0.0, %v2913
      %v2915 = vpop.f32.mrb[0].mxu0
      %2916 = vmatprep.mubr.bf16.mxu0 0
      %2917 = vmatmul.mubr.bf16.gmra.mrb[0].mxu0 %v2748
      %v2918 = vpop.f32.mrb[0].mxu0
      %v2919 = vadd.f32 0.0, %v2918
      %v2920 = vpop.f32.mrb[0].mxu0
      %v2921 = vpop.f32.mrb[0].mxu0
      %v2922 = vadd.f32 0.0, %v2921
      %v2923 = vpop.f32.mrb[0].mxu0
      %2924 = vmatprep.mubr.bf16.mxu0 0
      %2925 = vmatmul.mubr.bf16.gmra.mrb[0].mxu0 %v2751
      %v2926 = vpop.f32.mrb[0].mxu0
      %v2927 = vadd.f32 0.0, %v2926
      %v2928 = vpop.f32.mrb[0].mxu0
      %v2929 = vpop.f32.mrb[0].mxu0
      %v2930 = vadd.f32 0.0, %v2929
      %v2931 = vpop.f32.mrb[0].mxu0
      %2932 = vdwg.mxu0
      %v2933 = vadd.f32 %v2494, %v2791
      %v2934 = vadd.f32 %v2495, %v2794
      %v2935 = vadd.f32 %v2496, %v2799
      %v2936 = vadd.f32 %v2497, %v2802
      %v2937 = vadd.f32 %v2498, %v2807
      %v2938 = vadd.f32 %v2499, %v2810
      %v2939 = vadd.f32 %v2500, %v2815
      %v2940 = vadd.f32 %v2501, %v2818
      %v2941 = vadd.f32 %v2502, %v2823
      %v2942 = vadd.f32 %v2503, %v2826
      %v2943 = vadd.f32 %v2504, %v2831
      %v2944 = vadd.f32 %v2505, %v2834
      %v2945 = vadd.f32 %v2506, %v2839
      %v2946 = vadd.f32 %v2507, %v2842
      %v2947 = vadd.f32 %v2508, %v2847
      %v2948 = vadd.f32 %v2509, %v2850
      %v2949 = vadd.f32 %v2510, %v2855
      %v2950 = vadd.f32 %v2511, %v2858
      %v2951 = vadd.f32 %v2512, %v2863
      %v2952 = vadd.f32 %v2513, %v2866
      %v2953 = vadd.f32 %v2514, %v2871
      %v2954 = vadd.f32 %v2515, %v2874
      %v2955 = vadd.f32 %v2516, %v2879
      %v2956 = vadd.f32 %v2517, %v2882
      %v2957 = vadd.f32 %v2518, %v2887
      %v2958 = vadd.f32 %v2519, %v2890
      %v2959 = vadd.f32 %v2520, %v2895
      %v2960 = vadd.f32 %v2521, %v2898
      %v2961 = vadd.f32 %v2522, %v2903
      %v2962 = vadd.f32 %v2523, %v2906
      %v2963 = vadd.f32 %v2524, %v2911
      %v2964 = vadd.f32 %v2525, %v2914
      %v2965 = vadd.f32 %v2526, %v2919
      %v2966 = vadd.f32 %v2527, %v2922
      %v2967 = vadd.f32 %v2528, %v2927
      %v2968 = vadd.f32 %v2529, %v2930
      %v2969 = vld [vmem:[%s165 + $0xa0] sm:$0x3]
      %s2970 = scalar_lea.vmem %s1, 14
      %v2971 = vld [vmem:[%s2970] sm:$0x3]
      %v2973 = vunpack.c.l.b16 %v2969
      %v2974 = vpack.c.b16 %v2973, %v2973
      %vm2975 = vsmask.f32 5376
      %v2977 = vshrl.u32 %v2643, 16
      %v2979 = vrot.slane %v2977, 2
      %v2980 = vshll.u32 %v2643, 16
      %v2982 = vrot.slane %v2980, 3
      %v2983 = vor.u32 %v2979, %v2982
      %v2985 = vshrl.u32 %v2644, 16
      %v2987 = vrot.slane %v2985, 2
      %v2988 = vshll.u32 %v2644, 16
      %v2990 = vrot.slane %v2988, 3
      %v2991 = vor.u32 %v2987, %v2990
      %v2992 = vsel %vm2975, %v2983, %v2991
      %v2994 = vshrl.u32 %v2645, 16
      %v2996 = vrot.slane %v2994, 2
      %v2997 = vshll.u32 %v2645, 16
      %v2999 = vrot.slane %v2997, 3
      %v3000 = vor.u32 %v2996, %v2999
      %v3001 = vsel %vm2975, %v2991, %v3000
      %v3003 = vshrl.u32 %v2646, 16
      %v3005 = vrot.slane %v3003, 2
      %v3006 = vshll.u32 %v2646, 16
      %v3008 = vrot.slane %v3006, 3
      %v3009 = vor.u32 %v3005, %v3008
      %v3010 = vsel %vm2975, %v3000, %v3009
      %v3012 = vshrl.u32 %v2647, 16
      %v3014 = vrot.slane %v3012, 2
      %v3015 = vshll.u32 %v2647, 16
      %v3017 = vrot.slane %v3015, 3
      %v3018 = vor.u32 %v3014, %v3017
      %v3019 = vsel %vm2975, %v3009, %v3018
      %v3021 = vshrl.u32 %v2648, 16
      %v3023 = vrot.slane %v3021, 2
      %v3024 = vshll.u32 %v2648, 16
      %v3026 = vrot.slane %v3024, 3
      %v3027 = vor.u32 %v3023, %v3026
      %v3028 = vsel %vm2975, %v3018, %v3027
      %v3030 = vshrl.u32 %v2649, 16
      %v3032 = vrot.slane %v3030, 2
      %v3033 = vshll.u32 %v2649, 16
      %v3035 = vrot.slane %v3033, 3
      %v3036 = vor.u32 %v3032, %v3035
      %v3037 = vsel %vm2975, %v3027, %v3036
      %v3039 = vshrl.u32 %v2650, 16
      %v3041 = vrot.slane %v3039, 2
      %v3042 = vshll.u32 %v2650, 16
      %v3044 = vrot.slane %v3042, 3
      %v3045 = vor.u32 %v3041, %v3044
      %v3046 = vsel %vm2975, %v3036, %v3045
      %v3048 = vshrl.u32 %v2651, 16
      %v3050 = vrot.slane %v3048, 2
      %v3051 = vshll.u32 %v2651, 16
      %v3053 = vrot.slane %v3051, 3
      %v3054 = vor.u32 %v3050, %v3053
      %v3055 = vsel %vm2975, %v3045, %v3054
      %v3057 = vshrl.u32 %v2652, 16
      %v3059 = vrot.slane %v3057, 2
      %v3060 = vshll.u32 %v2652, 16
      %v3062 = vrot.slane %v3060, 3
      %v3063 = vor.u32 %v3059, %v3062
      %v3064 = vsel %vm2975, %v3054, %v3063
      %v3066 = vshrl.u32 %v2653, 16
      %v3068 = vrot.slane %v3066, 2
      %v3069 = vshll.u32 %v2653, 16
      %v3071 = vrot.slane %v3069, 3
      %v3072 = vor.u32 %v3068, %v3071
      %v3073 = vsel %vm2975, %v3063, %v3072
      %v3075 = vshrl.u32 %v2654, 16
      %v3077 = vrot.slane %v3075, 2
      %v3078 = vshll.u32 %v2654, 16
      %v3080 = vrot.slane %v3078, 3
      %v3081 = vor.u32 %v3077, %v3080
      %v3082 = vsel %vm2975, %v3072, %v3081
      %v3084 = vshrl.u32 %v2655, 16
      %v3086 = vrot.slane %v3084, 2
      %v3087 = vshll.u32 %v2655, 16
      %v3089 = vrot.slane %v3087, 3
      %v3090 = vor.u32 %v3086, %v3089
      %v3091 = vsel %vm2975, %v3081, %v3090
      %v3093 = vshrl.u32 %v2656, 16
      %v3095 = vrot.slane %v3093, 2
      %v3096 = vshll.u32 %v2656, 16
      %v3098 = vrot.slane %v3096, 3
      %v3099 = vor.u32 %v3095, %v3098
      %v3100 = vsel %vm2975, %v3090, %v3099
      %v3102 = vshrl.u32 %v2657, 16
      %v3104 = vrot.slane %v3102, 2
      %v3105 = vshll.u32 %v2657, 16
      %v3107 = vrot.slane %v3105, 3
      %v3108 = vor.u32 %v3104, %v3107
      %v3109 = vsel %vm2975, %v3099, %v3108
      %v3111 = vshrl.u32 %v2658, 16
      %v3113 = vrot.slane %v3111, 2
      %v3114 = vshll.u32 %v2658, 16
      %v3116 = vrot.slane %v3114, 3
      %v3117 = vor.u32 %v3113, %v3116
      %v3118 = vsel %vm2975, %v3108, %v3117
      %v3120 = vshrl.u32 %v2659, 16
      %v3122 = vrot.slane %v3120, 2
      %v3123 = vshll.u32 %v2659, 16
      %v3125 = vrot.slane %v3123, 3
      %v3126 = vor.u32 %v3122, %v3125
      %v3127 = vsel %vm2975, %v3117, %v3126
      %v3129 = vshrl.u32 %v2660, 16
      %v3131 = vrot.slane %v3129, 2
      %v3132 = vshll.u32 %v2660, 16
      %v3134 = vrot.slane %v3132, 3
      %v3135 = vor.u32 %v3131, %v3134
      %v3136 = vsel %vm2975, %v3126, %v3135
      %v3138 = vshrl.u32 %v2974, 16
      %v3140 = vrot.slane %v3138, 2
      %v3141 = vshll.u32 %v2974, 16
      %v3143 = vrot.slane %v3141, 3
      %v3144 = vor.u32 %v3140, %v3143
      %v3145 = vsel %vm2975, %v3135, %v3144
      %v3147 = vsel %vm446, %v2992, 0
      %v3150 = vsel %vm446, %v3001, 0
      %v3153 = vsel %vm446, %v3010, 0
      %v3156 = vsel %vm446, %v3019, 0
      %v3159 = vsel %vm446, %v3028, 0
      %v3162 = vsel %vm446, %v3037, 0
      %v3165 = vsel %vm446, %v3046, 0
      %v3168 = vsel %vm446, %v3055, 0
      %v3171 = vsel %vm446, %v3064, 0
      %v3174 = vsel %vm446, %v3073, 0
      %v3177 = vsel %vm446, %v3082, 0
      %v3180 = vsel %vm446, %v3091, 0
      %v3183 = vsel %vm446, %v3100, 0
      %v3186 = vsel %vm446, %v3109, 0
      %v3189 = vsel %vm446, %v3118, 0
      %v3192 = vsel %vm446, %v3127, 0
      %v3195 = vsel %vm446, %v3136, 0
      %v3198 = vsel %vm446, %v3145, 0
      %v3201 = vsel %vm501, %v2971, 0
      %3203 = vmatprep.subr.bf16.mxu0 0
      %3204 = vmatpush1.bf16.msra.mxu0 %v3201
      %3205 = vmatprep.subr.bf16.mxu0 0
      %3206 = vmatpush1.bf16.msra.mxu0 0
      %3207 = vmatprep.subr.bf16.mxu0 0
      %3208 = vmatpush1.bf16.msra.mxu0 0
      %3209 = vmatprep.subr.bf16.mxu0 0
      %3210 = vmatpush1.bf16.msra.mxu0 0
      %3211 = vmatprep.subr.bf16.mxu0 0
      %3212 = vmatpush1.bf16.msra.mxu0 0
      %3213 = vmatprep.subr.bf16.mxu0 0
      %3214 = vmatpush1.bf16.msra.mxu0 0
      %3215 = vmatprep.subr.bf16.mxu0 0
      %3216 = vmatpush1.bf16.msra.mxu0 0
      %3217 = vmatprep.subr.bf16.mxu0 0
      %3218 = vmatpush1.bf16.msra.mxu0 0
      %3219 = vmatprep.subr.bf16.mxu0 0
      %3220 = vmatpush1.bf16.msra.mxu0 0
      %3221 = vmatprep.subr.bf16.mxu0 0
      %3222 = vmatpush1.bf16.msra.mxu0 0
      %3223 = vmatprep.subr.bf16.mxu0 0
      %3224 = vmatpush1.bf16.msra.mxu0 0
      %3225 = vmatprep.subr.bf16.mxu0 0
      %3226 = vmatpush1.bf16.msra.mxu0 0
      %3227 = vmatprep.subr.bf16.mxu0 0
      %3228 = vmatpush1.bf16.msra.mxu0 0
      %3229 = vmatprep.subr.bf16.mxu0 0
      %3230 = vmatpush1.bf16.msra.mxu0 0
      %3231 = vmatprep.subr.bf16.mxu0 0
      %3232 = vmatpush1.bf16.msra.mxu0 0
      %3233 = vmatprep.subr.bf16.mxu0 0
      %3234 = vmatpush1.bf16.msra.mxu0 0
      %3235 = vmatprep.mubr.bf16.mxu0 0
      %3236 = vmatmul.mubr.bf16.gmra.mrb[0].mxu0 %v3147
      %v3237 = vpop.f32.mrb[0].mxu0
      %v3238 = vadd.f32 0.0, %v3237
      %v3239 = vpop.f32.mrb[0].mxu0
      %v3240 = vpop.f32.mrb[0].mxu0
      %v3241 = vadd.f32 0.0, %v3240
      %v3242 = vpop.f32.mrb[0].mxu0
      %3243 = vmatprep.mubr.bf16.mxu0 0
      %3244 = vmatmul.mubr.bf16.gmra.mrb[0].mxu0 %v3150
      %v3245 = vpop.f32.mrb[0].mxu0
      %v3246 = vadd.f32 0.0, %v3245
      %v3247 = vpop.f32.mrb[0].mxu0
      %v3248 = vpop.f32.mrb[0].mxu0
      %v3249 = vadd.f32 0.0, %v3248
      %v3250 = vpop.f32.mrb[0].mxu0
      %3251 = vmatprep.mubr.bf16.mxu0 0
      %3252 = vmatmul.mubr.bf16.gmra.mrb[0].mxu0 %v3153
      %v3253 = vpop.f32.mrb[0].mxu0
      %v3254 = vadd.f32 0.0, %v3253
      %v3255 = vpop.f32.mrb[0].mxu0
      %v3256 = vpop.f32.mrb[0].mxu0
      %v3257 = vadd.f32 0.0, %v3256
      %v3258 = vpop.f32.mrb[0].mxu0
      %3259 = vmatprep.mubr.bf16.mxu0 0
      %3260 = vmatmul.mubr.bf16.gmra.mrb[0].mxu0 %v3156
      %v3261 = vpop.f32.mrb[0].mxu0
      %v3262 = vadd.f32 0.0, %v3261
      %v3263 = vpop.f32.mrb[0].mxu0
      %v3264 = vpop.f32.mrb[0].mxu0
      %v3265 = vadd.f32 0.0, %v3264
      %v3266 = vpop.f32.mrb[0].mxu0
      %3267 = vmatprep.mubr.bf16.mxu0 0
      %3268 = vmatmul.mubr.bf16.gmra.mrb[0].mxu0 %v3159
      %v3269 = vpop.f32.mrb[0].mxu0
      %v3270 = vadd.f32 0.0, %v3269
      %v3271 = vpop.f32.mrb[0].mxu0
      %v3272 = vpop.f32.mrb[0].mxu0
      %v3273 = vadd.f32 0.0, %v3272
      %v3274 = vpop.f32.mrb[0].mxu0
      %3275 = vmatprep.mubr.bf16.mxu0 0
      %3276 = vmatmul.mubr.bf16.gmra.mrb[0].mxu0 %v3162
      %v3277 = vpop.f32.mrb[0].mxu0
      %v3278 = vadd.f32 0.0, %v3277
      %v3279 = vpop.f32.mrb[0].mxu0
      %v3280 = vpop.f32.mrb[0].mxu0
      %v3281 = vadd.f32 0.0, %v3280
      %v3282 = vpop.f32.mrb[0].mxu0
      %3283 = vmatprep.mubr.bf16.mxu0 0
      %3284 = vmatmul.mubr.bf16.gmra.mrb[0].mxu0 %v3165
      %v3285 = vpop.f32.mrb[0].mxu0
      %v3286 = vadd.f32 0.0, %v3285
      %v3287 = vpop.f32.mrb[0].mxu0
      %v3288 = vpop.f32.mrb[0].mxu0
      %v3289 = vadd.f32 0.0, %v3288
      %v3290 = vpop.f32.mrb[0].mxu0
      %3291 = vmatprep.mubr.bf16.mxu0 0
      %3292 = vmatmul.mubr.bf16.gmra.mrb[0].mxu0 %v3168
      %v3293 = vpop.f32.mrb[0].mxu0
      %v3294 = vadd.f32 0.0, %v3293
      %v3295 = vpop.f32.mrb[0].mxu0
      %v3296 = vpop.f32.mrb[0].mxu0
      %v3297 = vadd.f32 0.0, %v3296
      %v3298 = vpop.f32.mrb[0].mxu0
      %3299 = vmatprep.mubr.bf16.mxu0 0
      %3300 = vmatmul.mubr.bf16.gmra.mrb[0].mxu0 %v3171
      %v3301 = vpop.f32.mrb[0].mxu0
      %v3302 = vadd.f32 0.0, %v3301
      %v3303 = vpop.f32.mrb[0].mxu0
      %v3304 = vpop.f32.mrb[0].mxu0
      %v3305 = vadd.f32 0.0, %v3304
      %v3306 = vpop.f32.mrb[0].mxu0
      %3307 = vmatprep.mubr.bf16.mxu0 0
      %3308 = vmatmul.mubr.bf16.gmra.mrb[0].mxu0 %v3174
      %v3309 = vpop.f32.mrb[0].mxu0
      %v3310 = vadd.f32 0.0, %v3309
      %v3311 = vpop.f32.mrb[0].mxu0
      %v3312 = vpop.f32.mrb[0].mxu0
      %v3313 = vadd.f32 0.0, %v3312
      %v3314 = vpop.f32.mrb[0].mxu0
      %3315 = vmatprep.mubr.bf16.mxu0 0
      %3316 = vmatmul.mubr.bf16.gmra.mrb[0].mxu0 %v3177
      %v3317 = vpop.f32.mrb[0].mxu0
      %v3318 = vadd.f32 0.0, %v3317
      %v3319 = vpop.f32.mrb[0].mxu0
      %v3320 = vpop.f32.mrb[0].mxu0
      %v3321 = vadd.f32 0.0, %v3320
      %v3322 = vpop.f32.mrb[0].mxu0
      %3323 = vmatprep.mubr.bf16.mxu0 0
      %3324 = vmatmul.mubr.bf16.gmra.mrb[0].mxu0 %v3180
      %v3325 = vpop.f32.mrb[0].mxu0
      %v3326 = vadd.f32 0.0, %v3325
      %v3327 = vpop.f32.mrb[0].mxu0
      %v3328 = vpop.f32.mrb[0].mxu0
      %v3329 = vadd.f32 0.0, %v3328
      %v3330 = vpop.f32.mrb[0].mxu0
      %3331 = vmatprep.mubr.bf16.mxu0 0
      %3332 = vmatmul.mubr.bf16.gmra.mrb[0].mxu0 %v3183
      %v3333 = vpop.f32.mrb[0].mxu0
      %v3334 = vadd.f32 0.0, %v3333
      %v3335 = vpop.f32.mrb[0].mxu0
      %v3336 = vpop.f32.mrb[0].mxu0
      %v3337 = vadd.f32 0.0, %v3336
      %v3338 = vpop.f32.mrb[0].mxu0
      %3339 = vmatprep.mubr.bf16.mxu0 0
      %3340 = vmatmul.mubr.bf16.gmra.mrb[0].mxu0 %v3186
      %v3341 = vpop.f32.mrb[0].mxu0
      %v3342 = vadd.f32 0.0, %v3341
      %v3343 = vpop.f32.mrb[0].mxu0
      %v3344 = vpop.f32.mrb[0].mxu0
      %v3345 = vadd.f32 0.0, %v3344
      %v3346 = vpop.f32.mrb[0].mxu0
      %3347 = vmatprep.mubr.bf16.mxu0 0
      %3348 = vmatmul.mubr.bf16.gmra.mrb[0].mxu0 %v3189
      %v3349 = vpop.f32.mrb[0].mxu0
      %v3350 = vadd.f32 0.0, %v3349
      %v3351 = vpop.f32.mrb[0].mxu0
      %v3352 = vpop.f32.mrb[0].mxu0
      %v3353 = vadd.f32 0.0, %v3352
      %v3354 = vpop.f32.mrb[0].mxu0
      %3355 = vmatprep.mubr.bf16.mxu0 0
      %3356 = vmatmul.mubr.bf16.gmra.mrb[0].mxu0 %v3192
      %v3357 = vpop.f32.mrb[0].mxu0
      %v3358 = vadd.f32 0.0, %v3357
      %v3359 = vpop.f32.mrb[0].mxu0
      %v3360 = vpop.f32.mrb[0].mxu0
      %v3361 = vadd.f32 0.0, %v3360
      %v3362 = vpop.f32.mrb[0].mxu0
      %3363 = vmatprep.mubr.bf16.mxu0 0
      %3364 = vmatmul.mubr.bf16.gmra.mrb[0].mxu0 %v3195
      %v3365 = vpop.f32.mrb[0].mxu0
      %v3366 = vadd.f32 0.0, %v3365
      %v3367 = vpop.f32.mrb[0].mxu0
      %v3368 = vpop.f32.mrb[0].mxu0
      %v3369 = vadd.f32 0.0, %v3368
      %v3370 = vpop.f32.mrb[0].mxu0
      %3371 = vmatprep.mubr.bf16.mxu0 0
      %3372 = vmatmul.mubr.bf16.gmra.mrb[0].mxu0 %v3198
      %v3373 = vpop.f32.mrb[0].mxu0
      %v3374 = vadd.f32 0.0, %v3373
      %v3375 = vpop.f32.mrb[0].mxu0
      %v3376 = vpop.f32.mrb[0].mxu0
      %v3377 = vadd.f32 0.0, %v3376
      %v3378 = vpop.f32.mrb[0].mxu0
      %3379 = vdwg.mxu0
      %v3380 = vadd.f32 %v2933, %v3238
      %v3381 = vadd.f32 %v2934, %v3241
      %v3382 = vadd.f32 %v2935, %v3246
      %v3383 = vadd.f32 %v2936, %v3249
      %v3384 = vadd.f32 %v2937, %v3254
      %v3385 = vadd.f32 %v2938, %v3257
      %v3386 = vadd.f32 %v2939, %v3262
      %v3387 = vadd.f32 %v2940, %v3265
      %v3388 = vadd.f32 %v2941, %v3270
      %v3389 = vadd.f32 %v2942, %v3273
      %v3390 = vadd.f32 %v2943, %v3278
      %v3391 = vadd.f32 %v2944, %v3281
      %v3392 = vadd.f32 %v2945, %v3286
      %v3393 = vadd.f32 %v2946, %v3289
      %v3394 = vadd.f32 %v2947, %v3294
      %v3395 = vadd.f32 %v2948, %v3297
      %v3396 = vadd.f32 %v2949, %v3302
      %v3397 = vadd.f32 %v2950, %v3305
      %v3398 = vadd.f32 %v2951, %v3310
      %v3399 = vadd.f32 %v2952, %v3313
      %v3400 = vadd.f32 %v2953, %v3318
      %v3401 = vadd.f32 %v2954, %v3321
      %v3402 = vadd.f32 %v2955, %v3326
      %v3403 = vadd.f32 %v2956, %v3329
      %v3404 = vadd.f32 %v2957, %v3334
      %v3405 = vadd.f32 %v2958, %v3337
      %v3406 = vadd.f32 %v2959, %v3342
      %v3407 = vadd.f32 %v2960, %v3345
      %v3408 = vadd.f32 %v2961, %v3350
      %v3409 = vadd.f32 %v2962, %v3353
      %v3410 = vadd.f32 %v2963, %v3358
      %v3411 = vadd.f32 %v2964, %v3361
      %v3412 = vadd.f32 %v2965, %v3366
      %v3413 = vadd.f32 %v2966, %v3369
      %v3414 = vadd.f32 %v2967, %v3374
      %v3415 = vadd.f32 %v2968, %v3377
      %v3416 = vld [vmem:[%s165 + $0x10] sm:$0x8]
      %s3417 = scalar_lea.vmem %s1, 16
      %v3418 = vld [vmem:[%s3417] sm:$0x3]
      %v3420 = vunpack.c.l.b16 %v3416
      %v3421 = vpack.c.b16 %v2607, %v3420
      %vm3422 = vcmask 1044480
      %v3423 = vrot.slane %v3421, 3
      %v3424 = vrot.slane %v2644, 3
      %v3425 = vsel %vm3422, %v3423, %v3424
      %v3426 = vrot.slane %v2645, 3
      %v3427 = vsel %vm3422, %v3424, %v3426
      %v3428 = vrot.slane %v2646, 3
      %v3429 = vsel %vm3422, %v3426, %v3428
      %v3430 = vrot.slane %v2647, 3
      %v3431 = vsel %vm3422, %v3428, %v3430
      %v3432 = vrot.slane %v2648, 3
      %v3433 = vsel %vm3422, %v3430, %v3432
      %v3434 = vrot.slane %v2649, 3
      %v3435 = vsel %vm3422, %v3432, %v3434
      %v3436 = vrot.slane %v2650, 3
      %v3437 = vsel %vm3422, %v3434, %v3436
      %v3438 = vrot.slane %v2651, 3
      %v3439 = vsel %vm3422, %v3436, %v3438
      %v3440 = vrot.slane %v2652, 3
      %v3441 = vsel %vm3422, %v3438, %v3440
      %v3442 = vrot.slane %v2653, 3
      %v3443 = vsel %vm3422, %v3440, %v3442
      %v3444 = vrot.slane %v2654, 3
      %v3445 = vsel %vm3422, %v3442, %v3444
      %v3446 = vrot.slane %v2655, 3
      %v3447 = vsel %vm3422, %v3444, %v3446
      %v3448 = vrot.slane %v2656, 3
      %v3449 = vsel %vm3422, %v3446, %v3448
      %v3450 = vrot.slane %v2657, 3
      %v3451 = vsel %vm3422, %v3448, %v3450
      %v3452 = vrot.slane %v2658, 3
      %v3453 = vsel %vm3422, %v3450, %v3452
      %v3454 = vrot.slane %v2659, 3
      %v3455 = vsel %vm3422, %v3452, %v3454
      %v3456 = vrot.slane %v2660, 3
      %v3457 = vsel %vm3422, %v3454, %v3456
      %v3458 = vrot.slane %v2974, 3
      %v3459 = vsel %vm3422, %v3456, %v3458
      %v3461 = vsel %vm446, %v3425, 0
      %v3464 = vsel %vm446, %v3427, 0
      %v3467 = vsel %vm446, %v3429, 0
      %v3470 = vsel %vm446, %v3431, 0
      %v3473 = vsel %vm446, %v3433, 0
      %v3476 = vsel %vm446, %v3435, 0
      %v3479 = vsel %vm446, %v3437, 0
      %v3482 = vsel %vm446, %v3439, 0
      %v3485 = vsel %vm446, %v3441, 0
      %v3488 = vsel %vm446, %v3443, 0
      %v3491 = vsel %vm446, %v3445, 0
      %v3494 = vsel %vm446, %v3447, 0
      %v3497 = vsel %vm446, %v3449, 0
      %v3500 = vsel %vm446, %v3451, 0
      %v3503 = vsel %vm446, %v3453, 0
      %v3506 = vsel %vm446, %v3455, 0
      %v3509 = vsel %vm446, %v3457, 0
      %v3512 = vsel %vm446, %v3459, 0
      %v3515 = vsel %vm501, %v3418, 0
      %3517 = vmatprep.subr.bf16.mxu0 0
      %3518 = vmatpush1.bf16.msra.mxu0 %v3515
      %3519 = vmatprep.subr.bf16.mxu0 0
      %3520 = vmatpush1.bf16.msra.mxu0 0
      %3521 = vmatprep.subr.bf16.mxu0 0
      %3522 = vmatpush1.bf16.msra.mxu0 0
      %3523 = vmatprep.subr.bf16.mxu0 0
      %3524 = vmatpush1.bf16.msra.mxu0 0
      %3525 = vmatprep.subr.bf16.mxu0 0
      %3526 = vmatpush1.bf16.msra.mxu0 0
      %3527 = vmatprep.subr.bf16.mxu0 0
      %3528 = vmatpush1.bf16.msra.mxu0 0
      %3529 = vmatprep.subr.bf16.mxu0 0
      %3530 = vmatpush1.bf16.msra.mxu0 0
      %3531 = vmatprep.subr.bf16.mxu0 0
      %3532 = vmatpush1.bf16.msra.mxu0 0
      %3533 = vmatprep.subr.bf16.mxu0 0
      %3534 = vmatpush1.bf16.msra.mxu0 0
      %3535 = vmatprep.subr.bf16.mxu0 0
      %3536 = vmatpush1.bf16.msra.mxu0 0
      %3537 = vmatprep.subr.bf16.mxu0 0
      %3538 = vmatpush1.bf16.msra.mxu0 0
      %3539 = vmatprep.subr.bf16.mxu0 0
      %3540 = vmatpush1.bf16.msra.mxu0 0
      %3541 = vmatprep.subr.bf16.mxu0 0
      %3542 = vmatpush1.bf16.msra.mxu0 0
      %3543 = vmatprep.subr.bf16.mxu0 0
      %3544 = vmatpush1.bf16.msra.mxu0 0
      %3545 = vmatprep.subr.bf16.mxu0 0
      %3546 = vmatpush1.bf16.msra.mxu0 0
      %3547 = vmatprep.subr.bf16.mxu0 0
      %3548 = vmatpush1.bf16.msra.mxu0 0
      %3549 = vmatprep.mubr.bf16.mxu0 0
      %3550 = vmatmul.mubr.bf16.gmra.mrb[0].mxu0 %v3461
      %v3551 = vpop.f32.mrb[0].mxu0
      %v3552 = vadd.f32 0.0, %v3551
      %v3553 = vpop.f32.mrb[0].mxu0
      %v3554 = vpop.f32.mrb[0].mxu0
      %v3555 = vadd.f32 0.0, %v3554
      %v3556 = vpop.f32.mrb[0].mxu0
      %3557 = vmatprep.mubr.bf16.mxu0 0
      %3558 = vmatmul.mubr.bf16.gmra.mrb[0].mxu0 %v3464
      %v3559 = vpop.f32.mrb[0].mxu0
      %v3560 = vadd.f32 0.0, %v3559
      %v3561 = vpop.f32.mrb[0].mxu0
      %v3562 = vpop.f32.mrb[0].mxu0
      %v3563 = vadd.f32 0.0, %v3562
      %v3564 = vpop.f32.mrb[0].mxu0
      %3565 = vmatprep.mubr.bf16.mxu0 0
      %3566 = vmatmul.mubr.bf16.gmra.mrb[0].mxu0 %v3467
      %v3567 = vpop.f32.mrb[0].mxu0
      %v3568 = vadd.f32 0.0, %v3567
      %v3569 = vpop.f32.mrb[0].mxu0
      %v3570 = vpop.f32.mrb[0].mxu0
      %v3571 = vadd.f32 0.0, %v3570
      %v3572 = vpop.f32.mrb[0].mxu0
      %3573 = vmatprep.mubr.bf16.mxu0 0
      %3574 = vmatmul.mubr.bf16.gmra.mrb[0].mxu0 %v3470
      %v3575 = vpop.f32.mrb[0].mxu0
      %v3576 = vadd.f32 0.0, %v3575
      %v3577 = vpop.f32.mrb[0].mxu0
      %v3578 = vpop.f32.mrb[0].mxu0
      %v3579 = vadd.f32 0.0, %v3578
      %v3580 = vpop.f32.mrb[0].mxu0
      %3581 = vmatprep.mubr.bf16.mxu0 0
      %3582 = vmatmul.mubr.bf16.gmra.mrb[0].mxu0 %v3473
      %v3583 = vpop.f32.mrb[0].mxu0
      %v3584 = vadd.f32 0.0, %v3583
      %v3585 = vpop.f32.mrb[0].mxu0
      %v3586 = vpop.f32.mrb[0].mxu0
      %v3587 = vadd.f32 0.0, %v3586
      %v3588 = vpop.f32.mrb[0].mxu0
      %3589 = vmatprep.mubr.bf16.mxu0 0
      %3590 = vmatmul.mubr.bf16.gmra.mrb[0].mxu0 %v3476
      %v3591 = vpop.f32.mrb[0].mxu0
      %v3592 = vadd.f32 0.0, %v3591
      %v3593 = vpop.f32.mrb[0].mxu0
      %v3594 = vpop.f32.mrb[0].mxu0
      %v3595 = vadd.f32 0.0, %v3594
      %v3596 = vpop.f32.mrb[0].mxu0
      %3597 = vmatprep.mubr.bf16.mxu0 0
      %3598 = vmatmul.mubr.bf16.gmra.mrb[0].mxu0 %v3479
      %v3599 = vpop.f32.mrb[0].mxu0
      %v3600 = vadd.f32 0.0, %v3599
      %v3601 = vpop.f32.mrb[0].mxu0
      %v3602 = vpop.f32.mrb[0].mxu0
      %v3603 = vadd.f32 0.0, %v3602
      %v3604 = vpop.f32.mrb[0].mxu0
      %3605 = vmatprep.mubr.bf16.mxu0 0
      %3606 = vmatmul.mubr.bf16.gmra.mrb[0].mxu0 %v3482
      %v3607 = vpop.f32.mrb[0].mxu0
      %v3608 = vadd.f32 0.0, %v3607
      %v3609 = vpop.f32.mrb[0].mxu0
      %v3610 = vpop.f32.mrb[0].mxu0
      %v3611 = vadd.f32 0.0, %v3610
      %v3612 = vpop.f32.mrb[0].mxu0
      %3613 = vmatprep.mubr.bf16.mxu0 0
      %3614 = vmatmul.mubr.bf16.gmra.mrb[0].mxu0 %v3485
      %v3615 = vpop.f32.mrb[0].mxu0
      %v3616 = vadd.f32 0.0, %v3615
      %v3617 = vpop.f32.mrb[0].mxu0
      %v3618 = vpop.f32.mrb[0].mxu0
      %v3619 = vadd.f32 0.0, %v3618
      %v3620 = vpop.f32.mrb[0].mxu0
      %3621 = vmatprep.mubr.bf16.mxu0 0
      %3622 = vmatmul.mubr.bf16.gmra.mrb[0].mxu0 %v3488
      %v3623 = vpop.f32.mrb[0].mxu0
      %v3624 = vadd.f32 0.0, %v3623
      %v3625 = vpop.f32.mrb[0].mxu0
      %v3626 = vpop.f32.mrb[0].mxu0
      %v3627 = vadd.f32 0.0, %v3626
      %v3628 = vpop.f32.mrb[0].mxu0
      %3629 = vmatprep.mubr.bf16.mxu0 0
      %3630 = vmatmul.mubr.bf16.gmra.mrb[0].mxu0 %v3491
      %v3631 = vpop.f32.mrb[0].mxu0
      %v3632 = vadd.f32 0.0, %v3631
      %v3633 = vpop.f32.mrb[0].mxu0
      %v3634 = vpop.f32.mrb[0].mxu0
      %v3635 = vadd.f32 0.0, %v3634
      %v3636 = vpop.f32.mrb[0].mxu0
      %3637 = vmatprep.mubr.bf16.mxu0 0
      %3638 = vmatmul.mubr.bf16.gmra.mrb[0].mxu0 %v3494
      %v3639 = vpop.f32.mrb[0].mxu0
      %v3640 = vadd.f32 0.0, %v3639
      %v3641 = vpop.f32.mrb[0].mxu0
      %v3642 = vpop.f32.mrb[0].mxu0
      %v3643 = vadd.f32 0.0, %v3642
      %v3644 = vpop.f32.mrb[0].mxu0
      %3645 = vmatprep.mubr.bf16.mxu0 0
      %3646 = vmatmul.mubr.bf16.gmra.mrb[0].mxu0 %v3497
      %v3647 = vpop.f32.mrb[0].mxu0
      %v3648 = vadd.f32 0.0, %v3647
      %v3649 = vpop.f32.mrb[0].mxu0
      %v3650 = vpop.f32.mrb[0].mxu0
      %v3651 = vadd.f32 0.0, %v3650
      %v3652 = vpop.f32.mrb[0].mxu0
      %3653 = vmatprep.mubr.bf16.mxu0 0
      %3654 = vmatmul.mubr.bf16.gmra.mrb[0].mxu0 %v3500
      %v3655 = vpop.f32.mrb[0].mxu0
      %v3656 = vadd.f32 0.0, %v3655
      %v3657 = vpop.f32.mrb[0].mxu0
      %v3658 = vpop.f32.mrb[0].mxu0
      %v3659 = vadd.f32 0.0, %v3658
      %v3660 = vpop.f32.mrb[0].mxu0
      %3661 = vmatprep.mubr.bf16.mxu0 0
      %3662 = vmatmul.mubr.bf16.gmra.mrb[0].mxu0 %v3503
      %v3663 = vpop.f32.mrb[0].mxu0
      %v3664 = vadd.f32 0.0, %v3663
      %v3665 = vpop.f32.mrb[0].mxu0
      %v3666 = vpop.f32.mrb[0].mxu0
      %v3667 = vadd.f32 0.0, %v3666
      %v3668 = vpop.f32.mrb[0].mxu0
      %3669 = vmatprep.mubr.bf16.mxu0 0
      %3670 = vmatmul.mubr.bf16.gmra.mrb[0].mxu0 %v3506
      %v3671 = vpop.f32.mrb[0].mxu0
      %v3672 = vadd.f32 0.0, %v3671
      %v3673 = vpop.f32.mrb[0].mxu0
      %v3674 = vpop.f32.mrb[0].mxu0
      %v3675 = vadd.f32 0.0, %v3674
      %v3676 = vpop.f32.mrb[0].mxu0
      %3677 = vmatprep.mubr.bf16.mxu0 0
      %3678 = vmatmul.mubr.bf16.gmra.mrb[0].mxu0 %v3509
      %v3679 = vpop.f32.mrb[0].mxu0
      %v3680 = vadd.f32 0.0, %v3679
      %v3681 = vpop.f32.mrb[0].mxu0
      %v3682 = vpop.f32.mrb[0].mxu0
      %v3683 = vadd.f32 0.0, %v3682
      %v3684 = vpop.f32.mrb[0].mxu0
      %3685 = vmatprep.mubr.bf16.mxu0 0
      %3686 = vmatmul.mubr.bf16.gmra.mrb[0].mxu0 %v3512
      %v3687 = vpop.f32.mrb[0].mxu0
      %v3688 = vadd.f32 0.0, %v3687
      %v3689 = vpop.f32.mrb[0].mxu0
      %v3690 = vpop.f32.mrb[0].mxu0
      %v3691 = vadd.f32 0.0, %v3690
      %v3692 = vpop.f32.mrb[0].mxu0
      %3693 = vdwg.mxu0
      %v3694 = vadd.f32 %v3380, %v3552
      %v3695 = vadd.f32 %v3381, %v3555
      %v3696 = vadd.f32 %v3382, %v3560
      %v3697 = vadd.f32 %v3383, %v3563
      %v3698 = vadd.f32 %v3384, %v3568
      %v3699 = vadd.f32 %v3385, %v3571
      %v3700 = vadd.f32 %v3386, %v3576
      %v3701 = vadd.f32 %v3387, %v3579
      %v3702 = vadd.f32 %v3388, %v3584
      %v3703 = vadd.f32 %v3389, %v3587
      %v3704 = vadd.f32 %v3390, %v3592
      %v3705 = vadd.f32 %v3391, %v3595
      %v3706 = vadd.f32 %v3392, %v3600
      %v3707 = vadd.f32 %v3393, %v3603
      %v3708 = vadd.f32 %v3394, %v3608
      %v3709 = vadd.f32 %v3395, %v3611
      %v3710 = vadd.f32 %v3396, %v3616
      %v3711 = vadd.f32 %v3397, %v3619
      %v3712 = vadd.f32 %v3398, %v3624
      %v3713 = vadd.f32 %v3399, %v3627
      %v3714 = vadd.f32 %v3400, %v3632
      %v3715 = vadd.f32 %v3401, %v3635
      %v3716 = vadd.f32 %v3402, %v3640
      %v3717 = vadd.f32 %v3403, %v3643
      %v3718 = vadd.f32 %v3404, %v3648
      %v3719 = vadd.f32 %v3405, %v3651
      %v3720 = vadd.f32 %v3406, %v3656
      %v3721 = vadd.f32 %v3407, %v3659
      %v3722 = vadd.f32 %v3408, %v3664
      %v3723 = vadd.f32 %v3409, %v3667
      %v3724 = vadd.f32 %v3410, %v3672
      %v3725 = vadd.f32 %v3411, %v3675
      %v3726 = vadd.f32 %v3412, %v3680
      %v3727 = vadd.f32 %v3413, %v3683
      %v3728 = vadd.f32 %v3414, %v3688
      %v3729 = vadd.f32 %v3415, %v3691
      %v3730 = vld [vmem:[%s2] sm:$0x1]
      %v3732 = vlaneseq
      %v3733 = vshrl.u32 %v3732, 7
      %v3734 = vsub.s32 0, %v3733
      %v3735 = vrot.slane %v3730, %v3734
      %v3737 = vadd.f32 %v3694, %v3735
      %v3738 = vadd.f32 %v3695, %v3735
      %v3739 = vadd.f32 %v3696, %v3735
      %v3740 = vadd.f32 %v3697, %v3735
      %v3741 = vadd.f32 %v3698, %v3735
      %v3742 = vadd.f32 %v3699, %v3735
      %v3743 = vadd.f32 %v3700, %v3735
      %v3744 = vadd.f32 %v3701, %v3735
      %v3745 = vadd.f32 %v3702, %v3735
      %v3746 = vadd.f32 %v3703, %v3735
      %v3747 = vadd.f32 %v3704, %v3735
      %v3748 = vadd.f32 %v3705, %v3735
      %v3749 = vadd.f32 %v3706, %v3735
      %v3750 = vadd.f32 %v3707, %v3735
      %v3751 = vadd.f32 %v3708, %v3735
      %v3752 = vadd.f32 %v3709, %v3735
      %v3753 = vadd.f32 %v3710, %v3735
      %v3754 = vadd.f32 %v3711, %v3735
      %v3755 = vadd.f32 %v3712, %v3735
      %v3756 = vadd.f32 %v3713, %v3735
      %v3757 = vadd.f32 %v3714, %v3735
      %v3758 = vadd.f32 %v3715, %v3735
      %v3759 = vadd.f32 %v3716, %v3735
      %v3760 = vadd.f32 %v3717, %v3735
      %v3761 = vadd.f32 %v3718, %v3735
      %v3762 = vadd.f32 %v3719, %v3735
      %v3763 = vadd.f32 %v3720, %v3735
      %v3764 = vadd.f32 %v3721, %v3735
      %v3765 = vadd.f32 %v3722, %v3735
      %v3766 = vadd.f32 %v3723, %v3735
      %v3767 = vadd.f32 %v3724, %v3735
      %v3768 = vadd.f32 %v3725, %v3735
      %v3769 = vadd.f32 %v3726, %v3735
      %v3770 = vadd.f32 %v3727, %v3735
      %v3771 = vadd.f32 %v3728, %v3735
      %v3772 = vadd.f32 %v3729, %v3735
      %v3773 = vmax.f32 %v3737, 0.0
      %v3774 = vmax.f32 %v3738, 0.0
      %v3775 = vmax.f32 %v3739, 0.0
      %v3776 = vmax.f32 %v3740, 0.0
      %v3777 = vmax.f32 %v3741, 0.0
      %v3778 = vmax.f32 %v3742, 0.0
      %v3779 = vmax.f32 %v3743, 0.0
      %v3780 = vmax.f32 %v3744, 0.0
      %v3781 = vmax.f32 %v3745, 0.0
      %v3782 = vmax.f32 %v3746, 0.0
      %v3783 = vmax.f32 %v3747, 0.0
      %v3784 = vmax.f32 %v3748, 0.0
      %v3785 = vmax.f32 %v3749, 0.0
      %v3786 = vmax.f32 %v3750, 0.0
      %v3787 = vmax.f32 %v3751, 0.0
      %v3788 = vmax.f32 %v3752, 0.0
      %v3789 = vmax.f32 %v3753, 0.0
      %v3790 = vmax.f32 %v3754, 0.0
      %v3791 = vmax.f32 %v3755, 0.0
      %v3792 = vmax.f32 %v3756, 0.0
      %v3793 = vmax.f32 %v3757, 0.0
      %v3794 = vmax.f32 %v3758, 0.0
      %v3795 = vmax.f32 %v3759, 0.0
      %v3796 = vmax.f32 %v3760, 0.0
      %v3797 = vmax.f32 %v3761, 0.0
      %v3798 = vmax.f32 %v3762, 0.0
      %v3799 = vmax.f32 %v3763, 0.0
      %v3800 = vmax.f32 %v3764, 0.0
      %v3801 = vmax.f32 %v3765, 0.0
      %v3802 = vmax.f32 %v3766, 0.0
      %v3803 = vmax.f32 %v3767, 0.0
      %v3804 = vmax.f32 %v3768, 0.0
      %v3805 = vmax.f32 %v3769, 0.0
      %v3806 = vmax.f32 %v3770, 0.0
      %v3807 = vmax.f32 %v3771, 0.0
      %v3808 = vmax.f32 %v3772, 0.0
      %v3809 = vpack.c.bf16 %v3774, %v3773
      %v3810 = vpack.c.bf16 %v3776, %v3775
      %v3811 = vpack.c.bf16 %v3778, %v3777
      %v3812 = vpack.c.bf16 %v3780, %v3779
      %v3813 = vpack.c.bf16 %v3782, %v3781
      %v3814 = vpack.c.bf16 %v3784, %v3783
      %v3815 = vpack.c.bf16 %v3786, %v3785
      %v3816 = vpack.c.bf16 %v3788, %v3787
      %v3817 = vpack.c.bf16 %v3790, %v3789
      %v3818 = vpack.c.bf16 %v3792, %v3791
      %v3819 = vpack.c.bf16 %v3794, %v3793
      %v3820 = vpack.c.bf16 %v3796, %v3795
      %v3821 = vpack.c.bf16 %v3798, %v3797
      %v3822 = vpack.c.bf16 %v3800, %v3799
      %v3823 = vpack.c.bf16 %v3802, %v3801
      %v3824 = vpack.c.bf16 %v3804, %v3803
      %v3825 = vpack.c.bf16 %v3806, %v3805
      %v3826 = vpack.c.bf16 %v3808, %v3807
      %v3845 = vunpack.c.l.b16 %v3809
      %v3846 = vunpack.c.h.b16 %v3809
      %v3847 = vunpack.c.l.b16 %v3810
      %v3848 = vunpack.c.h.b16 %v3810
      %v3849 = vunpack.c.l.b16 %v3811
      %v3850 = vunpack.c.h.b16 %v3811
      %v3851 = vunpack.c.l.b16 %v3812
      %v3852 = vunpack.c.h.b16 %v3812
      %v3853 = vunpack.c.l.b16 %v3813
      %v3854 = vunpack.c.h.b16 %v3813
      %v3855 = vunpack.c.l.b16 %v3814
      %v3856 = vunpack.c.h.b16 %v3814
      %v3857 = vunpack.c.l.b16 %v3815
      %v3858 = vunpack.c.h.b16 %v3815
      %v3859 = vunpack.c.l.b16 %v3816
      %v3860 = vunpack.c.h.b16 %v3816
      %v3861 = vunpack.c.l.b16 %v3817
      %v3862 = vunpack.c.h.b16 %v3817
      %v3863 = vunpack.c.l.b16 %v3818
      %v3864 = vunpack.c.h.b16 %v3818
      %v3865 = vunpack.c.l.b16 %v3819
      %v3866 = vunpack.c.h.b16 %v3819
      %v3867 = vunpack.c.l.b16 %v3820
      %v3868 = vunpack.c.h.b16 %v3820
      %v3869 = vunpack.c.l.b16 %v3821
      %v3870 = vunpack.c.h.b16 %v3821
      %v3871 = vunpack.c.l.b16 %v3822
      %v3872 = vunpack.c.h.b16 %v3822
      %v3873 = vunpack.c.l.b16 %v3823
      %v3874 = vunpack.c.h.b16 %v3823
      %v3875 = vunpack.c.l.b16 %v3824
      %v3876 = vunpack.c.h.b16 %v3824
      %v3877 = vunpack.c.l.b16 %v3825
      %v3878 = vunpack.c.h.b16 %v3825
      %v3879 = vunpack.c.l.b16 %v3826
      %v3880 = vunpack.c.h.b16 %v3826
      %v3881 = vpack.c.b16 %v3845, %v3845
      %v3882 = vpack.c.b16 %v3846, %v3846
      %v3883 = vpack.c.b16 %v3847, %v3847
      %v3884 = vpack.c.b16 %v3848, %v3848
      %v3885 = vpack.c.b16 %v3849, %v3849
      %v3886 = vpack.c.b16 %v3850, %v3850
      %v3887 = vpack.c.b16 %v3851, %v3851
      %v3888 = vpack.c.b16 %v3852, %v3852
      %v3889 = vpack.c.b16 %v3853, %v3853
      %v3890 = vpack.c.b16 %v3854, %v3854
      %v3891 = vpack.c.b16 %v3855, %v3855
      %v3892 = vpack.c.b16 %v3856, %v3856
      %v3893 = vpack.c.b16 %v3857, %v3857
      %v3894 = vpack.c.b16 %v3858, %v3858
      %v3895 = vpack.c.b16 %v3859, %v3859
      %v3896 = vpack.c.b16 %v3860, %v3860
      %v3897 = vpack.c.b16 %v3861, %v3861
      %v3898 = vpack.c.b16 %v3862, %v3862
      %v3899 = vpack.c.b16 %v3863, %v3863
      %v3900 = vpack.c.b16 %v3864, %v3864
      %v3901 = vpack.c.b16 %v3865, %v3865
      %v3902 = vpack.c.b16 %v3866, %v3866
      %v3903 = vpack.c.b16 %v3867, %v3867
      %v3904 = vpack.c.b16 %v3868, %v3868
      %v3905 = vpack.c.b16 %v3869, %v3869
      %v3906 = vpack.c.b16 %v3870, %v3870
      %v3907 = vpack.c.b16 %v3871, %v3871
      %v3908 = vpack.c.b16 %v3872, %v3872
      %v3909 = vpack.c.b16 %v3873, %v3873
      %v3910 = vpack.c.b16 %v3874, %v3874
      %v3911 = vpack.c.b16 %v3875, %v3875
      %v3912 = vpack.c.b16 %v3876, %v3876
      %v3913 = vpack.c.b16 %v3877, %v3877
      %v3914 = vpack.c.b16 %v3878, %v3878
      %v3915 = vpack.c.b16 %v3879, %v3879
      %v3916 = vpack.c.b16 %v3880, %v3880
      %vm3953 = vcmask 60416
      %3954 = vst.msk [vmem:[%s170] sm:$0xf] %vm3953, %v3881
      %3955 = vst.msk [vmem:[%s170 + $0x4] sm:$0xf] %vm3953, %v3882
      %3956 = vst.msk [vmem:[%s170 + $0x8] sm:$0xf] %vm3953, %v3883
      %3957 = vst.msk [vmem:[%s170 + $0xc] sm:$0xf] %vm3953, %v3884
      %3958 = vst.msk [vmem:[%s170 + $0x10] sm:$0xf] %vm3953, %v3885
      %3959 = vst.msk [vmem:[%s170 + $0x14] sm:$0xf] %vm3953, %v3886
      %3960 = vst.msk [vmem:[%s170 + $0x18] sm:$0xf] %vm3953, %v3887
      %3961 = vst.msk [vmem:[%s170 + $0x1c] sm:$0xf] %vm3953, %v3888
      %3962 = vst.msk [vmem:[%s170 + $0x20] sm:$0xf] %vm3953, %v3889
      %3963 = vst.msk [vmem:[%s170 + $0x24] sm:$0xf] %vm3953, %v3890
      %3964 = vst.msk [vmem:[%s170 + $0x28] sm:$0xf] %vm3953, %v3891
      %3965 = vst.msk [vmem:[%s170 + $0x2c] sm:$0xf] %vm3953, %v3892
      %3966 = vst.msk [vmem:[%s170 + $0x30] sm:$0xf] %vm3953, %v3893
      %3967 = vst.msk [vmem:[%s170 + $0x34] sm:$0xf] %vm3953, %v3894
      %3968 = vst.msk [vmem:[%s170 + $0x38] sm:$0xf] %vm3953, %v3895
      %3969 = vst.msk [vmem:[%s170 + $0x3c] sm:$0xf] %vm3953, %v3896
      %3970 = vst.msk [vmem:[%s170 + $0x40] sm:$0xf] %vm3953, %v3897
      %3971 = vst.msk [vmem:[%s170 + $0x44] sm:$0xf] %vm3953, %v3898
      %3972 = vst.msk [vmem:[%s170 + $0x48] sm:$0xf] %vm3953, %v3899
      %3973 = vst.msk [vmem:[%s170 + $0x4c] sm:$0xf] %vm3953, %v3900
      %3974 = vst.msk [vmem:[%s170 + $0x50] sm:$0xf] %vm3953, %v3901
      %3975 = vst.msk [vmem:[%s170 + $0x54] sm:$0xf] %vm3953, %v3902
      %3976 = vst.msk [vmem:[%s170 + $0x58] sm:$0xf] %vm3953, %v3903
      %3977 = vst.msk [vmem:[%s170 + $0x5c] sm:$0xf] %vm3953, %v3904
      %3978 = vst.msk [vmem:[%s170 + $0x60] sm:$0xf] %vm3953, %v3905
      %3979 = vst.msk [vmem:[%s170 + $0x64] sm:$0xf] %vm3953, %v3906
      %3980 = vst.msk [vmem:[%s170 + $0x68] sm:$0xf] %vm3953, %v3907
      %3981 = vst.msk [vmem:[%s170 + $0x6c] sm:$0xf] %vm3953, %v3908
      %3982 = vst.msk [vmem:[%s170 + $0x70] sm:$0xf] %vm3953, %v3909
      %3983 = vst.msk [vmem:[%s170 + $0x74] sm:$0xf] %vm3953, %v3910
      %3984 = vst.msk [vmem:[%s170 + $0x78] sm:$0xf] %vm3953, %v3911
      %3985 = vst.msk [vmem:[%s170 + $0x7c] sm:$0xf] %vm3953, %v3912
      %3986 = vst.msk [vmem:[%s170 + $0x80] sm:$0xf] %vm3953, %v3913
      %3987 = vst.msk [vmem:[%s170 + $0x84] sm:$0xf] %vm3953, %v3914
      %3988 = vst.msk [vmem:[%s170 + $0x88] sm:$0xf] %vm3953, %v3915
      %vm3989 = vcmask 59392
      %3990 = vst.msk [vmem:[%s170 + $0x8c] sm:$0x7] %vm3989, %v3916
      %p3991 = scmp.lt.s32.totalorder %s14, 7
      %s3992 = scalar_select %p3991, %s14, 7
      %s3993 = smul.addr %s3992, 36
      %s3994 = smul.addr %s3993, 4
      %s3995 = scalar_lea.vmem %s3, %s3994
      // Predicated region
      $region33: #{similarity_regnet_forward.6} parent=31 // pred_check
        %p3996 = pneg %p100
      $region34: #{similarity_regnet_forward.6} parent=31 // pred_check_branch
        %3998 = sbr.rel (%p3996) target = $region36
      $region35: #{similarity_regnet_forward.6} parent=31 // pred_region
        _
      $region36: #{similarity_regnet_forward.6} parent=31 // pred_fallthru
        _
    $region32: #{similarity_regnet_forward.6} parent=5 // pred_fallthru
      _
    %p3999 = scmp.le.s32.totalorder 2, %s9
    // Predicated region
    $region37: #{similarity_regnet_forward.6} parent=5 // pred_check
      %p4000 = pneg %p3999
    $region38: #{similarity_regnet_forward.6} parent=5 // pred_check_branch
      %4002 = sbr.rel (%p4000) target = $region40
    $region39: #{similarity_regnet_forward.6} parent=5 // pred_region
      %s4003 = ssub.s32 %s9, 2
      // Predicated region
      $region41: #{similarity_regnet_forward.6} parent=39 // pred_check
        %p4004 = pneg %p106
      $region42: #{similarity_regnet_forward.6} parent=39 // pred_check_branch
        %4006 = sbr.rel (%p4004) target = $region44
      $region43: #{similarity_regnet_forward.6} parent=39 // pred_region
        %p4007 = scmp.lt.s32.totalorder %s15, 7
        %s4008 = scalar_select %p4007, %s15, 7
        %s4009 = smul.addr %s4008, 36
        %s4010 = smul.addr %s4009, 4
        %s4011 = scalar_lea.vmem %s3, %s4010
      $region44: #{similarity_regnet_forward.6} parent=39 // pred_fallthru
        _
    $region40: #{similarity_regnet_forward.6} parent=5 // pred_fallthru
      _
  $region6: #{similarity_regnet_forward.6} parent=0 // loop_footer
    %s13 = sadd.s32 1, %s9
  $region7: #{similarity_regnet_forward.6} parent=0 // loop_footer_branch
    %8 = sbr.rel target = $region3
  $region8: #{similarity_regnet_forward.6} parent=0 // loop_exit
    _

// kernel: similarity_regnet_forward.7
$region0: #{similarity_regnet_forward.7}
  #allocation0 [shape = 'u32[]', space=smem, size = 0x4, offset = 0x4, fixed_abs, tag = 'smem constant byte address 0x4 - core index']
  #allocation1 [shape = 'u32[144,128]{1,0:T(1,128)}', space=vmem, size = 0x12000, scoped, tag = 'internal scratch']
  %s0 = inlined_call_operand.vmem [shape: bf16[8,81,32], index: 0, kind: input, shape index: {}]
  %s1 = inlined_call_operand.vmem [shape: bf16[4,32,16], index: 1, kind: input, shape index: {}]
  %s2 = inlined_call_operand.vmem [shape: f32[1,16], index: 2, kind: input, shape index: {}]
  %s3 = inlined_call_operand.vmem [shape: bf16[8,71,16], index: 3, kind: output, shape index: {}]
  %s4 = sld [smem:[#allocation0]]
  $region45: #{similarity_regnet_forward.7} parent=0
    _
  %s6 = ssub.s32 1, %s4
  %s7 = scalar_select 0, %s6, %s4
  loop: start=0, step=1, limit=10
  $region2: #{similarity_regnet_forward.7} parent=0 // loop_pre_header
    _
  $region3: #{similarity_regnet_forward.7} parent=0 // loop_header
    %s9 = sphi 0, %s13
    %p10 = scmp.ge.s32.totalorder %s9, 10
    %s19 = sphi 0, %s21
    %s22 = sphi 0, %s19
    %s23 = sphi 0, %s22
    %s39 = sphi 0, %s23
    %s43 = sphi 0, %s43
    %s45 = sphi 0, %s43
    %s46 = sphi 0, %s45
    %s60 = sphi 0, %s46
    %s64 = sphi 0, %s64
    %s66 = sphi 0, %s64
    %s67 = sphi 0, %s66
    %s81 = sphi 0, %s67
    %s87 = sphi 0, %s89
    %s90 = sphi 0, %s87
    %s91 = sphi 0, %s90
    %s107 = sphi 0, %s91
  $region4: #{similarity_regnet_forward.7} parent=0 // loop_header_branch
    %12 = sbr.rel (%p10) target = $region8
  $region5: #{similarity_regnet_forward.7} parent=0 // loop_body
    %s14 = ssub.s32 %s9, 1
    %s15 = ssub.s32 %s9, 2
    %s16 = sadd.s32 %s9, 1
    %s17 = ssub.s32 %s9, %s16
    %p18 = scmp.eq.s32.totalorder %s17, 0
    %s20 = sadd.s32 %s19, 1
    %s21 = scalar_select %p18, %s19, %s20
    %p24 = pneg %p18
    %p25 = scmp.eq.s32.totalorder %s9, 7
    %p26 = por %p24, %p25
    %p27 = scmp.ne.s32.totalorder %s19, %s22
    %p28 = scmp.eq.s32.totalorder %s9, 0
    %p29 = por %p27, %p28
    %p30 = scmp.ne.s32.totalorder %s19, %s22
    %p31 = scmp.eq.s32.totalorder %s14, 7
    %p32 = por %p30, %p31
    %p33 = scmp.ne.s32.totalorder %s22, %s23
    %p34 = scmp.eq.s32.totalorder %s14, 0
    %p35 = por %p33, %p34
    %p36 = scmp.ne.s32.totalorder %s22, %s23
    %p37 = scmp.eq.s32.totalorder %s15, 7
    %p38 = por %p36, %p37
    %p40 = scmp.ne.s32.totalorder %s23, %s39
    %p41 = scmp.eq.s32.totalorder %s15, 0
    %p42 = por %p40, %p41
    %s44 = sadd.s32 %s43, 1
    %p47 = scmp.eq.s32.totalorder %s9, 7
    %p48 = scmp.ne.s32.totalorder %s43, %s45
    %p49 = scmp.eq.s32.totalorder %s9, 0
    %p50 = por %p48, %p49
    %p51 = scmp.ne.s32.totalorder %s43, %s45
    %p52 = scmp.eq.s32.totalorder %s14, 7
    %p53 = por %p51, %p52
    %p54 = scmp.ne.s32.totalorder %s45, %s46
    %p55 = scmp.eq.s32.totalorder %s14, 0
    %p56 = por %p54, %p55
    %p57 = scmp.ne.s32.totalorder %s45, %s46
    %p58 = scmp.eq.s32.totalorder %s15, 7
    %p59 = por %p57, %p58
    %p61 = scmp.ne.s32.totalorder %s46, %s60
    %p62 = scmp.eq.s32.totalorder %s15, 0
    %p63 = por %p61, %p62
    %s65 = sadd.s32 %s64, 1
    %p68 = scmp.eq.s32.totalorder %s9, 7
    %p69 = scmp.ne.s32.totalorder %s64, %s66
    %p70 = scmp.eq.s32.totalorder %s9, 0
    %p71 = por %p69, %p70
    %p72 = scmp.ne.s32.totalorder %s64, %s66
    %p73 = scmp.eq.s32.totalorder %s14, 7
    %p74 = por %p72, %p73
    %p75 = scmp.ne.s32.totalorder %s66, %s67
    %p76 = scmp.eq.s32.totalorder %s14, 0
    %p77 = por %p75, %p76
    %p78 = scmp.ne.s32.totalorder %s66, %s67
    %p79 = scmp.eq.s32.totalorder %s15, 7
    %p80 = por %p78, %p79
    %p82 = scmp.ne.s32.totalorder %s67, %s81
    %p83 = scmp.eq.s32.totalorder %s15, 0
    %p84 = por %p82, %p83
    %s85 = ssub.s32 %s9, %s16
    %p86 = scmp.eq.s32.totalorder %s85, 0
    %s88 = sadd.s32 %s87, 1
    %s89 = scalar_select %p86, %s87, %s88
    %p92 = pneg %p86
    %p93 = scmp.eq.s32.totalorder %s9, 7
    %p94 = por %p92, %p93
    %p95 = scmp.ne.s32.totalorder %s87, %s90
    %p96 = scmp.eq.s32.totalorder %s9, 0
    %p97 = por %p95, %p96
    %p98 = scmp.ne.s32.totalorder %s87, %s90
    %p99 = scmp.eq.s32.totalorder %s14, 7
    %p100 = por %p98, %p99
    %p101 = scmp.ne.s32.totalorder %s90, %s91
    %p102 = scmp.eq.s32.totalorder %s14, 0
    %p103 = por %p101, %p102
    %p104 = scmp.ne.s32.totalorder %s90, %s91
    %p105 = scmp.eq.s32.totalorder %s15, 7
    %p106 = por %p104, %p105
    %p108 = scmp.ne.s32.totalorder %s91, %s107
    %p109 = scmp.eq.s32.totalorder %s15, 0
    %p110 = por %p108, %p109
    %p111 = scmp.le.s32.totalorder 1, %s9
    %p112 = scmp.lt.s32.totalorder %s9, 9
    %p113 = pnand %p111, %p112
    %p114 = pneg %p113
    // Predicated region
    $region9: #{similarity_regnet_forward.7} parent=5 // pred_check
      _
    $region10: #{similarity_regnet_forward.7} parent=5 // pred_check_branch
      %116 = sbr.rel (%p113) target = $region12
    $region11: #{similarity_regnet_forward.7} parent=5 // pred_region
      %s117 = ssub.s32 %s9, 1
      // Predicated region
      $region13: #{similarity_regnet_forward.7} parent=11 // pred_check
        %p118 = pneg %p56
      $region14: #{similarity_regnet_forward.7} parent=11 // pred_check_branch
        %120 = sbr.rel (%p118) target = $region16
      $region15: #{similarity_regnet_forward.7} parent=11 // pred_region
        _
      $region16: #{similarity_regnet_forward.7} parent=11 // pred_fallthru
        _
      // Predicated region
      $region17: #{similarity_regnet_forward.7} parent=11 // pred_check
        %p121 = pneg %p77
      $region18: #{similarity_regnet_forward.7} parent=11 // pred_check_branch
        %123 = sbr.rel (%p121) target = $region20
      $region19: #{similarity_regnet_forward.7} parent=11 // pred_region
        _
      $region20: #{similarity_regnet_forward.7} parent=11 // pred_fallthru
        _
    $region12: #{similarity_regnet_forward.7} parent=5 // pred_fallthru
      _
    %p124 = scmp.lt.s32.totalorder %s9, 8
    // Predicated region
    $region21: #{similarity_regnet_forward.7} parent=5 // pred_check
      %p125 = pneg %p124
    $region22: #{similarity_regnet_forward.7} parent=5 // pred_check_branch
      %127 = sbr.rel (%p125) target = $region24
    $region23: #{similarity_regnet_forward.7} parent=5 // pred_region
      // Predicated region
      $region25: #{similarity_regnet_forward.7} parent=23 // pred_check
        %p128 = pneg %p29
      $region26: #{similarity_regnet_forward.7} parent=23 // pred_check_branch
        %130 = sbr.rel (%p128) target = $region28
      $region27: #{similarity_regnet_forward.7} parent=23 // pred_region
        %p131 = scmp.lt.s32.totalorder %s9, 7
        %s132 = scalar_select %p131, %s9, 7
        %s133 = smul.addr %s132, 11
        %s134 = smul.addr %s133, 4
        %s135 = scalar_lea.vmem %s0, %s134
      $region28: #{similarity_regnet_forward.7} parent=23 // pred_fallthru
        _
    $region24: #{similarity_regnet_forward.7} parent=5 // pred_fallthru
      _
    %p136 = scmp.le.s32.totalorder 1, %s9
    %p137 = scmp.lt.s32.totalorder %s9, 9
    %p138 = pnand %p136, %p137
    %p139 = pneg %p138
    // Predicated region
    $region29: #{similarity_regnet_forward.7} parent=5 // pred_check
      _
    $region30: #{similarity_regnet_forward.7} parent=5 // pred_check_branch
      %141 = sbr.rel (%p138) target = $region32
    $region31: #{similarity_regnet_forward.7} parent=5 // pred_region
      %s142 = ssub.s32 %s9, 1
      %p143 = scmp.lt.s32.totalorder %s14, 7
      %s144 = scalar_select %p143, %s14, 7
      %s145 = smul.addr %s144, 11
      %s146 = smul.addr %s145, 4
      %s147 = scalar_lea.vmem %s0, %s146
      %p148 = pneg %p35
      %p149 = pneg %p32
      %p150 = pneg %p56
      %p151 = pneg %p53
      %p152 = pneg %p77
      %p153 = pneg %p74
      %p154 = pneg %p103
      %p155 = pneg %p100
      %p156 = scmp.lt.s32.totalorder %s14, 7
      %s157 = scalar_select %p156, %s14, 7
      %s158 = smul.addr %s157, 9
      %s159 = smul.addr %s158, 4
      %s160 = scalar_lea.vmem %s3, %s159
      %p161 = scmp.lt.s32.totalorder %s14, 7
      %s162 = scalar_select %p161, %s14, 7
      %s163 = smul.addr %s162, 11
      %s164 = smul.addr %s163, 4
      %s165 = scalar_lea.vmem %s0, %s164
      %p166 = scmp.lt.s32.totalorder %s14, 7
      %s167 = scalar_select %p166, %s14, 7
      %s168 = smul.addr %s167, 9
      %s169 = smul.addr %s168, 4
      %s170 = scalar_lea.vmem %s3, %s169
      %v172 = vld [vmem:[%s165] sm:$0xf]
      %v173 = vld [vmem:[%s165 + $0x4] sm:$0xf]
      %v174 = vld [vmem:[%s165 + $0x8] sm:$0xf]
      %v175 = vld [vmem:[%s165 + $0xc] sm:$0xf]
      %v176 = vld [vmem:[%s165 + $0x10] sm:$0xf]
      %v177 = vld [vmem:[%s165 + $0x14] sm:$0xf]
      %v178 = vld [vmem:[%s165 + $0x18] sm:$0xf]
      %v179 = vld [vmem:[%s165 + $0x1c] sm:$0xf]
      %v180 = vld [vmem:[%s165 + $0x20] sm:$0xf]
      %v181 = vld [vmem:[%s1] sm:$0xf]
      %v182 = vld [vmem:[%s1 + $0x4] sm:$0xf]
      %v183 = vld [vmem:[%s1 + $0x8] sm:$0xf]
      %v184 = vld [vmem:[%s1 + $0xc] sm:$0xf]
      %s185 = scalar_lea.vmem %s1, 16
      %v186 = vld [vmem:[%s185] sm:$0xf]
      %v187 = vld [vmem:[%s185 + $0x4] sm:$0xf]
      %v188 = vld [vmem:[%s185 + $0x8] sm:$0xf]
      %v189 = vld [vmem:[%s185 + $0xc] sm:$0xf]
      %v199 = vunpack.c.l.b16 %v172
      %v200 = vunpack.c.l.b16 %v173
      %v201 = vunpack.c.l.b16 %v174
      %v202 = vunpack.c.l.b16 %v175
      %v203 = vunpack.c.l.b16 %v176
      %v204 = vunpack.c.l.b16 %v177
      %v205 = vunpack.c.l.b16 %v178
      %v206 = vunpack.c.l.b16 %v179
      %v207 = vunpack.c.l.b16 %v180
      %v208 = vpack.c.b16 %v200, %v199
      %v209 = vpack.c.b16 %v202, %v201
      %v210 = vpack.c.b16 %v204, %v203
      %v211 = vpack.c.b16 %v206, %v205
      %v212 = vpack.c.b16 %v207, %v207
      %vm213 = vsmask.f32 7424
      %v215 = vshrl.u32 %v208, 16
      %v217 = vshll.u32 %v208, 16
      %v219 = vrot.slane %v217, 1
      %v220 = vor.u32 %v215, %v219
      %v222 = vshll.u32 %v209, 16
      %v224 = vrot.slane %v222, 1
      %v225 = vsel %vm213, %v220, %v224
      %v226 = vshrl.u32 %v209, 16
      %v228 = vor.u32 %v226, %v224
      %v230 = vshll.u32 %v210, 16
      %v232 = vrot.slane %v230, 1
      %v233 = vsel %vm213, %v228, %v232
      %v234 = vshrl.u32 %v210, 16
      %v236 = vor.u32 %v234, %v232
      %v238 = vshll.u32 %v211, 16
      %v240 = vrot.slane %v238, 1
      %v241 = vsel %vm213, %v236, %v240
      %v242 = vshrl.u32 %v211, 16
      %v244 = vor.u32 %v242, %v240
      %v246 = vshll.u32 %v212, 16
      %v248 = vrot.slane %v246, 1
      %v249 = vsel %vm213, %v244, %v248
      %v250 = vshrl.u32 %v212, 16
      %v252 = vor.u32 %v250, %v248
      %v257 = vunpack.c.l.b16 %v186
      %v258 = vunpack.c.l.b16 %v187
      %v259 = vunpack.c.l.b16 %v188
      %v260 = vunpack.c.l.b16 %v189
      %v261 = vpack.c.b16 %v258, %v257
      %v262 = vpack.c.b16 %v260, %v259
      %vm265 = vcmask 261120
      %v267 = vsel %vm265, %v225, 0
      %v270 = vsel %vm265, %v233, 0
      %v273 = vsel %vm265, %v241, 0
      %v276 = vsel %vm265, %v249, 0
      %v279 = vsel %vm265, %v252, 0
      %281 = vmatprep.subr.bf16.mxu0 0
      %282 = vmatpush1.bf16.msra.mxu0 %v261
      %283 = vmatprep.subr.bf16.mxu0 0
      %284 = vmatpush1.bf16.msra.mxu0 %v262
      %285 = vmatprep.subr.bf16.mxu0 0
      %286 = vmatpush1.bf16.msra.mxu0 0
      %287 = vmatprep.subr.bf16.mxu0 0
      %288 = vmatpush1.bf16.msra.mxu0 0
      %289 = vmatprep.subr.bf16.mxu0 0
      %290 = vmatpush1.bf16.msra.mxu0 0
      %291 = vmatprep.subr.bf16.mxu0 0
      %292 = vmatpush1.bf16.msra.mxu0 0
      %293 = vmatprep.subr.bf16.mxu0 0
      %294 = vmatpush1.bf16.msra.mxu0 0
      %295 = vmatprep.subr.bf16.mxu0 0
      %296 = vmatpush1.bf16.msra.mxu0 0
      %297 = vmatprep.subr.bf16.mxu0 0
      %298 = vmatpush1.bf16.msra.mxu0 0
      %299 = vmatprep.subr.bf16.mxu0 0
      %300 = vmatpush1.bf16.msra.mxu0 0
      %301 = vmatprep.subr.bf16.mxu0 0
      %302 = vmatpush1.bf16.msra.mxu0 0
      %303 = vmatprep.subr.bf16.mxu0 0
      %304 = vmatpush1.bf16.msra.mxu0 0
      %305 = vmatprep.subr.bf16.mxu0 0
      %306 = vmatpush1.bf16.msra.mxu0 0
      %307 = vmatprep.subr.bf16.mxu0 0
      %308 = vmatpush1.bf16.msra.mxu0 0
      %309 = vmatprep.subr.bf16.mxu0 0
      %310 = vmatpush1.bf16.msra.mxu0 0
      %311 = vmatprep.subr.bf16.mxu0 0
      %312 = vmatpush1.bf16.msra.mxu0 0
      %313 = vmatprep.mubr.bf16.mxu0 0
      %314 = vmatmul.mubr.bf16.gmra.mrb[0].mxu0 %v267
      %v315 = vpop.f32.mrb[0].mxu0
      %v316 = vadd.f32 0.0, %v315
      %v317 = vpop.f32.mrb[0].mxu0
      %v318 = vpop.f32.mrb[0].mxu0
      %v319 = vadd.f32 0.0, %v318
      %v320 = vpop.f32.mrb[0].mxu0
      %321 = vmatprep.mubr.bf16.mxu0 0
      %322 = vmatmul.mubr.bf16.gmra.mrb[0].mxu0 %v270
      %v323 = vpop.f32.mrb[0].mxu0
      %v324 = vadd.f32 0.0, %v323
      %v325 = vpop.f32.mrb[0].mxu0
      %v326 = vpop.f32.mrb[0].mxu0
      %v327 = vadd.f32 0.0, %v326
      %v328 = vpop.f32.mrb[0].mxu0
      %329 = vmatprep.mubr.bf16.mxu0 0
      %330 = vmatmul.mubr.bf16.gmra.mrb[0].mxu0 %v273
      %v331 = vpop.f32.mrb[0].mxu0
      %v332 = vadd.f32 0.0, %v331
      %v333 = vpop.f32.mrb[0].mxu0
      %v334 = vpop.f32.mrb[0].mxu0
      %v335 = vadd.f32 0.0, %v334
      %v336 = vpop.f32.mrb[0].mxu0
      %337 = vmatprep.mubr.bf16.mxu0 0
      %338 = vmatmul.mubr.bf16.gmra.mrb[0].mxu0 %v276
      %v339 = vpop.f32.mrb[0].mxu0
      %v340 = vadd.f32 0.0, %v339
      %v341 = vpop.f32.mrb[0].mxu0
      %v342 = vpop.f32.mrb[0].mxu0
      %v343 = vadd.f32 0.0, %v342
      %v344 = vpop.f32.mrb[0].mxu0
      %345 = vmatprep.mubr.bf16.mxu0 0
      %346 = vmatmul.mubr.bf16.gmra.mrb[0].mxu0 %v279
      %v347 = vpop.f32.mrb[0].mxu0
      %v348 = vadd.f32 0.0, %v347
      %v349 = vpop.f32.mrb[0].mxu0
      %v350 = vpop.f32.mrb[0].mxu0
      %v351 = vpop.f32.mrb[0].mxu0
      %352 = vdwg.mxu0
      %v357 = vunpack.c.l.b16 %v181
      %v358 = vunpack.c.l.b16 %v182
      %v359 = vunpack.c.l.b16 %v183
      %v360 = vunpack.c.l.b16 %v184
      %v361 = vpack.c.b16 %v358, %v357
      %v362 = vpack.c.b16 %v360, %v359
      %v365 = vsel %vm265, %v208, 0
      %v367 = vsel %vm265, %v209, 0
      %v369 = vsel %vm265, %v210, 0
      %v371 = vsel %vm265, %v211, 0
      %v373 = vsel %vm265, %v212, 0
      %375 = vmatprep.subr.bf16.mxu0 0
      %376 = vmatpush1.bf16.msra.mxu0 %v361
      %377 = vmatprep.subr.bf16.mxu0 0
      %378 = vmatpush1.bf16.msra.mxu0 %v362
      %379 = vmatprep.subr.bf16.mxu0 0
      %380 = vmatpush1.bf16.msra.mxu0 0
      %381 = vmatprep.subr.bf16.mxu0 0
      %382 = vmatpush1.bf16.msra.mxu0 0
      %383 = vmatprep.subr.bf16.mxu0 0
      %384 = vmatpush1.bf16.msra.mxu0 0
      %385 = vmatprep.subr.bf16.mxu0 0
      %386 = vmatpush1.bf16.msra.mxu0 0
      %387 = vmatprep.subr.bf16.mxu0 0
      %388 = vmatpush1.bf16.msra.mxu0 0
      %389 = vmatprep.subr.bf16.mxu0 0
      %390 = vmatpush1.bf16.msra.mxu0 0
      %391 = vmatprep.subr.bf16.mxu0 0
      %392 = vmatpush1.bf16.msra.mxu0 0
      %393 = vmatprep.subr.bf16.mxu0 0
      %394 = vmatpush1.bf16.msra.mxu0 0
      %395 = vmatprep.subr.bf16.mxu0 0
      %396 = vmatpush1.bf16.msra.mxu0 0
      %397 = vmatprep.subr.bf16.mxu0 0
      %398 = vmatpush1.bf16.msra.mxu0 0
      %399 = vmatprep.subr.bf16.mxu0 0
      %400 = vmatpush1.bf16.msra.mxu0 0
      %401 = vmatprep.subr.bf16.mxu0 0
      %402 = vmatpush1.bf16.msra.mxu0 0
      %403 = vmatprep.subr.bf16.mxu0 0
      %404 = vmatpush1.bf16.msra.mxu0 0
      %405 = vmatprep.subr.bf16.mxu0 0
      %406 = vmatpush1.bf16.msra.mxu0 0
      %407 = vmatprep.mubr.bf16.mxu0 0
      %408 = vmatmul.mubr.bf16.gmra.mrb[0].mxu0 %v365
      %v409 = vpop.f32.mrb[0].mxu0
      %v410 = vadd.f32 %v316, %v409
      %v411 = vpop.f32.mrb[0].mxu0
      %v412 = vpop.f32.mrb[0].mxu0
      %v413 = vadd.f32 %v319, %v412
      %v414 = vpop.f32.mrb[0].mxu0
      %415 = vmatprep.mubr.bf16.mxu0 0
      %416 = vmatmul.mubr.bf16.gmra.mrb[0].mxu0 %v367
      %v417 = vpop.f32.mrb[0].mxu0
      %v418 = vadd.f32 %v324, %v417
      %v419 = vpop.f32.mrb[0].mxu0
      %v420 = vpop.f32.mrb[0].mxu0
      %v421 = vadd.f32 %v327, %v420
      %v422 = vpop.f32.mrb[0].mxu0
      %423 = vmatprep.mubr.bf16.mxu0 0
      %424 = vmatmul.mubr.bf16.gmra.mrb[0].mxu0 %v369
      %v425 = vpop.f32.mrb[0].mxu0
      %v426 = vadd.f32 %v332, %v425
      %v427 = vpop.f32.mrb[0].mxu0
      %v428 = vpop.f32.mrb[0].mxu0
      %v429 = vadd.f32 %v335, %v428
      %v430 = vpop.f32.mrb[0].mxu0
      %431 = vmatprep.mubr.bf16.mxu0 0
      %432 = vmatmul.mubr.bf16.gmra.mrb[0].mxu0 %v371
      %v433 = vpop.f32.mrb[0].mxu0
      %v434 = vadd.f32 %v340, %v433
      %v435 = vpop.f32.mrb[0].mxu0
      %v436 = vpop.f32.mrb[0].mxu0
      %v437 = vadd.f32 %v343, %v436
      %v438 = vpop.f32.mrb[0].mxu0
      %439 = vmatprep.mubr.bf16.mxu0 0
      %440 = vmatmul.mubr.bf16.gmra.mrb[0].mxu0 %v373
      %v441 = vpop.f32.mrb[0].mxu0
      %v442 = vadd.f32 %v348, %v441
      %v443 = vpop.f32.mrb[0].mxu0
      %v444 = vpop.f32.mrb[0].mxu0
      %v445 = vpop.f32.mrb[0].mxu0
      %446 = vdwg.mxu0
      %v447 = vld [vmem:[%s165 + $0x4] sm:$0xf]
      %v448 = vld [vmem:[%s165 + $0x8] sm:$0xf]
      %v449 = vld [vmem:[%s165 + $0xc] sm:$0xf]
      %v450 = vld [vmem:[%s165 + $0x10] sm:$0xf]
      %v451 = vld [vmem:[%s165 + $0x14] sm:$0xf]
      %v452 = vld [vmem:[%s165 + $0x18] sm:$0xf]
      %v453 = vld [vmem:[%s165 + $0x1c] sm:$0xf]
      %v454 = vld [vmem:[%s165 + $0x20] sm:$0xf]
      %v455 = vld [vmem:[%s165 + $0x24] sm:$0xf]
      %s456 = scalar_lea.vmem %s1, 32
      %v457 = vld [vmem:[%s456] sm:$0xf]
      %v458 = vld [vmem:[%s456 + $0x4] sm:$0xf]
      %v459 = vld [vmem:[%s456 + $0x8] sm:$0xf]
      %v460 = vld [vmem:[%s456 + $0xc] sm:$0xf]
      %v470 = vunpack.c.l.b16 %v447
      %v471 = vunpack.c.l.b16 %v448
      %v472 = vunpack.c.l.b16 %v449
      %v473 = vunpack.c.l.b16 %v450
      %v474 = vunpack.c.l.b16 %v451
      %v475 = vunpack.c.l.b16 %v452
      %v476 = vunpack.c.l.b16 %v453
      %v477 = vunpack.c.l.b16 %v454
      %v478 = vunpack.c.l.b16 %v455
      %v479 = vpack.c.b16 %v471, %v470
      %v480 = vpack.c.b16 %v473, %v472
      %v481 = vpack.c.b16 %v475, %v474
      %v482 = vpack.c.b16 %v477, %v476
      %v483 = vpack.c.b16 %v478, %v478
      %v485 = vshrl.u32 %v479, 16
      %v487 = vshll.u32 %v479, 16
      %v489 = vrot.slane %v487, 1
      %v490 = vor.u32 %v485, %v489
      %v492 = vshll.u32 %v480, 16
      %v494 = vrot.slane %v492, 1
      %v495 = vsel %vm213, %v490, %v494
      %v496 = vshrl.u32 %v480, 16
      %v498 = vor.u32 %v496, %v494
      %v500 = vshll.u32 %v481, 16
      %v502 = vrot.slane %v500, 1
      %v503 = vsel %vm213, %v498, %v502
      %v504 = vshrl.u32 %v481, 16
      %v506 = vor.u32 %v504, %v502
      %v508 = vshll.u32 %v482, 16
      %v510 = vrot.slane %v508, 1
      %v511 = vsel %vm213, %v506, %v510
      %v512 = vshrl.u32 %v482, 16
      %v514 = vor.u32 %v512, %v510
      %v516 = vshll.u32 %v483, 16
      %v518 = vrot.slane %v516, 1
      %v519 = vsel %vm213, %v514, %v518
      %v520 = vshrl.u32 %v483, 16
      %v522 = vor.u32 %v520, %v518
      %v527 = vunpack.c.l.b16 %v457
      %v528 = vunpack.c.l.b16 %v458
      %v529 = vunpack.c.l.b16 %v459
      %v530 = vunpack.c.l.b16 %v460
      %v531 = vpack.c.b16 %v528, %v527
      %v532 = vpack.c.b16 %v530, %v529
      %v536 = vsel %vm265, %v495, 0
      %v539 = vsel %vm265, %v503, 0
      %v542 = vsel %vm265, %v511, 0
      %v545 = vsel %vm265, %v519, 0
      %v548 = vsel %vm265, %v522, 0
      %550 = vmatprep.subr.bf16.mxu0 0
      %551 = vmatpush1.bf16.msra.mxu0 %v531
      %552 = vmatprep.subr.bf16.mxu0 0
      %553 = vmatpush1.bf16.msra.mxu0 %v532
      %554 = vmatprep.subr.bf16.mxu0 0
      %555 = vmatpush1.bf16.msra.mxu0 0
      %556 = vmatprep.subr.bf16.mxu0 0
      %557 = vmatpush1.bf16.msra.mxu0 0
      %558 = vmatprep.subr.bf16.mxu0 0
      %559 = vmatpush1.bf16.msra.mxu0 0
      %560 = vmatprep.subr.bf16.mxu0 0
      %561 = vmatpush1.bf16.msra.mxu0 0
      %562 = vmatprep.subr.bf16.mxu0 0
      %563 = vmatpush1.bf16.msra.mxu0 0
      %564 = vmatprep.subr.bf16.mxu0 0
      %565 = vmatpush1.bf16.msra.mxu0 0
      %566 = vmatprep.subr.bf16.mxu0 0
      %567 = vmatpush1.bf16.msra.mxu0 0
      %568 = vmatprep.subr.bf16.mxu0 0
      %569 = vmatpush1.bf16.msra.mxu0 0
      %570 = vmatprep.subr.bf16.mxu0 0
      %571 = vmatpush1.bf16.msra.mxu0 0
      %572 = vmatprep.subr.bf16.mxu0 0
      %573 = vmatpush1.bf16.msra.mxu0 0
      %574 = vmatprep.subr.bf16.mxu0 0
      %575 = vmatpush1.bf16.msra.mxu0 0
      %576 = vmatprep.subr.bf16.mxu0 0
      %577 = vmatpush1.bf16.msra.mxu0 0
      %578 = vmatprep.subr.bf16.mxu0 0
      %579 = vmatpush1.bf16.msra.mxu0 0
      %580 = vmatprep.subr.bf16.mxu0 0
      %581 = vmatpush1.bf16.msra.mxu0 0
      %582 = vmatprep.mubr.bf16.mxu0 0
      %583 = vmatmul.mubr.bf16.gmra.mrb[0].mxu0 %v536
      %v584 = vpop.f32.mrb[0].mxu0
      %v585 = vadd.f32 0.0, %v584
      %v586 = vpop.f32.mrb[0].mxu0
      %v587 = vpop.f32.mrb[0].mxu0
      %v588 = vadd.f32 0.0, %v587
      %v589 = vpop.f32.mrb[0].mxu0
      %590 = vmatprep.mubr.bf16.mxu0 0
      %591 = vmatmul.mubr.bf16.gmra.mrb[0].mxu0 %v539
      %v592 = vpop.f32.mrb[0].mxu0
      %v593 = vadd.f32 0.0, %v592
      %v594 = vpop.f32.mrb[0].mxu0
      %v595 = vpop.f32.mrb[0].mxu0
      %v596 = vadd.f32 0.0, %v595
      %v597 = vpop.f32.mrb[0].mxu0
      %598 = vmatprep.mubr.bf16.mxu0 0
      %599 = vmatmul.mubr.bf16.gmra.mrb[0].mxu0 %v542
      %v600 = vpop.f32.mrb[0].mxu0
      %v601 = vadd.f32 0.0, %v600
      %v602 = vpop.f32.mrb[0].mxu0
      %v603 = vpop.f32.mrb[0].mxu0
      %v604 = vadd.f32 0.0, %v603
      %v605 = vpop.f32.mrb[0].mxu0
      %606 = vmatprep.mubr.bf16.mxu0 0
      %607 = vmatmul.mubr.bf16.gmra.mrb[0].mxu0 %v545
      %v608 = vpop.f32.mrb[0].mxu0
      %v609 = vadd.f32 0.0, %v608
      %v610 = vpop.f32.mrb[0].mxu0
      %v611 = vpop.f32.mrb[0].mxu0
      %v612 = vadd.f32 0.0, %v611
      %v613 = vpop.f32.mrb[0].mxu0
      %614 = vmatprep.mubr.bf16.mxu0 0
      %615 = vmatmul.mubr.bf16.gmra.mrb[0].mxu0 %v548
      %v616 = vpop.f32.mrb[0].mxu0
      %v617 = vadd.f32 0.0, %v616
      %v618 = vpop.f32.mrb[0].mxu0
      %v619 = vpop.f32.mrb[0].mxu0
      %v620 = vpop.f32.mrb[0].mxu0
      %621 = vdwg.mxu0
      %v622 = vadd.f32 %v410, %v585
      %v623 = vadd.f32 %v413, %v588
      %v624 = vadd.f32 %v418, %v593
      %v625 = vadd.f32 %v421, %v596
      %v626 = vadd.f32 %v426, %v601
      %v627 = vadd.f32 %v429, %v604
      %v628 = vadd.f32 %v434, %v609
      %v629 = vadd.f32 %v437, %v612
      %v630 = vadd.f32 %v442, %v617
      %v631 = vld [vmem:[%s165 + $0x4] sm:$0xe]
      %v632 = vld [vmem:[%s165 + $0x8] sm:$0xf]
      %v633 = vld [vmem:[%s165 + $0xc] sm:$0xf]
      %v634 = vld [vmem:[%s165 + $0x10] sm:$0xf]
      %v635 = vld [vmem:[%s165 + $0x14] sm:$0xf]
      %v636 = vld [vmem:[%s165 + $0x18] sm:$0xf]
      %v637 = vld [vmem:[%s165 + $0x1c] sm:$0xf]
      %v638 = vld [vmem:[%s165 + $0x20] sm:$0xf]
      %v639 = vld [vmem:[%s165 + $0x24] sm:$0xf]
      %v640 = vld [vmem:[%s165 + $0x28] sm:$0x1]
      %s641 = scalar_lea.vmem %s1, 48
      %v642 = vld [vmem:[%s641] sm:$0xf]
      %v643 = vld [vmem:[%s641 + $0x4] sm:$0xf]
      %v644 = vld [vmem:[%s641 + $0x8] sm:$0xf]
      %v645 = vld [vmem:[%s641 + $0xc] sm:$0xf]
      %v656 = vunpack.c.l.b16 %v631
      %v657 = vunpack.c.l.b16 %v632
      %v658 = vunpack.c.l.b16 %v633
      %v659 = vunpack.c.l.b16 %v634
      %v660 = vunpack.c.l.b16 %v635
      %v661 = vunpack.c.l.b16 %v636
      %v662 = vunpack.c.l.b16 %v637
      %v663 = vunpack.c.l.b16 %v638
      %v664 = vunpack.c.l.b16 %v639
      %v665 = vunpack.c.l.b16 %v640
      %v666 = vpack.c.b16 %v657, %v656
      %v667 = vpack.c.b16 %v659, %v658
      %v668 = vpack.c.b16 %v661, %v660
      %v669 = vpack.c.b16 %v663, %v662
      %v670 = vpack.c.b16 %v665, %v664
      %vm671 = vcmask 1046528
      %v672 = vrot.slane %v666, 1
      %v673 = vrot.slane %v667, 1
      %v674 = vsel %vm671, %v672, %v673
      %v675 = vrot.slane %v668, 1
      %v676 = vsel %vm671, %v673, %v675
      %v677 = vrot.slane %v669, 1
      %v678 = vsel %vm671, %v675, %v677
      %v679 = vrot.slane %v670, 1
      %v680 = vsel %vm671, %v677, %v679
      %v685 = vunpack.c.l.b16 %v642
      %v686 = vunpack.c.l.b16 %v643
      %v687 = vunpack.c.l.b16 %v644
      %v688 = vunpack.c.l.b16 %v645
      %v689 = vpack.c.b16 %v686, %v685
      %v690 = vpack.c.b16 %v688, %v687
      %v694 = vsel %vm265, %v674, 0
      %v697 = vsel %vm265, %v676, 0
      %v700 = vsel %vm265, %v678, 0
      %v703 = vsel %vm265, %v680, 0
      %v706 = vsel %vm265, %v679, 0
      %708 = vmatprep.subr.bf16.mxu0 0
      %709 = vmatpush1.bf16.msra.mxu0 %v689
      %710 = vmatprep.subr.bf16.mxu0 0
      %711 = vmatpush1.bf16.msra.mxu0 %v690
      %712 = vmatprep.subr.bf16.mxu0 0
      %713 = vmatpush1.bf16.msra.mxu0 0
      %714 = vmatprep.subr.bf16.mxu0 0
      %715 = vmatpush1.bf16.msra.mxu0 0
      %716 = vmatprep.subr.bf16.mxu0 0
      %717 = vmatpush1.bf16.msra.mxu0 0
      %718 = vmatprep.subr.bf16.mxu0 0
      %719 = vmatpush1.bf16.msra.mxu0 0
      %720 = vmatprep.subr.bf16.mxu0 0
      %721 = vmatpush1.bf16.msra.mxu0 0
      %722 = vmatprep.subr.bf16.mxu0 0
      %723 = vmatpush1.bf16.msra.mxu0 0
      %724 = vmatprep.subr.bf16.mxu0 0
      %725 = vmatpush1.bf16.msra.mxu0 0
      %726 = vmatprep.subr.bf16.mxu0 0
      %727 = vmatpush1.bf16.msra.mxu0 0
      %728 = vmatprep.subr.bf16.mxu0 0
      %729 = vmatpush1.bf16.msra.mxu0 0
      %730 = vmatprep.subr.bf16.mxu0 0
      %731 = vmatpush1.bf16.msra.mxu0 0
      %732 = vmatprep.subr.bf16.mxu0 0
      %733 = vmatpush1.bf16.msra.mxu0 0
      %734 = vmatprep.subr.bf16.mxu0 0
      %735 = vmatpush1.bf16.msra.mxu0 0
      %736 = vmatprep.subr.bf16.mxu0 0
      %737 = vmatpush1.bf16.msra.mxu0 0
      %738 = vmatprep.subr.bf16.mxu0 0
      %739 = vmatpush1.bf16.msra.mxu0 0
      %740 = vmatprep.mubr.bf16.mxu0 0
      %741 = vmatmul.mubr.bf16.gmra.mrb[0].mxu0 %v694
      %v742 = vpop.f32.mrb[0].mxu0
      %v743 = vadd.f32 0.0, %v742
      %v744 = vpop.f32.mrb[0].mxu0
      %v745 = vpop.f32.mrb[0].mxu0
      %v746 = vadd.f32 0.0, %v745
      %v747 = vpop.f32.mrb[0].mxu0
      %748 = vmatprep.mubr.bf16.mxu0 0
      %749 = vmatmul.mubr.bf16.gmra.mrb[0].mxu0 %v697
      %v750 = vpop.f32.mrb[0].mxu0
      %v751 = vadd.f32 0.0, %v750
      %v752 = vpop.f32.mrb[0].mxu0
      %v753 = vpop.f32.mrb[0].mxu0
      %v754 = vadd.f32 0.0, %v753
      %v755 = vpop.f32.mrb[0].mxu0
      %756 = vmatprep.mubr.bf16.mxu0 0
      %757 = vmatmul.mubr.bf16.gmra.mrb[0].mxu0 %v700
      %v758 = vpop.f32.mrb[0].mxu0
      %v759 = vadd.f32 0.0, %v758
      %v760 = vpop.f32.mrb[0].mxu0
      %v761 = vpop.f32.mrb[0].mxu0
      %v762 = vadd.f32 0.0, %v761
      %v763 = vpop.f32.mrb[0].mxu0
      %764 = vmatprep.mubr.bf16.mxu0 0
      %765 = vmatmul.mubr.bf16.gmra.mrb[0].mxu0 %v703
      %v766 = vpop.f32.mrb[0].mxu0
      %v767 = vadd.f32 0.0, %v766
      %v768 = vpop.f32.mrb[0].mxu0
      %v769 = vpop.f32.mrb[0].mxu0
      %v770 = vadd.f32 0.0, %v769
      %v771 = vpop.f32.mrb[0].mxu0
      %772 = vmatprep.mubr.bf16.mxu0 0
      %773 = vmatmul.mubr.bf16.gmra.mrb[0].mxu0 %v706
      %v774 = vpop.f32.mrb[0].mxu0
      %v775 = vadd.f32 0.0, %v774
      %v776 = vpop.f32.mrb[0].mxu0
      %v777 = vpop.f32.mrb[0].mxu0
      %v778 = vpop.f32.mrb[0].mxu0
      %779 = vdwg.mxu0
      %v780 = vadd.f32 %v622, %v743
      %v781 = vadd.f32 %v623, %v746
      %v782 = vadd.f32 %v624, %v751
      %v783 = vadd.f32 %v625, %v754
      %v784 = vadd.f32 %v626, %v759
      %v785 = vadd.f32 %v627, %v762
      %v786 = vadd.f32 %v628, %v767
      %v787 = vadd.f32 %v629, %v770
      %v788 = vadd.f32 %v630, %v775
      %v789 = vld [vmem:[%s2] sm:$0x1]
      %v791 = vlaneseq
      %v792 = vshrl.u32 %v791, 7
      %v793 = vsub.s32 0, %v792
      %v794 = vrot.slane %v789, %v793
      %v796 = vadd.f32 %v780, %v794
      %v797 = vadd.f32 %v781, %v794
      %v798 = vadd.f32 %v782, %v794
      %v799 = vadd.f32 %v783, %v794
      %v800 = vadd.f32 %v784, %v794
      %v801 = vadd.f32 %v785, %v794
      %v802 = vadd.f32 %v786, %v794
      %v803 = vadd.f32 %v787, %v794
      %v804 = vadd.f32 %v788, %v794
      %v805 = vmax.f32 %v796, 0.0
      %v806 = vmax.f32 %v797, 0.0
      %v807 = vmax.f32 %v798, 0.0
      %v808 = vmax.f32 %v799, 0.0
      %v809 = vmax.f32 %v800, 0.0
      %v810 = vmax.f32 %v801, 0.0
      %v811 = vmax.f32 %v802, 0.0
      %v812 = vmax.f32 %v803, 0.0
      %v813 = vmax.f32 %v804, 0.0
      %v814 = vpack.c.bf16 %v806, %v805
      %v815 = vpack.c.bf16 %v808, %v807
      %v816 = vpack.c.bf16 %v810, %v809
      %v817 = vpack.c.bf16 %v812, %v811
      %v818 = vpack.c.bf16 %v813, %v813
      %v824 = vunpack.c.l.b16 %v814
      %v825 = vunpack.c.h.b16 %v814
      %v826 = vunpack.c.l.b16 %v815
      %v827 = vunpack.c.h.b16 %v815
      %v828 = vunpack.c.l.b16 %v816
      %v829 = vunpack.c.h.b16 %v816
      %v830 = vunpack.c.l.b16 %v817
      %v831 = vunpack.c.h.b16 %v817
      %v832 = vunpack.c.l.b16 %v818
      %v833 = vpack.c.b16 %v824, %v824
      %v834 = vpack.c.b16 %v825, %v825
      %v835 = vpack.c.b16 %v826, %v826
      %v836 = vpack.c.b16 %v827, %v827
      %v837 = vpack.c.b16 %v828, %v828
      %v838 = vpack.c.b16 %v829, %v829
      %v839 = vpack.c.b16 %v830, %v830
      %v840 = vpack.c.b16 %v831, %v831
      %v841 = vpack.c.b16 %v832, %v832
      %vm851 = vcmask 125952
      %852 = vst.msk [vmem:[%s170] sm:$0xf] %vm851, %v833
      %853 = vst.msk [vmem:[%s170 + $0x4] sm:$0xf] %vm851, %v834
      %854 = vst.msk [vmem:[%s170 + $0x8] sm:$0xf] %vm851, %v835
      %855 = vst.msk [vmem:[%s170 + $0xc] sm:$0xf] %vm851, %v836
      %856 = vst.msk [vmem:[%s170 + $0x10] sm:$0xf] %vm851, %v837
      %857 = vst.msk [vmem:[%s170 + $0x14] sm:$0xf] %vm851, %v838
      %858 = vst.msk [vmem:[%s170 + $0x18] sm:$0xf] %vm851, %v839
      %859 = vst.msk [vmem:[%s170 + $0x1c] sm:$0xf] %vm851, %v840
      %vm860 = vcmask 125952
      %vm861 = vsmask.f32 3328
      %vm862 = vmand %vm860, %vm861
      %v863 = vld [vmem:[%s170 + $0x20] sm:$0xf]
      %v864 = vsel %vm862, %v841, %v863
      %865 = vst [vmem:[%s170 + $0x20] sm:$0xf] %v864
      %p866 = scmp.lt.s32.totalorder %s14, 7
      %s867 = scalar_select %p866, %s14, 7
      %s868 = smul.addr %s867, 9
      %s869 = smul.addr %s868, 4
      %s870 = scalar_lea.vmem %s3, %s869
      // Predicated region
      $region33: #{similarity_regnet_forward.7} parent=31 // pred_check
        %p871 = pneg %p100
      $region34: #{similarity_regnet_forward.7} parent=31 // pred_check_branch
        %873 = sbr.rel (%p871) target = $region36
      $region35: #{similarity_regnet_forward.7} parent=31 // pred_region
        _
      $region36: #{similarity_regnet_forward.7} parent=31 // pred_fallthru
        _
    $region32: #{similarity_regnet_forward.7} parent=5 // pred_fallthru
      _
    %p874 = scmp.le.s32.totalorder 2, %s9
    // Predicated region
    $region37: #{similarity_regnet_forward.7} parent=5 // pred_check
      %p875 = pneg %p874
    $region38: #{similarity_regnet_forward.7} parent=5 // pred_check_branch
      %877 = sbr.rel (%p875) target = $region40
    $region39: #{similarity_regnet_forward.7} parent=5 // pred_region
      %s878 = ssub.s32 %s9, 2
      // Predicated region
      $region41: #{similarity_regnet_forward.7} parent=39 // pred_check
        %p879 = pneg %p106
      $region42: #{similarity_regnet_forward.7} parent=39 // pred_check_branch
        %881 = sbr.rel (%p879) target = $region44
      $region43: #{similarity_regnet_forward.7} parent=39 // pred_region
        %p882 = scmp.lt.s32.totalorder %s15, 7
        %s883 = scalar_select %p882, %s15, 7
        %s884 = smul.addr %s883, 9
        %s885 = smul.addr %s884, 4
        %s886 = scalar_lea.vmem %s3, %s885
      $region44: #{similarity_regnet_forward.7} parent=39 // pred_fallthru
        _
    $region40: #{similarity_regnet_forward.7} parent=5 // pred_fallthru
      _
  $region6: #{similarity_regnet_forward.7} parent=0 // loop_footer
    %s13 = sadd.s32 1, %s9
  $region7: #{similarity_regnet_forward.7} parent=0 // loop_footer_branch
    %8 = sbr.rel target = $region3
  $region8: #{similarity_regnet_forward.7} parent=0 // loop_exit
    _

// kernel: similarity_regnet_forward.8
$region0: #{similarity_regnet_forward.8}
  #allocation0 [shape = 'u32[]', space=smem, size = 0x4, offset = 0x4, fixed_abs, tag = 'smem constant byte address 0x4 - core index']
  #allocation1 [shape = 'u32[144,128]{1,0:T(1,128)}', space=vmem, size = 0x12000, scoped, tag = 'internal scratch']
  %s0 = inlined_call_operand.vmem [shape: bf16[8,25,64], index: 0, kind: input, shape index: {}]
  %s1 = inlined_call_operand.vmem [shape: bf16[4,64,32], index: 1, kind: input, shape index: {}]
  %s2 = inlined_call_operand.vmem [shape: f32[1,32], index: 2, kind: input, shape index: {}]
  %s3 = inlined_call_operand.vmem [shape: bf16[8,19,32], index: 3, kind: output, shape index: {}]
  %s4 = sld [smem:[#allocation0]]
  $region45: #{similarity_regnet_forward.8} parent=0
    _
  %s6 = ssub.s32 1, %s4
  %s7 = scalar_select 0, %s6, %s4
  loop: start=0, step=1, limit=10
  $region2: #{similarity_regnet_forward.8} parent=0 // loop_pre_header
    _
  $region3: #{similarity_regnet_forward.8} parent=0 // loop_header
    %s9 = sphi 0, %s13
    %p10 = scmp.ge.s32.totalorder %s9, 10
    %s19 = sphi 0, %s21
    %s22 = sphi 0, %s19
    %s23 = sphi 0, %s22
    %s39 = sphi 0, %s23
    %s43 = sphi 0, %s43
    %s45 = sphi 0, %s43
    %s46 = sphi 0, %s45
    %s60 = sphi 0, %s46
    %s64 = sphi 0, %s64
    %s66 = sphi 0, %s64
    %s67 = sphi 0, %s66
    %s81 = sphi 0, %s67
    %s87 = sphi 0, %s89
    %s90 = sphi 0, %s87
    %s91 = sphi 0, %s90
    %s107 = sphi 0, %s91
  $region4: #{similarity_regnet_forward.8} parent=0 // loop_header_branch
    %12 = sbr.rel (%p10) target = $region8
  $region5: #{similarity_regnet_forward.8} parent=0 // loop_body
    %s14 = ssub.s32 %s9, 1
    %s15 = ssub.s32 %s9, 2
    %s16 = sadd.s32 %s9, 1
    %s17 = ssub.s32 %s9, %s16
    %p18 = scmp.eq.s32.totalorder %s17, 0
    %s20 = sadd.s32 %s19, 1
    %s21 = scalar_select %p18, %s19, %s20
    %p24 = pneg %p18
    %p25 = scmp.eq.s32.totalorder %s9, 7
    %p26 = por %p24, %p25
    %p27 = scmp.ne.s32.totalorder %s19, %s22
    %p28 = scmp.eq.s32.totalorder %s9, 0
    %p29 = por %p27, %p28
    %p30 = scmp.ne.s32.totalorder %s19, %s22
    %p31 = scmp.eq.s32.totalorder %s14, 7
    %p32 = por %p30, %p31
    %p33 = scmp.ne.s32.totalorder %s22, %s23
    %p34 = scmp.eq.s32.totalorder %s14, 0
    %p35 = por %p33, %p34
    %p36 = scmp.ne.s32.totalorder %s22, %s23
    %p37 = scmp.eq.s32.totalorder %s15, 7
    %p38 = por %p36, %p37
    %p40 = scmp.ne.s32.totalorder %s23, %s39
    %p41 = scmp.eq.s32.totalorder %s15, 0
    %p42 = por %p40, %p41
    %s44 = sadd.s32 %s43, 1
    %p47 = scmp.eq.s32.totalorder %s9, 7
    %p48 = scmp.ne.s32.totalorder %s43, %s45
    %p49 = scmp.eq.s32.totalorder %s9, 0
    %p50 = por %p48, %p49
    %p51 = scmp.ne.s32.totalorder %s43, %s45
    %p52 = scmp.eq.s32.totalorder %s14, 7
    %p53 = por %p51, %p52
    %p54 = scmp.ne.s32.totalorder %s45, %s46
    %p55 = scmp.eq.s32.totalorder %s14, 0
    %p56 = por %p54, %p55
    %p57 = scmp.ne.s32.totalorder %s45, %s46
    %p58 = scmp.eq.s32.totalorder %s15, 7
    %p59 = por %p57, %p58
    %p61 = scmp.ne.s32.totalorder %s46, %s60
    %p62 = scmp.eq.s32.totalorder %s15, 0
    %p63 = por %p61, %p62
    %s65 = sadd.s32 %s64, 1
    %p68 = scmp.eq.s32.totalorder %s9, 7
    %p69 = scmp.ne.s32.totalorder %s64, %s66
    %p70 = scmp.eq.s32.totalorder %s9, 0
    %p71 = por %p69, %p70
    %p72 = scmp.ne.s32.totalorder %s64, %s66
    %p73 = scmp.eq.s32.totalorder %s14, 7
    %p74 = por %p72, %p73
    %p75 = scmp.ne.s32.totalorder %s66, %s67
    %p76 = scmp.eq.s32.totalorder %s14, 0
    %p77 = por %p75, %p76
    %p78 = scmp.ne.s32.totalorder %s66, %s67
    %p79 = scmp.eq.s32.totalorder %s15, 7
    %p80 = por %p78, %p79
    %p82 = scmp.ne.s32.totalorder %s67, %s81
    %p83 = scmp.eq.s32.totalorder %s15, 0
    %p84 = por %p82, %p83
    %s85 = ssub.s32 %s9, %s16
    %p86 = scmp.eq.s32.totalorder %s85, 0
    %s88 = sadd.s32 %s87, 1
    %s89 = scalar_select %p86, %s87, %s88
    %p92 = pneg %p86
    %p93 = scmp.eq.s32.totalorder %s9, 7
    %p94 = por %p92, %p93
    %p95 = scmp.ne.s32.totalorder %s87, %s90
    %p96 = scmp.eq.s32.totalorder %s9, 0
    %p97 = por %p95, %p96
    %p98 = scmp.ne.s32.totalorder %s87, %s90
    %p99 = scmp.eq.s32.totalorder %s14, 7
    %p100 = por %p98, %p99
    %p101 = scmp.ne.s32.totalorder %s90, %s91
    %p102 = scmp.eq.s32.totalorder %s14, 0
    %p103 = por %p101, %p102
    %p104 = scmp.ne.s32.totalorder %s90, %s91
    %p105 = scmp.eq.s32.totalorder %s15, 7
    %p106 = por %p104, %p105
    %p108 = scmp.ne.s32.totalorder %s91, %s107
    %p109 = scmp.eq.s32.totalorder %s15, 0
    %p110 = por %p108, %p109
    %p111 = scmp.le.s32.totalorder 1, %s9
    %p112 = scmp.lt.s32.totalorder %s9, 9
    %p113 = pnand %p111, %p112
    %p114 = pneg %p113
    // Predicated region
    $region9: #{similarity_regnet_forward.8} parent=5 // pred_check
      _
    $region10: #{similarity_regnet_forward.8} parent=5 // pred_check_branch
      %116 = sbr.rel (%p113) target = $region12
    $region11: #{similarity_regnet_forward.8} parent=5 // pred_region
      %s117 = ssub.s32 %s9, 1
      // Predicated region
      $region13: #{similarity_regnet_forward.8} parent=11 // pred_check
        %p118 = pneg %p56
      $region14: #{similarity_regnet_forward.8} parent=11 // pred_check_branch
        %120 = sbr.rel (%p118) target = $region16
      $region15: #{similarity_regnet_forward.8} parent=11 // pred_region
        _
      $region16: #{similarity_regnet_forward.8} parent=11 // pred_fallthru
        _
      // Predicated region
      $region17: #{similarity_regnet_forward.8} parent=11 // pred_check
        %p121 = pneg %p77
      $region18: #{similarity_regnet_forward.8} parent=11 // pred_check_branch
        %123 = sbr.rel (%p121) target = $region20
      $region19: #{similarity_regnet_forward.8} parent=11 // pred_region
        _
      $region20: #{similarity_regnet_forward.8} parent=11 // pred_fallthru
        _
    $region12: #{similarity_regnet_forward.8} parent=5 // pred_fallthru
      _
    %p124 = scmp.lt.s32.totalorder %s9, 8
    // Predicated region
    $region21: #{similarity_regnet_forward.8} parent=5 // pred_check
      %p125 = pneg %p124
    $region22: #{similarity_regnet_forward.8} parent=5 // pred_check_branch
      %127 = sbr.rel (%p125) target = $region24
    $region23: #{similarity_regnet_forward.8} parent=5 // pred_region
      // Predicated region
      $region25: #{similarity_regnet_forward.8} parent=23 // pred_check
        %p128 = pneg %p29
      $region26: #{similarity_regnet_forward.8} parent=23 // pred_check_branch
        %130 = sbr.rel (%p128) target = $region28
      $region27: #{similarity_regnet_forward.8} parent=23 // pred_region
        %p131 = scmp.lt.s32.totalorder %s9, 7
        %s132 = scalar_select %p131, %s9, 7
        %s133 = smul.addr %s132, 4
        %s134 = smul.addr %s133, 4
        %s135 = scalar_lea.vmem %s0, %s134
      $region28: #{similarity_regnet_forward.8} parent=23 // pred_fallthru
        _
    $region24: #{similarity_regnet_forward.8} parent=5 // pred_fallthru
      _
    %p136 = scmp.le.s32.totalorder 1, %s9
    %p137 = scmp.lt.s32.totalorder %s9, 9
    %p138 = pnand %p136, %p137
    %p139 = pneg %p138
    // Predicated region
    $region29: #{similarity_regnet_forward.8} parent=5 // pred_check
      _
    $region30: #{similarity_regnet_forward.8} parent=5 // pred_check_branch
      %141 = sbr.rel (%p138) target = $region32
    $region31: #{similarity_regnet_forward.8} parent=5 // pred_region
      %s142 = ssub.s32 %s9, 1
      %p143 = scmp.lt.s32.totalorder %s14, 7
      %s144 = scalar_select %p143, %s14, 7
      %s145 = smul.addr %s144, 4
      %s146 = smul.addr %s145, 4
      %s147 = scalar_lea.vmem %s0, %s146
      %p148 = pneg %p35
      %p149 = pneg %p32
      %p150 = pneg %p56
      %p151 = pneg %p53
      %p152 = pneg %p77
      %p153 = pneg %p74
      %p154 = pneg %p103
      %p155 = pneg %p100
      %p156 = scmp.lt.s32.totalorder %s14, 7
      %s157 = scalar_select %p156, %s14, 7
      %s158 = smul.addr %s157, 3
      %s159 = smul.addr %s158, 4
      %s160 = scalar_lea.vmem %s3, %s159
      %p161 = scmp.lt.s32.totalorder %s14, 7
      %s162 = scalar_select %p161, %s14, 7
      %s163 = smul.addr %s162, 4
      %s164 = smul.addr %s163, 4
      %s165 = scalar_lea.vmem %s0, %s164
      %p166 = scmp.lt.s32.totalorder %s14, 7
      %s167 = scalar_select %p166, %s14, 7
      %s168 = smul.addr %s167, 3
      %s169 = smul.addr %s168, 4
      %s170 = scalar_lea.vmem %s3, %s169
      %v172 = vld [vmem:[%s165] sm:$0xf]
      %v173 = vld [vmem:[%s165 + $0x4] sm:$0xf]
      %v174 = vld [vmem:[%s165 + $0x8] sm:$0x3]
      %v175 = vld [vmem:[%s1] sm:$0xf]
      %v176 = vld [vmem:[%s1 + $0x4] sm:$0xf]
      %v177 = vld [vmem:[%s1 + $0x8] sm:$0xf]
      %v178 = vld [vmem:[%s1 + $0xc] sm:$0xf]
      %v179 = vld [vmem:[%s1 + $0x10] sm:$0xf]
      %v180 = vld [vmem:[%s1 + $0x14] sm:$0xf]
      %v181 = vld [vmem:[%s1 + $0x18] sm:$0xf]
      %v182 = vld [vmem:[%s1 + $0x1c] sm:$0xf]
      %s183 = scalar_lea.vmem %s1, 32
      %v184 = vld [vmem:[%s183] sm:$0xf]
      %v185 = vld [vmem:[%s183 + $0x4] sm:$0xf]
      %v186 = vld [vmem:[%s183 + $0x8] sm:$0xf]
      %v187 = vld [vmem:[%s183 + $0xc] sm:$0xf]
      %v188 = vld [vmem:[%s183 + $0x10] sm:$0xf]
      %v189 = vld [vmem:[%s183 + $0x14] sm:$0xf]
      %v190 = vld [vmem:[%s183 + $0x18] sm:$0xf]
      %v191 = vld [vmem:[%s183 + $0x1c] sm:$0xf]
      %v195 = vunpack.c.l.b16 %v172
      %v196 = vunpack.c.l.b16 %v173
      %v197 = vunpack.c.l.b16 %v174
      %v198 = vpack.c.b16 %v196, %v195
      %v199 = vpack.c.b16 %v197, %v197
      %vm200 = vsmask.f32 7424
      %v202 = vshrl.u32 %v198, 16
      %v204 = vshll.u32 %v198, 16
      %v206 = vrot.slane %v204, 1
      %v207 = vor.u32 %v202, %v206
      %v209 = vshll.u32 %v199, 16
      %v211 = vrot.slane %v209, 1
      %v212 = vsel %vm200, %v207, %v211
      %v213 = vshrl.u32 %v199, 16
      %v215 = vor.u32 %v213, %v211
      %v224 = vunpack.c.l.b16 %v184
      %v225 = vunpack.c.l.b16 %v185
      %v226 = vunpack.c.l.b16 %v186
      %v227 = vunpack.c.l.b16 %v187
      %v228 = vunpack.c.l.b16 %v188
      %v229 = vunpack.c.l.b16 %v189
      %v230 = vunpack.c.l.b16 %v190
      %v231 = vunpack.c.l.b16 %v191
      %v232 = vpack.c.b16 %v225, %v224
      %v233 = vpack.c.b16 %v227, %v226
      %v234 = vpack.c.b16 %v229, %v228
      %v235 = vpack.c.b16 %v231, %v230
      %vm240 = vcmask 523264
      %v242 = vsel %vm240, %v212, 0
      %v245 = vsel %vm240, %v215, 0
      %247 = vmatprep.subr.bf16.mxu0 0
      %248 = vmatpush1.bf16.msra.mxu0 %v232
      %249 = vmatprep.subr.bf16.mxu0 0
      %250 = vmatpush1.bf16.msra.mxu0 %v233
      %251 = vmatprep.subr.bf16.mxu0 0
      %252 = vmatpush1.bf16.msra.mxu0 %v234
      %253 = vmatprep.subr.bf16.mxu0 0
      %254 = vmatpush1.bf16.msra.mxu0 %v235
      %255 = vmatprep.subr.bf16.mxu0 0
      %256 = vmatpush1.bf16.msra.mxu0 0
      %257 = vmatprep.subr.bf16.mxu0 0
      %258 = vmatpush1.bf16.msra.mxu0 0
      %259 = vmatprep.subr.bf16.mxu0 0
      %260 = vmatpush1.bf16.msra.mxu0 0
      %261 = vmatprep.subr.bf16.mxu0 0
      %262 = vmatpush1.bf16.msra.mxu0 0
      %263 = vmatprep.subr.bf16.mxu0 0
      %264 = vmatpush1.bf16.msra.mxu0 0
      %265 = vmatprep.subr.bf16.mxu0 0
      %266 = vmatpush1.bf16.msra.mxu0 0
      %267 = vmatprep.subr.bf16.mxu0 0
      %268 = vmatpush1.bf16.msra.mxu0 0
      %269 = vmatprep.subr.bf16.mxu0 0
      %270 = vmatpush1.bf16.msra.mxu0 0
      %271 = vmatprep.subr.bf16.mxu0 0
      %272 = vmatpush1.bf16.msra.mxu0 0
      %273 = vmatprep.subr.bf16.mxu0 0
      %274 = vmatpush1.bf16.msra.mxu0 0
      %275 = vmatprep.subr.bf16.mxu0 0
      %276 = vmatpush1.bf16.msra.mxu0 0
      %277 = vmatprep.subr.bf16.mxu0 0
      %278 = vmatpush1.bf16.msra.mxu0 0
      %279 = vmatprep.mubr.bf16.mxu0 0
      %280 = vmatmul.mubr.bf16.gmra.mrb[0].mxu0 %v242
      %v281 = vpop.f32.mrb[0].mxu0
      %v282 = vadd.f32 0.0, %v281
      %v283 = vpop.f32.mrb[0].mxu0
      %v284 = vpop.f32.mrb[0].mxu0
      %v285 = vadd.f32 0.0, %v284
      %v286 = vpop.f32.mrb[0].mxu0
      %287 = vmatprep.mubr.bf16.mxu0 0
      %288 = vmatmul.mubr.bf16.gmra.mrb[0].mxu0 %v245
      %v289 = vpop.f32.mrb[0].mxu0
      %v290 = vadd.f32 0.0, %v289
      %v291 = vpop.f32.mrb[0].mxu0
      %v292 = vpop.f32.mrb[0].mxu0
      %v293 = vpop.f32.mrb[0].mxu0
      %294 = vdwg.mxu0
      %v303 = vunpack.c.l.b16 %v175
      %v304 = vunpack.c.l.b16 %v176
      %v305 = vunpack.c.l.b16 %v177
      %v306 = vunpack.c.l.b16 %v178
      %v307 = vunpack.c.l.b16 %v179
      %v308 = vunpack.c.l.b16 %v180
      %v309 = vunpack.c.l.b16 %v181
      %v310 = vunpack.c.l.b16 %v182
      %v311 = vpack.c.b16 %v304, %v303
      %v312 = vpack.c.b16 %v306, %v305
      %v313 = vpack.c.b16 %v308, %v307
      %v314 = vpack.c.b16 %v310, %v309
      %v319 = vsel %vm240, %v198, 0
      %v321 = vsel %vm240, %v199, 0
      %323 = vmatprep.subr.bf16.mxu0 0
      %324 = vmatpush1.bf16.msra.mxu0 %v311
      %325 = vmatprep.subr.bf16.mxu0 0
      %326 = vmatpush1.bf16.msra.mxu0 %v312
      %327 = vmatprep.subr.bf16.mxu0 0
      %328 = vmatpush1.bf16.msra.mxu0 %v313
      %329 = vmatprep.subr.bf16.mxu0 0
      %330 = vmatpush1.bf16.msra.mxu0 %v314
      %331 = vmatprep.subr.bf16.mxu0 0
      %332 = vmatpush1.bf16.msra.mxu0 0
      %333 = vmatprep.subr.bf16.mxu0 0
      %334 = vmatpush1.bf16.msra.mxu0 0
      %335 = vmatprep.subr.bf16.mxu0 0
      %336 = vmatpush1.bf16.msra.mxu0 0
      %337 = vmatprep.subr.bf16.mxu0 0
      %338 = vmatpush1.bf16.msra.mxu0 0
      %339 = vmatprep.subr.bf16.mxu0 0
      %340 = vmatpush1.bf16.msra.mxu0 0
      %341 = vmatprep.subr.bf16.mxu0 0
      %342 = vmatpush1.bf16.msra.mxu0 0
      %343 = vmatprep.subr.bf16.mxu0 0
      %344 = vmatpush1.bf16.msra.mxu0 0
      %345 = vmatprep.subr.bf16.mxu0 0
      %346 = vmatpush1.bf16.msra.mxu0 0
      %347 = vmatprep.subr.bf16.mxu0 0
      %348 = vmatpush1.bf16.msra.mxu0 0
      %349 = vmatprep.subr.bf16.mxu0 0
      %350 = vmatpush1.bf16.msra.mxu0 0
      %351 = vmatprep.subr.bf16.mxu0 0
      %352 = vmatpush1.bf16.msra.mxu0 0
      %353 = vmatprep.subr.bf16.mxu0 0
      %354 = vmatpush1.bf16.msra.mxu0 0
      %355 = vmatprep.mubr.bf16.mxu0 0
      %356 = vmatmul.mubr.bf16.gmra.mrb[0].mxu0 %v319
      %v357 = vpop.f32.mrb[0].mxu0
      %v358 = vadd.f32 %v282, %v357
      %v359 = vpop.f32.mrb[0].mxu0
      %v360 = vpop.f32.mrb[0].mxu0
      %v361 = vadd.f32 %v285, %v360
      %v362 = vpop.f32.mrb[0].mxu0
      %363 = vmatprep.mubr.bf16.mxu0 0
      %364 = vmatmul.mubr.bf16.gmra.mrb[0].mxu0 %v321
      %v365 = vpop.f32.mrb[0].mxu0
      %v366 = vadd.f32 %v290, %v365
      %v367 = vpop.f32.mrb[0].mxu0
      %v368 = vpop.f32.mrb[0].mxu0
      %v369 = vpop.f32.mrb[0].mxu0
      %370 = vdwg.mxu0
      %v371 = vld [vmem:[%s165] sm:$0xc]
      %v372 = vld [vmem:[%s165 + $0x8] sm:$0xf]
      %s373 = scalar_lea.vmem %s1, 64
      %v374 = vld [vmem:[%s373] sm:$0xf]
      %v375 = vld [vmem:[%s373 + $0x4] sm:$0xf]
      %v376 = vld [vmem:[%s373 + $0x8] sm:$0xf]
      %v377 = vld [vmem:[%s373 + $0xc] sm:$0xf]
      %v378 = vld [vmem:[%s373 + $0x10] sm:$0xf]
      %v379 = vld [vmem:[%s373 + $0x14] sm:$0xf]
      %v380 = vld [vmem:[%s373 + $0x18] sm:$0xf]
      %v381 = vld [vmem:[%s373 + $0x1c] sm:$0xf]
      %v384 = vunpack.c.l.b16 %v371
      %v385 = vunpack.c.l.b16 %v372
      %v386 = vpack.c.b16 %v196, %v384
      %v387 = vpack.c.b16 %v385, %v385
      %vm388 = vsmask.f32 5376
      %v390 = vshrl.u32 %v386, 16
      %v392 = vrot.slane %v390, 2
      %v393 = vshll.u32 %v386, 16
      %v395 = vrot.slane %v393, 3
      %v396 = vor.u32 %v392, %v395
      %v398 = vshrl.u32 %v387, 16
      %v400 = vrot.slane %v398, 2
      %v401 = vshll.u32 %v387, 16
      %v403 = vrot.slane %v401, 3
      %v404 = vor.u32 %v400, %v403
      %v405 = vsel %vm388, %v396, %v404
      %v414 = vunpack.c.l.b16 %v374
      %v415 = vunpack.c.l.b16 %v375
      %v416 = vunpack.c.l.b16 %v376
      %v417 = vunpack.c.l.b16 %v377
      %v418 = vunpack.c.l.b16 %v378
      %v419 = vunpack.c.l.b16 %v379
      %v420 = vunpack.c.l.b16 %v380
      %v421 = vunpack.c.l.b16 %v381
      %v422 = vpack.c.b16 %v415, %v414
      %v423 = vpack.c.b16 %v417, %v416
      %v424 = vpack.c.b16 %v419, %v418
      %v425 = vpack.c.b16 %v421, %v420
      %v431 = vsel %vm240, %v405, 0
      %v434 = vsel %vm240, %v404, 0
      %436 = vmatprep.subr.bf16.mxu0 0
      %437 = vmatpush1.bf16.msra.mxu0 %v422
      %438 = vmatprep.subr.bf16.mxu0 0
      %439 = vmatpush1.bf16.msra.mxu0 %v423
      %440 = vmatprep.subr.bf16.mxu0 0
      %441 = vmatpush1.bf16.msra.mxu0 %v424
      %442 = vmatprep.subr.bf16.mxu0 0
      %443 = vmatpush1.bf16.msra.mxu0 %v425
      %444 = vmatprep.subr.bf16.mxu0 0
      %445 = vmatpush1.bf16.msra.mxu0 0
      %446 = vmatprep.subr.bf16.mxu0 0
      %447 = vmatpush1.bf16.msra.mxu0 0
      %448 = vmatprep.subr.bf16.mxu0 0
      %449 = vmatpush1.bf16.msra.mxu0 0
      %450 = vmatprep.subr.bf16.mxu0 0
      %451 = vmatpush1.bf16.msra.mxu0 0
      %452 = vmatprep.subr.bf16.mxu0 0
      %453 = vmatpush1.bf16.msra.mxu0 0
      %454 = vmatprep.subr.bf16.mxu0 0
      %455 = vmatpush1.bf16.msra.mxu0 0
      %456 = vmatprep.subr.bf16.mxu0 0
      %457 = vmatpush1.bf16.msra.mxu0 0
      %458 = vmatprep.subr.bf16.mxu0 0
      %459 = vmatpush1.bf16.msra.mxu0 0
      %460 = vmatprep.subr.bf16.mxu0 0
      %461 = vmatpush1.bf16.msra.mxu0 0
      %462 = vmatprep.subr.bf16.mxu0 0
      %463 = vmatpush1.bf16.msra.mxu0 0
      %464 = vmatprep.subr.bf16.mxu0 0
      %465 = vmatpush1.bf16.msra.mxu0 0
      %466 = vmatprep.subr.bf16.mxu0 0
      %467 = vmatpush1.bf16.msra.mxu0 0
      %468 = vmatprep.mubr.bf16.mxu0 0
      %469 = vmatmul.mubr.bf16.gmra.mrb[0].mxu0 %v431
      %v470 = vpop.f32.mrb[0].mxu0
      %v471 = vadd.f32 0.0, %v470
      %v472 = vpop.f32.mrb[0].mxu0
      %v473 = vpop.f32.mrb[0].mxu0
      %v474 = vadd.f32 0.0, %v473
      %v475 = vpop.f32.mrb[0].mxu0
      %476 = vmatprep.mubr.bf16.mxu0 0
      %477 = vmatmul.mubr.bf16.gmra.mrb[0].mxu0 %v434
      %v478 = vpop.f32.mrb[0].mxu0
      %v479 = vadd.f32 0.0, %v478
      %v480 = vpop.f32.mrb[0].mxu0
      %v481 = vpop.f32.mrb[0].mxu0
      %v482 = vpop.f32.mrb[0].mxu0
      %483 = vdwg.mxu0
      %v484 = vadd.f32 %v358, %v471
      %v485 = vadd.f32 %v361, %v474
      %v486 = vadd.f32 %v366, %v479
      %v487 = vld [vmem:[%s165] sm:$0x8]
      %v488 = vld [vmem:[%s165 + $0x4] sm:$0xf]
      %v489 = vld [vmem:[%s165 + $0x8] sm:$0xf]
      %v490 = vld [vmem:[%s165 + $0xc] sm:$0x1]
      %s491 = scalar_lea.vmem %s1, 96
      %v492 = vld [vmem:[%s491] sm:$0xf]
      %v493 = vld [vmem:[%s491 + $0x4] sm:$0xf]
      %v494 = vld [vmem:[%s491 + $0x8] sm:$0xf]
      %v495 = vld [vmem:[%s491 + $0xc] sm:$0xf]
      %v496 = vld [vmem:[%s491 + $0x10] sm:$0xf]
      %v497 = vld [vmem:[%s491 + $0x14] sm:$0xf]
      %v498 = vld [vmem:[%s491 + $0x18] sm:$0xf]
      %v499 = vld [vmem:[%s491 + $0x1c] sm:$0xf]
      %v504 = vunpack.c.l.b16 %v487
      %v505 = vunpack.c.l.b16 %v488
      %v506 = vunpack.c.l.b16 %v489
      %v507 = vunpack.c.l.b16 %v490
      %v508 = vpack.c.b16 %v505, %v504
      %v509 = vpack.c.b16 %v507, %v506
      %vm510 = vcmask 1044480
      %v511 = vrot.slane %v508, 3
      %v512 = vrot.slane %v509, 3
      %v513 = vsel %vm510, %v511, %v512
      %v522 = vunpack.c.l.b16 %v492
      %v523 = vunpack.c.l.b16 %v493
      %v524 = vunpack.c.l.b16 %v494
      %v525 = vunpack.c.l.b16 %v495
      %v526 = vunpack.c.l.b16 %v496
      %v527 = vunpack.c.l.b16 %v497
      %v528 = vunpack.c.l.b16 %v498
      %v529 = vunpack.c.l.b16 %v499
      %v530 = vpack.c.b16 %v523, %v522
      %v531 = vpack.c.b16 %v525, %v524
      %v532 = vpack.c.b16 %v527, %v526
      %v533 = vpack.c.b16 %v529, %v528
      %v539 = vsel %vm240, %v513, 0
      %v542 = vsel %vm240, %v512, 0
      %544 = vmatprep.subr.bf16.mxu0 0
      %545 = vmatpush1.bf16.msra.mxu0 %v530
      %546 = vmatprep.subr.bf16.mxu0 0
      %547 = vmatpush1.bf16.msra.mxu0 %v531
      %548 = vmatprep.subr.bf16.mxu0 0
      %549 = vmatpush1.bf16.msra.mxu0 %v532
      %550 = vmatprep.subr.bf16.mxu0 0
      %551 = vmatpush1.bf16.msra.mxu0 %v533
      %552 = vmatprep.subr.bf16.mxu0 0
      %553 = vmatpush1.bf16.msra.mxu0 0
      %554 = vmatprep.subr.bf16.mxu0 0
      %555 = vmatpush1.bf16.msra.mxu0 0
      %556 = vmatprep.subr.bf16.mxu0 0
      %557 = vmatpush1.bf16.msra.mxu0 0
      %558 = vmatprep.subr.bf16.mxu0 0
      %559 = vmatpush1.bf16.msra.mxu0 0
      %560 = vmatprep.subr.bf16.mxu0 0
      %561 = vmatpush1.bf16.msra.mxu0 0
      %562 = vmatprep.subr.bf16.mxu0 0
      %563 = vmatpush1.bf16.msra.mxu0 0
      %564 = vmatprep.subr.bf16.mxu0 0
      %565 = vmatpush1.bf16.msra.mxu0 0
      %566 = vmatprep.subr.bf16.mxu0 0
      %567 = vmatpush1.bf16.msra.mxu0 0
      %568 = vmatprep.subr.bf16.mxu0 0
      %569 = vmatpush1.bf16.msra.mxu0 0
      %570 = vmatprep.subr.bf16.mxu0 0
      %571 = vmatpush1.bf16.msra.mxu0 0
      %572 = vmatprep.subr.bf16.mxu0 0
      %573 = vmatpush1.bf16.msra.mxu0 0
      %574 = vmatprep.subr.bf16.mxu0 0
      %575 = vmatpush1.bf16.msra.mxu0 0
      %576 = vmatprep.mubr.bf16.mxu0 0
      %577 = vmatmul.mubr.bf16.gmra.mrb[0].mxu0 %v539
      %v578 = vpop.f32.mrb[0].mxu0
      %v579 = vadd.f32 0.0, %v578
      %v580 = vpop.f32.mrb[0].mxu0
      %v581 = vpop.f32.mrb[0].mxu0
      %v582 = vadd.f32 0.0, %v581
      %v583 = vpop.f32.mrb[0].mxu0
      %584 = vmatprep.mubr.bf16.mxu0 0
      %585 = vmatmul.mubr.bf16.gmra.mrb[0].mxu0 %v542
      %v586 = vpop.f32.mrb[0].mxu0
      %v587 = vadd.f32 0.0, %v586
      %v588 = vpop.f32.mrb[0].mxu0
      %v589 = vpop.f32.mrb[0].mxu0
      %v590 = vpop.f32.mrb[0].mxu0
      %591 = vdwg.mxu0
      %v592 = vadd.f32 %v484, %v579
      %v593 = vadd.f32 %v485, %v582
      %v594 = vadd.f32 %v486, %v587
      %v595 = vld [vmem:[%s2] sm:$0x1]
      %v597 = vlaneseq
      %v598 = vshrl.u32 %v597, 7
      %v599 = vsub.s32 0, %v598
      %v600 = vrot.slane %v595, %v599
      %v602 = vadd.f32 %v592, %v600
      %v603 = vadd.f32 %v593, %v600
      %v604 = vadd.f32 %v594, %v600
      %v605 = vmax.f32 %v602, 0.0
      %v606 = vmax.f32 %v603, 0.0
      %v607 = vmax.f32 %v604, 0.0
      %v608 = vpack.c.bf16 %v606, %v605
      %v609 = vpack.c.bf16 %v607, %v607
      %v612 = vunpack.c.l.b16 %v608
      %v613 = vunpack.c.h.b16 %v608
      %v614 = vunpack.c.l.b16 %v609
      %v615 = vpack.c.b16 %v612, %v612
      %v616 = vpack.c.b16 %v613, %v613
      %v617 = vpack.c.b16 %v614, %v614
      %vm621 = vcmask 257024
      %622 = vst.msk [vmem:[%s170] sm:$0xf] %vm621, %v615
      %623 = vst.msk [vmem:[%s170 + $0x4] sm:$0xf] %vm621, %v616
      %vm624 = vcmask 254976
      %vm625 = vsmask.f32 1280
      %vm626 = vmand %vm624, %vm625
      %v627 = vld [vmem:[%s170 + $0x8] sm:$0x3]
      %v628 = vsel %vm626, %v617, %v627
      %629 = vst [vmem:[%s170 + $0x8] sm:$0x3] %v628
      %p630 = scmp.lt.s32.totalorder %s14, 7
      %s631 = scalar_select %p630, %s14, 7
      %s632 = smul.addr %s631, 3
      %s633 = smul.addr %s632, 4
      %s634 = scalar_lea.vmem %s3, %s633
      // Predicated region
      $region33: #{similarity_regnet_forward.8} parent=31 // pred_check
        %p635 = pneg %p100
      $region34: #{similarity_regnet_forward.8} parent=31 // pred_check_branch
        %637 = sbr.rel (%p635) target = $region36
      $region35: #{similarity_regnet_forward.8} parent=31 // pred_region
        _
      $region36: #{similarity_regnet_forward.8} parent=31 // pred_fallthru
        _
    $region32: #{similarity_regnet_forward.8} parent=5 // pred_fallthru
      _
    %p638 = scmp.le.s32.totalorder 2, %s9
    // Predicated region
    $region37: #{similarity_regnet_forward.8} parent=5 // pred_check
      %p639 = pneg %p638
    $region38: #{similarity_regnet_forward.8} parent=5 // pred_check_branch
      %641 = sbr.rel (%p639) target = $region40
    $region39: #{similarity_regnet_forward.8} parent=5 // pred_region
      %s642 = ssub.s32 %s9, 2
      // Predicated region
      $region41: #{similarity_regnet_forward.8} parent=39 // pred_check
        %p643 = pneg %p106
      $region42: #{similarity_regnet_forward.8} parent=39 // pred_check_branch
        %645 = sbr.rel (%p643) target = $region44
      $region43: #{similarity_regnet_forward.8} parent=39 // pred_region
        %p646 = scmp.lt.s32.totalorder %s15, 7
        %s647 = scalar_select %p646, %s15, 7
        %s648 = smul.addr %s647, 3
        %s649 = smul.addr %s648, 4
        %s650 = scalar_lea.vmem %s3, %s649
      $region44: #{similarity_regnet_forward.8} parent=39 // pred_fallthru
        _
    $region40: #{similarity_regnet_forward.8} parent=5 // pred_fallthru
      _
  $region6: #{similarity_regnet_forward.8} parent=0 // loop_footer
    %s13 = sadd.s32 1, %s9
  $region7: #{similarity_regnet_forward.8} parent=0 // loop_footer_branch
    %8 = sbr.rel target = $region3
  $region8: #{similarity_regnet_forward.8} parent=0 // loop_exit
    _

// kernel: similarity_regnet_forward.9
$region0: #{similarity_regnet_forward.9}
  #allocation0 [shape = 'u32[]', space=smem, size = 0x4, offset = 0x4, fixed_abs, tag = 'smem constant byte address 0x4 - core index']
  #allocation1 [shape = 'u32[144,128]{1,0:T(1,128)}', space=vmem, size = 0x12000, scoped, tag = 'internal scratch']
  %s0 = inlined_call_operand.vmem [shape: bf16[8,25,32], index: 0, kind: input, shape index: {}]
  %s1 = inlined_call_operand.vmem [shape: bf16[4,32,64], index: 1, kind: input, shape index: {}]
  %s2 = inlined_call_operand.vmem [shape: f32[1,64], index: 2, kind: input, shape index: {}]
  %s3 = inlined_call_operand.vmem [shape: bf16[8,19,64], index: 3, kind: output, shape index: {}]
  %s4 = sld [smem:[#allocation0]]
  $region45: #{similarity_regnet_forward.9} parent=0
    _
  %s6 = ssub.s32 1, %s4
  %s7 = scalar_select 0, %s6, %s4
  loop: start=0, step=1, limit=10
  $region2: #{similarity_regnet_forward.9} parent=0 // loop_pre_header
    _
  $region3: #{similarity_regnet_forward.9} parent=0 // loop_header
    %s9 = sphi 0, %s13
    %p10 = scmp.ge.s32.totalorder %s9, 10
    %s19 = sphi 0, %s21
    %s22 = sphi 0, %s19
    %s23 = sphi 0, %s22
    %s39 = sphi 0, %s23
    %s43 = sphi 0, %s43
    %s45 = sphi 0, %s43
    %s46 = sphi 0, %s45
    %s60 = sphi 0, %s46
    %s64 = sphi 0, %s64
    %s66 = sphi 0, %s64
    %s67 = sphi 0, %s66
    %s81 = sphi 0, %s67
    %s87 = sphi 0, %s89
    %s90 = sphi 0, %s87
    %s91 = sphi 0, %s90
    %s107 = sphi 0, %s91
  $region4: #{similarity_regnet_forward.9} parent=0 // loop_header_branch
    %12 = sbr.rel (%p10) target = $region8
  $region5: #{similarity_regnet_forward.9} parent=0 // loop_body
    %s14 = ssub.s32 %s9, 1
    %s15 = ssub.s32 %s9, 2
    %s16 = sadd.s32 %s9, 1
    %s17 = ssub.s32 %s9, %s16
    %p18 = scmp.eq.s32.totalorder %s17, 0
    %s20 = sadd.s32 %s19, 1
    %s21 = scalar_select %p18, %s19, %s20
    %p24 = pneg %p18
    %p25 = scmp.eq.s32.totalorder %s9, 7
    %p26 = por %p24, %p25
    %p27 = scmp.ne.s32.totalorder %s19, %s22
    %p28 = scmp.eq.s32.totalorder %s9, 0
    %p29 = por %p27, %p28
    %p30 = scmp.ne.s32.totalorder %s19, %s22
    %p31 = scmp.eq.s32.totalorder %s14, 7
    %p32 = por %p30, %p31
    %p33 = scmp.ne.s32.totalorder %s22, %s23
    %p34 = scmp.eq.s32.totalorder %s14, 0
    %p35 = por %p33, %p34
    %p36 = scmp.ne.s32.totalorder %s22, %s23
    %p37 = scmp.eq.s32.totalorder %s15, 7
    %p38 = por %p36, %p37
    %p40 = scmp.ne.s32.totalorder %s23, %s39
    %p41 = scmp.eq.s32.totalorder %s15, 0
    %p42 = por %p40, %p41
    %s44 = sadd.s32 %s43, 1
    %p47 = scmp.eq.s32.totalorder %s9, 7
    %p48 = scmp.ne.s32.totalorder %s43, %s45
    %p49 = scmp.eq.s32.totalorder %s9, 0
    %p50 = por %p48, %p49
    %p51 = scmp.ne.s32.totalorder %s43, %s45
    %p52 = scmp.eq.s32.totalorder %s14, 7
    %p53 = por %p51, %p52
    %p54 = scmp.ne.s32.totalorder %s45, %s46
    %p55 = scmp.eq.s32.totalorder %s14, 0
    %p56 = por %p54, %p55
    %p57 = scmp.ne.s32.totalorder %s45, %s46
    %p58 = scmp.eq.s32.totalorder %s15, 7
    %p59 = por %p57, %p58
    %p61 = scmp.ne.s32.totalorder %s46, %s60
    %p62 = scmp.eq.s32.totalorder %s15, 0
    %p63 = por %p61, %p62
    %s65 = sadd.s32 %s64, 1
    %p68 = scmp.eq.s32.totalorder %s9, 7
    %p69 = scmp.ne.s32.totalorder %s64, %s66
    %p70 = scmp.eq.s32.totalorder %s9, 0
    %p71 = por %p69, %p70
    %p72 = scmp.ne.s32.totalorder %s64, %s66
    %p73 = scmp.eq.s32.totalorder %s14, 7
    %p74 = por %p72, %p73
    %p75 = scmp.ne.s32.totalorder %s66, %s67
    %p76 = scmp.eq.s32.totalorder %s14, 0
    %p77 = por %p75, %p76
    %p78 = scmp.ne.s32.totalorder %s66, %s67
    %p79 = scmp.eq.s32.totalorder %s15, 7
    %p80 = por %p78, %p79
    %p82 = scmp.ne.s32.totalorder %s67, %s81
    %p83 = scmp.eq.s32.totalorder %s15, 0
    %p84 = por %p82, %p83
    %s85 = ssub.s32 %s9, %s16
    %p86 = scmp.eq.s32.totalorder %s85, 0
    %s88 = sadd.s32 %s87, 1
    %s89 = scalar_select %p86, %s87, %s88
    %p92 = pneg %p86
    %p93 = scmp.eq.s32.totalorder %s9, 7
    %p94 = por %p92, %p93
    %p95 = scmp.ne.s32.totalorder %s87, %s90
    %p96 = scmp.eq.s32.totalorder %s9, 0
    %p97 = por %p95, %p96
    %p98 = scmp.ne.s32.totalorder %s87, %s90
    %p99 = scmp.eq.s32.totalorder %s14, 7
    %p100 = por %p98, %p99
    %p101 = scmp.ne.s32.totalorder %s90, %s91
    %p102 = scmp.eq.s32.totalorder %s14, 0
    %p103 = por %p101, %p102
    %p104 = scmp.ne.s32.totalorder %s90, %s91
    %p105 = scmp.eq.s32.totalorder %s15, 7
    %p106 = por %p104, %p105
    %p108 = scmp.ne.s32.totalorder %s91, %s107
    %p109 = scmp.eq.s32.totalorder %s15, 0
    %p110 = por %p108, %p109
    %p111 = scmp.le.s32.totalorder 1, %s9
    %p112 = scmp.lt.s32.totalorder %s9, 9
    %p113 = pnand %p111, %p112
    %p114 = pneg %p113
    // Predicated region
    $region9: #{similarity_regnet_forward.9} parent=5 // pred_check
      _
    $region10: #{similarity_regnet_forward.9} parent=5 // pred_check_branch
      %116 = sbr.rel (%p113) target = $region12
    $region11: #{similarity_regnet_forward.9} parent=5 // pred_region
      %s117 = ssub.s32 %s9, 1
      // Predicated region
      $region13: #{similarity_regnet_forward.9} parent=11 // pred_check
        %p118 = pneg %p56
      $region14: #{similarity_regnet_forward.9} parent=11 // pred_check_branch
        %120 = sbr.rel (%p118) target = $region16
      $region15: #{similarity_regnet_forward.9} parent=11 // pred_region
        _
      $region16: #{similarity_regnet_forward.9} parent=11 // pred_fallthru
        _
      // Predicated region
      $region17: #{similarity_regnet_forward.9} parent=11 // pred_check
        %p121 = pneg %p77
      $region18: #{similarity_regnet_forward.9} parent=11 // pred_check_branch
        %123 = sbr.rel (%p121) target = $region20
      $region19: #{similarity_regnet_forward.9} parent=11 // pred_region
        _
      $region20: #{similarity_regnet_forward.9} parent=11 // pred_fallthru
        _
    $region12: #{similarity_regnet_forward.9} parent=5 // pred_fallthru
      _
    %p124 = scmp.lt.s32.totalorder %s9, 8
    // Predicated region
    $region21: #{similarity_regnet_forward.9} parent=5 // pred_check
      %p125 = pneg %p124
    $region22: #{similarity_regnet_forward.9} parent=5 // pred_check_branch
      %127 = sbr.rel (%p125) target = $region24
    $region23: #{similarity_regnet_forward.9} parent=5 // pred_region
      // Predicated region
      $region25: #{similarity_regnet_forward.9} parent=23 // pred_check
        %p128 = pneg %p29
      $region26: #{similarity_regnet_forward.9} parent=23 // pred_check_branch
        %130 = sbr.rel (%p128) target = $region28
      $region27: #{similarity_regnet_forward.9} parent=23 // pred_region
        %p131 = scmp.lt.s32.totalorder %s9, 7
        %s132 = scalar_select %p131, %s9, 7
        %s133 = smul.addr %s132, 4
        %s134 = smul.addr %s133, 4
        %s135 = scalar_lea.vmem %s0, %s134
      $region28: #{similarity_regnet_forward.9} parent=23 // pred_fallthru
        _
    $region24: #{similarity_regnet_forward.9} parent=5 // pred_fallthru
      _
    %p136 = scmp.le.s32.totalorder 1, %s9
    %p137 = scmp.lt.s32.totalorder %s9, 9
    %p138 = pnand %p136, %p137
    %p139 = pneg %p138
    // Predicated region
    $region29: #{similarity_regnet_forward.9} parent=5 // pred_check
      _
    $region30: #{similarity_regnet_forward.9} parent=5 // pred_check_branch
      %141 = sbr.rel (%p138) target = $region32
    $region31: #{similarity_regnet_forward.9} parent=5 // pred_region
      %s142 = ssub.s32 %s9, 1
      %p143 = scmp.lt.s32.totalorder %s14, 7
      %s144 = scalar_select %p143, %s14, 7
      %s145 = smul.addr %s144, 4
      %s146 = smul.addr %s145, 4
      %s147 = scalar_lea.vmem %s0, %s146
      %p148 = pneg %p35
      %p149 = pneg %p32
      %p150 = pneg %p56
      %p151 = pneg %p53
      %p152 = pneg %p77
      %p153 = pneg %p74
      %p154 = pneg %p103
      %p155 = pneg %p100
      %p156 = scmp.lt.s32.totalorder %s14, 7
      %s157 = scalar_select %p156, %s14, 7
      %s158 = smul.addr %s157, 3
      %s159 = smul.addr %s158, 4
      %s160 = scalar_lea.vmem %s3, %s159
      %p161 = scmp.lt.s32.totalorder %s14, 7
      %s162 = scalar_select %p161, %s14, 7
      %s163 = smul.addr %s162, 4
      %s164 = smul.addr %s163, 4
      %s165 = scalar_lea.vmem %s0, %s164
      %p166 = scmp.lt.s32.totalorder %s14, 7
      %s167 = scalar_select %p166, %s14, 7
      %s168 = smul.addr %s167, 3
      %s169 = smul.addr %s168, 4
      %s170 = scalar_lea.vmem %s3, %s169
      %v172 = vld [vmem:[%s165] sm:$0xf]
      %v173 = vld [vmem:[%s165 + $0x4] sm:$0xf]
      %v174 = vld [vmem:[%s165 + $0x8] sm:$0x3]
      %v175 = vld [vmem:[%s1] sm:$0xf]
      %v176 = vld [vmem:[%s1 + $0x4] sm:$0xf]
      %v177 = vld [vmem:[%s1 + $0x8] sm:$0xf]
      %v178 = vld [vmem:[%s1 + $0xc] sm:$0xf]
      %s179 = scalar_lea.vmem %s1, 16
      %v180 = vld [vmem:[%s179] sm:$0xf]
      %v181 = vld [vmem:[%s179 + $0x4] sm:$0xf]
      %v182 = vld [vmem:[%s179 + $0x8] sm:$0xf]
      %v183 = vld [vmem:[%s179 + $0xc] sm:$0xf]
      %v187 = vunpack.c.l.b16 %v172
      %v188 = vunpack.c.l.b16 %v173
      %v189 = vunpack.c.l.b16 %v174
      %v190 = vpack.c.b16 %v188, %v187
      %v191 = vpack.c.b16 %v189, %v189
      %vm192 = vsmask.f32 7424
      %v194 = vshrl.u32 %v190, 16
      %v196 = vshll.u32 %v190, 16
      %v198 = vrot.slane %v196, 1
      %v199 = vor.u32 %v194, %v198
      %v201 = vshll.u32 %v191, 16
      %v203 = vrot.slane %v201, 1
      %v204 = vsel %vm192, %v199, %v203
      %v205 = vshrl.u32 %v191, 16
      %v207 = vor.u32 %v205, %v203
      %v212 = vunpack.c.l.b16 %v180
      %v213 = vunpack.c.l.b16 %v181
      %v214 = vunpack.c.l.b16 %v182
      %v215 = vunpack.c.l.b16 %v183
      %v216 = vpack.c.b16 %v213, %v212
      %v217 = vpack.c.b16 %v215, %v214
      %vm220 = vcmask 261120
      %v222 = vsel %vm220, %v204, 0
      %v225 = vsel %vm220, %v207, 0
      %227 = vmatprep.subr.bf16.mxu0 0
      %228 = vmatpush1.bf16.msra.mxu0 %v216
      %229 = vmatprep.subr.bf16.mxu0 0
      %230 = vmatpush1.bf16.msra.mxu0 %v217
      %231 = vmatprep.subr.bf16.mxu0 0
      %232 = vmatpush1.bf16.msra.mxu0 0
      %233 = vmatprep.subr.bf16.mxu0 0
      %234 = vmatpush1.bf16.msra.mxu0 0
      %235 = vmatprep.subr.bf16.mxu0 0
      %236 = vmatpush1.bf16.msra.mxu0 0
      %237 = vmatprep.subr.bf16.mxu0 0
      %238 = vmatpush1.bf16.msra.mxu0 0
      %239 = vmatprep.subr.bf16.mxu0 0
      %240 = vmatpush1.bf16.msra.mxu0 0
      %241 = vmatprep.subr.bf16.mxu0 0
      %242 = vmatpush1.bf16.msra.mxu0 0
      %243 = vmatprep.subr.bf16.mxu0 0
      %244 = vmatpush1.bf16.msra.mxu0 0
      %245 = vmatprep.subr.bf16.mxu0 0
      %246 = vmatpush1.bf16.msra.mxu0 0
      %247 = vmatprep.subr.bf16.mxu0 0
      %248 = vmatpush1.bf16.msra.mxu0 0
      %249 = vmatprep.subr.bf16.mxu0 0
      %250 = vmatpush1.bf16.msra.mxu0 0
      %251 = vmatprep.subr.bf16.mxu0 0
      %252 = vmatpush1.bf16.msra.mxu0 0
      %253 = vmatprep.subr.bf16.mxu0 0
      %254 = vmatpush1.bf16.msra.mxu0 0
      %255 = vmatprep.subr.bf16.mxu0 0
      %256 = vmatpush1.bf16.msra.mxu0 0
      %257 = vmatprep.subr.bf16.mxu0 0
      %258 = vmatpush1.bf16.msra.mxu0 0
      %259 = vmatprep.mubr.bf16.mxu0 0
      %260 = vmatmul.mubr.bf16.gmra.mrb[0].mxu0 %v222
      %v261 = vpop.f32.mrb[0].mxu0
      %v262 = vadd.f32 0.0, %v261
      %v263 = vpop.f32.mrb[0].mxu0
      %v264 = vpop.f32.mrb[0].mxu0
      %v265 = vadd.f32 0.0, %v264
      %v266 = vpop.f32.mrb[0].mxu0
      %267 = vmatprep.mubr.bf16.mxu0 0
      %268 = vmatmul.mubr.bf16.gmra.mrb[0].mxu0 %v225
      %v269 = vpop.f32.mrb[0].mxu0
      %v270 = vadd.f32 0.0, %v269
      %v271 = vpop.f32.mrb[0].mxu0
      %v272 = vpop.f32.mrb[0].mxu0
      %v273 = vpop.f32.mrb[0].mxu0
      %274 = vdwg.mxu0
      %v279 = vunpack.c.l.b16 %v175
      %v280 = vunpack.c.l.b16 %v176
      %v281 = vunpack.c.l.b16 %v177
      %v282 = vunpack.c.l.b16 %v178
      %v283 = vpack.c.b16 %v280, %v279
      %v284 = vpack.c.b16 %v282, %v281
      %v287 = vsel %vm220, %v190, 0
      %v289 = vsel %vm220, %v191, 0
      %291 = vmatprep.subr.bf16.mxu0 0
      %292 = vmatpush1.bf16.msra.mxu0 %v283
      %293 = vmatprep.subr.bf16.mxu0 0
      %294 = vmatpush1.bf16.msra.mxu0 %v284
      %295 = vmatprep.subr.bf16.mxu0 0
      %296 = vmatpush1.bf16.msra.mxu0 0
      %297 = vmatprep.subr.bf16.mxu0 0
      %298 = vmatpush1.bf16.msra.mxu0 0
      %299 = vmatprep.subr.bf16.mxu0 0
      %300 = vmatpush1.bf16.msra.mxu0 0
      %301 = vmatprep.subr.bf16.mxu0 0
      %302 = vmatpush1.bf16.msra.mxu0 0
      %303 = vmatprep.subr.bf16.mxu0 0
      %304 = vmatpush1.bf16.msra.mxu0 0
      %305 = vmatprep.subr.bf16.mxu0 0
      %306 = vmatpush1.bf16.msra.mxu0 0
      %307 = vmatprep.subr.bf16.mxu0 0
      %308 = vmatpush1.bf16.msra.mxu0 0
      %309 = vmatprep.subr.bf16.mxu0 0
      %310 = vmatpush1.bf16.msra.mxu0 0
      %311 = vmatprep.subr.bf16.mxu0 0
      %312 = vmatpush1.bf16.msra.mxu0 0
      %313 = vmatprep.subr.bf16.mxu0 0
      %314 = vmatpush1.bf16.msra.mxu0 0
      %315 = vmatprep.subr.bf16.mxu0 0
      %316 = vmatpush1.bf16.msra.mxu0 0
      %317 = vmatprep.subr.bf16.mxu0 0
      %318 = vmatpush1.bf16.msra.mxu0 0
      %319 = vmatprep.subr.bf16.mxu0 0
      %320 = vmatpush1.bf16.msra.mxu0 0
      %321 = vmatprep.subr.bf16.mxu0 0
      %322 = vmatpush1.bf16.msra.mxu0 0
      %323 = vmatprep.mubr.bf16.mxu0 0
      %324 = vmatmul.mubr.bf16.gmra.mrb[0].mxu0 %v287
      %v325 = vpop.f32.mrb[0].mxu0
      %v326 = vadd.f32 %v262, %v325
      %v327 = vpop.f32.mrb[0].mxu0
      %v328 = vpop.f32.mrb[0].mxu0
      %v329 = vadd.f32 %v265, %v328
      %v330 = vpop.f32.mrb[0].mxu0
      %331 = vmatprep.mubr.bf16.mxu0 0
      %332 = vmatmul.mubr.bf16.gmra.mrb[0].mxu0 %v289
      %v333 = vpop.f32.mrb[0].mxu0
      %v334 = vadd.f32 %v270, %v333
      %v335 = vpop.f32.mrb[0].mxu0
      %v336 = vpop.f32.mrb[0].mxu0
      %v337 = vpop.f32.mrb[0].mxu0
      %338 = vdwg.mxu0
      %v339 = vld [vmem:[%s165] sm:$0xc]
      %v340 = vld [vmem:[%s165 + $0x8] sm:$0xf]
      %s341 = scalar_lea.vmem %s1, 32
      %v342 = vld [vmem:[%s341] sm:$0xf]
      %v343 = vld [vmem:[%s341 + $0x4] sm:$0xf]
      %v344 = vld [vmem:[%s341 + $0x8] sm:$0xf]
      %v345 = vld [vmem:[%s341 + $0xc] sm:$0xf]
      %v348 = vunpack.c.l.b16 %v339
      %v349 = vunpack.c.l.b16 %v340
      %v350 = vpack.c.b16 %v188, %v348
      %v351 = vpack.c.b16 %v349, %v349
      %vm352 = vsmask.f32 5376
      %v354 = vshrl.u32 %v350, 16
      %v356 = vrot.slane %v354, 2
      %v357 = vshll.u32 %v350, 16
      %v359 = vrot.slane %v357, 3
      %v360 = vor.u32 %v356, %v359
      %v362 = vshrl.u32 %v351, 16
      %v364 = vrot.slane %v362, 2
      %v365 = vshll.u32 %v351, 16
      %v367 = vrot.slane %v365, 3
      %v368 = vor.u32 %v364, %v367
      %v369 = vsel %vm352, %v360, %v368
      %v374 = vunpack.c.l.b16 %v342
      %v375 = vunpack.c.l.b16 %v343
      %v376 = vunpack.c.l.b16 %v344
      %v377 = vunpack.c.l.b16 %v345
      %v378 = vpack.c.b16 %v375, %v374
      %v379 = vpack.c.b16 %v377, %v376
      %v383 = vsel %vm220, %v369, 0
      %v386 = vsel %vm220, %v368, 0
      %388 = vmatprep.subr.bf16.mxu0 0
      %389 = vmatpush1.bf16.msra.mxu0 %v378
      %390 = vmatprep.subr.bf16.mxu0 0
      %391 = vmatpush1.bf16.msra.mxu0 %v379
      %392 = vmatprep.subr.bf16.mxu0 0
      %393 = vmatpush1.bf16.msra.mxu0 0
      %394 = vmatprep.subr.bf16.mxu0 0
      %395 = vmatpush1.bf16.msra.mxu0 0
      %396 = vmatprep.subr.bf16.mxu0 0
      %397 = vmatpush1.bf16.msra.mxu0 0
      %398 = vmatprep.subr.bf16.mxu0 0
      %399 = vmatpush1.bf16.msra.mxu0 0
      %400 = vmatprep.subr.bf16.mxu0 0
      %401 = vmatpush1.bf16.msra.mxu0 0
      %402 = vmatprep.subr.bf16.mxu0 0
      %403 = vmatpush1.bf16.msra.mxu0 0
      %404 = vmatprep.subr.bf16.mxu0 0
      %405 = vmatpush1.bf16.msra.mxu0 0
      %406 = vmatprep.subr.bf16.mxu0 0
      %407 = vmatpush1.bf16.msra.mxu0 0
      %408 = vmatprep.subr.bf16.mxu0 0
      %409 = vmatpush1.bf16.msra.mxu0 0
      %410 = vmatprep.subr.bf16.mxu0 0
      %411 = vmatpush1.bf16.msra.mxu0 0
      %412 = vmatprep.subr.bf16.mxu0 0
      %413 = vmatpush1.bf16.msra.mxu0 0
      %414 = vmatprep.subr.bf16.mxu0 0
      %415 = vmatpush1.bf16.msra.mxu0 0
      %416 = vmatprep.subr.bf16.mxu0 0
      %417 = vmatpush1.bf16.msra.mxu0 0
      %418 = vmatprep.subr.bf16.mxu0 0
      %419 = vmatpush1.bf16.msra.mxu0 0
      %420 = vmatprep.mubr.bf16.mxu0 0
      %421 = vmatmul.mubr.bf16.gmra.mrb[0].mxu0 %v383
      %v422 = vpop.f32.mrb[0].mxu0
      %v423 = vadd.f32 0.0, %v422
      %v424 = vpop.f32.mrb[0].mxu0
      %v425 = vpop.f32.mrb[0].mxu0
      %v426 = vadd.f32 0.0, %v425
      %v427 = vpop.f32.mrb[0].mxu0
      %428 = vmatprep.mubr.bf16.mxu0 0
      %429 = vmatmul.mubr.bf16.gmra.mrb[0].mxu0 %v386
      %v430 = vpop.f32.mrb[0].mxu0
      %v431 = vadd.f32 0.0, %v430
      %v432 = vpop.f32.mrb[0].mxu0
      %v433 = vpop.f32.mrb[0].mxu0
      %v434 = vpop.f32.mrb[0].mxu0
      %435 = vdwg.mxu0
      %v436 = vadd.f32 %v326, %v423
      %v437 = vadd.f32 %v329, %v426
      %v438 = vadd.f32 %v334, %v431
      %v439 = vld [vmem:[%s165] sm:$0x8]
      %v440 = vld [vmem:[%s165 + $0x4] sm:$0xf]
      %v441 = vld [vmem:[%s165 + $0x8] sm:$0xf]
      %v442 = vld [vmem:[%s165 + $0xc] sm:$0x1]
      %s443 = scalar_lea.vmem %s1, 48
      %v444 = vld [vmem:[%s443] sm:$0xf]
      %v445 = vld [vmem:[%s443 + $0x4] sm:$0xf]
      %v446 = vld [vmem:[%s443 + $0x8] sm:$0xf]
      %v447 = vld [vmem:[%s443 + $0xc] sm:$0xf]
      %v452 = vunpack.c.l.b16 %v439
      %v453 = vunpack.c.l.b16 %v440
      %v454 = vunpack.c.l.b16 %v441
      %v455 = vunpack.c.l.b16 %v442
      %v456 = vpack.c.b16 %v453, %v452
      %v457 = vpack.c.b16 %v455, %v454
      %vm458 = vcmask 1044480
      %v459 = vrot.slane %v456, 3
      %v460 = vrot.slane %v457, 3
      %v461 = vsel %vm458, %v459, %v460
      %v466 = vunpack.c.l.b16 %v444
      %v467 = vunpack.c.l.b16 %v445
      %v468 = vunpack.c.l.b16 %v446
      %v469 = vunpack.c.l.b16 %v447
      %v470 = vpack.c.b16 %v467, %v466
      %v471 = vpack.c.b16 %v469, %v468
      %v475 = vsel %vm220, %v461, 0
      %v478 = vsel %vm220, %v460, 0
      %480 = vmatprep.subr.bf16.mxu0 0
      %481 = vmatpush1.bf16.msra.mxu0 %v470
      %482 = vmatprep.subr.bf16.mxu0 0
      %483 = vmatpush1.bf16.msra.mxu0 %v471
      %484 = vmatprep.subr.bf16.mxu0 0
      %485 = vmatpush1.bf16.msra.mxu0 0
      %486 = vmatprep.subr.bf16.mxu0 0
      %487 = vmatpush1.bf16.msra.mxu0 0
      %488 = vmatprep.subr.bf16.mxu0 0
      %489 = vmatpush1.bf16.msra.mxu0 0
      %490 = vmatprep.subr.bf16.mxu0 0
      %491 = vmatpush1.bf16.msra.mxu0 0
      %492 = vmatprep.subr.bf16.mxu0 0
      %493 = vmatpush1.bf16.msra.mxu0 0
      %494 = vmatprep.subr.bf16.mxu0 0
      %495 = vmatpush1.bf16.msra.mxu0 0
      %496 = vmatprep.subr.bf16.mxu0 0
      %497 = vmatpush1.bf16.msra.mxu0 0
      %498 = vmatprep.subr.bf16.mxu0 0
      %499 = vmatpush1.bf16.msra.mxu0 0
      %500 = vmatprep.subr.bf16.mxu0 0
      %501 = vmatpush1.bf16.msra.mxu0 0
      %502 = vmatprep.subr.bf16.mxu0 0
      %503 = vmatpush1.bf16.msra.mxu0 0
      %504 = vmatprep.subr.bf16.mxu0 0
      %505 = vmatpush1.bf16.msra.mxu0 0
      %506 = vmatprep.subr.bf16.mxu0 0
      %507 = vmatpush1.bf16.msra.mxu0 0
      %508 = vmatprep.subr.bf16.mxu0 0
      %509 = vmatpush1.bf16.msra.mxu0 0
      %510 = vmatprep.subr.bf16.mxu0 0
      %511 = vmatpush1.bf16.msra.mxu0 0
      %512 = vmatprep.mubr.bf16.mxu0 0
      %513 = vmatmul.mubr.bf16.gmra.mrb[0].mxu0 %v475
      %v514 = vpop.f32.mrb[0].mxu0
      %v515 = vadd.f32 0.0, %v514
      %v516 = vpop.f32.mrb[0].mxu0
      %v517 = vpop.f32.mrb[0].mxu0
      %v518 = vadd.f32 0.0, %v517
      %v519 = vpop.f32.mrb[0].mxu0
      %520 = vmatprep.mubr.bf16.mxu0 0
      %521 = vmatmul.mubr.bf16.gmra.mrb[0].mxu0 %v478
      %v522 = vpop.f32.mrb[0].mxu0
      %v523 = vadd.f32 0.0, %v522
      %v524 = vpop.f32.mrb[0].mxu0
      %v525 = vpop.f32.mrb[0].mxu0
      %v526 = vpop.f32.mrb[0].mxu0
      %527 = vdwg.mxu0
      %v528 = vadd.f32 %v436, %v515
      %v529 = vadd.f32 %v437, %v518
      %v530 = vadd.f32 %v438, %v523
      %v531 = vld [vmem:[%s2] sm:$0x1]
      %v533 = vlaneseq
      %v534 = vshrl.u32 %v533, 7
      %v535 = vsub.s32 0, %v534
      %v536 = vrot.slane %v531, %v535
      %v538 = vadd.f32 %v528, %v536
      %v539 = vadd.f32 %v529, %v536
      %v540 = vadd.f32 %v530, %v536
      %v541 = vpack.c.bf16 %v539, %v538
      %v542 = vpack.c.bf16 %v540, %v540
      %v545 = vunpack.c.l.b16 %v541
      %v546 = vunpack.c.h.b16 %v541
      %v547 = vunpack.c.l.b16 %v542
      %v548 = vpack.c.b16 %v545, %v545
      %v549 = vpack.c.b16 %v546, %v546
      %v550 = vpack.c.b16 %v547, %v547
      %vm554 = vcmask 519168
      %555 = vst.msk [vmem:[%s170] sm:$0xf] %vm554, %v548
      %556 = vst.msk [vmem:[%s170 + $0x4] sm:$0xf] %vm554, %v549
      %vm557 = vcmask 517120
      %vm558 = vsmask.f32 1280
      %vm559 = vmand %vm557, %vm558
      %v560 = vld [vmem:[%s170 + $0x8] sm:$0x3]
      %v561 = vsel %vm559, %v550, %v560
      %562 = vst [vmem:[%s170 + $0x8] sm:$0x3] %v561
      %p563 = scmp.lt.s32.totalorder %s14, 7
      %s564 = scalar_select %p563, %s14, 7
      %s565 = smul.addr %s564, 3
      %s566 = smul.addr %s565, 4
      %s567 = scalar_lea.vmem %s3, %s566
      // Predicated region
      $region33: #{similarity_regnet_forward.9} parent=31 // pred_check
        %p568 = pneg %p100
      $region34: #{similarity_regnet_forward.9} parent=31 // pred_check_branch
        %570 = sbr.rel (%p568) target = $region36
      $region35: #{similarity_regnet_forward.9} parent=31 // pred_region
        _
      $region36: #{similarity_regnet_forward.9} parent=31 // pred_fallthru
        _
    $region32: #{similarity_regnet_forward.9} parent=5 // pred_fallthru
      _
    %p571 = scmp.le.s32.totalorder 2, %s9
    // Predicated region
    $region37: #{similarity_regnet_forward.9} parent=5 // pred_check
      %p572 = pneg %p571
    $region38: #{similarity_regnet_forward.9} parent=5 // pred_check_branch
      %574 = sbr.rel (%p572) target = $region40
    $region39: #{similarity_regnet_forward.9} parent=5 // pred_region
      %s575 = ssub.s32 %s9, 2
      // Predicated region
      $region41: #{similarity_regnet_forward.9} parent=39 // pred_check
        %p576 = pneg %p106
      $region42: #{similarity_regnet_forward.9} parent=39 // pred_check_branch
        %578 = sbr.rel (%p576) target = $region44
      $region43: #{similarity_regnet_forward.9} parent=39 // pred_region
        %p579 = scmp.lt.s32.totalorder %s15, 7
        %s580 = scalar_select %p579, %s15, 7
        %s581 = smul.addr %s580, 3
        %s582 = smul.addr %s581, 4
        %s583 = scalar_lea.vmem %s3, %s582
      $region44: #{similarity_regnet_forward.9} parent=39 // pred_fallthru
        _
    $region40: #{similarity_regnet_forward.9} parent=5 // pred_fallthru
      _
  $region6: #{similarity_regnet_forward.9} parent=0 // loop_footer
    %s13 = sadd.s32 1, %s9
  $region7: #{similarity_regnet_forward.9} parent=0 // loop_footer_branch
    %8 = sbr.rel target = $region3
  $region8: #{similarity_regnet_forward.9} parent=0 // loop_exit
    _

// kernel: similarity_regnet_forward.10
$region0: #{similarity_regnet_forward.10}
  #allocation0 [shape = 'u32[]', space=smem, size = 0x4, offset = 0x4, fixed_abs, tag = 'smem constant byte address 0x4 - core index']
  #allocation1 [shape = 'u32[144,128]{1,0:T(1,128)}', space=vmem, size = 0x12000, scoped, tag = 'internal scratch']
  %s0 = inlined_call_operand.vmem [shape: bf16[8,81,16], index: 0, kind: input, shape index: {}]
  %s1 = inlined_call_operand.vmem [shape: bf16[8,81,16], index: 1, kind: input, shape index: {}]
  %s2 = inlined_call_operand.vmem [shape: bf16[4,16,32], index: 2, kind: input, shape index: {}]
  %s3 = inlined_call_operand.vmem [shape: f32[1,32], index: 3, kind: input, shape index: {}]
  %s4 = inlined_call_operand.vmem [shape: bf16[8,71,32], index: 4, kind: output, shape index: {}]
  %s5 = sld [smem:[#allocation0]]
  $region49: #{similarity_regnet_forward.10} parent=0
    _
  %s7 = ssub.s32 1, %s5
  %s8 = scalar_select 0, %s7, %s5
  loop: start=0, step=1, limit=10
  $region2: #{similarity_regnet_forward.10} parent=0 // loop_pre_header
    _
  $region3: #{similarity_regnet_forward.10} parent=0 // loop_header
    %s10 = sphi 0, %s14
    %p11 = scmp.ge.s32.totalorder %s10, 10
    %s20 = sphi 0, %s22
    %s23 = sphi 0, %s20
    %s24 = sphi 0, %s23
    %s40 = sphi 0, %s24
    %s46 = sphi 0, %s48
    %s49 = sphi 0, %s46
    %s50 = sphi 0, %s49
    %s66 = sphi 0, %s50
    %s70 = sphi 0, %s70
    %s72 = sphi 0, %s70
    %s73 = sphi 0, %s72
    %s87 = sphi 0, %s73
    %s91 = sphi 0, %s91
    %s93 = sphi 0, %s91
    %s94 = sphi 0, %s93
    %s108 = sphi 0, %s94
    %s114 = sphi 0, %s116
    %s117 = sphi 0, %s114
    %s118 = sphi 0, %s117
    %s134 = sphi 0, %s118
  $region4: #{similarity_regnet_forward.10} parent=0 // loop_header_branch
    %13 = sbr.rel (%p11) target = $region8
  $region5: #{similarity_regnet_forward.10} parent=0 // loop_body
    %s15 = ssub.s32 %s10, 1
    %s16 = ssub.s32 %s10, 2
    %s17 = sadd.s32 %s10, 1
    %s18 = ssub.s32 %s10, %s17
    %p19 = scmp.eq.s32.totalorder %s18, 0
    %s21 = sadd.s32 %s20, 1
    %s22 = scalar_select %p19, %s20, %s21
    %p25 = pneg %p19
    %p26 = scmp.eq.s32.totalorder %s10, 7
    %p27 = por %p25, %p26
    %p28 = scmp.ne.s32.totalorder %s20, %s23
    %p29 = scmp.eq.s32.totalorder %s10, 0
    %p30 = por %p28, %p29
    %p31 = scmp.ne.s32.totalorder %s20, %s23
    %p32 = scmp.eq.s32.totalorder %s15, 7
    %p33 = por %p31, %p32
    %p34 = scmp.ne.s32.totalorder %s23, %s24
    %p35 = scmp.eq.s32.totalorder %s15, 0
    %p36 = por %p34, %p35
    %p37 = scmp.ne.s32.totalorder %s23, %s24
    %p38 = scmp.eq.s32.totalorder %s16, 7
    %p39 = por %p37, %p38
    %p41 = scmp.ne.s32.totalorder %s24, %s40
    %p42 = scmp.eq.s32.totalorder %s16, 0
    %p43 = por %p41, %p42
    %s44 = ssub.s32 %s10, %s17
    %p45 = scmp.eq.s32.totalorder %s44, 0
    %s47 = sadd.s32 %s46, 1
    %s48 = scalar_select %p45, %s46, %s47
    %p51 = pneg %p45
    %p52 = scmp.eq.s32.totalorder %s10, 7
    %p53 = por %p51, %p52
    %p54 = scmp.ne.s32.totalorder %s46, %s49
    %p55 = scmp.eq.s32.totalorder %s10, 0
    %p56 = por %p54, %p55
    %p57 = scmp.ne.s32.totalorder %s46, %s49
    %p58 = scmp.eq.s32.totalorder %s15, 7
    %p59 = por %p57, %p58
    %p60 = scmp.ne.s32.totalorder %s49, %s50
    %p61 = scmp.eq.s32.totalorder %s15, 0
    %p62 = por %p60, %p61
    %p63 = scmp.ne.s32.totalorder %s49, %s50
    %p64 = scmp.eq.s32.totalorder %s16, 7
    %p65 = por %p63, %p64
    %p67 = scmp.ne.s32.totalorder %s50, %s66
    %p68 = scmp.eq.s32.totalorder %s16, 0
    %p69 = por %p67, %p68
    %s71 = sadd.s32 %s70, 1
    %p74 = scmp.eq.s32.totalorder %s10, 7
    %p75 = scmp.ne.s32.totalorder %s70, %s72
    %p76 = scmp.eq.s32.totalorder %s10, 0
    %p77 = por %p75, %p76
    %p78 = scmp.ne.s32.totalorder %s70, %s72
    %p79 = scmp.eq.s32.totalorder %s15, 7
    %p80 = por %p78, %p79
    %p81 = scmp.ne.s32.totalorder %s72, %s73
    %p82 = scmp.eq.s32.totalorder %s15, 0
    %p83 = por %p81, %p82
    %p84 = scmp.ne.s32.totalorder %s72, %s73
    %p85 = scmp.eq.s32.totalorder %s16, 7
    %p86 = por %p84, %p85
    %p88 = scmp.ne.s32.totalorder %s73, %s87
    %p89 = scmp.eq.s32.totalorder %s16, 0
    %p90 = por %p88, %p89
    %s92 = sadd.s32 %s91, 1
    %p95 = scmp.eq.s32.totalorder %s10, 7
    %p96 = scmp.ne.s32.totalorder %s91, %s93
    %p97 = scmp.eq.s32.totalorder %s10, 0
    %p98 = por %p96, %p97
    %p99 = scmp.ne.s32.totalorder %s91, %s93
    %p100 = scmp.eq.s32.totalorder %s15, 7
    %p101 = por %p99, %p100
    %p102 = scmp.ne.s32.totalorder %s93, %s94
    %p103 = scmp.eq.s32.totalorder %s15, 0
    %p104 = por %p102, %p103
    %p105 = scmp.ne.s32.totalorder %s93, %s94
    %p106 = scmp.eq.s32.totalorder %s16, 7
    %p107 = por %p105, %p106
    %p109 = scmp.ne.s32.totalorder %s94, %s108
    %p110 = scmp.eq.s32.totalorder %s16, 0
    %p111 = por %p109, %p110
    %s112 = ssub.s32 %s10, %s17
    %p113 = scmp.eq.s32.totalorder %s112, 0
    %s115 = sadd.s32 %s114, 1
    %s116 = scalar_select %p113, %s114, %s115
    %p119 = pneg %p113
    %p120 = scmp.eq.s32.totalorder %s10, 7
    %p121 = por %p119, %p120
    %p122 = scmp.ne.s32.totalorder %s114, %s117
    %p123 = scmp.eq.s32.totalorder %s10, 0
    %p124 = por %p122, %p123
    %p125 = scmp.ne.s32.totalorder %s114, %s117
    %p126 = scmp.eq.s32.totalorder %s15, 7
    %p127 = por %p125, %p126
    %p128 = scmp.ne.s32.totalorder %s117, %s118
    %p129 = scmp.eq.s32.totalorder %s15, 0
    %p130 = por %p128, %p129
    %p131 = scmp.ne.s32.totalorder %s117, %s118
    %p132 = scmp.eq.s32.totalorder %s16, 7
    %p133 = por %p131, %p132
    %p135 = scmp.ne.s32.totalorder %s118, %s134
    %p136 = scmp.eq.s32.totalorder %s16, 0
    %p137 = por %p135, %p136
    %p138 = scmp.le.s32.totalorder 1, %s10
    %p139 = scmp.lt.s32.totalorder %s10, 9
    %p140 = pnand %p138, %p139
    %p141 = pneg %p140
    // Predicated region
    $region9: #{similarity_regnet_forward.10} parent=5 // pred_check
      _
    $region10: #{similarity_regnet_forward.10} parent=5 // pred_check_branch
      %143 = sbr.rel (%p140) target = $region12
    $region11: #{similarity_regnet_forward.10} parent=5 // pred_region
      %s144 = ssub.s32 %s10, 1
      // Predicated region
      $region13: #{similarity_regnet_forward.10} parent=11 // pred_check
        %p145 = pneg %p83
      $region14: #{similarity_regnet_forward.10} parent=11 // pred_check_branch
        %147 = sbr.rel (%p145) target = $region16
      $region15: #{similarity_regnet_forward.10} parent=11 // pred_region
        _
      $region16: #{similarity_regnet_forward.10} parent=11 // pred_fallthru
        _
      // Predicated region
      $region17: #{similarity_regnet_forward.10} parent=11 // pred_check
        %p148 = pneg %p104
      $region18: #{similarity_regnet_forward.10} parent=11 // pred_check_branch
        %150 = sbr.rel (%p148) target = $region20
      $region19: #{similarity_regnet_forward.10} parent=11 // pred_region
        _
      $region20: #{similarity_regnet_forward.10} parent=11 // pred_fallthru
        _
    $region12: #{similarity_regnet_forward.10} parent=5 // pred_fallthru
      _
    %p151 = scmp.lt.s32.totalorder %s10, 8
    // Predicated region
    $region21: #{similarity_regnet_forward.10} parent=5 // pred_check
      %p152 = pneg %p151
    $region22: #{similarity_regnet_forward.10} parent=5 // pred_check_branch
      %154 = sbr.rel (%p152) target = $region24
    $region23: #{similarity_regnet_forward.10} parent=5 // pred_region
      // Predicated region
      $region25: #{similarity_regnet_forward.10} parent=23 // pred_check
        %p155 = pneg %p30
      $region26: #{similarity_regnet_forward.10} parent=23 // pred_check_branch
        %157 = sbr.rel (%p155) target = $region28
      $region27: #{similarity_regnet_forward.10} parent=23 // pred_region
        %p158 = scmp.lt.s32.totalorder %s10, 7
        %s159 = scalar_select %p158, %s10, 7
        %s160 = smul.addr %s159, 11
        %s161 = smul.addr %s160, 4
        %s162 = scalar_lea.vmem %s0, %s161
      $region28: #{similarity_regnet_forward.10} parent=23 // pred_fallthru
        _
      // Predicated region
      $region29: #{similarity_regnet_forward.10} parent=23 // pred_check
        %p163 = pneg %p56
      $region30: #{similarity_regnet_forward.10} parent=23 // pred_check_branch
        %165 = sbr.rel (%p163) target = $region32
      $region31: #{similarity_regnet_forward.10} parent=23 // pred_region
        %p166 = scmp.lt.s32.totalorder %s10, 7
        %s167 = scalar_select %p166, %s10, 7
        %s168 = smul.addr %s167, 11
        %s169 = smul.addr %s168, 4
        %s170 = scalar_lea.vmem %s1, %s169
      $region32: #{similarity_regnet_forward.10} parent=23 // pred_fallthru
        _
    $region24: #{similarity_regnet_forward.10} parent=5 // pred_fallthru
      _
    %p171 = scmp.le.s32.totalorder 1, %s10
    %p172 = scmp.lt.s32.totalorder %s10, 9
    %p173 = pnand %p171, %p172
    %p174 = pneg %p173
    // Predicated region
    $region33: #{similarity_regnet_forward.10} parent=5 // pred_check
      _
    $region34: #{similarity_regnet_forward.10} parent=5 // pred_check_branch
      %176 = sbr.rel (%p173) target = $region36
    $region35: #{similarity_regnet_forward.10} parent=5 // pred_region
      %s177 = ssub.s32 %s10, 1
      %p178 = scmp.lt.s32.totalorder %s15, 7
      %s179 = scalar_select %p178, %s15, 7
      %s180 = smul.addr %s179, 11
      %s181 = smul.addr %s180, 4
      %s182 = scalar_lea.vmem %s0, %s181
      %p183 = pneg %p36
      %p184 = pneg %p33
      %p185 = scmp.lt.s32.totalorder %s15, 7
      %s186 = scalar_select %p185, %s15, 7
      %s187 = smul.addr %s186, 11
      %s188 = smul.addr %s187, 4
      %s189 = scalar_lea.vmem %s1, %s188
      %p190 = pneg %p62
      %p191 = pneg %p59
      %p192 = pneg %p83
      %p193 = pneg %p80
      %p194 = pneg %p104
      %p195 = pneg %p101
      %p196 = pneg %p130
      %p197 = pneg %p127
      %p198 = scmp.lt.s32.totalorder %s15, 7
      %s199 = scalar_select %p198, %s15, 7
      %s200 = smul.addr %s199, 9
      %s201 = smul.addr %s200, 4
      %s202 = scalar_lea.vmem %s4, %s201
      %p203 = scmp.lt.s32.totalorder %s15, 7
      %s204 = scalar_select %p203, %s15, 7
      %s205 = smul.addr %s204, 11
      %s206 = smul.addr %s205, 4
      %s207 = scalar_lea.vmem %s0, %s206
      %p208 = scmp.lt.s32.totalorder %s15, 7
      %s209 = scalar_select %p208, %s15, 7
      %s210 = smul.addr %s209, 11
      %s211 = smul.addr %s210, 4
      %s212 = scalar_lea.vmem %s1, %s211
      %p213 = scmp.lt.s32.totalorder %s15, 7
      %s214 = scalar_select %p213, %s15, 7
      %s215 = smul.addr %s214, 9
      %s216 = smul.addr %s215, 4
      %s217 = scalar_lea.vmem %s4, %s216
      %v219 = vld [vmem:[%s207] sm:$0xf]
      %v220 = vld [vmem:[%s207 + $0x4] sm:$0xf]
      %v221 = vld [vmem:[%s207 + $0x8] sm:$0xf]
      %v222 = vld [vmem:[%s207 + $0xc] sm:$0xf]
      %v223 = vld [vmem:[%s207 + $0x10] sm:$0xf]
      %v224 = vld [vmem:[%s207 + $0x14] sm:$0xf]
      %v225 = vld [vmem:[%s207 + $0x18] sm:$0xf]
      %v226 = vld [vmem:[%s207 + $0x1c] sm:$0xf]
      %v227 = vld [vmem:[%s207 + $0x20] sm:$0xf]
      %v228 = vld [vmem:[%s207 + $0x24] sm:$0xf]
      %v229 = vld [vmem:[%s207 + $0x28] sm:$0x1]
      %v230 = vld [vmem:[%s212] sm:$0xf]
      %v231 = vld [vmem:[%s212 + $0x4] sm:$0xf]
      %v232 = vld [vmem:[%s212 + $0x8] sm:$0xf]
      %v233 = vld [vmem:[%s212 + $0xc] sm:$0xf]
      %v234 = vld [vmem:[%s212 + $0x10] sm:$0xf]
      %v235 = vld [vmem:[%s212 + $0x14] sm:$0xf]
      %v236 = vld [vmem:[%s212 + $0x18] sm:$0xf]
      %v237 = vld [vmem:[%s212 + $0x1c] sm:$0xf]
      %v238 = vld [vmem:[%s212 + $0x20] sm:$0xf]
      %v239 = vld [vmem:[%s212 + $0x24] sm:$0xf]
      %v240 = vld [vmem:[%s212 + $0x28] sm:$0x1]
      %v241 = vadd.bf16 %v219, %v230
      %v242 = vadd.bf16 %v220, %v231
      %v243 = vadd.bf16 %v221, %v232
      %v244 = vadd.bf16 %v222, %v233
      %v245 = vadd.bf16 %v223, %v234
      %v246 = vadd.bf16 %v224, %v235
      %v247 = vadd.bf16 %v225, %v236
      %v248 = vadd.bf16 %v226, %v237
      %v249 = vadd.bf16 %v227, %v238
      %v250 = vadd.bf16 %v228, %v239
      %v251 = vadd.bf16 %v229, %v240
      %v252 = vld [vmem:[%s2] sm:$0xf]
      %v253 = vld [vmem:[%s2 + $0x4] sm:$0xf]
      %s254 = scalar_lea.vmem %s2, 8
      %v255 = vld [vmem:[%s254] sm:$0xf]
      %v256 = vld [vmem:[%s254 + $0x4] sm:$0xf]
      %v266 = vunpack.c.l.b16 %v241
      %v267 = vunpack.c.l.b16 %v242
      %v268 = vunpack.c.l.b16 %v243
      %v269 = vunpack.c.l.b16 %v244
      %v270 = vunpack.c.l.b16 %v245
      %v271 = vunpack.c.l.b16 %v246
      %v272 = vunpack.c.l.b16 %v247
      %v273 = vunpack.c.l.b16 %v248
      %v274 = vunpack.c.l.b16 %v249
      %v275 = vpack.c.b16 %v267, %v266
      %v276 = vpack.c.b16 %v269, %v268
      %v277 = vpack.c.b16 %v271, %v270
      %v278 = vpack.c.b16 %v273, %v272
      %v279 = vpack.c.b16 %v274, %v274
      %vm280 = vsmask.f32 7424
      %v282 = vshrl.u32 %v275, 16
      %v284 = vshll.u32 %v275, 16
      %v286 = vrot.slane %v284, 1
      %v287 = vor.u32 %v282, %v286
      %v289 = vshll.u32 %v276, 16
      %v291 = vrot.slane %v289, 1
      %v292 = vsel %vm280, %v287, %v291
      %v293 = vshrl.u32 %v276, 16
      %v295 = vor.u32 %v293, %v291
      %v297 = vshll.u32 %v277, 16
      %v299 = vrot.slane %v297, 1
      %v300 = vsel %vm280, %v295, %v299
      %v301 = vshrl.u32 %v277, 16
      %v303 = vor.u32 %v301, %v299
      %v305 = vshll.u32 %v278, 16
      %v307 = vrot.slane %v305, 1
      %v308 = vsel %vm280, %v303, %v307
      %v309 = vshrl.u32 %v278, 16
      %v311 = vor.u32 %v309, %v307
      %v313 = vshll.u32 %v279, 16
      %v315 = vrot.slane %v313, 1
      %v316 = vsel %vm280, %v311, %v315
      %v317 = vshrl.u32 %v279, 16
      %v319 = vor.u32 %v317, %v315
      %v322 = vunpack.c.l.b16 %v255
      %v323 = vunpack.c.l.b16 %v256
      %v324 = vpack.c.b16 %v323, %v322
      %vm326 = vcmask 130048
      %v328 = vsel %vm326, %v292, 0
      %v331 = vsel %vm326, %v300, 0
      %v334 = vsel %vm326, %v308, 0
      %v337 = vsel %vm326, %v316, 0
      %v340 = vsel %vm326, %v319, 0
      %342 = vmatprep.subr.bf16.mxu0 0
      %343 = vmatpush1.bf16.msra.mxu0 %v324
      %344 = vmatprep.subr.bf16.mxu0 0
      %345 = vmatpush1.bf16.msra.mxu0 0
      %346 = vmatprep.subr.bf16.mxu0 0
      %347 = vmatpush1.bf16.msra.mxu0 0
      %348 = vmatprep.subr.bf16.mxu0 0
      %349 = vmatpush1.bf16.msra.mxu0 0
      %350 = vmatprep.subr.bf16.mxu0 0
      %351 = vmatpush1.bf16.msra.mxu0 0
      %352 = vmatprep.subr.bf16.mxu0 0
      %353 = vmatpush1.bf16.msra.mxu0 0
      %354 = vmatprep.subr.bf16.mxu0 0
      %355 = vmatpush1.bf16.msra.mxu0 0
      %356 = vmatprep.subr.bf16.mxu0 0
      %357 = vmatpush1.bf16.msra.mxu0 0
      %358 = vmatprep.subr.bf16.mxu0 0
      %359 = vmatpush1.bf16.msra.mxu0 0
      %360 = vmatprep.subr.bf16.mxu0 0
      %361 = vmatpush1.bf16.msra.mxu0 0
      %362 = vmatprep.subr.bf16.mxu0 0
      %363 = vmatpush1.bf16.msra.mxu0 0
      %364 = vmatprep.subr.bf16.mxu0 0
      %365 = vmatpush1.bf16.msra.mxu0 0
      %366 = vmatprep.subr.bf16.mxu0 0
      %367 = vmatpush1.bf16.msra.mxu0 0
      %368 = vmatprep.subr.bf16.mxu0 0
      %369 = vmatpush1.bf16.msra.mxu0 0
      %370 = vmatprep.subr.bf16.mxu0 0
      %371 = vmatpush1.bf16.msra.mxu0 0
      %372 = vmatprep.subr.bf16.mxu0 0
      %373 = vmatpush1.bf16.msra.mxu0 0
      %374 = vmatprep.mubr.bf16.mxu0 0
      %375 = vmatmul.mubr.bf16.gmra.mrb[0].mxu0 %v328
      %v376 = vpop.f32.mrb[0].mxu0
      %v377 = vadd.f32 0.0, %v376
      %v378 = vpop.f32.mrb[0].mxu0
      %v379 = vpop.f32.mrb[0].mxu0
      %v380 = vadd.f32 0.0, %v379
      %v381 = vpop.f32.mrb[0].mxu0
      %382 = vmatprep.mubr.bf16.mxu0 0
      %383 = vmatmul.mubr.bf16.gmra.mrb[0].mxu0 %v331
      %v384 = vpop.f32.mrb[0].mxu0
      %v385 = vadd.f32 0.0, %v384
      %v386 = vpop.f32.mrb[0].mxu0
      %v387 = vpop.f32.mrb[0].mxu0
      %v388 = vadd.f32 0.0, %v387
      %v389 = vpop.f32.mrb[0].mxu0
      %390 = vmatprep.mubr.bf16.mxu0 0
      %391 = vmatmul.mubr.bf16.gmra.mrb[0].mxu0 %v334
      %v392 = vpop.f32.mrb[0].mxu0
      %v393 = vadd.f32 0.0, %v392
      %v394 = vpop.f32.mrb[0].mxu0
      %v395 = vpop.f32.mrb[0].mxu0
      %v396 = vadd.f32 0.0, %v395
      %v397 = vpop.f32.mrb[0].mxu0
      %398 = vmatprep.mubr.bf16.mxu0 0
      %399 = vmatmul.mubr.bf16.gmra.mrb[0].mxu0 %v337
      %v400 = vpop.f32.mrb[0].mxu0
      %v401 = vadd.f32 0.0, %v400
      %v402 = vpop.f32.mrb[0].mxu0
      %v403 = vpop.f32.mrb[0].mxu0
      %v404 = vadd.f32 0.0, %v403
      %v405 = vpop.f32.mrb[0].mxu0
      %406 = vmatprep.mubr.bf16.mxu0 0
      %407 = vmatmul.mubr.bf16.gmra.mrb[0].mxu0 %v340
      %v408 = vpop.f32.mrb[0].mxu0
      %v409 = vadd.f32 0.0, %v408
      %v410 = vpop.f32.mrb[0].mxu0
      %v411 = vpop.f32.mrb[0].mxu0
      %v412 = vpop.f32.mrb[0].mxu0
      %413 = vdwg.mxu0
      %v416 = vunpack.c.l.b16 %v252
      %v417 = vunpack.c.l.b16 %v253
      %v418 = vpack.c.b16 %v417, %v416
      %v420 = vsel %vm326, %v275, 0
      %v422 = vsel %vm326, %v276, 0
      %v424 = vsel %vm326, %v277, 0
      %v426 = vsel %vm326, %v278, 0
      %v428 = vsel %vm326, %v279, 0
      %430 = vmatprep.subr.bf16.mxu0 0
      %431 = vmatpush1.bf16.msra.mxu0 %v418
      %432 = vmatprep.subr.bf16.mxu0 0
      %433 = vmatpush1.bf16.msra.mxu0 0
      %434 = vmatprep.subr.bf16.mxu0 0
      %435 = vmatpush1.bf16.msra.mxu0 0
      %436 = vmatprep.subr.bf16.mxu0 0
      %437 = vmatpush1.bf16.msra.mxu0 0
      %438 = vmatprep.subr.bf16.mxu0 0
      %439 = vmatpush1.bf16.msra.mxu0 0
      %440 = vmatprep.subr.bf16.mxu0 0
      %441 = vmatpush1.bf16.msra.mxu0 0
      %442 = vmatprep.subr.bf16.mxu0 0
      %443 = vmatpush1.bf16.msra.mxu0 0
      %444 = vmatprep.subr.bf16.mxu0 0
      %445 = vmatpush1.bf16.msra.mxu0 0
      %446 = vmatprep.subr.bf16.mxu0 0
      %447 = vmatpush1.bf16.msra.mxu0 0
      %448 = vmatprep.subr.bf16.mxu0 0
      %449 = vmatpush1.bf16.msra.mxu0 0
      %450 = vmatprep.subr.bf16.mxu0 0
      %451 = vmatpush1.bf16.msra.mxu0 0
      %452 = vmatprep.subr.bf16.mxu0 0
      %453 = vmatpush1.bf16.msra.mxu0 0
      %454 = vmatprep.subr.bf16.mxu0 0
      %455 = vmatpush1.bf16.msra.mxu0 0
      %456 = vmatprep.subr.bf16.mxu0 0
      %457 = vmatpush1.bf16.msra.mxu0 0
      %458 = vmatprep.subr.bf16.mxu0 0
      %459 = vmatpush1.bf16.msra.mxu0 0
      %460 = vmatprep.subr.bf16.mxu0 0
      %461 = vmatpush1.bf16.msra.mxu0 0
      %462 = vmatprep.mubr.bf16.mxu0 0
      %463 = vmatmul.mubr.bf16.gmra.mrb[0].mxu0 %v420
      %v464 = vpop.f32.mrb[0].mxu0
      %v465 = vadd.f32 %v377, %v464
      %v466 = vpop.f32.mrb[0].mxu0
      %v467 = vpop.f32.mrb[0].mxu0
      %v468 = vadd.f32 %v380, %v467
      %v469 = vpop.f32.mrb[0].mxu0
      %470 = vmatprep.mubr.bf16.mxu0 0
      %471 = vmatmul.mubr.bf16.gmra.mrb[0].mxu0 %v422
      %v472 = vpop.f32.mrb[0].mxu0
      %v473 = vadd.f32 %v385, %v472
      %v474 = vpop.f32.mrb[0].mxu0
      %v475 = vpop.f32.mrb[0].mxu0
      %v476 = vadd.f32 %v388, %v475
      %v477 = vpop.f32.mrb[0].mxu0
      %478 = vmatprep.mubr.bf16.mxu0 0
      %479 = vmatmul.mubr.bf16.gmra.mrb[0].mxu0 %v424
      %v480 = vpop.f32.mrb[0].mxu0
      %v481 = vadd.f32 %v393, %v480
      %v482 = vpop.f32.mrb[0].mxu0
      %v483 = vpop.f32.mrb[0].mxu0
      %v484 = vadd.f32 %v396, %v483
      %v485 = vpop.f32.mrb[0].mxu0
      %486 = vmatprep.mubr.bf16.mxu0 0
      %487 = vmatmul.mubr.bf16.gmra.mrb[0].mxu0 %v426
      %v488 = vpop.f32.mrb[0].mxu0
      %v489 = vadd.f32 %v401, %v488
      %v490 = vpop.f32.mrb[0].mxu0
      %v491 = vpop.f32.mrb[0].mxu0
      %v492 = vadd.f32 %v404, %v491
      %v493 = vpop.f32.mrb[0].mxu0
      %494 = vmatprep.mubr.bf16.mxu0 0
      %495 = vmatmul.mubr.bf16.gmra.mrb[0].mxu0 %v428
      %v496 = vpop.f32.mrb[0].mxu0
      %v497 = vadd.f32 %v409, %v496
      %v498 = vpop.f32.mrb[0].mxu0
      %v499 = vpop.f32.mrb[0].mxu0
      %v500 = vpop.f32.mrb[0].mxu0
      %501 = vdwg.mxu0
      %s502 = scalar_lea.vmem %s2, 16
      %v503 = vld [vmem:[%s502] sm:$0xf]
      %v504 = vld [vmem:[%s502 + $0x4] sm:$0xf]
      %v506 = vunpack.c.l.b16 %v250
      %v507 = vpack.c.b16 %v268, %v267
      %v508 = vpack.c.b16 %v270, %v269
      %v509 = vpack.c.b16 %v272, %v271
      %v510 = vpack.c.b16 %v274, %v273
      %v511 = vpack.c.b16 %v506, %v506
      %v513 = vshrl.u32 %v507, 16
      %v515 = vshll.u32 %v507, 16
      %v517 = vrot.slane %v515, 1
      %v518 = vor.u32 %v513, %v517
      %v520 = vshll.u32 %v508, 16
      %v522 = vrot.slane %v520, 1
      %v523 = vsel %vm280, %v518, %v522
      %v524 = vshrl.u32 %v508, 16
      %v526 = vor.u32 %v524, %v522
      %v528 = vshll.u32 %v509, 16
      %v530 = vrot.slane %v528, 1
      %v531 = vsel %vm280, %v526, %v530
      %v532 = vshrl.u32 %v509, 16
      %v534 = vor.u32 %v532, %v530
      %v536 = vshll.u32 %v510, 16
      %v538 = vrot.slane %v536, 1
      %v539 = vsel %vm280, %v534, %v538
      %v540 = vshrl.u32 %v510, 16
      %v542 = vor.u32 %v540, %v538
      %v544 = vshll.u32 %v511, 16
      %v546 = vrot.slane %v544, 1
      %v547 = vsel %vm280, %v542, %v546
      %v548 = vshrl.u32 %v511, 16
      %v550 = vor.u32 %v548, %v546
      %v553 = vunpack.c.l.b16 %v503
      %v554 = vunpack.c.l.b16 %v504
      %v555 = vpack.c.b16 %v554, %v553
      %v558 = vsel %vm326, %v523, 0
      %v561 = vsel %vm326, %v531, 0
      %v564 = vsel %vm326, %v539, 0
      %v567 = vsel %vm326, %v547, 0
      %v570 = vsel %vm326, %v550, 0
      %572 = vmatprep.subr.bf16.mxu0 0
      %573 = vmatpush1.bf16.msra.mxu0 %v555
      %574 = vmatprep.subr.bf16.mxu0 0
      %575 = vmatpush1.bf16.msra.mxu0 0
      %576 = vmatprep.subr.bf16.mxu0 0
      %577 = vmatpush1.bf16.msra.mxu0 0
      %578 = vmatprep.subr.bf16.mxu0 0
      %579 = vmatpush1.bf16.msra.mxu0 0
      %580 = vmatprep.subr.bf16.mxu0 0
      %581 = vmatpush1.bf16.msra.mxu0 0
      %582 = vmatprep.subr.bf16.mxu0 0
      %583 = vmatpush1.bf16.msra.mxu0 0
      %584 = vmatprep.subr.bf16.mxu0 0
      %585 = vmatpush1.bf16.msra.mxu0 0
      %586 = vmatprep.subr.bf16.mxu0 0
      %587 = vmatpush1.bf16.msra.mxu0 0
      %588 = vmatprep.subr.bf16.mxu0 0
      %589 = vmatpush1.bf16.msra.mxu0 0
      %590 = vmatprep.subr.bf16.mxu0 0
      %591 = vmatpush1.bf16.msra.mxu0 0
      %592 = vmatprep.subr.bf16.mxu0 0
      %593 = vmatpush1.bf16.msra.mxu0 0
      %594 = vmatprep.subr.bf16.mxu0 0
      %595 = vmatpush1.bf16.msra.mxu0 0
      %596 = vmatprep.subr.bf16.mxu0 0
      %597 = vmatpush1.bf16.msra.mxu0 0
      %598 = vmatprep.subr.bf16.mxu0 0
      %599 = vmatpush1.bf16.msra.mxu0 0
      %600 = vmatprep.subr.bf16.mxu0 0
      %601 = vmatpush1.bf16.msra.mxu0 0
      %602 = vmatprep.subr.bf16.mxu0 0
      %603 = vmatpush1.bf16.msra.mxu0 0
      %604 = vmatprep.mubr.bf16.mxu0 0
      %605 = vmatmul.mubr.bf16.gmra.mrb[0].mxu0 %v558
      %v606 = vpop.f32.mrb[0].mxu0
      %v607 = vadd.f32 0.0, %v606
      %v608 = vpop.f32.mrb[0].mxu0
      %v609 = vpop.f32.mrb[0].mxu0
      %v610 = vadd.f32 0.0, %v609
      %v611 = vpop.f32.mrb[0].mxu0
      %612 = vmatprep.mubr.bf16.mxu0 0
      %613 = vmatmul.mubr.bf16.gmra.mrb[0].mxu0 %v561
      %v614 = vpop.f32.mrb[0].mxu0
      %v615 = vadd.f32 0.0, %v614
      %v616 = vpop.f32.mrb[0].mxu0
      %v617 = vpop.f32.mrb[0].mxu0
      %v618 = vadd.f32 0.0, %v617
      %v619 = vpop.f32.mrb[0].mxu0
      %620 = vmatprep.mubr.bf16.mxu0 0
      %621 = vmatmul.mubr.bf16.gmra.mrb[0].mxu0 %v564
      %v622 = vpop.f32.mrb[0].mxu0
      %v623 = vadd.f32 0.0, %v622
      %v624 = vpop.f32.mrb[0].mxu0
      %v625 = vpop.f32.mrb[0].mxu0
      %v626 = vadd.f32 0.0, %v625
      %v627 = vpop.f32.mrb[0].mxu0
      %628 = vmatprep.mubr.bf16.mxu0 0
      %629 = vmatmul.mubr.bf16.gmra.mrb[0].mxu0 %v567
      %v630 = vpop.f32.mrb[0].mxu0
      %v631 = vadd.f32 0.0, %v630
      %v632 = vpop.f32.mrb[0].mxu0
      %v633 = vpop.f32.mrb[0].mxu0
      %v634 = vadd.f32 0.0, %v633
      %v635 = vpop.f32.mrb[0].mxu0
      %636 = vmatprep.mubr.bf16.mxu0 0
      %637 = vmatmul.mubr.bf16.gmra.mrb[0].mxu0 %v570
      %v638 = vpop.f32.mrb[0].mxu0
      %v639 = vadd.f32 0.0, %v638
      %v640 = vpop.f32.mrb[0].mxu0
      %v641 = vpop.f32.mrb[0].mxu0
      %v642 = vpop.f32.mrb[0].mxu0
      %643 = vdwg.mxu0
      %v644 = vadd.f32 %v465, %v607
      %v645 = vadd.f32 %v468, %v610
      %v646 = vadd.f32 %v473, %v615
      %v647 = vadd.f32 %v476, %v618
      %v648 = vadd.f32 %v481, %v623
      %v649 = vadd.f32 %v484, %v626
      %v650 = vadd.f32 %v489, %v631
      %v651 = vadd.f32 %v492, %v634
      %v652 = vadd.f32 %v497, %v639
      %s653 = scalar_lea.vmem %s2, 24
      %v654 = vld [vmem:[%s653] sm:$0xf]
      %v655 = vld [vmem:[%s653 + $0x4] sm:$0xf]
      %v657 = vunpack.c.l.b16 %v251
      %v658 = vpack.c.b16 %v657, %v506
      %vm659 = vcmask 1046528
      %v660 = vrot.slane %v507, 1
      %v661 = vrot.slane %v508, 1
      %v662 = vsel %vm659, %v660, %v661
      %v663 = vrot.slane %v509, 1
      %v664 = vsel %vm659, %v661, %v663
      %v665 = vrot.slane %v510, 1
      %v666 = vsel %vm659, %v663, %v665
      %v667 = vrot.slane %v658, 1
      %v668 = vsel %vm659, %v665, %v667
      %v671 = vunpack.c.l.b16 %v654
      %v672 = vunpack.c.l.b16 %v655
      %v673 = vpack.c.b16 %v672, %v671
      %v676 = vsel %vm326, %v662, 0
      %v679 = vsel %vm326, %v664, 0
      %v682 = vsel %vm326, %v666, 0
      %v685 = vsel %vm326, %v668, 0
      %v688 = vsel %vm326, %v667, 0
      %690 = vmatprep.subr.bf16.mxu0 0
      %691 = vmatpush1.bf16.msra.mxu0 %v673
      %692 = vmatprep.subr.bf16.mxu0 0
      %693 = vmatpush1.bf16.msra.mxu0 0
      %694 = vmatprep.subr.bf16.mxu0 0
      %695 = vmatpush1.bf16.msra.mxu0 0
      %696 = vmatprep.subr.bf16.mxu0 0
      %697 = vmatpush1.bf16.msra.mxu0 0
      %698 = vmatprep.subr.bf16.mxu0 0
      %699 = vmatpush1.bf16.msra.mxu0 0
      %700 = vmatprep.subr.bf16.mxu0 0
      %701 = vmatpush1.bf16.msra.mxu0 0
      %702 = vmatprep.subr.bf16.mxu0 0
      %703 = vmatpush1.bf16.msra.mxu0 0
      %704 = vmatprep.subr.bf16.mxu0 0
      %705 = vmatpush1.bf16.msra.mxu0 0
      %706 = vmatprep.subr.bf16.mxu0 0
      %707 = vmatpush1.bf16.msra.mxu0 0
      %708 = vmatprep.subr.bf16.mxu0 0
      %709 = vmatpush1.bf16.msra.mxu0 0
      %710 = vmatprep.subr.bf16.mxu0 0
      %711 = vmatpush1.bf16.msra.mxu0 0
      %712 = vmatprep.subr.bf16.mxu0 0
      %713 = vmatpush1.bf16.msra.mxu0 0
      %714 = vmatprep.subr.bf16.mxu0 0
      %715 = vmatpush1.bf16.msra.mxu0 0
      %716 = vmatprep.subr.bf16.mxu0 0
      %717 = vmatpush1.bf16.msra.mxu0 0
      %718 = vmatprep.subr.bf16.mxu0 0
      %719 = vmatpush1.bf16.msra.mxu0 0
      %720 = vmatprep.subr.bf16.mxu0 0
      %721 = vmatpush1.bf16.msra.mxu0 0
      %722 = vmatprep.mubr.bf16.mxu0 0
      %723 = vmatmul.mubr.bf16.gmra.mrb[0].mxu0 %v676
      %v724 = vpop.f32.mrb[0].mxu0
      %v725 = vadd.f32 0.0, %v724
      %v726 = vpop.f32.mrb[0].mxu0
      %v727 = vpop.f32.mrb[0].mxu0
      %v728 = vadd.f32 0.0, %v727
      %v729 = vpop.f32.mrb[0].mxu0
      %730 = vmatprep.mubr.bf16.mxu0 0
      %731 = vmatmul.mubr.bf16.gmra.mrb[0].mxu0 %v679
      %v732 = vpop.f32.mrb[0].mxu0
      %v733 = vadd.f32 0.0, %v732
      %v734 = vpop.f32.mrb[0].mxu0
      %v735 = vpop.f32.mrb[0].mxu0
      %v736 = vadd.f32 0.0, %v735
      %v737 = vpop.f32.mrb[0].mxu0
      %738 = vmatprep.mubr.bf16.mxu0 0
      %739 = vmatmul.mubr.bf16.gmra.mrb[0].mxu0 %v682
      %v740 = vpop.f32.mrb[0].mxu0
      %v741 = vadd.f32 0.0, %v740
      %v742 = vpop.f32.mrb[0].mxu0
      %v743 = vpop.f32.mrb[0].mxu0
      %v744 = vadd.f32 0.0, %v743
      %v745 = vpop.f32.mrb[0].mxu0
      %746 = vmatprep.mubr.bf16.mxu0 0
      %747 = vmatmul.mubr.bf16.gmra.mrb[0].mxu0 %v685
      %v748 = vpop.f32.mrb[0].mxu0
      %v749 = vadd.f32 0.0, %v748
      %v750 = vpop.f32.mrb[0].mxu0
      %v751 = vpop.f32.mrb[0].mxu0
      %v752 = vadd.f32 0.0, %v751
      %v753 = vpop.f32.mrb[0].mxu0
      %754 = vmatprep.mubr.bf16.mxu0 0
      %755 = vmatmul.mubr.bf16.gmra.mrb[0].mxu0 %v688
      %v756 = vpop.f32.mrb[0].mxu0
      %v757 = vadd.f32 0.0, %v756
      %v758 = vpop.f32.mrb[0].mxu0
      %v759 = vpop.f32.mrb[0].mxu0
      %v760 = vpop.f32.mrb[0].mxu0
      %761 = vdwg.mxu0
      %v762 = vadd.f32 %v644, %v725
      %v763 = vadd.f32 %v645, %v728
      %v764 = vadd.f32 %v646, %v733
      %v765 = vadd.f32 %v647, %v736
      %v766 = vadd.f32 %v648, %v741
      %v767 = vadd.f32 %v649, %v744
      %v768 = vadd.f32 %v650, %v749
      %v769 = vadd.f32 %v651, %v752
      %v770 = vadd.f32 %v652, %v757
      %v771 = vld [vmem:[%s3] sm:$0x1]
      %v773 = vlaneseq
      %v774 = vshrl.u32 %v773, 7
      %v775 = vsub.s32 0, %v774
      %v776 = vrot.slane %v771, %v775
      %v778 = vadd.f32 %v762, %v776
      %v779 = vadd.f32 %v763, %v776
      %v780 = vadd.f32 %v764, %v776
      %v781 = vadd.f32 %v765, %v776
      %v782 = vadd.f32 %v766, %v776
      %v783 = vadd.f32 %v767, %v776
      %v784 = vadd.f32 %v768, %v776
      %v785 = vadd.f32 %v769, %v776
      %v786 = vadd.f32 %v770, %v776
      %v787 = vpack.c.bf16 %v779, %v778
      %v788 = vpack.c.bf16 %v781, %v780
      %v789 = vpack.c.bf16 %v783, %v782
      %v790 = vpack.c.bf16 %v785, %v784
      %v791 = vpack.c.bf16 %v786, %v786
      %v797 = vunpack.c.l.b16 %v787
      %v798 = vunpack.c.h.b16 %v787
      %v799 = vunpack.c.l.b16 %v788
      %v800 = vunpack.c.h.b16 %v788
      %v801 = vunpack.c.l.b16 %v789
      %v802 = vunpack.c.h.b16 %v789
      %v803 = vunpack.c.l.b16 %v790
      %v804 = vunpack.c.h.b16 %v790
      %v805 = vunpack.c.l.b16 %v791
      %v806 = vpack.c.b16 %v797, %v797
      %v807 = vpack.c.b16 %v798, %v798
      %v808 = vpack.c.b16 %v799, %v799
      %v809 = vpack.c.b16 %v800, %v800
      %v810 = vpack.c.b16 %v801, %v801
      %v811 = vpack.c.b16 %v802, %v802
      %v812 = vpack.c.b16 %v803, %v803
      %v813 = vpack.c.b16 %v804, %v804
      %v814 = vpack.c.b16 %v805, %v805
      %vm824 = vcmask 257024
      %825 = vst.msk [vmem:[%s217] sm:$0xf] %vm824, %v806
      %826 = vst.msk [vmem:[%s217 + $0x4] sm:$0xf] %vm824, %v807
      %827 = vst.msk [vmem:[%s217 + $0x8] sm:$0xf] %vm824, %v808
      %828 = vst.msk [vmem:[%s217 + $0xc] sm:$0xf] %vm824, %v809
      %829 = vst.msk [vmem:[%s217 + $0x10] sm:$0xf] %vm824, %v810
      %830 = vst.msk [vmem:[%s217 + $0x14] sm:$0xf] %vm824, %v811
      %831 = vst.msk [vmem:[%s217 + $0x18] sm:$0xf] %vm824, %v812
      %832 = vst.msk [vmem:[%s217 + $0x1c] sm:$0xf] %vm824, %v813
      %vm833 = vcmask 257024
      %vm834 = vsmask.f32 3328
      %vm835 = vmand %vm833, %vm834
      %v836 = vld [vmem:[%s217 + $0x20] sm:$0xf]
      %v837 = vsel %vm835, %v814, %v836
      %838 = vst [vmem:[%s217 + $0x20] sm:$0xf] %v837
      %p839 = scmp.lt.s32.totalorder %s15, 7
      %s840 = scalar_select %p839, %s15, 7
      %s841 = smul.addr %s840, 9
      %s842 = smul.addr %s841, 4
      %s843 = scalar_lea.vmem %s4, %s842
      // Predicated region
      $region37: #{similarity_regnet_forward.10} parent=35 // pred_check
        %p844 = pneg %p127
      $region38: #{similarity_regnet_forward.10} parent=35 // pred_check_branch
        %846 = sbr.rel (%p844) target = $region40
      $region39: #{similarity_regnet_forward.10} parent=35 // pred_region
        _
      $region40: #{similarity_regnet_forward.10} parent=35 // pred_fallthru
        _
    $region36: #{similarity_regnet_forward.10} parent=5 // pred_fallthru
      _
    %p847 = scmp.le.s32.totalorder 2, %s10
    // Predicated region
    $region41: #{similarity_regnet_forward.10} parent=5 // pred_check
      %p848 = pneg %p847
    $region42: #{similarity_regnet_forward.10} parent=5 // pred_check_branch
      %850 = sbr.rel (%p848) target = $region44
    $region43: #{similarity_regnet_forward.10} parent=5 // pred_region
      %s851 = ssub.s32 %s10, 2
      // Predicated region
      $region45: #{similarity_regnet_forward.10} parent=43 // pred_check
        %p852 = pneg %p133
      $region46: #{similarity_regnet_forward.10} parent=43 // pred_check_branch
        %854 = sbr.rel (%p852) target = $region48
      $region47: #{similarity_regnet_forward.10} parent=43 // pred_region
        %p855 = scmp.lt.s32.totalorder %s16, 7
        %s856 = scalar_select %p855, %s16, 7
        %s857 = smul.addr %s856, 9
        %s858 = smul.addr %s857, 4
        %s859 = scalar_lea.vmem %s4, %s858
      $region48: #{similarity_regnet_forward.10} parent=43 // pred_fallthru
        _
    $region44: #{similarity_regnet_forward.10} parent=5 // pred_fallthru
      _
  $region6: #{similarity_regnet_forward.10} parent=0 // loop_footer
    %s14 = sadd.s32 1, %s10
  $region7: #{similarity_regnet_forward.10} parent=0 // loop_footer_branch
    %9 = sbr.rel target = $region3
  $region8: #{similarity_regnet_forward.10} parent=0 // loop_exit
    _

// kernel: similarity_regnet_forward.11
$region0: #{similarity_regnet_forward.11}
  #allocation0 [shape = 'u32[]', space=smem, size = 0x4, offset = 0x4, fixed_abs, tag = 'smem constant byte address 0x4 - core index']
  #allocation1 [shape = 'u32[144,128]{1,0:T(1,128)}', space=vmem, size = 0x12000, scoped, tag = 'internal scratch']
  #allocation2 [shape = 'f32[1,1]{1,0:T(1,128)S(1)}', space=vmem, size = 0x200, scoped, tag = 'scoped memory for similarity_regnet_forward.11']
  %s0 = inlined_call_operand.vmem [shape: bf16[8,18,18,8], index: 0, kind: input, shape index: {}]
  %s1 = inlined_call_operand.vmem [shape: bf16[8,18,18,8], index: 1, kind: input, shape index: {}]
  %s2 = inlined_call_operand.vmem [shape: f32[9,1,8], index: 2, kind: input, shape index: {}]
  %s3 = inlined_call_operand.<no memory space> [shape: f32[1,1], index: 3, kind: input, shape index: {}]
  %s4 = inlined_call_operand.hbm [shape: f32[8,16,16], index: 4, kind: output, shape index: {}]
  %s5 = sld [smem:[#allocation0]]
  $region49: #{similarity_regnet_forward.11} parent=0
    _
  %s7 = ssub.s32 1, %s5
  %s8 = scalar_select 0, %s7, %s5
  %v9 = vstv %s3
  %10 = vst [vmem:[#allocation2] sm:$0x1] %v9
  $region1: #{similarity_regnet_forward.11} parent=0
    #allocation3 [shape = 'u8[16384]{0}', space=vmem, size = 0x4000, scoped, tag = 'output window, operand 0']
    #allocation4 [shape = 's32[2]{0}', space=sflag, size = 0x8, scoped, tag = 'scoped memory for similarity_regnet_forward.11']
    %11 = vsyncpa [#allocation4], 0
    %s12 = scalar_lea.sflag [#allocation4], 1
    %13 = vsyncpa %s12, 0
    loop: start=0, step=1, limit=10
    $region2: #{similarity_regnet_forward.11} parent=1 // loop_pre_header
      _
    $region3: #{similarity_regnet_forward.11} parent=1 // loop_header
      %s15 = sphi 0, %s19
      %p16 = scmp.ge.s32.totalorder %s15, 10
      %s25 = sphi 0, %s27
      %s28 = sphi 0, %s25
      %s29 = sphi 0, %s28
      %s45 = sphi 0, %s29
      %s51 = sphi 0, %s53
      %s54 = sphi 0, %s51
      %s55 = sphi 0, %s54
      %s71 = sphi 0, %s55
      %s75 = sphi 0, %s75
      %s77 = sphi 0, %s75
      %s78 = sphi 0, %s77
      %s92 = sphi 0, %s78
      %s96 = sphi 0, %s96
      %s98 = sphi 0, %s96
      %s99 = sphi 0, %s98
      %s113 = sphi 0, %s99
      %s119 = sphi 0, %s121
      %s122 = sphi 0, %s119
      %s123 = sphi 0, %s122
      %s139 = sphi 0, %s123
    $region4: #{similarity_regnet_forward.11} parent=1 // loop_header_branch
      %18 = sbr.rel (%p16) target = $region8
    $region5: #{similarity_regnet_forward.11} parent=1 // loop_body
      %s20 = ssub.s32 %s15, 1
      %s21 = ssub.s32 %s15, 2
      %s22 = sadd.s32 %s15, 1
      %s23 = ssub.s32 %s15, %s22
      %p24 = scmp.eq.s32.totalorder %s23, 0
      %s26 = sadd.s32 %s25, 1
      %s27 = scalar_select %p24, %s25, %s26
      %p30 = pneg %p24
      %p31 = scmp.eq.s32.totalorder %s15, 7
      %p32 = por %p30, %p31
      %p33 = scmp.ne.s32.totalorder %s25, %s28
      %p34 = scmp.eq.s32.totalorder %s15, 0
      %p35 = por %p33, %p34
      %p36 = scmp.ne.s32.totalorder %s25, %s28
      %p37 = scmp.eq.s32.totalorder %s20, 7
      %p38 = por %p36, %p37
      %p39 = scmp.ne.s32.totalorder %s28, %s29
      %p40 = scmp.eq.s32.totalorder %s20, 0
      %p41 = por %p39, %p40
      %p42 = scmp.ne.s32.totalorder %s28, %s29
      %p43 = scmp.eq.s32.totalorder %s21, 7
      %p44 = por %p42, %p43
      %p46 = scmp.ne.s32.totalorder %s29, %s45
      %p47 = scmp.eq.s32.totalorder %s21, 0
      %p48 = por %p46, %p47
      %s49 = ssub.s32 %s15, %s22
      %p50 = scmp.eq.s32.totalorder %s49, 0
      %s52 = sadd.s32 %s51, 1
      %s53 = scalar_select %p50, %s51, %s52
      %p56 = pneg %p50
      %p57 = scmp.eq.s32.totalorder %s15, 7
      %p58 = por %p56, %p57
      %p59 = scmp.ne.s32.totalorder %s51, %s54
      %p60 = scmp.eq.s32.totalorder %s15, 0
      %p61 = por %p59, %p60
      %p62 = scmp.ne.s32.totalorder %s51, %s54
      %p63 = scmp.eq.s32.totalorder %s20, 7
      %p64 = por %p62, %p63
      %p65 = scmp.ne.s32.totalorder %s54, %s55
      %p66 = scmp.eq.s32.totalorder %s20, 0
      %p67 = por %p65, %p66
      %p68 = scmp.ne.s32.totalorder %s54, %s55
      %p69 = scmp.eq.s32.totalorder %s21, 7
      %p70 = por %p68, %p69
      %p72 = scmp.ne.s32.totalorder %s55, %s71
      %p73 = scmp.eq.s32.totalorder %s21, 0
      %p74 = por %p72, %p73
      %s76 = sadd.s32 %s75, 1
      %p79 = scmp.eq.s32.totalorder %s15, 7
      %p80 = scmp.ne.s32.totalorder %s75, %s77
      %p81 = scmp.eq.s32.totalorder %s15, 0
      %p82 = por %p80, %p81
      %p83 = scmp.ne.s32.totalorder %s75, %s77
      %p84 = scmp.eq.s32.totalorder %s20, 7
      %p85 = por %p83, %p84
      %p86 = scmp.ne.s32.totalorder %s77, %s78
      %p87 = scmp.eq.s32.totalorder %s20, 0
      %p88 = por %p86, %p87
      %p89 = scmp.ne.s32.totalorder %s77, %s78
      %p90 = scmp.eq.s32.totalorder %s21, 7
      %p91 = por %p89, %p90
      %p93 = scmp.ne.s32.totalorder %s78, %s92
      %p94 = scmp.eq.s32.totalorder %s21, 0
      %p95 = por %p93, %p94
      %s97 = sadd.s32 %s96, 1
      %p100 = scmp.eq.s32.totalorder %s15, 7
      %p101 = scmp.ne.s32.totalorder %s96, %s98
      %p102 = scmp.eq.s32.totalorder %s15, 0
      %p103 = por %p101, %p102
      %p104 = scmp.ne.s32.totalorder %s96, %s98
      %p105 = scmp.eq.s32.totalorder %s20, 7
      %p106 = por %p104, %p105
      %p107 = scmp.ne.s32.totalorder %s98, %s99
      %p108 = scmp.eq.s32.totalorder %s20, 0
      %p109 = por %p107, %p108
      %p110 = scmp.ne.s32.totalorder %s98, %s99
      %p111 = scmp.eq.s32.totalorder %s21, 7
      %p112 = por %p110, %p111
      %p114 = scmp.ne.s32.totalorder %s99, %s113
      %p115 = scmp.eq.s32.totalorder %s21, 0
      %p116 = por %p114, %p115
      %s117 = ssub.s32 %s15, %s22
      %p118 = scmp.eq.s32.totalorder %s117, 0
      %s120 = sadd.s32 %s119, 1
      %s121 = scalar_select %p118, %s119, %s120
      %p124 = pneg %p118
      %p125 = scmp.eq.s32.totalorder %s15, 7
      %p126 = por %p124, %p125
      %p127 = scmp.ne.s32.totalorder %s119, %s122
      %p128 = scmp.eq.s32.totalorder %s15, 0
      %p129 = por %p127, %p128
      %p130 = scmp.ne.s32.totalorder %s119, %s122
      %p131 = scmp.eq.s32.totalorder %s20, 7
      %p132 = por %p130, %p131
      %p133 = scmp.ne.s32.totalorder %s122, %s123
      %p134 = scmp.eq.s32.totalorder %s20, 0
      %p135 = por %p133, %p134
      %p136 = scmp.ne.s32.totalorder %s122, %s123
      %p137 = scmp.eq.s32.totalorder %s21, 7
      %p138 = por %p136, %p137
      %p140 = scmp.ne.s32.totalorder %s123, %s139
      %p141 = scmp.eq.s32.totalorder %s21, 0
      %p142 = por %p140, %p141
      %p143 = scmp.le.s32.totalorder 1, %s15
      %p144 = scmp.lt.s32.totalorder %s15, 9
      %p145 = pnand %p143, %p144
      %p146 = pneg %p145
      // Predicated region
      $region9: #{similarity_regnet_forward.11} parent=5 // pred_check
        _
      $region10: #{similarity_regnet_forward.11} parent=5 // pred_check_branch
        %148 = sbr.rel (%p145) target = $region12
      $region11: #{similarity_regnet_forward.11} parent=5 // pred_region
        %s149 = ssub.s32 %s15, 1
        // Predicated region
        $region13: #{similarity_regnet_forward.11} parent=11 // pred_check
          %p150 = pneg %p88
        $region14: #{similarity_regnet_forward.11} parent=11 // pred_check_branch
          %152 = sbr.rel (%p150) target = $region16
        $region15: #{similarity_regnet_forward.11} parent=11 // pred_region
          _
        $region16: #{similarity_regnet_forward.11} parent=11 // pred_fallthru
          _
        // Predicated region
        $region17: #{similarity_regnet_forward.11} parent=11 // pred_check
          %p153 = pneg %p109
        $region18: #{similarity_regnet_forward.11} parent=11 // pred_check_branch
          %155 = sbr.rel (%p153) target = $region20
        $region19: #{similarity_regnet_forward.11} parent=11 // pred_region
          _
        $region20: #{similarity_regnet_forward.11} parent=11 // pred_fallthru
          _
      $region12: #{similarity_regnet_forward.11} parent=5 // pred_fallthru
        _
      %p156 = scmp.lt.s32.totalorder %s15, 8
      // Predicated region
      $region21: #{similarity_regnet_forward.11} parent=5 // pred_check
        %p157 = pneg %p156
      $region22: #{similarity_regnet_forward.11} parent=5 // pred_check_branch
        %159 = sbr.rel (%p157) target = $region24
      $region23: #{similarity_regnet_forward.11} parent=5 // pred_region
        // Predicated region
        $region25: #{similarity_regnet_forward.11} parent=23 // pred_check
          %p160 = pneg %p35
        $region26: #{similarity_regnet_forward.11} parent=23 // pred_check_branch
          %162 = sbr.rel (%p160) target = $region28
        $region27: #{similarity_regnet_forward.11} parent=23 // pred_region
          %p163 = scmp.lt.s32.totalorder %s15, 7
          %s164 = scalar_select %p163, %s15, 7
          %s165 = smul.addr %s164, 54
          %s166 = smul.addr %s165, 4
          %s167 = scalar_lea.vmem %s0, %s166
        $region28: #{similarity_regnet_forward.11} parent=23 // pred_fallthru
          _
        // Predicated region
        $region29: #{similarity_regnet_forward.11} parent=23 // pred_check
          %p168 = pneg %p61
        $region30: #{similarity_regnet_forward.11} parent=23 // pred_check_branch
          %170 = sbr.rel (%p168) target = $region32
        $region31: #{similarity_regnet_forward.11} parent=23 // pred_region
          %p171 = scmp.lt.s32.totalorder %s15, 7
          %s172 = scalar_select %p171, %s15, 7
          %s173 = smul.addr %s172, 54
          %s174 = smul.addr %s173, 4
          %s175 = scalar_lea.vmem %s1, %s174
        $region32: #{similarity_regnet_forward.11} parent=23 // pred_fallthru
          _
      $region24: #{similarity_regnet_forward.11} parent=5 // pred_fallthru
        _
      %p176 = scmp.le.s32.totalorder 1, %s15
      %p177 = scmp.lt.s32.totalorder %s15, 9
      %p178 = pnand %p176, %p177
      %p179 = pneg %p178
      // Predicated region
      $region33: #{similarity_regnet_forward.11} parent=5 // pred_check
        _
      $region34: #{similarity_regnet_forward.11} parent=5 // pred_check_branch
        %181 = sbr.rel (%p178) target = $region36
      $region35: #{similarity_regnet_forward.11} parent=5 // pred_region
        %s182 = ssub.s32 %s15, 1
        %p183 = scmp.lt.s32.totalorder %s20, 7
        %s184 = scalar_select %p183, %s20, 7
        %s185 = smul.addr %s184, 54
        %s186 = smul.addr %s185, 4
        %s187 = scalar_lea.vmem %s0, %s186
        %p188 = pneg %p41
        %p189 = pneg %p38
        %p190 = scmp.lt.s32.totalorder %s20, 7
        %s191 = scalar_select %p190, %s20, 7
        %s192 = smul.addr %s191, 54
        %s193 = smul.addr %s192, 4
        %s194 = scalar_lea.vmem %s1, %s193
        %p195 = pneg %p67
        %p196 = pneg %p64
        %p197 = pneg %p88
        %p198 = pneg %p85
        %p199 = pneg %p109
        %p200 = pneg %p106
        %p201 = pneg %p135
        %p202 = pneg %p132
        %s203 = sand.u32 %s122, 1
        %s204 = scalar_lea.sflag [#allocation4], %s203
        %s205 = sand.u32 %s122, 1
        %s206 = smul.addr %s205, 16
        %s207 = scalar_lea.vmem [#allocation3], %s206
        %p208 = scmp.lt.s32.totalorder %s20, 7
        %s209 = scalar_select %p208, %s20, 7
        %s210 = smul.addr %s209, 54
        %s211 = smul.addr %s210, 4
        %s212 = scalar_lea.vmem %s0, %s211
        %p213 = scmp.lt.s32.totalorder %s20, 7
        %s214 = scalar_select %p213, %s20, 7
        %s215 = smul.addr %s214, 54
        %s216 = smul.addr %s215, 4
        %s217 = scalar_lea.vmem %s1, %s216
        %v218 = vld [vmem:[%s212] sm:$0xf]
        %v219 = vld [vmem:[%s212 + $0x4] sm:$0xf]
        %v220 = vld [vmem:[%s212 + $0x8] sm:$0x1]
        %v221 = vld [vmem:[%s212 + $0xc] sm:$0xf]
        %v222 = vld [vmem:[%s212 + $0x10] sm:$0xf]
        %v223 = vld [vmem:[%s212 + $0x14] sm:$0x1]
        %v224 = vld [vmem:[%s212 + $0x18] sm:$0xf]
        %v225 = vld [vmem:[%s212 + $0x1c] sm:$0xf]
        %v226 = vld [vmem:[%s212 + $0x20] sm:$0x1]
        %v227 = vld [vmem:[%s212 + $0x24] sm:$0xf]
        %v228 = vld [vmem:[%s212 + $0x28] sm:$0xf]
        %v229 = vld [vmem:[%s212 + $0x2c] sm:$0x1]
        %v230 = vld [vmem:[%s212 + $0x30] sm:$0xf]
        %v231 = vld [vmem:[%s212 + $0x34] sm:$0xf]
        %v232 = vld [vmem:[%s212 + $0x38] sm:$0x1]
        %v233 = vld [vmem:[%s212 + $0x3c] sm:$0xf]
        %v234 = vld [vmem:[%s212 + $0x40] sm:$0xf]
        %v235 = vld [vmem:[%s212 + $0x44] sm:$0x1]
        %v236 = vld [vmem:[%s212 + $0x48] sm:$0xf]
        %v237 = vld [vmem:[%s212 + $0x4c] sm:$0xf]
        %v238 = vld [vmem:[%s212 + $0x50] sm:$0x1]
        %v239 = vld [vmem:[%s212 + $0x54] sm:$0xf]
        %v240 = vld [vmem:[%s212 + $0x58] sm:$0xf]
        %v241 = vld [vmem:[%s212 + $0x5c] sm:$0x1]
        %v242 = vld [vmem:[%s212 + $0x60] sm:$0xf]
        %v243 = vld [vmem:[%s212 + $0x64] sm:$0xf]
        %v244 = vld [vmem:[%s212 + $0x68] sm:$0x1]
        %v245 = vld [vmem:[%s212 + $0x6c] sm:$0xf]
        %v246 = vld [vmem:[%s212 + $0x70] sm:$0xf]
        %v247 = vld [vmem:[%s212 + $0x74] sm:$0x1]
        %v248 = vld [vmem:[%s212 + $0x78] sm:$0xf]
        %v249 = vld [vmem:[%s212 + $0x7c] sm:$0xf]
        %v250 = vld [vmem:[%s212 + $0x80] sm:$0x1]
        %v251 = vld [vmem:[%s212 + $0x84] sm:$0xf]
        %v252 = vld [vmem:[%s212 + $0x88] sm:$0xf]
        %v253 = vld [vmem:[%s212 + $0x8c] sm:$0x1]
        %v254 = vld [vmem:[%s212 + $0x90] sm:$0xf]
        %v255 = vld [vmem:[%s212 + $0x94] sm:$0xf]
        %v256 = vld [vmem:[%s212 + $0x98] sm:$0x1]
        %v257 = vld [vmem:[%s212 + $0x9c] sm:$0xf]
        %v258 = vld [vmem:[%s212 + $0xa0] sm:$0xf]
        %v259 = vld [vmem:[%s212 + $0xa4] sm:$0x1]
        %v260 = vld [vmem:[%s212 + $0xa8] sm:$0xf]
        %v261 = vld [vmem:[%s212 + $0xac] sm:$0xf]
        %v262 = vld [vmem:[%s212 + $0xb0] sm:$0x1]
        %v263 = vld [vmem:[%s212 + $0xb4] sm:$0xf]
        %v264 = vld [vmem:[%s212 + $0xb8] sm:$0xf]
        %v265 = vld [vmem:[%s212 + $0xbc] sm:$0x1]
        %v266 = vld [vmem:[%s212 + $0xc0] sm:$0xf]
        %v267 = vld [vmem:[%s212 + $0xc4] sm:$0xf]
        %v268 = vld [vmem:[%s212 + $0xc8] sm:$0x1]
        %v269 = vld [vmem:[%s212 + $0xcc] sm:$0xf]
        %v270 = vld [vmem:[%s212 + $0xd0] sm:$0xf]
        %v271 = vld [vmem:[%s212 + $0xd4] sm:$0x1]
        %v272 = vunpack.c.l.bf16 %v218
        %v273 = vunpack.c.l.bf16 %v219
        %v274 = vunpack.c.l.bf16 %v220
        %v275 = vunpack.c.l.bf16 %v221
        %v276 = vunpack.c.l.bf16 %v222
        %v277 = vunpack.c.l.bf16 %v223
        %v278 = vunpack.c.l.bf16 %v224
        %v279 = vunpack.c.l.bf16 %v225
        %v280 = vunpack.c.l.bf16 %v226
        %v281 = vunpack.c.l.bf16 %v227
        %v282 = vunpack.c.l.bf16 %v228
        %v283 = vunpack.c.l.bf16 %v229
        %v284 = vunpack.c.l.bf16 %v230
        %v285 = vunpack.c.l.bf16 %v231
        %v286 = vunpack.c.l.bf16 %v232
        %v287 = vunpack.c.l.bf16 %v233
        %v288 = vunpack.c.l.bf16 %v234
        %v289 = vunpack.c.l.bf16 %v235
        %v290 = vunpack.c.l.bf16 %v236
        %v291 = vunpack.c.l.bf16 %v237
        %v292 = vunpack.c.l.bf16 %v238
        %v293 = vunpack.c.l.bf16 %v239
        %v294 = vunpack.c.l.bf16 %v240
        %v295 = vunpack.c.l.bf16 %v241
        %v296 = vunpack.c.l.bf16 %v242
        %v297 = vunpack.c.l.bf16 %v243
        %v298 = vunpack.c.l.bf16 %v244
        %v299 = vunpack.c.l.bf16 %v245
        %v300 = vunpack.c.l.bf16 %v246
        %v301 = vunpack.c.l.bf16 %v247
        %v302 = vunpack.c.l.bf16 %v248
        %v303 = vunpack.c.l.bf16 %v249
        %v304 = vunpack.c.l.bf16 %v250
        %v305 = vunpack.c.l.bf16 %v251
        %v306 = vunpack.c.l.bf16 %v252
        %v307 = vunpack.c.l.bf16 %v253
        %v308 = vunpack.c.l.bf16 %v254
        %v309 = vunpack.c.l.bf16 %v255
        %v310 = vunpack.c.l.bf16 %v256
        %v311 = vunpack.c.l.bf16 %v257
        %v312 = vunpack.c.l.bf16 %v258
        %v313 = vunpack.c.l.bf16 %v259
        %v314 = vunpack.c.l.bf16 %v260
        %v315 = vunpack.c.l.bf16 %v261
        %v316 = vunpack.c.l.bf16 %v262
        %v317 = vunpack.c.l.bf16 %v263
        %v318 = vunpack.c.l.bf16 %v264
        %v319 = vunpack.c.l.bf16 %v265
        %v320 = vunpack.c.l.bf16 %v266
        %v321 = vunpack.c.l.bf16 %v267
        %v322 = vunpack.c.l.bf16 %v268
        %v323 = vunpack.c.l.bf16 %v269
        %v324 = vunpack.c.l.bf16 %v270
        %v325 = vunpack.c.l.bf16 %v271
        %v326 = vld [vmem:[%s217] sm:$0xf]
        %v327 = vld [vmem:[%s217 + $0x4] sm:$0xf]
        %v328 = vld [vmem:[%s217 + $0x8] sm:$0x1]
        %v329 = vld [vmem:[%s217 + $0xc] sm:$0xf]
        %v330 = vld [vmem:[%s217 + $0x10] sm:$0xf]
        %v331 = vld [vmem:[%s217 + $0x14] sm:$0x1]
        %v332 = vld [vmem:[%s217 + $0x18] sm:$0xf]
        %v333 = vld [vmem:[%s217 + $0x1c] sm:$0xf]
        %v334 = vld [vmem:[%s217 + $0x20] sm:$0x1]
        %v335 = vld [vmem:[%s217 + $0x24] sm:$0xf]
        %v336 = vld [vmem:[%s217 + $0x28] sm:$0xf]
        %v337 = vld [vmem:[%s217 + $0x2c] sm:$0x1]
        %v338 = vld [vmem:[%s217 + $0x30] sm:$0xf]
        %v339 = vld [vmem:[%s217 + $0x34] sm:$0xf]
        %v340 = vld [vmem:[%s217 + $0x38] sm:$0x1]
        %v341 = vld [vmem:[%s217 + $0x3c] sm:$0xf]
        %v342 = vld [vmem:[%s217 + $0x40] sm:$0xf]
        %v343 = vld [vmem:[%s217 + $0x44] sm:$0x1]
        %v344 = vld [vmem:[%s217 + $0x48] sm:$0xf]
        %v345 = vld [vmem:[%s217 + $0x4c] sm:$0xf]
        %v346 = vld [vmem:[%s217 + $0x50] sm:$0x1]
        %v347 = vld [vmem:[%s217 + $0x54] sm:$0xf]
        %v348 = vld [vmem:[%s217 + $0x58] sm:$0xf]
        %v349 = vld [vmem:[%s217 + $0x5c] sm:$0x1]
        %v350 = vld [vmem:[%s217 + $0x60] sm:$0xf]
        %v351 = vld [vmem:[%s217 + $0x64] sm:$0xf]
        %v352 = vld [vmem:[%s217 + $0x68] sm:$0x1]
        %v353 = vld [vmem:[%s217 + $0x6c] sm:$0xf]
        %v354 = vld [vmem:[%s217 + $0x70] sm:$0xf]
        %v355 = vld [vmem:[%s217 + $0x74] sm:$0x1]
        %v356 = vld [vmem:[%s217 + $0x78] sm:$0xf]
        %v357 = vld [vmem:[%s217 + $0x7c] sm:$0xf]
        %v358 = vld [vmem:[%s217 + $0x80] sm:$0x1]
        %v359 = vld [vmem:[%s217 + $0x84] sm:$0xf]
        %v360 = vld [vmem:[%s217 + $0x88] sm:$0xf]
        %v361 = vld [vmem:[%s217 + $0x8c] sm:$0x1]
        %v362 = vld [vmem:[%s217 + $0x90] sm:$0xf]
        %v363 = vld [vmem:[%s217 + $0x94] sm:$0xf]
        %v364 = vld [vmem:[%s217 + $0x98] sm:$0x1]
        %v365 = vld [vmem:[%s217 + $0x9c] sm:$0xf]
        %v366 = vld [vmem:[%s217 + $0xa0] sm:$0xf]
        %v367 = vld [vmem:[%s217 + $0xa4] sm:$0x1]
        %v368 = vld [vmem:[%s217 + $0xa8] sm:$0xf]
        %v369 = vld [vmem:[%s217 + $0xac] sm:$0xf]
        %v370 = vld [vmem:[%s217 + $0xb0] sm:$0x1]
        %v371 = vld [vmem:[%s217 + $0xb4] sm:$0xf]
        %v372 = vld [vmem:[%s217 + $0xb8] sm:$0xf]
        %v373 = vld [vmem:[%s217 + $0xbc] sm:$0x1]
        %v374 = vld [vmem:[%s217 + $0xc0] sm:$0xf]
        %v375 = vld [vmem:[%s217 + $0xc4] sm:$0xf]
        %v376 = vld [vmem:[%s217 + $0xc8] sm:$0x1]
        %v377 = vld [vmem:[%s217 + $0xcc] sm:$0xf]
        %v378 = vld [vmem:[%s217 + $0xd0] sm:$0xf]
        %v379 = vld [vmem:[%s217 + $0xd4] sm:$0x1]
        %v380 = vunpack.c.l.bf16 %v326
        %v381 = vunpack.c.l.bf16 %v327
        %v382 = vunpack.c.l.bf16 %v328
        %v383 = vunpack.c.l.bf16 %v329
        %v384 = vunpack.c.l.bf16 %v330
        %v385 = vunpack.c.l.bf16 %v331
        %v386 = vunpack.c.l.bf16 %v332
        %v387 = vunpack.c.l.bf16 %v333
        %v388 = vunpack.c.l.bf16 %v334
        %v389 = vunpack.c.l.bf16 %v335
        %v390 = vunpack.c.l.bf16 %v336
        %v391 = vunpack.c.l.bf16 %v337
        %v392 = vunpack.c.l.bf16 %v338
        %v393 = vunpack.c.l.bf16 %v339
        %v394 = vunpack.c.l.bf16 %v340
        %v395 = vunpack.c.l.bf16 %v341
        %v396 = vunpack.c.l.bf16 %v342
        %v397 = vunpack.c.l.bf16 %v343
        %v398 = vunpack.c.l.bf16 %v344
        %v399 = vunpack.c.l.bf16 %v345
        %v400 = vunpack.c.l.bf16 %v346
        %v401 = vunpack.c.l.bf16 %v347
        %v402 = vunpack.c.l.bf16 %v348
        %v403 = vunpack.c.l.bf16 %v349
        %v404 = vunpack.c.l.bf16 %v350
        %v405 = vunpack.c.l.bf16 %v351
        %v406 = vunpack.c.l.bf16 %v352
        %v407 = vunpack.c.l.bf16 %v353
        %v408 = vunpack.c.l.bf16 %v354
        %v409 = vunpack.c.l.bf16 %v355
        %v410 = vunpack.c.l.bf16 %v356
        %v411 = vunpack.c.l.bf16 %v357
        %v412 = vunpack.c.l.bf16 %v358
        %v413 = vunpack.c.l.bf16 %v359
        %v414 = vunpack.c.l.bf16 %v360
        %v415 = vunpack.c.l.bf16 %v361
        %v416 = vunpack.c.l.bf16 %v362
        %v417 = vunpack.c.l.bf16 %v363
        %v418 = vunpack.c.l.bf16 %v364
        %v419 = vunpack.c.l.bf16 %v365
        %v420 = vunpack.c.l.bf16 %v366
        %v421 = vunpack.c.l.bf16 %v367
        %v422 = vunpack.c.l.bf16 %v368
        %v423 = vunpack.c.l.bf16 %v369
        %v424 = vunpack.c.l.bf16 %v370
        %v425 = vunpack.c.l.bf16 %v371
        %v426 = vunpack.c.l.bf16 %v372
        %v427 = vunpack.c.l.bf16 %v373
        %v428 = vunpack.c.l.bf16 %v374
        %v429 = vunpack.c.l.bf16 %v375
        %v430 = vunpack.c.l.bf16 %v376
        %v431 = vunpack.c.l.bf16 %v377
        %v432 = vunpack.c.l.bf16 %v378
        %v433 = vunpack.c.l.bf16 %v379
        %v434 = vadd.f32 %v272, %v380
        %v435 = vadd.f32 %v273, %v381
        %v436 = vadd.f32 %v274, %v382
        %v437 = vadd.f32 %v275, %v383
        %v438 = vadd.f32 %v276, %v384
        %v439 = vadd.f32 %v277, %v385
        %v440 = vadd.f32 %v278, %v386
        %v441 = vadd.f32 %v279, %v387
        %v442 = vadd.f32 %v280, %v388
        %v443 = vadd.f32 %v281, %v389
        %v444 = vadd.f32 %v282, %v390
        %v445 = vadd.f32 %v283, %v391
        %v446 = vadd.f32 %v284, %v392
        %v447 = vadd.f32 %v285, %v393
        %v448 = vadd.f32 %v286, %v394
        %v449 = vadd.f32 %v287, %v395
        %v450 = vadd.f32 %v288, %v396
        %v451 = vadd.f32 %v289, %v397
        %v452 = vadd.f32 %v290, %v398
        %v453 = vadd.f32 %v291, %v399
        %v454 = vadd.f32 %v292, %v400
        %v455 = vadd.f32 %v293, %v401
        %v456 = vadd.f32 %v294, %v402
        %v457 = vadd.f32 %v295, %v403
        %v458 = vadd.f32 %v296, %v404
        %v459 = vadd.f32 %v297, %v405
        %v460 = vadd.f32 %v298, %v406
        %v461 = vadd.f32 %v299, %v407
        %v462 = vadd.f32 %v300, %v408
        %v463 = vadd.f32 %v301, %v409
        %v464 = vadd.f32 %v302, %v410
        %v465 = vadd.f32 %v303, %v411
        %v466 = vadd.f32 %v304, %v412
        %v467 = vadd.f32 %v305, %v413
        %v468 = vadd.f32 %v306, %v414
        %v469 = vadd.f32 %v307, %v415
        %v470 = vadd.f32 %v308, %v416
        %v471 = vadd.f32 %v309, %v417
        %v472 = vadd.f32 %v310, %v418
        %v473 = vadd.f32 %v311, %v419
        %v474 = vadd.f32 %v312, %v420
        %v475 = vadd.f32 %v313, %v421
        %v476 = vadd.f32 %v314, %v422
        %v477 = vadd.f32 %v315, %v423
        %v478 = vadd.f32 %v316, %v424
        %v479 = vadd.f32 %v317, %v425
        %v480 = vadd.f32 %v318, %v426
        %v481 = vadd.f32 %v319, %v427
        %v482 = vadd.f32 %v320, %v428
        %v483 = vadd.f32 %v321, %v429
        %v484 = vadd.f32 %v322, %v430
        %v485 = vadd.f32 %v323, %v431
        %v486 = vadd.f32 %v324, %v432
        %v487 = vadd.f32 %v325, %v433
        %v488 = vld [vmem:[%s2] sm:$0x1]
        %v490 = vlaneseq
        %v491 = vshrl.u32 %v490, 7
        %v492 = vsub.s32 0, %v491
        %v493 = vrot.slane %v488, %v492
        %v495 = vmul.f32 %v434, %v493
        %v496 = vmul.f32 %v435, %v493
        %v497 = vmul.f32 %v437, %v493
        %v498 = vmul.f32 %v438, %v493
        %v499 = vmul.f32 %v440, %v493
        %v500 = vmul.f32 %v441, %v493
        %v501 = vmul.f32 %v443, %v493
        %v502 = vmul.f32 %v444, %v493
        %v503 = vmul.f32 %v446, %v493
        %v504 = vmul.f32 %v447, %v493
        %v505 = vmul.f32 %v449, %v493
        %v506 = vmul.f32 %v450, %v493
        %v507 = vmul.f32 %v452, %v493
        %v508 = vmul.f32 %v453, %v493
        %v509 = vmul.f32 %v455, %v493
        %v510 = vmul.f32 %v456, %v493
        %v511 = vmul.f32 %v458, %v493
        %v512 = vmul.f32 %v459, %v493
        %v513 = vmul.f32 %v461, %v493
        %v514 = vmul.f32 %v462, %v493
        %v515 = vmul.f32 %v464, %v493
        %v516 = vmul.f32 %v465, %v493
        %v517 = vmul.f32 %v467, %v493
        %v518 = vmul.f32 %v468, %v493
        %v519 = vmul.f32 %v470, %v493
        %v520 = vmul.f32 %v471, %v493
        %v521 = vmul.f32 %v473, %v493
        %v522 = vmul.f32 %v474, %v493
        %v523 = vmul.f32 %v476, %v493
        %v524 = vmul.f32 %v477, %v493
        %v525 = vmul.f32 %v479, %v493
        %v526 = vmul.f32 %v480, %v493
        %vm527 = vcmask 64512
        %v528 = vsel %vm527, %v495, 0.0
        %529 = vadd.xlane.f32.xlu0 %v528
        %v530 = vpop.xlane.xlu0 %529
        %v531 = vsel %vm527, %v496, 0.0
        %532 = vadd.xlane.f32.xlu0 %v531
        %v533 = vpop.xlane.xlu0 %532
        %v534 = vsel %vm527, %v497, 0.0
        %535 = vadd.xlane.f32.xlu0 %v534
        %v536 = vpop.xlane.xlu0 %535
        %v537 = vsel %vm527, %v498, 0.0
        %538 = vadd.xlane.f32.xlu0 %v537
        %v539 = vpop.xlane.xlu0 %538
        %v540 = vsel %vm527, %v499, 0.0
        %541 = vadd.xlane.f32.xlu0 %v540
        %v542 = vpop.xlane.xlu0 %541
        %v543 = vsel %vm527, %v500, 0.0
        %544 = vadd.xlane.f32.xlu0 %v543
        %v545 = vpop.xlane.xlu0 %544
        %v546 = vsel %vm527, %v501, 0.0
        %547 = vadd.xlane.f32.xlu0 %v546
        %v548 = vpop.xlane.xlu0 %547
        %v549 = vsel %vm527, %v502, 0.0
        %550 = vadd.xlane.f32.xlu0 %v549
        %v551 = vpop.xlane.xlu0 %550
        %v552 = vsel %vm527, %v503, 0.0
        %553 = vadd.xlane.f32.xlu0 %v552
        %v554 = vpop.xlane.xlu0 %553
        %v555 = vsel %vm527, %v504, 0.0
        %556 = vadd.xlane.f32.xlu0 %v555
        %v557 = vpop.xlane.xlu0 %556
        %v558 = vsel %vm527, %v505, 0.0
        %559 = vadd.xlane.f32.xlu0 %v558
        %v560 = vpop.xlane.xlu0 %559
        %v561 = vsel %vm527, %v506, 0.0
        %562 = vadd.xlane.f32.xlu0 %v561
        %v563 = vpop.xlane.xlu0 %562
        %v564 = vsel %vm527, %v507, 0.0
        %565 = vadd.xlane.f32.xlu0 %v564
        %v566 = vpop.xlane.xlu0 %565
        %v567 = vsel %vm527, %v508, 0.0
        %568 = vadd.xlane.f32.xlu0 %v567
        %v569 = vpop.xlane.xlu0 %568
        %v570 = vsel %vm527, %v509, 0.0
        %571 = vadd.xlane.f32.xlu0 %v570
        %v572 = vpop.xlane.xlu0 %571
        %v573 = vsel %vm527, %v510, 0.0
        %574 = vadd.xlane.f32.xlu0 %v573
        %v575 = vpop.xlane.xlu0 %574
        %v576 = vsel %vm527, %v511, 0.0
        %577 = vadd.xlane.f32.xlu0 %v576
        %v578 = vpop.xlane.xlu0 %577
        %v579 = vsel %vm527, %v512, 0.0
        %580 = vadd.xlane.f32.xlu0 %v579
        %v581 = vpop.xlane.xlu0 %580
        %v582 = vsel %vm527, %v513, 0.0
        %583 = vadd.xlane.f32.xlu0 %v582
        %v584 = vpop.xlane.xlu0 %583
        %v585 = vsel %vm527, %v514, 0.0
        %586 = vadd.xlane.f32.xlu0 %v585
        %v587 = vpop.xlane.xlu0 %586
        %v588 = vsel %vm527, %v515, 0.0
        %589 = vadd.xlane.f32.xlu0 %v588
        %v590 = vpop.xlane.xlu0 %589
        %v591 = vsel %vm527, %v516, 0.0
        %592 = vadd.xlane.f32.xlu0 %v591
        %v593 = vpop.xlane.xlu0 %592
        %v594 = vsel %vm527, %v517, 0.0
        %595 = vadd.xlane.f32.xlu0 %v594
        %v596 = vpop.xlane.xlu0 %595
        %v597 = vsel %vm527, %v518, 0.0
        %598 = vadd.xlane.f32.xlu0 %v597
        %v599 = vpop.xlane.xlu0 %598
        %v600 = vsel %vm527, %v519, 0.0
        %601 = vadd.xlane.f32.xlu0 %v600
        %v602 = vpop.xlane.xlu0 %601
        %v603 = vsel %vm527, %v520, 0.0
        %604 = vadd.xlane.f32.xlu0 %v603
        %v605 = vpop.xlane.xlu0 %604
        %v606 = vsel %vm527, %v521, 0.0
        %607 = vadd.xlane.f32.xlu0 %v606
        %v608 = vpop.xlane.xlu0 %607
        %v609 = vsel %vm527, %v522, 0.0
        %610 = vadd.xlane.f32.xlu0 %v609
        %v611 = vpop.xlane.xlu0 %610
        %v612 = vsel %vm527, %v523, 0.0
        %613 = vadd.xlane.f32.xlu0 %v612
        %v614 = vpop.xlane.xlu0 %613
        %v615 = vsel %vm527, %v524, 0.0
        %616 = vadd.xlane.f32.xlu0 %v615
        %v617 = vpop.xlane.xlu0 %616
        %v618 = vsel %vm527, %v525, 0.0
        %619 = vadd.xlane.f32.xlu0 %v618
        %v620 = vpop.xlane.xlu0 %619
        %v621 = vsel %vm527, %v526, 0.0
        %622 = vadd.xlane.f32.xlu0 %v621
        %v623 = vpop.xlane.xlu0 %622
        %v624 = vadd.f32 %v530, 0.0
        %v625 = vadd.f32 %v533, 0.0
        %v626 = vadd.f32 %v536, 0.0
        %v627 = vadd.f32 %v539, 0.0
        %v628 = vadd.f32 %v542, 0.0
        %v629 = vadd.f32 %v545, 0.0
        %v630 = vadd.f32 %v548, 0.0
        %v631 = vadd.f32 %v551, 0.0
        %v632 = vadd.f32 %v554, 0.0
        %v633 = vadd.f32 %v557, 0.0
        %v634 = vadd.f32 %v560, 0.0
        %v635 = vadd.f32 %v563, 0.0
        %v636 = vadd.f32 %v566, 0.0
        %v637 = vadd.f32 %v569, 0.0
        %v638 = vadd.f32 %v572, 0.0
        %v639 = vadd.f32 %v575, 0.0
        %v640 = vadd.f32 %v578, 0.0
        %v641 = vadd.f32 %v581, 0.0
        %v642 = vadd.f32 %v584, 0.0
        %v643 = vadd.f32 %v587, 0.0
        %v644 = vadd.f32 %v590, 0.0
        %v645 = vadd.f32 %v593, 0.0
        %v646 = vadd.f32 %v596, 0.0
        %v647 = vadd.f32 %v599, 0.0
        %v648 = vadd.f32 %v602, 0.0
        %v649 = vadd.f32 %v605, 0.0
        %v650 = vadd.f32 %v608, 0.0
        %v651 = vadd.f32 %v611, 0.0
        %v652 = vadd.f32 %v614, 0.0
        %v653 = vadd.f32 %v617, 0.0
        %v654 = vadd.f32 %v620, 0.0
        %v655 = vadd.f32 %v623, 0.0
        %s656 = scalar_lea.vmem %s2, 1
        %v657 = vld [vmem:[%s656] sm:$0x1]
        %v659 = vlaneseq
        %v660 = vshrl.u32 %v659, 7
        %v661 = vsub.s32 0, %v660
        %v662 = vrot.slane %v657, %v661
        %v664 = vmul.f32 %v434, %v662
        %v665 = vmul.f32 %v435, %v662
        %v666 = vmul.f32 %v436, %v662
        %v667 = vmul.f32 %v437, %v662
        %v668 = vmul.f32 %v438, %v662
        %v669 = vmul.f32 %v439, %v662
        %v670 = vmul.f32 %v440, %v662
        %v671 = vmul.f32 %v441, %v662
        %v672 = vmul.f32 %v442, %v662
        %v673 = vmul.f32 %v443, %v662
        %v674 = vmul.f32 %v444, %v662
        %v675 = vmul.f32 %v445, %v662
        %v676 = vmul.f32 %v446, %v662
        %v677 = vmul.f32 %v447, %v662
        %v678 = vmul.f32 %v448, %v662
        %v679 = vmul.f32 %v449, %v662
        %v680 = vmul.f32 %v450, %v662
        %v681 = vmul.f32 %v451, %v662
        %v682 = vmul.f32 %v452, %v662
        %v683 = vmul.f32 %v453, %v662
        %v684 = vmul.f32 %v454, %v662
        %v685 = vmul.f32 %v455, %v662
        %v686 = vmul.f32 %v456, %v662
        %v687 = vmul.f32 %v457, %v662
        %v688 = vmul.f32 %v458, %v662
        %v689 = vmul.f32 %v459, %v662
        %v690 = vmul.f32 %v460, %v662
        %v691 = vmul.f32 %v461, %v662
        %v692 = vmul.f32 %v462, %v662
        %v693 = vmul.f32 %v463, %v662
        %v694 = vmul.f32 %v464, %v662
        %v695 = vmul.f32 %v465, %v662
        %v696 = vmul.f32 %v466, %v662
        %v697 = vmul.f32 %v467, %v662
        %v698 = vmul.f32 %v468, %v662
        %v699 = vmul.f32 %v469, %v662
        %v700 = vmul.f32 %v470, %v662
        %v701 = vmul.f32 %v471, %v662
        %v702 = vmul.f32 %v472, %v662
        %v703 = vmul.f32 %v473, %v662
        %v704 = vmul.f32 %v474, %v662
        %v705 = vmul.f32 %v475, %v662
        %v706 = vmul.f32 %v476, %v662
        %v707 = vmul.f32 %v477, %v662
        %v708 = vmul.f32 %v478, %v662
        %v709 = vmul.f32 %v479, %v662
        %v710 = vmul.f32 %v480, %v662
        %v711 = vmul.f32 %v481, %v662
        %vm712 = vcmask 64513
        %v713 = vsel %vm712, %v664, 0.0
        %714 = vadd.xlane.f32.xlu0 %v713
        %v715 = vpop.xlane.xlu0 %714
        %v716 = vsel %vm527, %v665, 0.0
        %717 = vadd.xlane.f32.xlu0 %v716
        %v718 = vpop.xlane.xlu0 %717
        %vm719 = vcmask 57344
        %v720 = vsel %vm719, %v666, 0.0
        %721 = vadd.xlane.f32.xlu0 %v720
        %v722 = vpop.xlane.xlu0 %721
        %v723 = vsel %vm712, %v667, 0.0
        %724 = vadd.xlane.f32.xlu0 %v723
        %v725 = vpop.xlane.xlu0 %724
        %v726 = vsel %vm527, %v668, 0.0
        %727 = vadd.xlane.f32.xlu0 %v726
        %v728 = vpop.xlane.xlu0 %727
        %v729 = vsel %vm719, %v669, 0.0
        %730 = vadd.xlane.f32.xlu0 %v729
        %v731 = vpop.xlane.xlu0 %730
        %v732 = vsel %vm712, %v670, 0.0
        %733 = vadd.xlane.f32.xlu0 %v732
        %v734 = vpop.xlane.xlu0 %733
        %v735 = vsel %vm527, %v671, 0.0
        %736 = vadd.xlane.f32.xlu0 %v735
        %v737 = vpop.xlane.xlu0 %736
        %v738 = vsel %vm719, %v672, 0.0
        %739 = vadd.xlane.f32.xlu0 %v738
        %v740 = vpop.xlane.xlu0 %739
        %v741 = vsel %vm712, %v673, 0.0
        %742 = vadd.xlane.f32.xlu0 %v741
        %v743 = vpop.xlane.xlu0 %742
        %v744 = vsel %vm527, %v674, 0.0
        %745 = vadd.xlane.f32.xlu0 %v744
        %v746 = vpop.xlane.xlu0 %745
        %v747 = vsel %vm719, %v675, 0.0
        %748 = vadd.xlane.f32.xlu0 %v747
        %v749 = vpop.xlane.xlu0 %748
        %v750 = vsel %vm712, %v676, 0.0
        %751 = vadd.xlane.f32.xlu0 %v750
        %v752 = vpop.xlane.xlu0 %751
        %v753 = vsel %vm527, %v677, 0.0
        %754 = vadd.xlane.f32.xlu0 %v753
        %v755 = vpop.xlane.xlu0 %754
        %v756 = vsel %vm719, %v678, 0.0
        %757 = vadd.xlane.f32.xlu0 %v756
        %v758 = vpop.xlane.xlu0 %757
        %v759 = vsel %vm712, %v679, 0.0
        %760 = vadd.xlane.f32.xlu0 %v759
        %v761 = vpop.xlane.xlu0 %760
        %v762 = vsel %vm527, %v680, 0.0
        %763 = vadd.xlane.f32.xlu0 %v762
        %v764 = vpop.xlane.xlu0 %763
        %v765 = vsel %vm719, %v681, 0.0
        %766 = vadd.xlane.f32.xlu0 %v765
        %v767 = vpop.xlane.xlu0 %766
        %v768 = vsel %vm712, %v682, 0.0
        %769 = vadd.xlane.f32.xlu0 %v768
        %v770 = vpop.xlane.xlu0 %769
        %v771 = vsel %vm527, %v683, 0.0
        %772 = vadd.xlane.f32.xlu0 %v771
        %v773 = vpop.xlane.xlu0 %772
        %v774 = vsel %vm719, %v684, 0.0
        %775 = vadd.xlane.f32.xlu0 %v774
        %v776 = vpop.xlane.xlu0 %775
        %v777 = vsel %vm712, %v685, 0.0
        %778 = vadd.xlane.f32.xlu0 %v777
        %v779 = vpop.xlane.xlu0 %778
        %v780 = vsel %vm527, %v686, 0.0
        %781 = vadd.xlane.f32.xlu0 %v780
        %v782 = vpop.xlane.xlu0 %781
        %v783 = vsel %vm719, %v687, 0.0
        %784 = vadd.xlane.f32.xlu0 %v783
        %v785 = vpop.xlane.xlu0 %784
        %v786 = vsel %vm712, %v688, 0.0
        %787 = vadd.xlane.f32.xlu0 %v786
        %v788 = vpop.xlane.xlu0 %787
        %v789 = vsel %vm527, %v689, 0.0
        %790 = vadd.xlane.f32.xlu0 %v789
        %v791 = vpop.xlane.xlu0 %790
        %v792 = vsel %vm719, %v690, 0.0
        %793 = vadd.xlane.f32.xlu0 %v792
        %v794 = vpop.xlane.xlu0 %793
        %v795 = vsel %vm712, %v691, 0.0
        %796 = vadd.xlane.f32.xlu0 %v795
        %v797 = vpop.xlane.xlu0 %796
        %v798 = vsel %vm527, %v692, 0.0
        %799 = vadd.xlane.f32.xlu0 %v798
        %v800 = vpop.xlane.xlu0 %799
        %v801 = vsel %vm719, %v693, 0.0
        %802 = vadd.xlane.f32.xlu0 %v801
        %v803 = vpop.xlane.xlu0 %802
        %v804 = vsel %vm712, %v694, 0.0
        %805 = vadd.xlane.f32.xlu0 %v804
        %v806 = vpop.xlane.xlu0 %805
        %v807 = vsel %vm527, %v695, 0.0
        %808 = vadd.xlane.f32.xlu0 %v807
        %v809 = vpop.xlane.xlu0 %808
        %v810 = vsel %vm719, %v696, 0.0
        %811 = vadd.xlane.f32.xlu0 %v810
        %v812 = vpop.xlane.xlu0 %811
        %v813 = vsel %vm712, %v697, 0.0
        %814 = vadd.xlane.f32.xlu0 %v813
        %v815 = vpop.xlane.xlu0 %814
        %v816 = vsel %vm527, %v698, 0.0
        %817 = vadd.xlane.f32.xlu0 %v816
        %v818 = vpop.xlane.xlu0 %817
        %v819 = vsel %vm719, %v699, 0.0
        %820 = vadd.xlane.f32.xlu0 %v819
        %v821 = vpop.xlane.xlu0 %820
        %v822 = vsel %vm712, %v700, 0.0
        %823 = vadd.xlane.f32.xlu0 %v822
        %v824 = vpop.xlane.xlu0 %823
        %v825 = vsel %vm527, %v701, 0.0
        %826 = vadd.xlane.f32.xlu0 %v825
        %v827 = vpop.xlane.xlu0 %826
        %v828 = vsel %vm719, %v702, 0.0
        %829 = vadd.xlane.f32.xlu0 %v828
        %v830 = vpop.xlane.xlu0 %829
        %v831 = vsel %vm712, %v703, 0.0
        %832 = vadd.xlane.f32.xlu0 %v831
        %v833 = vpop.xlane.xlu0 %832
        %v834 = vsel %vm527, %v704, 0.0
        %835 = vadd.xlane.f32.xlu0 %v834
        %v836 = vpop.xlane.xlu0 %835
        %v837 = vsel %vm719, %v705, 0.0
        %838 = vadd.xlane.f32.xlu0 %v837
        %v839 = vpop.xlane.xlu0 %838
        %v840 = vsel %vm712, %v706, 0.0
        %841 = vadd.xlane.f32.xlu0 %v840
        %v842 = vpop.xlane.xlu0 %841
        %v843 = vsel %vm527, %v707, 0.0
        %844 = vadd.xlane.f32.xlu0 %v843
        %v845 = vpop.xlane.xlu0 %844
        %v846 = vsel %vm719, %v708, 0.0
        %847 = vadd.xlane.f32.xlu0 %v846
        %v848 = vpop.xlane.xlu0 %847
        %v849 = vsel %vm712, %v709, 0.0
        %850 = vadd.xlane.f32.xlu0 %v849
        %v851 = vpop.xlane.xlu0 %850
        %v852 = vsel %vm527, %v710, 0.0
        %853 = vadd.xlane.f32.xlu0 %v852
        %v854 = vpop.xlane.xlu0 %853
        %v855 = vsel %vm719, %v711, 0.0
        %856 = vadd.xlane.f32.xlu0 %v855
        %v857 = vpop.xlane.xlu0 %856
        %vm906 = vcmask 1046528
        %v907 = vrot.slane %v715, 1
        %v908 = vrot.slane %v718, 1
        %v909 = vsel %vm906, %v907, %v908
        %v910 = vrot.slane %v722, 1
        %v911 = vsel %vm906, %v908, %v910
        %v912 = vrot.slane %v725, 1
        %v913 = vrot.slane %v728, 1
        %v914 = vsel %vm906, %v912, %v913
        %v915 = vrot.slane %v731, 1
        %v916 = vsel %vm906, %v913, %v915
        %v917 = vrot.slane %v734, 1
        %v918 = vrot.slane %v737, 1
        %v919 = vsel %vm906, %v917, %v918
        %v920 = vrot.slane %v740, 1
        %v921 = vsel %vm906, %v918, %v920
        %v922 = vrot.slane %v743, 1
        %v923 = vrot.slane %v746, 1
        %v924 = vsel %vm906, %v922, %v923
        %v925 = vrot.slane %v749, 1
        %v926 = vsel %vm906, %v923, %v925
        %v927 = vrot.slane %v752, 1
        %v928 = vrot.slane %v755, 1
        %v929 = vsel %vm906, %v927, %v928
        %v930 = vrot.slane %v758, 1
        %v931 = vsel %vm906, %v928, %v930
        %v932 = vrot.slane %v761, 1
        %v933 = vrot.slane %v764, 1
        %v934 = vsel %vm906, %v932, %v933
        %v935 = vrot.slane %v767, 1
        %v936 = vsel %vm906, %v933, %v935
        %v937 = vrot.slane %v770, 1
        %v938 = vrot.slane %v773, 1
        %v939 = vsel %vm906, %v937, %v938
        %v940 = vrot.slane %v776, 1
        %v941 = vsel %vm906, %v938, %v940
        %v942 = vrot.slane %v779, 1
        %v943 = vrot.slane %v782, 1
        %v944 = vsel %vm906, %v942, %v943
        %v945 = vrot.slane %v785, 1
        %v946 = vsel %vm906, %v943, %v945
        %v947 = vrot.slane %v788, 1
        %v948 = vrot.slane %v791, 1
        %v949 = vsel %vm906, %v947, %v948
        %v950 = vrot.slane %v794, 1
        %v951 = vsel %vm906, %v948, %v950
        %v952 = vrot.slane %v797, 1
        %v953 = vrot.slane %v800, 1
        %v954 = vsel %vm906, %v952, %v953
        %v955 = vrot.slane %v803, 1
        %v956 = vsel %vm906, %v953, %v955
        %v957 = vrot.slane %v806, 1
        %v958 = vrot.slane %v809, 1
        %v959 = vsel %vm906, %v957, %v958
        %v960 = vrot.slane %v812, 1
        %v961 = vsel %vm906, %v958, %v960
        %v962 = vrot.slane %v815, 1
        %v963 = vrot.slane %v818, 1
        %v964 = vsel %vm906, %v962, %v963
        %v965 = vrot.slane %v821, 1
        %v966 = vsel %vm906, %v963, %v965
        %v967 = vrot.slane %v824, 1
        %v968 = vrot.slane %v827, 1
        %v969 = vsel %vm906, %v967, %v968
        %v970 = vrot.slane %v830, 1
        %v971 = vsel %vm906, %v968, %v970
        %v972 = vrot.slane %v833, 1
        %v973 = vrot.slane %v836, 1
        %v974 = vsel %vm906, %v972, %v973
        %v975 = vrot.slane %v839, 1
        %v976 = vsel %vm906, %v973, %v975
        %v977 = vrot.slane %v842, 1
        %v978 = vrot.slane %v845, 1
        %v979 = vsel %vm906, %v977, %v978
        %v980 = vrot.slane %v848, 1
        %v981 = vsel %vm906, %v978, %v980
        %v982 = vrot.slane %v851, 1
        %v983 = vrot.slane %v854, 1
        %v984 = vsel %vm906, %v982, %v983
        %v985 = vrot.slane %v857, 1
        %v986 = vsel %vm906, %v983, %v985
        %v1019 = vadd.f32 %v624, %v909
        %v1020 = vadd.f32 %v625, %v911
        %v1021 = vadd.f32 %v626, %v914
        %v1022 = vadd.f32 %v627, %v916
        %v1023 = vadd.f32 %v628, %v919
        %v1024 = vadd.f32 %v629, %v921
        %v1025 = vadd.f32 %v630, %v924
        %v1026 = vadd.f32 %v631, %v926
        %v1027 = vadd.f32 %v632, %v929
        %v1028 = vadd.f32 %v633, %v931
        %v1029 = vadd.f32 %v634, %v934
        %v1030 = vadd.f32 %v635, %v936
        %v1031 = vadd.f32 %v636, %v939
        %v1032 = vadd.f32 %v637, %v941
        %v1033 = vadd.f32 %v638, %v944
        %v1034 = vadd.f32 %v639, %v946
        %v1035 = vadd.f32 %v640, %v949
        %v1036 = vadd.f32 %v641, %v951
        %v1037 = vadd.f32 %v642, %v954
        %v1038 = vadd.f32 %v643, %v956
        %v1039 = vadd.f32 %v644, %v959
        %v1040 = vadd.f32 %v645, %v961
        %v1041 = vadd.f32 %v646, %v964
        %v1042 = vadd.f32 %v647, %v966
        %v1043 = vadd.f32 %v648, %v969
        %v1044 = vadd.f32 %v649, %v971
        %v1045 = vadd.f32 %v650, %v974
        %v1046 = vadd.f32 %v651, %v976
        %v1047 = vadd.f32 %v652, %v979
        %v1048 = vadd.f32 %v653, %v981
        %v1049 = vadd.f32 %v654, %v984
        %v1050 = vadd.f32 %v655, %v986
        %s1051 = scalar_lea.vmem %s2, 2
        %v1052 = vld [vmem:[%s1051] sm:$0x1]
        %v1054 = vlaneseq
        %v1055 = vshrl.u32 %v1054, 7
        %v1056 = vsub.s32 0, %v1055
        %v1057 = vrot.slane %v1052, %v1056
        %v1059 = vmul.f32 %v434, %v1057
        %v1060 = vmul.f32 %v435, %v1057
        %v1061 = vmul.f32 %v436, %v1057
        %v1062 = vmul.f32 %v437, %v1057
        %v1063 = vmul.f32 %v438, %v1057
        %v1064 = vmul.f32 %v439, %v1057
        %v1065 = vmul.f32 %v440, %v1057
        %v1066 = vmul.f32 %v441, %v1057
        %v1067 = vmul.f32 %v442, %v1057
        %v1068 = vmul.f32 %v443, %v1057
        %v1069 = vmul.f32 %v444, %v1057
        %v1070 = vmul.f32 %v445, %v1057
        %v1071 = vmul.f32 %v446, %v1057
        %v1072 = vmul.f32 %v447, %v1057
        %v1073 = vmul.f32 %v448, %v1057
        %v1074 = vmul.f32 %v449, %v1057
        %v1075 = vmul.f32 %v450, %v1057
        %v1076 = vmul.f32 %v451, %v1057
        %v1077 = vmul.f32 %v452, %v1057
        %v1078 = vmul.f32 %v453, %v1057
        %v1079 = vmul.f32 %v454, %v1057
        %v1080 = vmul.f32 %v455, %v1057
        %v1081 = vmul.f32 %v456, %v1057
        %v1082 = vmul.f32 %v457, %v1057
        %v1083 = vmul.f32 %v458, %v1057
        %v1084 = vmul.f32 %v459, %v1057
        %v1085 = vmul.f32 %v460, %v1057
        %v1086 = vmul.f32 %v461, %v1057
        %v1087 = vmul.f32 %v462, %v1057
        %v1088 = vmul.f32 %v463, %v1057
        %v1089 = vmul.f32 %v464, %v1057
        %v1090 = vmul.f32 %v465, %v1057
        %v1091 = vmul.f32 %v466, %v1057
        %v1092 = vmul.f32 %v467, %v1057
        %v1093 = vmul.f32 %v468, %v1057
        %v1094 = vmul.f32 %v469, %v1057
        %v1095 = vmul.f32 %v470, %v1057
        %v1096 = vmul.f32 %v471, %v1057
        %v1097 = vmul.f32 %v472, %v1057
        %v1098 = vmul.f32 %v473, %v1057
        %v1099 = vmul.f32 %v474, %v1057
        %v1100 = vmul.f32 %v475, %v1057
        %v1101 = vmul.f32 %v476, %v1057
        %v1102 = vmul.f32 %v477, %v1057
        %v1103 = vmul.f32 %v478, %v1057
        %v1104 = vmul.f32 %v479, %v1057
        %v1105 = vmul.f32 %v480, %v1057
        %v1106 = vmul.f32 %v481, %v1057
        %vm1107 = vcmask 64514
        %v1108 = vsel %vm1107, %v1059, 0.0
        %1109 = vadd.xlane.f32.xlu0 %v1108
        %v1110 = vpop.xlane.xlu0 %1109
        %v1111 = vsel %vm527, %v1060, 0.0
        %1112 = vadd.xlane.f32.xlu0 %v1111
        %v1113 = vpop.xlane.xlu0 %1112
        %vm1114 = vcmask 58368
        %v1115 = vsel %vm1114, %v1061, 0.0
        %1116 = vadd.xlane.f32.xlu0 %v1115
        %v1117 = vpop.xlane.xlu0 %1116
        %v1118 = vsel %vm1107, %v1062, 0.0
        %1119 = vadd.xlane.f32.xlu0 %v1118
        %v1120 = vpop.xlane.xlu0 %1119
        %v1121 = vsel %vm527, %v1063, 0.0
        %1122 = vadd.xlane.f32.xlu0 %v1121
        %v1123 = vpop.xlane.xlu0 %1122
        %v1124 = vsel %vm1114, %v1064, 0.0
        %1125 = vadd.xlane.f32.xlu0 %v1124
        %v1126 = vpop.xlane.xlu0 %1125
        %v1127 = vsel %vm1107, %v1065, 0.0
        %1128 = vadd.xlane.f32.xlu0 %v1127
        %v1129 = vpop.xlane.xlu0 %1128
        %v1130 = vsel %vm527, %v1066, 0.0
        %1131 = vadd.xlane.f32.xlu0 %v1130
        %v1132 = vpop.xlane.xlu0 %1131
        %v1133 = vsel %vm1114, %v1067, 0.0
        %1134 = vadd.xlane.f32.xlu0 %v1133
        %v1135 = vpop.xlane.xlu0 %1134
        %v1136 = vsel %vm1107, %v1068, 0.0
        %1137 = vadd.xlane.f32.xlu0 %v1136
        %v1138 = vpop.xlane.xlu0 %1137
        %v1139 = vsel %vm527, %v1069, 0.0
        %1140 = vadd.xlane.f32.xlu0 %v1139
        %v1141 = vpop.xlane.xlu0 %1140
        %v1142 = vsel %vm1114, %v1070, 0.0
        %1143 = vadd.xlane.f32.xlu0 %v1142
        %v1144 = vpop.xlane.xlu0 %1143
        %v1145 = vsel %vm1107, %v1071, 0.0
        %1146 = vadd.xlane.f32.xlu0 %v1145
        %v1147 = vpop.xlane.xlu0 %1146
        %v1148 = vsel %vm527, %v1072, 0.0
        %1149 = vadd.xlane.f32.xlu0 %v1148
        %v1150 = vpop.xlane.xlu0 %1149
        %v1151 = vsel %vm1114, %v1073, 0.0
        %1152 = vadd.xlane.f32.xlu0 %v1151
        %v1153 = vpop.xlane.xlu0 %1152
        %v1154 = vsel %vm1107, %v1074, 0.0
        %1155 = vadd.xlane.f32.xlu0 %v1154
        %v1156 = vpop.xlane.xlu0 %1155
        %v1157 = vsel %vm527, %v1075, 0.0
        %1158 = vadd.xlane.f32.xlu0 %v1157
        %v1159 = vpop.xlane.xlu0 %1158
        %v1160 = vsel %vm1114, %v1076, 0.0
        %1161 = vadd.xlane.f32.xlu0 %v1160
        %v1162 = vpop.xlane.xlu0 %1161
        %v1163 = vsel %vm1107, %v1077, 0.0
        %1164 = vadd.xlane.f32.xlu0 %v1163
        %v1165 = vpop.xlane.xlu0 %1164
        %v1166 = vsel %vm527, %v1078, 0.0
        %1167 = vadd.xlane.f32.xlu0 %v1166
        %v1168 = vpop.xlane.xlu0 %1167
        %v1169 = vsel %vm1114, %v1079, 0.0
        %1170 = vadd.xlane.f32.xlu0 %v1169
        %v1171 = vpop.xlane.xlu0 %1170
        %v1172 = vsel %vm1107, %v1080, 0.0
        %1173 = vadd.xlane.f32.xlu0 %v1172
        %v1174 = vpop.xlane.xlu0 %1173
        %v1175 = vsel %vm527, %v1081, 0.0
        %1176 = vadd.xlane.f32.xlu0 %v1175
        %v1177 = vpop.xlane.xlu0 %1176
        %v1178 = vsel %vm1114, %v1082, 0.0
        %1179 = vadd.xlane.f32.xlu0 %v1178
        %v1180 = vpop.xlane.xlu0 %1179
        %v1181 = vsel %vm1107, %v1083, 0.0
        %1182 = vadd.xlane.f32.xlu0 %v1181
        %v1183 = vpop.xlane.xlu0 %1182
        %v1184 = vsel %vm527, %v1084, 0.0
        %1185 = vadd.xlane.f32.xlu0 %v1184
        %v1186 = vpop.xlane.xlu0 %1185
        %v1187 = vsel %vm1114, %v1085, 0.0
        %1188 = vadd.xlane.f32.xlu0 %v1187
        %v1189 = vpop.xlane.xlu0 %1188
        %v1190 = vsel %vm1107, %v1086, 0.0
        %1191 = vadd.xlane.f32.xlu0 %v1190
        %v1192 = vpop.xlane.xlu0 %1191
        %v1193 = vsel %vm527, %v1087, 0.0
        %1194 = vadd.xlane.f32.xlu0 %v1193
        %v1195 = vpop.xlane.xlu0 %1194
        %v1196 = vsel %vm1114, %v1088, 0.0
        %1197 = vadd.xlane.f32.xlu0 %v1196
        %v1198 = vpop.xlane.xlu0 %1197
        %v1199 = vsel %vm1107, %v1089, 0.0
        %1200 = vadd.xlane.f32.xlu0 %v1199
        %v1201 = vpop.xlane.xlu0 %1200
        %v1202 = vsel %vm527, %v1090, 0.0
        %1203 = vadd.xlane.f32.xlu0 %v1202
        %v1204 = vpop.xlane.xlu0 %1203
        %v1205 = vsel %vm1114, %v1091, 0.0
        %1206 = vadd.xlane.f32.xlu0 %v1205
        %v1207 = vpop.xlane.xlu0 %1206
        %v1208 = vsel %vm1107, %v1092, 0.0
        %1209 = vadd.xlane.f32.xlu0 %v1208
        %v1210 = vpop.xlane.xlu0 %1209
        %v1211 = vsel %vm527, %v1093, 0.0
        %1212 = vadd.xlane.f32.xlu0 %v1211
        %v1213 = vpop.xlane.xlu0 %1212
        %v1214 = vsel %vm1114, %v1094, 0.0
        %1215 = vadd.xlane.f32.xlu0 %v1214
        %v1216 = vpop.xlane.xlu0 %1215
        %v1217 = vsel %vm1107, %v1095, 0.0
        %1218 = vadd.xlane.f32.xlu0 %v1217
        %v1219 = vpop.xlane.xlu0 %1218
        %v1220 = vsel %vm527, %v1096, 0.0
        %1221 = vadd.xlane.f32.xlu0 %v1220
        %v1222 = vpop.xlane.xlu0 %1221
        %v1223 = vsel %vm1114, %v1097, 0.0
        %1224 = vadd.xlane.f32.xlu0 %v1223
        %v1225 = vpop.xlane.xlu0 %1224
        %v1226 = vsel %vm1107, %v1098, 0.0
        %1227 = vadd.xlane.f32.xlu0 %v1226
        %v1228 = vpop.xlane.xlu0 %1227
        %v1229 = vsel %vm527, %v1099, 0.0
        %1230 = vadd.xlane.f32.xlu0 %v1229
        %v1231 = vpop.xlane.xlu0 %1230
        %v1232 = vsel %vm1114, %v1100, 0.0
        %1233 = vadd.xlane.f32.xlu0 %v1232
        %v1234 = vpop.xlane.xlu0 %1233
        %v1235 = vsel %vm1107, %v1101, 0.0
        %1236 = vadd.xlane.f32.xlu0 %v1235
        %v1237 = vpop.xlane.xlu0 %1236
        %v1238 = vsel %vm527, %v1102, 0.0
        %1239 = vadd.xlane.f32.xlu0 %v1238
        %v1240 = vpop.xlane.xlu0 %1239
        %v1241 = vsel %vm1114, %v1103, 0.0
        %1242 = vadd.xlane.f32.xlu0 %v1241
        %v1243 = vpop.xlane.xlu0 %1242
        %v1244 = vsel %vm1107, %v1104, 0.0
        %1245 = vadd.xlane.f32.xlu0 %v1244
        %v1246 = vpop.xlane.xlu0 %1245
        %v1247 = vsel %vm527, %v1105, 0.0
        %1248 = vadd.xlane.f32.xlu0 %v1247
        %v1249 = vpop.xlane.xlu0 %1248
        %v1250 = vsel %vm1114, %v1106, 0.0
        %1251 = vadd.xlane.f32.xlu0 %v1250
        %v1252 = vpop.xlane.xlu0 %1251
        %vm1301 = vcmask 1045504
        %v1302 = vrot.slane %v1110, 2
        %v1303 = vrot.slane %v1113, 2
        %v1304 = vsel %vm1301, %v1302, %v1303
        %v1305 = vrot.slane %v1117, 2
        %v1306 = vsel %vm1301, %v1303, %v1305
        %v1307 = vrot.slane %v1120, 2
        %v1308 = vrot.slane %v1123, 2
        %v1309 = vsel %vm1301, %v1307, %v1308
        %v1310 = vrot.slane %v1126, 2
        %v1311 = vsel %vm1301, %v1308, %v1310
        %v1312 = vrot.slane %v1129, 2
        %v1313 = vrot.slane %v1132, 2
        %v1314 = vsel %vm1301, %v1312, %v1313
        %v1315 = vrot.slane %v1135, 2
        %v1316 = vsel %vm1301, %v1313, %v1315
        %v1317 = vrot.slane %v1138, 2
        %v1318 = vrot.slane %v1141, 2
        %v1319 = vsel %vm1301, %v1317, %v1318
        %v1320 = vrot.slane %v1144, 2
        %v1321 = vsel %vm1301, %v1318, %v1320
        %v1322 = vrot.slane %v1147, 2
        %v1323 = vrot.slane %v1150, 2
        %v1324 = vsel %vm1301, %v1322, %v1323
        %v1325 = vrot.slane %v1153, 2
        %v1326 = vsel %vm1301, %v1323, %v1325
        %v1327 = vrot.slane %v1156, 2
        %v1328 = vrot.slane %v1159, 2
        %v1329 = vsel %vm1301, %v1327, %v1328
        %v1330 = vrot.slane %v1162, 2
        %v1331 = vsel %vm1301, %v1328, %v1330
        %v1332 = vrot.slane %v1165, 2
        %v1333 = vrot.slane %v1168, 2
        %v1334 = vsel %vm1301, %v1332, %v1333
        %v1335 = vrot.slane %v1171, 2
        %v1336 = vsel %vm1301, %v1333, %v1335
        %v1337 = vrot.slane %v1174, 2
        %v1338 = vrot.slane %v1177, 2
        %v1339 = vsel %vm1301, %v1337, %v1338
        %v1340 = vrot.slane %v1180, 2
        %v1341 = vsel %vm1301, %v1338, %v1340
        %v1342 = vrot.slane %v1183, 2
        %v1343 = vrot.slane %v1186, 2
        %v1344 = vsel %vm1301, %v1342, %v1343
        %v1345 = vrot.slane %v1189, 2
        %v1346 = vsel %vm1301, %v1343, %v1345
        %v1347 = vrot.slane %v1192, 2
        %v1348 = vrot.slane %v1195, 2
        %v1349 = vsel %vm1301, %v1347, %v1348
        %v1350 = vrot.slane %v1198, 2
        %v1351 = vsel %vm1301, %v1348, %v1350
        %v1352 = vrot.slane %v1201, 2
        %v1353 = vrot.slane %v1204, 2
        %v1354 = vsel %vm1301, %v1352, %v1353
        %v1355 = vrot.slane %v1207, 2
        %v1356 = vsel %vm1301, %v1353, %v1355
        %v1357 = vrot.slane %v1210, 2
        %v1358 = vrot.slane %v1213, 2
        %v1359 = vsel %vm1301, %v1357, %v1358
        %v1360 = vrot.slane %v1216, 2
        %v1361 = vsel %vm1301, %v1358, %v1360
        %v1362 = vrot.slane %v1219, 2
        %v1363 = vrot.slane %v1222, 2
        %v1364 = vsel %vm1301, %v1362, %v1363
        %v1365 = vrot.slane %v1225, 2
        %v1366 = vsel %vm1301, %v1363, %v1365
        %v1367 = vrot.slane %v1228, 2
        %v1368 = vrot.slane %v1231, 2
        %v1369 = vsel %vm1301, %v1367, %v1368
        %v1370 = vrot.slane %v1234, 2
        %v1371 = vsel %vm1301, %v1368, %v1370
        %v1372 = vrot.slane %v1237, 2
        %v1373 = vrot.slane %v1240, 2
        %v1374 = vsel %vm1301, %v1372, %v1373
        %v1375 = vrot.slane %v1243, 2
        %v1376 = vsel %vm1301, %v1373, %v1375
        %v1377 = vrot.slane %v1246, 2
        %v1378 = vrot.slane %v1249, 2
        %v1379 = vsel %vm1301, %v1377, %v1378
        %v1380 = vrot.slane %v1252, 2
        %v1381 = vsel %vm1301, %v1378, %v1380
        %v1414 = vadd.f32 %v1019, %v1304
        %v1415 = vadd.f32 %v1020, %v1306
        %v1416 = vadd.f32 %v1021, %v1309
        %v1417 = vadd.f32 %v1022, %v1311
        %v1418 = vadd.f32 %v1023, %v1314
        %v1419 = vadd.f32 %v1024, %v1316
        %v1420 = vadd.f32 %v1025, %v1319
        %v1421 = vadd.f32 %v1026, %v1321
        %v1422 = vadd.f32 %v1027, %v1324
        %v1423 = vadd.f32 %v1028, %v1326
        %v1424 = vadd.f32 %v1029, %v1329
        %v1425 = vadd.f32 %v1030, %v1331
        %v1426 = vadd.f32 %v1031, %v1334
        %v1427 = vadd.f32 %v1032, %v1336
        %v1428 = vadd.f32 %v1033, %v1339
        %v1429 = vadd.f32 %v1034, %v1341
        %v1430 = vadd.f32 %v1035, %v1344
        %v1431 = vadd.f32 %v1036, %v1346
        %v1432 = vadd.f32 %v1037, %v1349
        %v1433 = vadd.f32 %v1038, %v1351
        %v1434 = vadd.f32 %v1039, %v1354
        %v1435 = vadd.f32 %v1040, %v1356
        %v1436 = vadd.f32 %v1041, %v1359
        %v1437 = vadd.f32 %v1042, %v1361
        %v1438 = vadd.f32 %v1043, %v1364
        %v1439 = vadd.f32 %v1044, %v1366
        %v1440 = vadd.f32 %v1045, %v1369
        %v1441 = vadd.f32 %v1046, %v1371
        %v1442 = vadd.f32 %v1047, %v1374
        %v1443 = vadd.f32 %v1048, %v1376
        %v1444 = vadd.f32 %v1049, %v1379
        %v1445 = vadd.f32 %v1050, %v1381
        %s1446 = scalar_lea.vmem %s2, 3
        %v1447 = vld [vmem:[%s1446] sm:$0x1]
        %v1449 = vlaneseq
        %v1450 = vshrl.u32 %v1449, 7
        %v1451 = vsub.s32 0, %v1450
        %v1452 = vrot.slane %v1447, %v1451
        %v1454 = vmul.f32 %v437, %v1452
        %v1455 = vmul.f32 %v438, %v1452
        %v1456 = vmul.f32 %v440, %v1452
        %v1457 = vmul.f32 %v441, %v1452
        %v1458 = vmul.f32 %v443, %v1452
        %v1459 = vmul.f32 %v444, %v1452
        %v1460 = vmul.f32 %v446, %v1452
        %v1461 = vmul.f32 %v447, %v1452
        %v1462 = vmul.f32 %v449, %v1452
        %v1463 = vmul.f32 %v450, %v1452
        %v1464 = vmul.f32 %v452, %v1452
        %v1465 = vmul.f32 %v453, %v1452
        %v1466 = vmul.f32 %v455, %v1452
        %v1467 = vmul.f32 %v456, %v1452
        %v1468 = vmul.f32 %v458, %v1452
        %v1469 = vmul.f32 %v459, %v1452
        %v1470 = vmul.f32 %v461, %v1452
        %v1471 = vmul.f32 %v462, %v1452
        %v1472 = vmul.f32 %v464, %v1452
        %v1473 = vmul.f32 %v465, %v1452
        %v1474 = vmul.f32 %v467, %v1452
        %v1475 = vmul.f32 %v468, %v1452
        %v1476 = vmul.f32 %v470, %v1452
        %v1477 = vmul.f32 %v471, %v1452
        %v1478 = vmul.f32 %v473, %v1452
        %v1479 = vmul.f32 %v474, %v1452
        %v1480 = vmul.f32 %v476, %v1452
        %v1481 = vmul.f32 %v477, %v1452
        %v1482 = vmul.f32 %v479, %v1452
        %v1483 = vmul.f32 %v480, %v1452
        %v1484 = vmul.f32 %v482, %v1452
        %v1485 = vmul.f32 %v483, %v1452
        %v1486 = vsel %vm527, %v1454, 0.0
        %1487 = vadd.xlane.f32.xlu0 %v1486
        %v1488 = vpop.xlane.xlu0 %1487
        %v1489 = vsel %vm527, %v1455, 0.0
        %1490 = vadd.xlane.f32.xlu0 %v1489
        %v1491 = vpop.xlane.xlu0 %1490
        %v1492 = vsel %vm527, %v1456, 0.0
        %1493 = vadd.xlane.f32.xlu0 %v1492
        %v1494 = vpop.xlane.xlu0 %1493
        %v1495 = vsel %vm527, %v1457, 0.0
        %1496 = vadd.xlane.f32.xlu0 %v1495
        %v1497 = vpop.xlane.xlu0 %1496
        %v1498 = vsel %vm527, %v1458, 0.0
        %1499 = vadd.xlane.f32.xlu0 %v1498
        %v1500 = vpop.xlane.xlu0 %1499
        %v1501 = vsel %vm527, %v1459, 0.0
        %1502 = vadd.xlane.f32.xlu0 %v1501
        %v1503 = vpop.xlane.xlu0 %1502
        %v1504 = vsel %vm527, %v1460, 0.0
        %1505 = vadd.xlane.f32.xlu0 %v1504
        %v1506 = vpop.xlane.xlu0 %1505
        %v1507 = vsel %vm527, %v1461, 0.0
        %1508 = vadd.xlane.f32.xlu0 %v1507
        %v1509 = vpop.xlane.xlu0 %1508
        %v1510 = vsel %vm527, %v1462, 0.0
        %1511 = vadd.xlane.f32.xlu0 %v1510
        %v1512 = vpop.xlane.xlu0 %1511
        %v1513 = vsel %vm527, %v1463, 0.0
        %1514 = vadd.xlane.f32.xlu0 %v1513
        %v1515 = vpop.xlane.xlu0 %1514
        %v1516 = vsel %vm527, %v1464, 0.0
        %1517 = vadd.xlane.f32.xlu0 %v1516
        %v1518 = vpop.xlane.xlu0 %1517
        %v1519 = vsel %vm527, %v1465, 0.0
        %1520 = vadd.xlane.f32.xlu0 %v1519
        %v1521 = vpop.xlane.xlu0 %1520
        %v1522 = vsel %vm527, %v1466, 0.0
        %1523 = vadd.xlane.f32.xlu0 %v1522
        %v1524 = vpop.xlane.xlu0 %1523
        %v1525 = vsel %vm527, %v1467, 0.0
        %1526 = vadd.xlane.f32.xlu0 %v1525
        %v1527 = vpop.xlane.xlu0 %1526
        %v1528 = vsel %vm527, %v1468, 0.0
        %1529 = vadd.xlane.f32.xlu0 %v1528
        %v1530 = vpop.xlane.xlu0 %1529
        %v1531 = vsel %vm527, %v1469, 0.0
        %1532 = vadd.xlane.f32.xlu0 %v1531
        %v1533 = vpop.xlane.xlu0 %1532
        %v1534 = vsel %vm527, %v1470, 0.0
        %1535 = vadd.xlane.f32.xlu0 %v1534
        %v1536 = vpop.xlane.xlu0 %1535
        %v1537 = vsel %vm527, %v1471, 0.0
        %1538 = vadd.xlane.f32.xlu0 %v1537
        %v1539 = vpop.xlane.xlu0 %1538
        %v1540 = vsel %vm527, %v1472, 0.0
        %1541 = vadd.xlane.f32.xlu0 %v1540
        %v1542 = vpop.xlane.xlu0 %1541
        %v1543 = vsel %vm527, %v1473, 0.0
        %1544 = vadd.xlane.f32.xlu0 %v1543
        %v1545 = vpop.xlane.xlu0 %1544
        %v1546 = vsel %vm527, %v1474, 0.0
        %1547 = vadd.xlane.f32.xlu0 %v1546
        %v1548 = vpop.xlane.xlu0 %1547
        %v1549 = vsel %vm527, %v1475, 0.0
        %1550 = vadd.xlane.f32.xlu0 %v1549
        %v1551 = vpop.xlane.xlu0 %1550
        %v1552 = vsel %vm527, %v1476, 0.0
        %1553 = vadd.xlane.f32.xlu0 %v1552
        %v1554 = vpop.xlane.xlu0 %1553
        %v1555 = vsel %vm527, %v1477, 0.0
        %1556 = vadd.xlane.f32.xlu0 %v1555
        %v1557 = vpop.xlane.xlu0 %1556
        %v1558 = vsel %vm527, %v1478, 0.0
        %1559 = vadd.xlane.f32.xlu0 %v1558
        %v1560 = vpop.xlane.xlu0 %1559
        %v1561 = vsel %vm527, %v1479, 0.0
        %1562 = vadd.xlane.f32.xlu0 %v1561
        %v1563 = vpop.xlane.xlu0 %1562
        %v1564 = vsel %vm527, %v1480, 0.0
        %1565 = vadd.xlane.f32.xlu0 %v1564
        %v1566 = vpop.xlane.xlu0 %1565
        %v1567 = vsel %vm527, %v1481, 0.0
        %1568 = vadd.xlane.f32.xlu0 %v1567
        %v1569 = vpop.xlane.xlu0 %1568
        %v1570 = vsel %vm527, %v1482, 0.0
        %1571 = vadd.xlane.f32.xlu0 %v1570
        %v1572 = vpop.xlane.xlu0 %1571
        %v1573 = vsel %vm527, %v1483, 0.0
        %1574 = vadd.xlane.f32.xlu0 %v1573
        %v1575 = vpop.xlane.xlu0 %1574
        %v1576 = vsel %vm527, %v1484, 0.0
        %1577 = vadd.xlane.f32.xlu0 %v1576
        %v1578 = vpop.xlane.xlu0 %1577
        %v1579 = vsel %vm527, %v1485, 0.0
        %1580 = vadd.xlane.f32.xlu0 %v1579
        %v1581 = vpop.xlane.xlu0 %1580
        %v1582 = vadd.f32 %v1414, %v1488
        %v1583 = vadd.f32 %v1415, %v1491
        %v1584 = vadd.f32 %v1416, %v1494
        %v1585 = vadd.f32 %v1417, %v1497
        %v1586 = vadd.f32 %v1418, %v1500
        %v1587 = vadd.f32 %v1419, %v1503
        %v1588 = vadd.f32 %v1420, %v1506
        %v1589 = vadd.f32 %v1421, %v1509
        %v1590 = vadd.f32 %v1422, %v1512
        %v1591 = vadd.f32 %v1423, %v1515
        %v1592 = vadd.f32 %v1424, %v1518
        %v1593 = vadd.f32 %v1425, %v1521
        %v1594 = vadd.f32 %v1426, %v1524
        %v1595 = vadd.f32 %v1427, %v1527
        %v1596 = vadd.f32 %v1428, %v1530
        %v1597 = vadd.f32 %v1429, %v1533
        %v1598 = vadd.f32 %v1430, %v1536
        %v1599 = vadd.f32 %v1431, %v1539
        %v1600 = vadd.f32 %v1432, %v1542
        %v1601 = vadd.f32 %v1433, %v1545
        %v1602 = vadd.f32 %v1434, %v1548
        %v1603 = vadd.f32 %v1435, %v1551
        %v1604 = vadd.f32 %v1436, %v1554
        %v1605 = vadd.f32 %v1437, %v1557
        %v1606 = vadd.f32 %v1438, %v1560
        %v1607 = vadd.f32 %v1439, %v1563
        %v1608 = vadd.f32 %v1440, %v1566
        %v1609 = vadd.f32 %v1441, %v1569
        %v1610 = vadd.f32 %v1442, %v1572
        %v1611 = vadd.f32 %v1443, %v1575
        %v1612 = vadd.f32 %v1444, %v1578
        %v1613 = vadd.f32 %v1445, %v1581
        %s1614 = scalar_lea.vmem %s2, 4
        %v1615 = vld [vmem:[%s1614] sm:$0x1]
        %v1617 = vlaneseq
        %v1618 = vshrl.u32 %v1617, 7
        %v1619 = vsub.s32 0, %v1618
        %v1620 = vrot.slane %v1615, %v1619
        %v1622 = vmul.f32 %v437, %v1620
        %v1623 = vmul.f32 %v438, %v1620
        %v1624 = vmul.f32 %v439, %v1620
        %v1625 = vmul.f32 %v440, %v1620
        %v1626 = vmul.f32 %v441, %v1620
        %v1627 = vmul.f32 %v442, %v1620
        %v1628 = vmul.f32 %v443, %v1620
        %v1629 = vmul.f32 %v444, %v1620
        %v1630 = vmul.f32 %v445, %v1620
        %v1631 = vmul.f32 %v446, %v1620
        %v1632 = vmul.f32 %v447, %v1620
        %v1633 = vmul.f32 %v448, %v1620
        %v1634 = vmul.f32 %v449, %v1620
        %v1635 = vmul.f32 %v450, %v1620
        %v1636 = vmul.f32 %v451, %v1620
        %v1637 = vmul.f32 %v452, %v1620
        %v1638 = vmul.f32 %v453, %v1620
        %v1639 = vmul.f32 %v454, %v1620
        %v1640 = vmul.f32 %v455, %v1620
        %v1641 = vmul.f32 %v456, %v1620
        %v1642 = vmul.f32 %v457, %v1620
        %v1643 = vmul.f32 %v458, %v1620
        %v1644 = vmul.f32 %v459, %v1620
        %v1645 = vmul.f32 %v460, %v1620
        %v1646 = vmul.f32 %v461, %v1620
        %v1647 = vmul.f32 %v462, %v1620
        %v1648 = vmul.f32 %v463, %v1620
        %v1649 = vmul.f32 %v464, %v1620
        %v1650 = vmul.f32 %v465, %v1620
        %v1651 = vmul.f32 %v466, %v1620
        %v1652 = vmul.f32 %v467, %v1620
        %v1653 = vmul.f32 %v468, %v1620
        %v1654 = vmul.f32 %v469, %v1620
        %v1655 = vmul.f32 %v470, %v1620
        %v1656 = vmul.f32 %v471, %v1620
        %v1657 = vmul.f32 %v472, %v1620
        %v1658 = vmul.f32 %v473, %v1620
        %v1659 = vmul.f32 %v474, %v1620
        %v1660 = vmul.f32 %v475, %v1620
        %v1661 = vmul.f32 %v476, %v1620
        %v1662 = vmul.f32 %v477, %v1620
        %v1663 = vmul.f32 %v478, %v1620
        %v1664 = vmul.f32 %v479, %v1620
        %v1665 = vmul.f32 %v480, %v1620
        %v1666 = vmul.f32 %v481, %v1620
        %v1667 = vmul.f32 %v482, %v1620
        %v1668 = vmul.f32 %v483, %v1620
        %v1669 = vmul.f32 %v484, %v1620
        %v1670 = vsel %vm712, %v1622, 0.0
        %1671 = vadd.xlane.f32.xlu0 %v1670
        %v1672 = vpop.xlane.xlu0 %1671
        %v1673 = vsel %vm527, %v1623, 0.0
        %1674 = vadd.xlane.f32.xlu0 %v1673
        %v1675 = vpop.xlane.xlu0 %1674
        %v1676 = vsel %vm719, %v1624, 0.0
        %1677 = vadd.xlane.f32.xlu0 %v1676
        %v1678 = vpop.xlane.xlu0 %1677
        %v1679 = vsel %vm712, %v1625, 0.0
        %1680 = vadd.xlane.f32.xlu0 %v1679
        %v1681 = vpop.xlane.xlu0 %1680
        %v1682 = vsel %vm527, %v1626, 0.0
        %1683 = vadd.xlane.f32.xlu0 %v1682
        %v1684 = vpop.xlane.xlu0 %1683
        %v1685 = vsel %vm719, %v1627, 0.0
        %1686 = vadd.xlane.f32.xlu0 %v1685
        %v1687 = vpop.xlane.xlu0 %1686
        %v1688 = vsel %vm712, %v1628, 0.0
        %1689 = vadd.xlane.f32.xlu0 %v1688
        %v1690 = vpop.xlane.xlu0 %1689
        %v1691 = vsel %vm527, %v1629, 0.0
        %1692 = vadd.xlane.f32.xlu0 %v1691
        %v1693 = vpop.xlane.xlu0 %1692
        %v1694 = vsel %vm719, %v1630, 0.0
        %1695 = vadd.xlane.f32.xlu0 %v1694
        %v1696 = vpop.xlane.xlu0 %1695
        %v1697 = vsel %vm712, %v1631, 0.0
        %1698 = vadd.xlane.f32.xlu0 %v1697
        %v1699 = vpop.xlane.xlu0 %1698
        %v1700 = vsel %vm527, %v1632, 0.0
        %1701 = vadd.xlane.f32.xlu0 %v1700
        %v1702 = vpop.xlane.xlu0 %1701
        %v1703 = vsel %vm719, %v1633, 0.0
        %1704 = vadd.xlane.f32.xlu0 %v1703
        %v1705 = vpop.xlane.xlu0 %1704
        %v1706 = vsel %vm712, %v1634, 0.0
        %1707 = vadd.xlane.f32.xlu0 %v1706
        %v1708 = vpop.xlane.xlu0 %1707
        %v1709 = vsel %vm527, %v1635, 0.0
        %1710 = vadd.xlane.f32.xlu0 %v1709
        %v1711 = vpop.xlane.xlu0 %1710
        %v1712 = vsel %vm719, %v1636, 0.0
        %1713 = vadd.xlane.f32.xlu0 %v1712
        %v1714 = vpop.xlane.xlu0 %1713
        %v1715 = vsel %vm712, %v1637, 0.0
        %1716 = vadd.xlane.f32.xlu0 %v1715
        %v1717 = vpop.xlane.xlu0 %1716
        %v1718 = vsel %vm527, %v1638, 0.0
        %1719 = vadd.xlane.f32.xlu0 %v1718
        %v1720 = vpop.xlane.xlu0 %1719
        %v1721 = vsel %vm719, %v1639, 0.0
        %1722 = vadd.xlane.f32.xlu0 %v1721
        %v1723 = vpop.xlane.xlu0 %1722
        %v1724 = vsel %vm712, %v1640, 0.0
        %1725 = vadd.xlane.f32.xlu0 %v1724
        %v1726 = vpop.xlane.xlu0 %1725
        %v1727 = vsel %vm527, %v1641, 0.0
        %1728 = vadd.xlane.f32.xlu0 %v1727
        %v1729 = vpop.xlane.xlu0 %1728
        %v1730 = vsel %vm719, %v1642, 0.0
        %1731 = vadd.xlane.f32.xlu0 %v1730
        %v1732 = vpop.xlane.xlu0 %1731
        %v1733 = vsel %vm712, %v1643, 0.0
        %1734 = vadd.xlane.f32.xlu0 %v1733
        %v1735 = vpop.xlane.xlu0 %1734
        %v1736 = vsel %vm527, %v1644, 0.0
        %1737 = vadd.xlane.f32.xlu0 %v1736
        %v1738 = vpop.xlane.xlu0 %1737
        %v1739 = vsel %vm719, %v1645, 0.0
        %1740 = vadd.xlane.f32.xlu0 %v1739
        %v1741 = vpop.xlane.xlu0 %1740
        %v1742 = vsel %vm712, %v1646, 0.0
        %1743 = vadd.xlane.f32.xlu0 %v1742
        %v1744 = vpop.xlane.xlu0 %1743
        %v1745 = vsel %vm527, %v1647, 0.0
        %1746 = vadd.xlane.f32.xlu0 %v1745
        %v1747 = vpop.xlane.xlu0 %1746
        %v1748 = vsel %vm719, %v1648, 0.0
        %1749 = vadd.xlane.f32.xlu0 %v1748
        %v1750 = vpop.xlane.xlu0 %1749
        %v1751 = vsel %vm712, %v1649, 0.0
        %1752 = vadd.xlane.f32.xlu0 %v1751
        %v1753 = vpop.xlane.xlu0 %1752
        %v1754 = vsel %vm527, %v1650, 0.0
        %1755 = vadd.xlane.f32.xlu0 %v1754
        %v1756 = vpop.xlane.xlu0 %1755
        %v1757 = vsel %vm719, %v1651, 0.0
        %1758 = vadd.xlane.f32.xlu0 %v1757
        %v1759 = vpop.xlane.xlu0 %1758
        %v1760 = vsel %vm712, %v1652, 0.0
        %1761 = vadd.xlane.f32.xlu0 %v1760
        %v1762 = vpop.xlane.xlu0 %1761
        %v1763 = vsel %vm527, %v1653, 0.0
        %1764 = vadd.xlane.f32.xlu0 %v1763
        %v1765 = vpop.xlane.xlu0 %1764
        %v1766 = vsel %vm719, %v1654, 0.0
        %1767 = vadd.xlane.f32.xlu0 %v1766
        %v1768 = vpop.xlane.xlu0 %1767
        %v1769 = vsel %vm712, %v1655, 0.0
        %1770 = vadd.xlane.f32.xlu0 %v1769
        %v1771 = vpop.xlane.xlu0 %1770
        %v1772 = vsel %vm527, %v1656, 0.0
        %1773 = vadd.xlane.f32.xlu0 %v1772
        %v1774 = vpop.xlane.xlu0 %1773
        %v1775 = vsel %vm719, %v1657, 0.0
        %1776 = vadd.xlane.f32.xlu0 %v1775
        %v1777 = vpop.xlane.xlu0 %1776
        %v1778 = vsel %vm712, %v1658, 0.0
        %1779 = vadd.xlane.f32.xlu0 %v1778
        %v1780 = vpop.xlane.xlu0 %1779
        %v1781 = vsel %vm527, %v1659, 0.0
        %1782 = vadd.xlane.f32.xlu0 %v1781
        %v1783 = vpop.xlane.xlu0 %1782
        %v1784 = vsel %vm719, %v1660, 0.0
        %1785 = vadd.xlane.f32.xlu0 %v1784
        %v1786 = vpop.xlane.xlu0 %1785
        %v1787 = vsel %vm712, %v1661, 0.0
        %1788 = vadd.xlane.f32.xlu0 %v1787
        %v1789 = vpop.xlane.xlu0 %1788
        %v1790 = vsel %vm527, %v1662, 0.0
        %1791 = vadd.xlane.f32.xlu0 %v1790
        %v1792 = vpop.xlane.xlu0 %1791
        %v1793 = vsel %vm719, %v1663, 0.0
        %1794 = vadd.xlane.f32.xlu0 %v1793
        %v1795 = vpop.xlane.xlu0 %1794
        %v1796 = vsel %vm712, %v1664, 0.0
        %1797 = vadd.xlane.f32.xlu0 %v1796
        %v1798 = vpop.xlane.xlu0 %1797
        %v1799 = vsel %vm527, %v1665, 0.0
        %1800 = vadd.xlane.f32.xlu0 %v1799
        %v1801 = vpop.xlane.xlu0 %1800
        %v1802 = vsel %vm719, %v1666, 0.0
        %1803 = vadd.xlane.f32.xlu0 %v1802
        %v1804 = vpop.xlane.xlu0 %1803
        %v1805 = vsel %vm712, %v1667, 0.0
        %1806 = vadd.xlane.f32.xlu0 %v1805
        %v1807 = vpop.xlane.xlu0 %1806
        %v1808 = vsel %vm527, %v1668, 0.0
        %1809 = vadd.xlane.f32.xlu0 %v1808
        %v1810 = vpop.xlane.xlu0 %1809
        %v1811 = vsel %vm719, %v1669, 0.0
        %1812 = vadd.xlane.f32.xlu0 %v1811
        %v1813 = vpop.xlane.xlu0 %1812
        %v1862 = vrot.slane %v1672, 1
        %v1863 = vrot.slane %v1675, 1
        %v1864 = vsel %vm906, %v1862, %v1863
        %v1865 = vrot.slane %v1678, 1
        %v1866 = vsel %vm906, %v1863, %v1865
        %v1867 = vrot.slane %v1681, 1
        %v1868 = vrot.slane %v1684, 1
        %v1869 = vsel %vm906, %v1867, %v1868
        %v1870 = vrot.slane %v1687, 1
        %v1871 = vsel %vm906, %v1868, %v1870
        %v1872 = vrot.slane %v1690, 1
        %v1873 = vrot.slane %v1693, 1
        %v1874 = vsel %vm906, %v1872, %v1873
        %v1875 = vrot.slane %v1696, 1
        %v1876 = vsel %vm906, %v1873, %v1875
        %v1877 = vrot.slane %v1699, 1
        %v1878 = vrot.slane %v1702, 1
        %v1879 = vsel %vm906, %v1877, %v1878
        %v1880 = vrot.slane %v1705, 1
        %v1881 = vsel %vm906, %v1878, %v1880
        %v1882 = vrot.slane %v1708, 1
        %v1883 = vrot.slane %v1711, 1
        %v1884 = vsel %vm906, %v1882, %v1883
        %v1885 = vrot.slane %v1714, 1
        %v1886 = vsel %vm906, %v1883, %v1885
        %v1887 = vrot.slane %v1717, 1
        %v1888 = vrot.slane %v1720, 1
        %v1889 = vsel %vm906, %v1887, %v1888
        %v1890 = vrot.slane %v1723, 1
        %v1891 = vsel %vm906, %v1888, %v1890
        %v1892 = vrot.slane %v1726, 1
        %v1893 = vrot.slane %v1729, 1
        %v1894 = vsel %vm906, %v1892, %v1893
        %v1895 = vrot.slane %v1732, 1
        %v1896 = vsel %vm906, %v1893, %v1895
        %v1897 = vrot.slane %v1735, 1
        %v1898 = vrot.slane %v1738, 1
        %v1899 = vsel %vm906, %v1897, %v1898
        %v1900 = vrot.slane %v1741, 1
        %v1901 = vsel %vm906, %v1898, %v1900
        %v1902 = vrot.slane %v1744, 1
        %v1903 = vrot.slane %v1747, 1
        %v1904 = vsel %vm906, %v1902, %v1903
        %v1905 = vrot.slane %v1750, 1
        %v1906 = vsel %vm906, %v1903, %v1905
        %v1907 = vrot.slane %v1753, 1
        %v1908 = vrot.slane %v1756, 1
        %v1909 = vsel %vm906, %v1907, %v1908
        %v1910 = vrot.slane %v1759, 1
        %v1911 = vsel %vm906, %v1908, %v1910
        %v1912 = vrot.slane %v1762, 1
        %v1913 = vrot.slane %v1765, 1
        %v1914 = vsel %vm906, %v1912, %v1913
        %v1915 = vrot.slane %v1768, 1
        %v1916 = vsel %vm906, %v1913, %v1915
        %v1917 = vrot.slane %v1771, 1
        %v1918 = vrot.slane %v1774, 1
        %v1919 = vsel %vm906, %v1917, %v1918
        %v1920 = vrot.slane %v1777, 1
        %v1921 = vsel %vm906, %v1918, %v1920
        %v1922 = vrot.slane %v1780, 1
        %v1923 = vrot.slane %v1783, 1
        %v1924 = vsel %vm906, %v1922, %v1923
        %v1925 = vrot.slane %v1786, 1
        %v1926 = vsel %vm906, %v1923, %v1925
        %v1927 = vrot.slane %v1789, 1
        %v1928 = vrot.slane %v1792, 1
        %v1929 = vsel %vm906, %v1927, %v1928
        %v1930 = vrot.slane %v1795, 1
        %v1931 = vsel %vm906, %v1928, %v1930
        %v1932 = vrot.slane %v1798, 1
        %v1933 = vrot.slane %v1801, 1
        %v1934 = vsel %vm906, %v1932, %v1933
        %v1935 = vrot.slane %v1804, 1
        %v1936 = vsel %vm906, %v1933, %v1935
        %v1937 = vrot.slane %v1807, 1
        %v1938 = vrot.slane %v1810, 1
        %v1939 = vsel %vm906, %v1937, %v1938
        %v1940 = vrot.slane %v1813, 1
        %v1941 = vsel %vm906, %v1938, %v1940
        %v1974 = vadd.f32 %v1582, %v1864
        %v1975 = vadd.f32 %v1583, %v1866
        %v1976 = vadd.f32 %v1584, %v1869
        %v1977 = vadd.f32 %v1585, %v1871
        %v1978 = vadd.f32 %v1586, %v1874
        %v1979 = vadd.f32 %v1587, %v1876
        %v1980 = vadd.f32 %v1588, %v1879
        %v1981 = vadd.f32 %v1589, %v1881
        %v1982 = vadd.f32 %v1590, %v1884
        %v1983 = vadd.f32 %v1591, %v1886
        %v1984 = vadd.f32 %v1592, %v1889
        %v1985 = vadd.f32 %v1593, %v1891
        %v1986 = vadd.f32 %v1594, %v1894
        %v1987 = vadd.f32 %v1595, %v1896
        %v1988 = vadd.f32 %v1596, %v1899
        %v1989 = vadd.f32 %v1597, %v1901
        %v1990 = vadd.f32 %v1598, %v1904
        %v1991 = vadd.f32 %v1599, %v1906
        %v1992 = vadd.f32 %v1600, %v1909
        %v1993 = vadd.f32 %v1601, %v1911
        %v1994 = vadd.f32 %v1602, %v1914
        %v1995 = vadd.f32 %v1603, %v1916
        %v1996 = vadd.f32 %v1604, %v1919
        %v1997 = vadd.f32 %v1605, %v1921
        %v1998 = vadd.f32 %v1606, %v1924
        %v1999 = vadd.f32 %v1607, %v1926
        %v2000 = vadd.f32 %v1608, %v1929
        %v2001 = vadd.f32 %v1609, %v1931
        %v2002 = vadd.f32 %v1610, %v1934
        %v2003 = vadd.f32 %v1611, %v1936
        %v2004 = vadd.f32 %v1612, %v1939
        %v2005 = vadd.f32 %v1613, %v1941
        %s2006 = scalar_lea.vmem %s2, 5
        %v2007 = vld [vmem:[%s2006] sm:$0x1]
        %v2009 = vlaneseq
        %v2010 = vshrl.u32 %v2009, 7
        %v2011 = vsub.s32 0, %v2010
        %v2012 = vrot.slane %v2007, %v2011
        %v2014 = vmul.f32 %v437, %v2012
        %v2015 = vmul.f32 %v438, %v2012
        %v2016 = vmul.f32 %v439, %v2012
        %v2017 = vmul.f32 %v440, %v2012
        %v2018 = vmul.f32 %v441, %v2012
        %v2019 = vmul.f32 %v442, %v2012
        %v2020 = vmul.f32 %v443, %v2012
        %v2021 = vmul.f32 %v444, %v2012
        %v2022 = vmul.f32 %v445, %v2012
        %v2023 = vmul.f32 %v446, %v2012
        %v2024 = vmul.f32 %v447, %v2012
        %v2025 = vmul.f32 %v448, %v2012
        %v2026 = vmul.f32 %v449, %v2012
        %v2027 = vmul.f32 %v450, %v2012
        %v2028 = vmul.f32 %v451, %v2012
        %v2029 = vmul.f32 %v452, %v2012
        %v2030 = vmul.f32 %v453, %v2012
        %v2031 = vmul.f32 %v454, %v2012
        %v2032 = vmul.f32 %v455, %v2012
        %v2033 = vmul.f32 %v456, %v2012
        %v2034 = vmul.f32 %v457, %v2012
        %v2035 = vmul.f32 %v458, %v2012
        %v2036 = vmul.f32 %v459, %v2012
        %v2037 = vmul.f32 %v460, %v2012
        %v2038 = vmul.f32 %v461, %v2012
        %v2039 = vmul.f32 %v462, %v2012
        %v2040 = vmul.f32 %v463, %v2012
        %v2041 = vmul.f32 %v464, %v2012
        %v2042 = vmul.f32 %v465, %v2012
        %v2043 = vmul.f32 %v466, %v2012
        %v2044 = vmul.f32 %v467, %v2012
        %v2045 = vmul.f32 %v468, %v2012
        %v2046 = vmul.f32 %v469, %v2012
        %v2047 = vmul.f32 %v470, %v2012
        %v2048 = vmul.f32 %v471, %v2012
        %v2049 = vmul.f32 %v472, %v2012
        %v2050 = vmul.f32 %v473, %v2012
        %v2051 = vmul.f32 %v474, %v2012
        %v2052 = vmul.f32 %v475, %v2012
        %v2053 = vmul.f32 %v476, %v2012
        %v2054 = vmul.f32 %v477, %v2012
        %v2055 = vmul.f32 %v478, %v2012
        %v2056 = vmul.f32 %v479, %v2012
        %v2057 = vmul.f32 %v480, %v2012
        %v2058 = vmul.f32 %v481, %v2012
        %v2059 = vmul.f32 %v482, %v2012
        %v2060 = vmul.f32 %v483, %v2012
        %v2061 = vmul.f32 %v484, %v2012
        %v2062 = vsel %vm1107, %v2014, 0.0
        %2063 = vadd.xlane.f32.xlu0 %v2062
        %v2064 = vpop.xlane.xlu0 %2063
        %v2065 = vsel %vm527, %v2015, 0.0
        %2066 = vadd.xlane.f32.xlu0 %v2065
        %v2067 = vpop.xlane.xlu0 %2066
        %v2068 = vsel %vm1114, %v2016, 0.0
        %2069 = vadd.xlane.f32.xlu0 %v2068
        %v2070 = vpop.xlane.xlu0 %2069
        %v2071 = vsel %vm1107, %v2017, 0.0
        %2072 = vadd.xlane.f32.xlu0 %v2071
        %v2073 = vpop.xlane.xlu0 %2072
        %v2074 = vsel %vm527, %v2018, 0.0
        %2075 = vadd.xlane.f32.xlu0 %v2074
        %v2076 = vpop.xlane.xlu0 %2075
        %v2077 = vsel %vm1114, %v2019, 0.0
        %2078 = vadd.xlane.f32.xlu0 %v2077
        %v2079 = vpop.xlane.xlu0 %2078
        %v2080 = vsel %vm1107, %v2020, 0.0
        %2081 = vadd.xlane.f32.xlu0 %v2080
        %v2082 = vpop.xlane.xlu0 %2081
        %v2083 = vsel %vm527, %v2021, 0.0
        %2084 = vadd.xlane.f32.xlu0 %v2083
        %v2085 = vpop.xlane.xlu0 %2084
        %v2086 = vsel %vm1114, %v2022, 0.0
        %2087 = vadd.xlane.f32.xlu0 %v2086
        %v2088 = vpop.xlane.xlu0 %2087
        %v2089 = vsel %vm1107, %v2023, 0.0
        %2090 = vadd.xlane.f32.xlu0 %v2089
        %v2091 = vpop.xlane.xlu0 %2090
        %v2092 = vsel %vm527, %v2024, 0.0
        %2093 = vadd.xlane.f32.xlu0 %v2092
        %v2094 = vpop.xlane.xlu0 %2093
        %v2095 = vsel %vm1114, %v2025, 0.0
        %2096 = vadd.xlane.f32.xlu0 %v2095
        %v2097 = vpop.xlane.xlu0 %2096
        %v2098 = vsel %vm1107, %v2026, 0.0
        %2099 = vadd.xlane.f32.xlu0 %v2098
        %v2100 = vpop.xlane.xlu0 %2099
        %v2101 = vsel %vm527, %v2027, 0.0
        %2102 = vadd.xlane.f32.xlu0 %v2101
        %v2103 = vpop.xlane.xlu0 %2102
        %v2104 = vsel %vm1114, %v2028, 0.0
        %2105 = vadd.xlane.f32.xlu0 %v2104
        %v2106 = vpop.xlane.xlu0 %2105
        %v2107 = vsel %vm1107, %v2029, 0.0
        %2108 = vadd.xlane.f32.xlu0 %v2107
        %v2109 = vpop.xlane.xlu0 %2108
        %v2110 = vsel %vm527, %v2030, 0.0
        %2111 = vadd.xlane.f32.xlu0 %v2110
        %v2112 = vpop.xlane.xlu0 %2111
        %v2113 = vsel %vm1114, %v2031, 0.0
        %2114 = vadd.xlane.f32.xlu0 %v2113
        %v2115 = vpop.xlane.xlu0 %2114
        %v2116 = vsel %vm1107, %v2032, 0.0
        %2117 = vadd.xlane.f32.xlu0 %v2116
        %v2118 = vpop.xlane.xlu0 %2117
        %v2119 = vsel %vm527, %v2033, 0.0
        %2120 = vadd.xlane.f32.xlu0 %v2119
        %v2121 = vpop.xlane.xlu0 %2120
        %v2122 = vsel %vm1114, %v2034, 0.0
        %2123 = vadd.xlane.f32.xlu0 %v2122
        %v2124 = vpop.xlane.xlu0 %2123
        %v2125 = vsel %vm1107, %v2035, 0.0
        %2126 = vadd.xlane.f32.xlu0 %v2125
        %v2127 = vpop.xlane.xlu0 %2126
        %v2128 = vsel %vm527, %v2036, 0.0
        %2129 = vadd.xlane.f32.xlu0 %v2128
        %v2130 = vpop.xlane.xlu0 %2129
        %v2131 = vsel %vm1114, %v2037, 0.0
        %2132 = vadd.xlane.f32.xlu0 %v2131
        %v2133 = vpop.xlane.xlu0 %2132
        %v2134 = vsel %vm1107, %v2038, 0.0
        %2135 = vadd.xlane.f32.xlu0 %v2134
        %v2136 = vpop.xlane.xlu0 %2135
        %v2137 = vsel %vm527, %v2039, 0.0
        %2138 = vadd.xlane.f32.xlu0 %v2137
        %v2139 = vpop.xlane.xlu0 %2138
        %v2140 = vsel %vm1114, %v2040, 0.0
        %2141 = vadd.xlane.f32.xlu0 %v2140
        %v2142 = vpop.xlane.xlu0 %2141
        %v2143 = vsel %vm1107, %v2041, 0.0
        %2144 = vadd.xlane.f32.xlu0 %v2143
        %v2145 = vpop.xlane.xlu0 %2144
        %v2146 = vsel %vm527, %v2042, 0.0
        %2147 = vadd.xlane.f32.xlu0 %v2146
        %v2148 = vpop.xlane.xlu0 %2147
        %v2149 = vsel %vm1114, %v2043, 0.0
        %2150 = vadd.xlane.f32.xlu0 %v2149
        %v2151 = vpop.xlane.xlu0 %2150
        %v2152 = vsel %vm1107, %v2044, 0.0
        %2153 = vadd.xlane.f32.xlu0 %v2152
        %v2154 = vpop.xlane.xlu0 %2153
        %v2155 = vsel %vm527, %v2045, 0.0
        %2156 = vadd.xlane.f32.xlu0 %v2155
        %v2157 = vpop.xlane.xlu0 %2156
        %v2158 = vsel %vm1114, %v2046, 0.0
        %2159 = vadd.xlane.f32.xlu0 %v2158
        %v2160 = vpop.xlane.xlu0 %2159
        %v2161 = vsel %vm1107, %v2047, 0.0
        %2162 = vadd.xlane.f32.xlu0 %v2161
        %v2163 = vpop.xlane.xlu0 %2162
        %v2164 = vsel %vm527, %v2048, 0.0
        %2165 = vadd.xlane.f32.xlu0 %v2164
        %v2166 = vpop.xlane.xlu0 %2165
        %v2167 = vsel %vm1114, %v2049, 0.0
        %2168 = vadd.xlane.f32.xlu0 %v2167
        %v2169 = vpop.xlane.xlu0 %2168
        %v2170 = vsel %vm1107, %v2050, 0.0
        %2171 = vadd.xlane.f32.xlu0 %v2170
        %v2172 = vpop.xlane.xlu0 %2171
        %v2173 = vsel %vm527, %v2051, 0.0
        %2174 = vadd.xlane.f32.xlu0 %v2173
        %v2175 = vpop.xlane.xlu0 %2174
        %v2176 = vsel %vm1114, %v2052, 0.0
        %2177 = vadd.xlane.f32.xlu0 %v2176
        %v2178 = vpop.xlane.xlu0 %2177
        %v2179 = vsel %vm1107, %v2053, 0.0
        %2180 = vadd.xlane.f32.xlu0 %v2179
        %v2181 = vpop.xlane.xlu0 %2180
        %v2182 = vsel %vm527, %v2054, 0.0
        %2183 = vadd.xlane.f32.xlu0 %v2182
        %v2184 = vpop.xlane.xlu0 %2183
        %v2185 = vsel %vm1114, %v2055, 0.0
        %2186 = vadd.xlane.f32.xlu0 %v2185
        %v2187 = vpop.xlane.xlu0 %2186
        %v2188 = vsel %vm1107, %v2056, 0.0
        %2189 = vadd.xlane.f32.xlu0 %v2188
        %v2190 = vpop.xlane.xlu0 %2189
        %v2191 = vsel %vm527, %v2057, 0.0
        %2192 = vadd.xlane.f32.xlu0 %v2191
        %v2193 = vpop.xlane.xlu0 %2192
        %v2194 = vsel %vm1114, %v2058, 0.0
        %2195 = vadd.xlane.f32.xlu0 %v2194
        %v2196 = vpop.xlane.xlu0 %2195
        %v2197 = vsel %vm1107, %v2059, 0.0
        %2198 = vadd.xlane.f32.xlu0 %v2197
        %v2199 = vpop.xlane.xlu0 %2198
        %v2200 = vsel %vm527, %v2060, 0.0
        %2201 = vadd.xlane.f32.xlu0 %v2200
        %v2202 = vpop.xlane.xlu0 %2201
        %v2203 = vsel %vm1114, %v2061, 0.0
        %2204 = vadd.xlane.f32.xlu0 %v2203
        %v2205 = vpop.xlane.xlu0 %2204
        %v2254 = vrot.slane %v2064, 2
        %v2255 = vrot.slane %v2067, 2
        %v2256 = vsel %vm1301, %v2254, %v2255
        %v2257 = vrot.slane %v2070, 2
        %v2258 = vsel %vm1301, %v2255, %v2257
        %v2259 = vrot.slane %v2073, 2
        %v2260 = vrot.slane %v2076, 2
        %v2261 = vsel %vm1301, %v2259, %v2260
        %v2262 = vrot.slane %v2079, 2
        %v2263 = vsel %vm1301, %v2260, %v2262
        %v2264 = vrot.slane %v2082, 2
        %v2265 = vrot.slane %v2085, 2
        %v2266 = vsel %vm1301, %v2264, %v2265
        %v2267 = vrot.slane %v2088, 2
        %v2268 = vsel %vm1301, %v2265, %v2267
        %v2269 = vrot.slane %v2091, 2
        %v2270 = vrot.slane %v2094, 2
        %v2271 = vsel %vm1301, %v2269, %v2270
        %v2272 = vrot.slane %v2097, 2
        %v2273 = vsel %vm1301, %v2270, %v2272
        %v2274 = vrot.slane %v2100, 2
        %v2275 = vrot.slane %v2103, 2
        %v2276 = vsel %vm1301, %v2274, %v2275
        %v2277 = vrot.slane %v2106, 2
        %v2278 = vsel %vm1301, %v2275, %v2277
        %v2279 = vrot.slane %v2109, 2
        %v2280 = vrot.slane %v2112, 2
        %v2281 = vsel %vm1301, %v2279, %v2280
        %v2282 = vrot.slane %v2115, 2
        %v2283 = vsel %vm1301, %v2280, %v2282
        %v2284 = vrot.slane %v2118, 2
        %v2285 = vrot.slane %v2121, 2
        %v2286 = vsel %vm1301, %v2284, %v2285
        %v2287 = vrot.slane %v2124, 2
        %v2288 = vsel %vm1301, %v2285, %v2287
        %v2289 = vrot.slane %v2127, 2
        %v2290 = vrot.slane %v2130, 2
        %v2291 = vsel %vm1301, %v2289, %v2290
        %v2292 = vrot.slane %v2133, 2
        %v2293 = vsel %vm1301, %v2290, %v2292
        %v2294 = vrot.slane %v2136, 2
        %v2295 = vrot.slane %v2139, 2
        %v2296 = vsel %vm1301, %v2294, %v2295
        %v2297 = vrot.slane %v2142, 2
        %v2298 = vsel %vm1301, %v2295, %v2297
        %v2299 = vrot.slane %v2145, 2
        %v2300 = vrot.slane %v2148, 2
        %v2301 = vsel %vm1301, %v2299, %v2300
        %v2302 = vrot.slane %v2151, 2
        %v2303 = vsel %vm1301, %v2300, %v2302
        %v2304 = vrot.slane %v2154, 2
        %v2305 = vrot.slane %v2157, 2
        %v2306 = vsel %vm1301, %v2304, %v2305
        %v2307 = vrot.slane %v2160, 2
        %v2308 = vsel %vm1301, %v2305, %v2307
        %v2309 = vrot.slane %v2163, 2
        %v2310 = vrot.slane %v2166, 2
        %v2311 = vsel %vm1301, %v2309, %v2310
        %v2312 = vrot.slane %v2169, 2
        %v2313 = vsel %vm1301, %v2310, %v2312
        %v2314 = vrot.slane %v2172, 2
        %v2315 = vrot.slane %v2175, 2
        %v2316 = vsel %vm1301, %v2314, %v2315
        %v2317 = vrot.slane %v2178, 2
        %v2318 = vsel %vm1301, %v2315, %v2317
        %v2319 = vrot.slane %v2181, 2
        %v2320 = vrot.slane %v2184, 2
        %v2321 = vsel %vm1301, %v2319, %v2320
        %v2322 = vrot.slane %v2187, 2
        %v2323 = vsel %vm1301, %v2320, %v2322
        %v2324 = vrot.slane %v2190, 2
        %v2325 = vrot.slane %v2193, 2
        %v2326 = vsel %vm1301, %v2324, %v2325
        %v2327 = vrot.slane %v2196, 2
        %v2328 = vsel %vm1301, %v2325, %v2327
        %v2329 = vrot.slane %v2199, 2
        %v2330 = vrot.slane %v2202, 2
        %v2331 = vsel %vm1301, %v2329, %v2330
        %v2332 = vrot.slane %v2205, 2
        %v2333 = vsel %vm1301, %v2330, %v2332
        %v2366 = vadd.f32 %v1974, %v2256
        %v2367 = vadd.f32 %v1975, %v2258
        %v2368 = vadd.f32 %v1976, %v2261
        %v2369 = vadd.f32 %v1977, %v2263
        %v2370 = vadd.f32 %v1978, %v2266
        %v2371 = vadd.f32 %v1979, %v2268
        %v2372 = vadd.f32 %v1980, %v2271
        %v2373 = vadd.f32 %v1981, %v2273
        %v2374 = vadd.f32 %v1982, %v2276
        %v2375 = vadd.f32 %v1983, %v2278
        %v2376 = vadd.f32 %v1984, %v2281
        %v2377 = vadd.f32 %v1985, %v2283
        %v2378 = vadd.f32 %v1986, %v2286
        %v2379 = vadd.f32 %v1987, %v2288
        %v2380 = vadd.f32 %v1988, %v2291
        %v2381 = vadd.f32 %v1989, %v2293
        %v2382 = vadd.f32 %v1990, %v2296
        %v2383 = vadd.f32 %v1991, %v2298
        %v2384 = vadd.f32 %v1992, %v2301
        %v2385 = vadd.f32 %v1993, %v2303
        %v2386 = vadd.f32 %v1994, %v2306
        %v2387 = vadd.f32 %v1995, %v2308
        %v2388 = vadd.f32 %v1996, %v2311
        %v2389 = vadd.f32 %v1997, %v2313
        %v2390 = vadd.f32 %v1998, %v2316
        %v2391 = vadd.f32 %v1999, %v2318
        %v2392 = vadd.f32 %v2000, %v2321
        %v2393 = vadd.f32 %v2001, %v2323
        %v2394 = vadd.f32 %v2002, %v2326
        %v2395 = vadd.f32 %v2003, %v2328
        %v2396 = vadd.f32 %v2004, %v2331
        %v2397 = vadd.f32 %v2005, %v2333
        %s2398 = scalar_lea.vmem %s2, 6
        %v2399 = vld [vmem:[%s2398] sm:$0x1]
        %v2401 = vlaneseq
        %v2402 = vshrl.u32 %v2401, 7
        %v2403 = vsub.s32 0, %v2402
        %v2404 = vrot.slane %v2399, %v2403
        %v2406 = vmul.f32 %v440, %v2404
        %v2407 = vmul.f32 %v441, %v2404
        %v2408 = vmul.f32 %v443, %v2404
        %v2409 = vmul.f32 %v444, %v2404
        %v2410 = vmul.f32 %v446, %v2404
        %v2411 = vmul.f32 %v447, %v2404
        %v2412 = vmul.f32 %v449, %v2404
        %v2413 = vmul.f32 %v450, %v2404
        %v2414 = vmul.f32 %v452, %v2404
        %v2415 = vmul.f32 %v453, %v2404
        %v2416 = vmul.f32 %v455, %v2404
        %v2417 = vmul.f32 %v456, %v2404
        %v2418 = vmul.f32 %v458, %v2404
        %v2419 = vmul.f32 %v459, %v2404
        %v2420 = vmul.f32 %v461, %v2404
        %v2421 = vmul.f32 %v462, %v2404
        %v2422 = vmul.f32 %v464, %v2404
        %v2423 = vmul.f32 %v465, %v2404
        %v2424 = vmul.f32 %v467, %v2404
        %v2425 = vmul.f32 %v468, %v2404
        %v2426 = vmul.f32 %v470, %v2404
        %v2427 = vmul.f32 %v471, %v2404
        %v2428 = vmul.f32 %v473, %v2404
        %v2429 = vmul.f32 %v474, %v2404
        %v2430 = vmul.f32 %v476, %v2404
        %v2431 = vmul.f32 %v477, %v2404
        %v2432 = vmul.f32 %v479, %v2404
        %v2433 = vmul.f32 %v480, %v2404
        %v2434 = vmul.f32 %v482, %v2404
        %v2435 = vmul.f32 %v483, %v2404
        %v2436 = vmul.f32 %v485, %v2404
        %v2437 = vmul.f32 %v486, %v2404
        %v2438 = vsel %vm527, %v2406, 0.0
        %2439 = vadd.xlane.f32.xlu0 %v2438
        %v2440 = vpop.xlane.xlu0 %2439
        %v2441 = vsel %vm527, %v2407, 0.0
        %2442 = vadd.xlane.f32.xlu0 %v2441
        %v2443 = vpop.xlane.xlu0 %2442
        %v2444 = vsel %vm527, %v2408, 0.0
        %2445 = vadd.xlane.f32.xlu0 %v2444
        %v2446 = vpop.xlane.xlu0 %2445
        %v2447 = vsel %vm527, %v2409, 0.0
        %2448 = vadd.xlane.f32.xlu0 %v2447
        %v2449 = vpop.xlane.xlu0 %2448
        %v2450 = vsel %vm527, %v2410, 0.0
        %2451 = vadd.xlane.f32.xlu0 %v2450
        %v2452 = vpop.xlane.xlu0 %2451
        %v2453 = vsel %vm527, %v2411, 0.0
        %2454 = vadd.xlane.f32.xlu0 %v2453
        %v2455 = vpop.xlane.xlu0 %2454
        %v2456 = vsel %vm527, %v2412, 0.0
        %2457 = vadd.xlane.f32.xlu0 %v2456
        %v2458 = vpop.xlane.xlu0 %2457
        %v2459 = vsel %vm527, %v2413, 0.0
        %2460 = vadd.xlane.f32.xlu0 %v2459
        %v2461 = vpop.xlane.xlu0 %2460
        %v2462 = vsel %vm527, %v2414, 0.0
        %2463 = vadd.xlane.f32.xlu0 %v2462
        %v2464 = vpop.xlane.xlu0 %2463
        %v2465 = vsel %vm527, %v2415, 0.0
        %2466 = vadd.xlane.f32.xlu0 %v2465
        %v2467 = vpop.xlane.xlu0 %2466
        %v2468 = vsel %vm527, %v2416, 0.0
        %2469 = vadd.xlane.f32.xlu0 %v2468
        %v2470 = vpop.xlane.xlu0 %2469
        %v2471 = vsel %vm527, %v2417, 0.0
        %2472 = vadd.xlane.f32.xlu0 %v2471
        %v2473 = vpop.xlane.xlu0 %2472
        %v2474 = vsel %vm527, %v2418, 0.0
        %2475 = vadd.xlane.f32.xlu0 %v2474
        %v2476 = vpop.xlane.xlu0 %2475
        %v2477 = vsel %vm527, %v2419, 0.0
        %2478 = vadd.xlane.f32.xlu0 %v2477
        %v2479 = vpop.xlane.xlu0 %2478
        %v2480 = vsel %vm527, %v2420, 0.0
        %2481 = vadd.xlane.f32.xlu0 %v2480
        %v2482 = vpop.xlane.xlu0 %2481
        %v2483 = vsel %vm527, %v2421, 0.0
        %2484 = vadd.xlane.f32.xlu0 %v2483
        %v2485 = vpop.xlane.xlu0 %2484
        %v2486 = vsel %vm527, %v2422, 0.0
        %2487 = vadd.xlane.f32.xlu0 %v2486
        %v2488 = vpop.xlane.xlu0 %2487
        %v2489 = vsel %vm527, %v2423, 0.0
        %2490 = vadd.xlane.f32.xlu0 %v2489
        %v2491 = vpop.xlane.xlu0 %2490
        %v2492 = vsel %vm527, %v2424, 0.0
        %2493 = vadd.xlane.f32.xlu0 %v2492
        %v2494 = vpop.xlane.xlu0 %2493
        %v2495 = vsel %vm527, %v2425, 0.0
        %2496 = vadd.xlane.f32.xlu0 %v2495
        %v2497 = vpop.xlane.xlu0 %2496
        %v2498 = vsel %vm527, %v2426, 0.0
        %2499 = vadd.xlane.f32.xlu0 %v2498
        %v2500 = vpop.xlane.xlu0 %2499
        %v2501 = vsel %vm527, %v2427, 0.0
        %2502 = vadd.xlane.f32.xlu0 %v2501
        %v2503 = vpop.xlane.xlu0 %2502
        %v2504 = vsel %vm527, %v2428, 0.0
        %2505 = vadd.xlane.f32.xlu0 %v2504
        %v2506 = vpop.xlane.xlu0 %2505
        %v2507 = vsel %vm527, %v2429, 0.0
        %2508 = vadd.xlane.f32.xlu0 %v2507
        %v2509 = vpop.xlane.xlu0 %2508
        %v2510 = vsel %vm527, %v2430, 0.0
        %2511 = vadd.xlane.f32.xlu0 %v2510
        %v2512 = vpop.xlane.xlu0 %2511
        %v2513 = vsel %vm527, %v2431, 0.0
        %2514 = vadd.xlane.f32.xlu0 %v2513
        %v2515 = vpop.xlane.xlu0 %2514
        %v2516 = vsel %vm527, %v2432, 0.0
        %2517 = vadd.xlane.f32.xlu0 %v2516
        %v2518 = vpop.xlane.xlu0 %2517
        %v2519 = vsel %vm527, %v2433, 0.0
        %2520 = vadd.xlane.f32.xlu0 %v2519
        %v2521 = vpop.xlane.xlu0 %2520
        %v2522 = vsel %vm527, %v2434, 0.0
        %2523 = vadd.xlane.f32.xlu0 %v2522
        %v2524 = vpop.xlane.xlu0 %2523
        %v2525 = vsel %vm527, %v2435, 0.0
        %2526 = vadd.xlane.f32.xlu0 %v2525
        %v2527 = vpop.xlane.xlu0 %2526
        %v2528 = vsel %vm527, %v2436, 0.0
        %2529 = vadd.xlane.f32.xlu0 %v2528
        %v2530 = vpop.xlane.xlu0 %2529
        %v2531 = vsel %vm527, %v2437, 0.0
        %2532 = vadd.xlane.f32.xlu0 %v2531
        %v2533 = vpop.xlane.xlu0 %2532
        %v2534 = vadd.f32 %v2366, %v2440
        %v2535 = vadd.f32 %v2367, %v2443
        %v2536 = vadd.f32 %v2368, %v2446
        %v2537 = vadd.f32 %v2369, %v2449
        %v2538 = vadd.f32 %v2370, %v2452
        %v2539 = vadd.f32 %v2371, %v2455
        %v2540 = vadd.f32 %v2372, %v2458
        %v2541 = vadd.f32 %v2373, %v2461
        %v2542 = vadd.f32 %v2374, %v2464
        %v2543 = vadd.f32 %v2375, %v2467
        %v2544 = vadd.f32 %v2376, %v2470
        %v2545 = vadd.f32 %v2377, %v2473
        %v2546 = vadd.f32 %v2378, %v2476
        %v2547 = vadd.f32 %v2379, %v2479
        %v2548 = vadd.f32 %v2380, %v2482
        %v2549 = vadd.f32 %v2381, %v2485
        %v2550 = vadd.f32 %v2382, %v2488
        %v2551 = vadd.f32 %v2383, %v2491
        %v2552 = vadd.f32 %v2384, %v2494
        %v2553 = vadd.f32 %v2385, %v2497
        %v2554 = vadd.f32 %v2386, %v2500
        %v2555 = vadd.f32 %v2387, %v2503
        %v2556 = vadd.f32 %v2388, %v2506
        %v2557 = vadd.f32 %v2389, %v2509
        %v2558 = vadd.f32 %v2390, %v2512
        %v2559 = vadd.f32 %v2391, %v2515
        %v2560 = vadd.f32 %v2392, %v2518
        %v2561 = vadd.f32 %v2393, %v2521
        %v2562 = vadd.f32 %v2394, %v2524
        %v2563 = vadd.f32 %v2395, %v2527
        %v2564 = vadd.f32 %v2396, %v2530
        %v2565 = vadd.f32 %v2397, %v2533
        %s2566 = scalar_lea.vmem %s2, 7
        %v2567 = vld [vmem:[%s2566] sm:$0x1]
        %v2569 = vlaneseq
        %v2570 = vshrl.u32 %v2569, 7
        %v2571 = vsub.s32 0, %v2570
        %v2572 = vrot.slane %v2567, %v2571
        %v2574 = vmul.f32 %v440, %v2572
        %v2575 = vmul.f32 %v441, %v2572
        %v2576 = vmul.f32 %v442, %v2572
        %v2577 = vmul.f32 %v443, %v2572
        %v2578 = vmul.f32 %v444, %v2572
        %v2579 = vmul.f32 %v445, %v2572
        %v2580 = vmul.f32 %v446, %v2572
        %v2581 = vmul.f32 %v447, %v2572
        %v2582 = vmul.f32 %v448, %v2572
        %v2583 = vmul.f32 %v449, %v2572
        %v2584 = vmul.f32 %v450, %v2572
        %v2585 = vmul.f32 %v451, %v2572
        %v2586 = vmul.f32 %v452, %v2572
        %v2587 = vmul.f32 %v453, %v2572
        %v2588 = vmul.f32 %v454, %v2572
        %v2589 = vmul.f32 %v455, %v2572
        %v2590 = vmul.f32 %v456, %v2572
        %v2591 = vmul.f32 %v457, %v2572
        %v2592 = vmul.f32 %v458, %v2572
        %v2593 = vmul.f32 %v459, %v2572
        %v2594 = vmul.f32 %v460, %v2572
        %v2595 = vmul.f32 %v461, %v2572
        %v2596 = vmul.f32 %v462, %v2572
        %v2597 = vmul.f32 %v463, %v2572
        %v2598 = vmul.f32 %v464, %v2572
        %v2599 = vmul.f32 %v465, %v2572
        %v2600 = vmul.f32 %v466, %v2572
        %v2601 = vmul.f32 %v467, %v2572
        %v2602 = vmul.f32 %v468, %v2572
        %v2603 = vmul.f32 %v469, %v2572
        %v2604 = vmul.f32 %v470, %v2572
        %v2605 = vmul.f32 %v471, %v2572
        %v2606 = vmul.f32 %v472, %v2572
        %v2607 = vmul.f32 %v473, %v2572
        %v2608 = vmul.f32 %v474, %v2572
        %v2609 = vmul.f32 %v475, %v2572
        %v2610 = vmul.f32 %v476, %v2572
        %v2611 = vmul.f32 %v477, %v2572
        %v2612 = vmul.f32 %v478, %v2572
        %v2613 = vmul.f32 %v479, %v2572
        %v2614 = vmul.f32 %v480, %v2572
        %v2615 = vmul.f32 %v481, %v2572
        %v2616 = vmul.f32 %v482, %v2572
        %v2617 = vmul.f32 %v483, %v2572
        %v2618 = vmul.f32 %v484, %v2572
        %v2619 = vmul.f32 %v485, %v2572
        %v2620 = vmul.f32 %v486, %v2572
        %v2621 = vmul.f32 %v487, %v2572
        %v2622 = vsel %vm712, %v2574, 0.0
        %2623 = vadd.xlane.f32.xlu0 %v2622
        %v2624 = vpop.xlane.xlu0 %2623
        %v2625 = vsel %vm527, %v2575, 0.0
        %2626 = vadd.xlane.f32.xlu0 %v2625
        %v2627 = vpop.xlane.xlu0 %2626
        %v2628 = vsel %vm719, %v2576, 0.0
        %2629 = vadd.xlane.f32.xlu0 %v2628
        %v2630 = vpop.xlane.xlu0 %2629
        %v2631 = vsel %vm712, %v2577, 0.0
        %2632 = vadd.xlane.f32.xlu0 %v2631
        %v2633 = vpop.xlane.xlu0 %2632
        %v2634 = vsel %vm527, %v2578, 0.0
        %2635 = vadd.xlane.f32.xlu0 %v2634
        %v2636 = vpop.xlane.xlu0 %2635
        %v2637 = vsel %vm719, %v2579, 0.0
        %2638 = vadd.xlane.f32.xlu0 %v2637
        %v2639 = vpop.xlane.xlu0 %2638
        %v2640 = vsel %vm712, %v2580, 0.0
        %2641 = vadd.xlane.f32.xlu0 %v2640
        %v2642 = vpop.xlane.xlu0 %2641
        %v2643 = vsel %vm527, %v2581, 0.0
        %2644 = vadd.xlane.f32.xlu0 %v2643
        %v2645 = vpop.xlane.xlu0 %2644
        %v2646 = vsel %vm719, %v2582, 0.0
        %2647 = vadd.xlane.f32.xlu0 %v2646
        %v2648 = vpop.xlane.xlu0 %2647
        %v2649 = vsel %vm712, %v2583, 0.0
        %2650 = vadd.xlane.f32.xlu0 %v2649
        %v2651 = vpop.xlane.xlu0 %2650
        %v2652 = vsel %vm527, %v2584, 0.0
        %2653 = vadd.xlane.f32.xlu0 %v2652
        %v2654 = vpop.xlane.xlu0 %2653
        %v2655 = vsel %vm719, %v2585, 0.0
        %2656 = vadd.xlane.f32.xlu0 %v2655
        %v2657 = vpop.xlane.xlu0 %2656
        %v2658 = vsel %vm712, %v2586, 0.0
        %2659 = vadd.xlane.f32.xlu0 %v2658
        %v2660 = vpop.xlane.xlu0 %2659
        %v2661 = vsel %vm527, %v2587, 0.0
        %2662 = vadd.xlane.f32.xlu0 %v2661
        %v2663 = vpop.xlane.xlu0 %2662
        %v2664 = vsel %vm719, %v2588, 0.0
        %2665 = vadd.xlane.f32.xlu0 %v2664
        %v2666 = vpop.xlane.xlu0 %2665
        %v2667 = vsel %vm712, %v2589, 0.0
        %2668 = vadd.xlane.f32.xlu0 %v2667
        %v2669 = vpop.xlane.xlu0 %2668
        %v2670 = vsel %vm527, %v2590, 0.0
        %2671 = vadd.xlane.f32.xlu0 %v2670
        %v2672 = vpop.xlane.xlu0 %2671
        %v2673 = vsel %vm719, %v2591, 0.0
        %2674 = vadd.xlane.f32.xlu0 %v2673
        %v2675 = vpop.xlane.xlu0 %2674
        %v2676 = vsel %vm712, %v2592, 0.0
        %2677 = vadd.xlane.f32.xlu0 %v2676
        %v2678 = vpop.xlane.xlu0 %2677
        %v2679 = vsel %vm527, %v2593, 0.0
        %2680 = vadd.xlane.f32.xlu0 %v2679
        %v2681 = vpop.xlane.xlu0 %2680
        %v2682 = vsel %vm719, %v2594, 0.0
        %2683 = vadd.xlane.f32.xlu0 %v2682
        %v2684 = vpop.xlane.xlu0 %2683
        %v2685 = vsel %vm712, %v2595, 0.0
        %2686 = vadd.xlane.f32.xlu0 %v2685
        %v2687 = vpop.xlane.xlu0 %2686
        %v2688 = vsel %vm527, %v2596, 0.0
        %2689 = vadd.xlane.f32.xlu0 %v2688
        %v2690 = vpop.xlane.xlu0 %2689
        %v2691 = vsel %vm719, %v2597, 0.0
        %2692 = vadd.xlane.f32.xlu0 %v2691
        %v2693 = vpop.xlane.xlu0 %2692
        %v2694 = vsel %vm712, %v2598, 0.0
        %2695 = vadd.xlane.f32.xlu0 %v2694
        %v2696 = vpop.xlane.xlu0 %2695
        %v2697 = vsel %vm527, %v2599, 0.0
        %2698 = vadd.xlane.f32.xlu0 %v2697
        %v2699 = vpop.xlane.xlu0 %2698
        %v2700 = vsel %vm719, %v2600, 0.0
        %2701 = vadd.xlane.f32.xlu0 %v2700
        %v2702 = vpop.xlane.xlu0 %2701
        %v2703 = vsel %vm712, %v2601, 0.0
        %2704 = vadd.xlane.f32.xlu0 %v2703
        %v2705 = vpop.xlane.xlu0 %2704
        %v2706 = vsel %vm527, %v2602, 0.0
        %2707 = vadd.xlane.f32.xlu0 %v2706
        %v2708 = vpop.xlane.xlu0 %2707
        %v2709 = vsel %vm719, %v2603, 0.0
        %2710 = vadd.xlane.f32.xlu0 %v2709
        %v2711 = vpop.xlane.xlu0 %2710
        %v2712 = vsel %vm712, %v2604, 0.0
        %2713 = vadd.xlane.f32.xlu0 %v2712
        %v2714 = vpop.xlane.xlu0 %2713
        %v2715 = vsel %vm527, %v2605, 0.0
        %2716 = vadd.xlane.f32.xlu0 %v2715
        %v2717 = vpop.xlane.xlu0 %2716
        %v2718 = vsel %vm719, %v2606, 0.0
        %2719 = vadd.xlane.f32.xlu0 %v2718
        %v2720 = vpop.xlane.xlu0 %2719
        %v2721 = vsel %vm712, %v2607, 0.0
        %2722 = vadd.xlane.f32.xlu0 %v2721
        %v2723 = vpop.xlane.xlu0 %2722
        %v2724 = vsel %vm527, %v2608, 0.0
        %2725 = vadd.xlane.f32.xlu0 %v2724
        %v2726 = vpop.xlane.xlu0 %2725
        %v2727 = vsel %vm719, %v2609, 0.0
        %2728 = vadd.xlane.f32.xlu0 %v2727
        %v2729 = vpop.xlane.xlu0 %2728
        %v2730 = vsel %vm712, %v2610, 0.0
        %2731 = vadd.xlane.f32.xlu0 %v2730
        %v2732 = vpop.xlane.xlu0 %2731
        %v2733 = vsel %vm527, %v2611, 0.0
        %2734 = vadd.xlane.f32.xlu0 %v2733
        %v2735 = vpop.xlane.xlu0 %2734
        %v2736 = vsel %vm719, %v2612, 0.0
        %2737 = vadd.xlane.f32.xlu0 %v2736
        %v2738 = vpop.xlane.xlu0 %2737
        %v2739 = vsel %vm712, %v2613, 0.0
        %2740 = vadd.xlane.f32.xlu0 %v2739
        %v2741 = vpop.xlane.xlu0 %2740
        %v2742 = vsel %vm527, %v2614, 0.0
        %2743 = vadd.xlane.f32.xlu0 %v2742
        %v2744 = vpop.xlane.xlu0 %2743
        %v2745 = vsel %vm719, %v2615, 0.0
        %2746 = vadd.xlane.f32.xlu0 %v2745
        %v2747 = vpop.xlane.xlu0 %2746
        %v2748 = vsel %vm712, %v2616, 0.0
        %2749 = vadd.xlane.f32.xlu0 %v2748
        %v2750 = vpop.xlane.xlu0 %2749
        %v2751 = vsel %vm527, %v2617, 0.0
        %2752 = vadd.xlane.f32.xlu0 %v2751
        %v2753 = vpop.xlane.xlu0 %2752
        %v2754 = vsel %vm719, %v2618, 0.0
        %2755 = vadd.xlane.f32.xlu0 %v2754
        %v2756 = vpop.xlane.xlu0 %2755
        %v2757 = vsel %vm712, %v2619, 0.0
        %2758 = vadd.xlane.f32.xlu0 %v2757
        %v2759 = vpop.xlane.xlu0 %2758
        %v2760 = vsel %vm527, %v2620, 0.0
        %2761 = vadd.xlane.f32.xlu0 %v2760
        %v2762 = vpop.xlane.xlu0 %2761
        %v2763 = vsel %vm719, %v2621, 0.0
        %2764 = vadd.xlane.f32.xlu0 %v2763
        %v2765 = vpop.xlane.xlu0 %2764
        %v2814 = vrot.slane %v2624, 1
        %v2815 = vrot.slane %v2627, 1
        %v2816 = vsel %vm906, %v2814, %v2815
        %v2817 = vrot.slane %v2630, 1
        %v2818 = vsel %vm906, %v2815, %v2817
        %v2819 = vrot.slane %v2633, 1
        %v2820 = vrot.slane %v2636, 1
        %v2821 = vsel %vm906, %v2819, %v2820
        %v2822 = vrot.slane %v2639, 1
        %v2823 = vsel %vm906, %v2820, %v2822
        %v2824 = vrot.slane %v2642, 1
        %v2825 = vrot.slane %v2645, 1
        %v2826 = vsel %vm906, %v2824, %v2825
        %v2827 = vrot.slane %v2648, 1
        %v2828 = vsel %vm906, %v2825, %v2827
        %v2829 = vrot.slane %v2651, 1
        %v2830 = vrot.slane %v2654, 1
        %v2831 = vsel %vm906, %v2829, %v2830
        %v2832 = vrot.slane %v2657, 1
        %v2833 = vsel %vm906, %v2830, %v2832
        %v2834 = vrot.slane %v2660, 1
        %v2835 = vrot.slane %v2663, 1
        %v2836 = vsel %vm906, %v2834, %v2835
        %v2837 = vrot.slane %v2666, 1
        %v2838 = vsel %vm906, %v2835, %v2837
        %v2839 = vrot.slane %v2669, 1
        %v2840 = vrot.slane %v2672, 1
        %v2841 = vsel %vm906, %v2839, %v2840
        %v2842 = vrot.slane %v2675, 1
        %v2843 = vsel %vm906, %v2840, %v2842
        %v2844 = vrot.slane %v2678, 1
        %v2845 = vrot.slane %v2681, 1
        %v2846 = vsel %vm906, %v2844, %v2845
        %v2847 = vrot.slane %v2684, 1
        %v2848 = vsel %vm906, %v2845, %v2847
        %v2849 = vrot.slane %v2687, 1
        %v2850 = vrot.slane %v2690, 1
        %v2851 = vsel %vm906, %v2849, %v2850
        %v2852 = vrot.slane %v2693, 1
        %v2853 = vsel %vm906, %v2850, %v2852
        %v2854 = vrot.slane %v2696, 1
        %v2855 = vrot.slane %v2699, 1
        %v2856 = vsel %vm906, %v2854, %v2855
        %v2857 = vrot.slane %v2702, 1
        %v2858 = vsel %vm906, %v2855, %v2857
        %v2859 = vrot.slane %v2705, 1
        %v2860 = vrot.slane %v2708, 1
        %v2861 = vsel %vm906, %v2859, %v2860
        %v2862 = vrot.slane %v2711, 1
        %v2863 = vsel %vm906, %v2860, %v2862
        %v2864 = vrot.slane %v2714, 1
        %v2865 = vrot.slane %v2717, 1
        %v2866 = vsel %vm906, %v2864, %v2865
        %v2867 = vrot.slane %v2720, 1
        %v2868 = vsel %vm906, %v2865, %v2867
        %v2869 = vrot.slane %v2723, 1
        %v2870 = vrot.slane %v2726, 1
        %v2871 = vsel %vm906, %v2869, %v2870
        %v2872 = vrot.slane %v2729, 1
        %v2873 = vsel %vm906, %v2870, %v2872
        %v2874 = vrot.slane %v2732, 1
        %v2875 = vrot.slane %v2735, 1
        %v2876 = vsel %vm906, %v2874, %v2875
        %v2877 = vrot.slane %v2738, 1
        %v2878 = vsel %vm906, %v2875, %v2877
        %v2879 = vrot.slane %v2741, 1
        %v2880 = vrot.slane %v2744, 1
        %v2881 = vsel %vm906, %v2879, %v2880
        %v2882 = vrot.slane %v2747, 1
        %v2883 = vsel %vm906, %v2880, %v2882
        %v2884 = vrot.slane %v2750, 1
        %v2885 = vrot.slane %v2753, 1
        %v2886 = vsel %vm906, %v2884, %v2885
        %v2887 = vrot.slane %v2756, 1
        %v2888 = vsel %vm906, %v2885, %v2887
        %v2889 = vrot.slane %v2759, 1
        %v2890 = vrot.slane %v2762, 1
        %v2891 = vsel %vm906, %v2889, %v2890
        %v2892 = vrot.slane %v2765, 1
        %v2893 = vsel %vm906, %v2890, %v2892
        %v2926 = vadd.f32 %v2534, %v2816
        %v2927 = vadd.f32 %v2535, %v2818
        %v2928 = vadd.f32 %v2536, %v2821
        %v2929 = vadd.f32 %v2537, %v2823
        %v2930 = vadd.f32 %v2538, %v2826
        %v2931 = vadd.f32 %v2539, %v2828
        %v2932 = vadd.f32 %v2540, %v2831
        %v2933 = vadd.f32 %v2541, %v2833
        %v2934 = vadd.f32 %v2542, %v2836
        %v2935 = vadd.f32 %v2543, %v2838
        %v2936 = vadd.f32 %v2544, %v2841
        %v2937 = vadd.f32 %v2545, %v2843
        %v2938 = vadd.f32 %v2546, %v2846
        %v2939 = vadd.f32 %v2547, %v2848
        %v2940 = vadd.f32 %v2548, %v2851
        %v2941 = vadd.f32 %v2549, %v2853
        %v2942 = vadd.f32 %v2550, %v2856
        %v2943 = vadd.f32 %v2551, %v2858
        %v2944 = vadd.f32 %v2552, %v2861
        %v2945 = vadd.f32 %v2553, %v2863
        %v2946 = vadd.f32 %v2554, %v2866
        %v2947 = vadd.f32 %v2555, %v2868
        %v2948 = vadd.f32 %v2556, %v2871
        %v2949 = vadd.f32 %v2557, %v2873
        %v2950 = vadd.f32 %v2558, %v2876
        %v2951 = vadd.f32 %v2559, %v2878
        %v2952 = vadd.f32 %v2560, %v2881
        %v2953 = vadd.f32 %v2561, %v2883
        %v2954 = vadd.f32 %v2562, %v2886
        %v2955 = vadd.f32 %v2563, %v2888
        %v2956 = vadd.f32 %v2564, %v2891
        %v2957 = vadd.f32 %v2565, %v2893
        %s2958 = scalar_lea.vmem %s2, 8
        %v2959 = vld [vmem:[%s2958] sm:$0x1]
        %v2961 = vlaneseq
        %v2962 = vshrl.u32 %v2961, 7
        %v2963 = vsub.s32 0, %v2962
        %v2964 = vrot.slane %v2959, %v2963
        %v2966 = vmul.f32 %v440, %v2964
        %v2967 = vmul.f32 %v441, %v2964
        %v2968 = vmul.f32 %v442, %v2964
        %v2969 = vmul.f32 %v443, %v2964
        %v2970 = vmul.f32 %v444, %v2964
        %v2971 = vmul.f32 %v445, %v2964
        %v2972 = vmul.f32 %v446, %v2964
        %v2973 = vmul.f32 %v447, %v2964
        %v2974 = vmul.f32 %v448, %v2964
        %v2975 = vmul.f32 %v449, %v2964
        %v2976 = vmul.f32 %v450, %v2964
        %v2977 = vmul.f32 %v451, %v2964
        %v2978 = vmul.f32 %v452, %v2964
        %v2979 = vmul.f32 %v453, %v2964
        %v2980 = vmul.f32 %v454, %v2964
        %v2981 = vmul.f32 %v455, %v2964
        %v2982 = vmul.f32 %v456, %v2964
        %v2983 = vmul.f32 %v457, %v2964
        %v2984 = vmul.f32 %v458, %v2964
        %v2985 = vmul.f32 %v459, %v2964
        %v2986 = vmul.f32 %v460, %v2964
        %v2987 = vmul.f32 %v461, %v2964
        %v2988 = vmul.f32 %v462, %v2964
        %v2989 = vmul.f32 %v463, %v2964
        %v2990 = vmul.f32 %v464, %v2964
        %v2991 = vmul.f32 %v465, %v2964
        %v2992 = vmul.f32 %v466, %v2964
        %v2993 = vmul.f32 %v467, %v2964
        %v2994 = vmul.f32 %v468, %v2964
        %v2995 = vmul.f32 %v469, %v2964
        %v2996 = vmul.f32 %v470, %v2964
        %v2997 = vmul.f32 %v471, %v2964
        %v2998 = vmul.f32 %v472, %v2964
        %v2999 = vmul.f32 %v473, %v2964
        %v3000 = vmul.f32 %v474, %v2964
        %v3001 = vmul.f32 %v475, %v2964
        %v3002 = vmul.f32 %v476, %v2964
        %v3003 = vmul.f32 %v477, %v2964
        %v3004 = vmul.f32 %v478, %v2964
        %v3005 = vmul.f32 %v479, %v2964
        %v3006 = vmul.f32 %v480, %v2964
        %v3007 = vmul.f32 %v481, %v2964
        %v3008 = vmul.f32 %v482, %v2964
        %v3009 = vmul.f32 %v483, %v2964
        %v3010 = vmul.f32 %v484, %v2964
        %v3011 = vmul.f32 %v485, %v2964
        %v3012 = vmul.f32 %v486, %v2964
        %v3013 = vmul.f32 %v487, %v2964
        %v3014 = vsel %vm1107, %v2966, 0.0
        %3015 = vadd.xlane.f32.xlu0 %v3014
        %v3016 = vpop.xlane.xlu0 %3015
        %v3017 = vsel %vm527, %v2967, 0.0
        %3018 = vadd.xlane.f32.xlu0 %v3017
        %v3019 = vpop.xlane.xlu0 %3018
        %v3020 = vsel %vm1114, %v2968, 0.0
        %3021 = vadd.xlane.f32.xlu0 %v3020
        %v3022 = vpop.xlane.xlu0 %3021
        %v3023 = vsel %vm1107, %v2969, 0.0
        %3024 = vadd.xlane.f32.xlu0 %v3023
        %v3025 = vpop.xlane.xlu0 %3024
        %v3026 = vsel %vm527, %v2970, 0.0
        %3027 = vadd.xlane.f32.xlu0 %v3026
        %v3028 = vpop.xlane.xlu0 %3027
        %v3029 = vsel %vm1114, %v2971, 0.0
        %3030 = vadd.xlane.f32.xlu0 %v3029
        %v3031 = vpop.xlane.xlu0 %3030
        %v3032 = vsel %vm1107, %v2972, 0.0
        %3033 = vadd.xlane.f32.xlu0 %v3032
        %v3034 = vpop.xlane.xlu0 %3033
        %v3035 = vsel %vm527, %v2973, 0.0
        %3036 = vadd.xlane.f32.xlu0 %v3035
        %v3037 = vpop.xlane.xlu0 %3036
        %v3038 = vsel %vm1114, %v2974, 0.0
        %3039 = vadd.xlane.f32.xlu0 %v3038
        %v3040 = vpop.xlane.xlu0 %3039
        %v3041 = vsel %vm1107, %v2975, 0.0
        %3042 = vadd.xlane.f32.xlu0 %v3041
        %v3043 = vpop.xlane.xlu0 %3042
        %v3044 = vsel %vm527, %v2976, 0.0
        %3045 = vadd.xlane.f32.xlu0 %v3044
        %v3046 = vpop.xlane.xlu0 %3045
        %v3047 = vsel %vm1114, %v2977, 0.0
        %3048 = vadd.xlane.f32.xlu0 %v3047
        %v3049 = vpop.xlane.xlu0 %3048
        %v3050 = vsel %vm1107, %v2978, 0.0
        %3051 = vadd.xlane.f32.xlu0 %v3050
        %v3052 = vpop.xlane.xlu0 %3051
        %v3053 = vsel %vm527, %v2979, 0.0
        %3054 = vadd.xlane.f32.xlu0 %v3053
        %v3055 = vpop.xlane.xlu0 %3054
        %v3056 = vsel %vm1114, %v2980, 0.0
        %3057 = vadd.xlane.f32.xlu0 %v3056
        %v3058 = vpop.xlane.xlu0 %3057
        %v3059 = vsel %vm1107, %v2981, 0.0
        %3060 = vadd.xlane.f32.xlu0 %v3059
        %v3061 = vpop.xlane.xlu0 %3060
        %v3062 = vsel %vm527, %v2982, 0.0
        %3063 = vadd.xlane.f32.xlu0 %v3062
        %v3064 = vpop.xlane.xlu0 %3063
        %v3065 = vsel %vm1114, %v2983, 0.0
        %3066 = vadd.xlane.f32.xlu0 %v3065
        %v3067 = vpop.xlane.xlu0 %3066
        %v3068 = vsel %vm1107, %v2984, 0.0
        %3069 = vadd.xlane.f32.xlu0 %v3068
        %v3070 = vpop.xlane.xlu0 %3069
        %v3071 = vsel %vm527, %v2985, 0.0
        %3072 = vadd.xlane.f32.xlu0 %v3071
        %v3073 = vpop.xlane.xlu0 %3072
        %v3074 = vsel %vm1114, %v2986, 0.0
        %3075 = vadd.xlane.f32.xlu0 %v3074
        %v3076 = vpop.xlane.xlu0 %3075
        %v3077 = vsel %vm1107, %v2987, 0.0
        %3078 = vadd.xlane.f32.xlu0 %v3077
        %v3079 = vpop.xlane.xlu0 %3078
        %v3080 = vsel %vm527, %v2988, 0.0
        %3081 = vadd.xlane.f32.xlu0 %v3080
        %v3082 = vpop.xlane.xlu0 %3081
        %v3083 = vsel %vm1114, %v2989, 0.0
        %3084 = vadd.xlane.f32.xlu0 %v3083
        %v3085 = vpop.xlane.xlu0 %3084
        %v3086 = vsel %vm1107, %v2990, 0.0
        %3087 = vadd.xlane.f32.xlu0 %v3086
        %v3088 = vpop.xlane.xlu0 %3087
        %v3089 = vsel %vm527, %v2991, 0.0
        %3090 = vadd.xlane.f32.xlu0 %v3089
        %v3091 = vpop.xlane.xlu0 %3090
        %v3092 = vsel %vm1114, %v2992, 0.0
        %3093 = vadd.xlane.f32.xlu0 %v3092
        %v3094 = vpop.xlane.xlu0 %3093
        %v3095 = vsel %vm1107, %v2993, 0.0
        %3096 = vadd.xlane.f32.xlu0 %v3095
        %v3097 = vpop.xlane.xlu0 %3096
        %v3098 = vsel %vm527, %v2994, 0.0
        %3099 = vadd.xlane.f32.xlu0 %v3098
        %v3100 = vpop.xlane.xlu0 %3099
        %v3101 = vsel %vm1114, %v2995, 0.0
        %3102 = vadd.xlane.f32.xlu0 %v3101
        %v3103 = vpop.xlane.xlu0 %3102
        %v3104 = vsel %vm1107, %v2996, 0.0
        %3105 = vadd.xlane.f32.xlu0 %v3104
        %v3106 = vpop.xlane.xlu0 %3105
        %v3107 = vsel %vm527, %v2997, 0.0
        %3108 = vadd.xlane.f32.xlu0 %v3107
        %v3109 = vpop.xlane.xlu0 %3108
        %v3110 = vsel %vm1114, %v2998, 0.0
        %3111 = vadd.xlane.f32.xlu0 %v3110
        %v3112 = vpop.xlane.xlu0 %3111
        %v3113 = vsel %vm1107, %v2999, 0.0
        %3114 = vadd.xlane.f32.xlu0 %v3113
        %v3115 = vpop.xlane.xlu0 %3114
        %v3116 = vsel %vm527, %v3000, 0.0
        %3117 = vadd.xlane.f32.xlu0 %v3116
        %v3118 = vpop.xlane.xlu0 %3117
        %v3119 = vsel %vm1114, %v3001, 0.0
        %3120 = vadd.xlane.f32.xlu0 %v3119
        %v3121 = vpop.xlane.xlu0 %3120
        %v3122 = vsel %vm1107, %v3002, 0.0
        %3123 = vadd.xlane.f32.xlu0 %v3122
        %v3124 = vpop.xlane.xlu0 %3123
        %v3125 = vsel %vm527, %v3003, 0.0
        %3126 = vadd.xlane.f32.xlu0 %v3125
        %v3127 = vpop.xlane.xlu0 %3126
        %v3128 = vsel %vm1114, %v3004, 0.0
        %3129 = vadd.xlane.f32.xlu0 %v3128
        %v3130 = vpop.xlane.xlu0 %3129
        %v3131 = vsel %vm1107, %v3005, 0.0
        %3132 = vadd.xlane.f32.xlu0 %v3131
        %v3133 = vpop.xlane.xlu0 %3132
        %v3134 = vsel %vm527, %v3006, 0.0
        %3135 = vadd.xlane.f32.xlu0 %v3134
        %v3136 = vpop.xlane.xlu0 %3135
        %v3137 = vsel %vm1114, %v3007, 0.0
        %3138 = vadd.xlane.f32.xlu0 %v3137
        %v3139 = vpop.xlane.xlu0 %3138
        %v3140 = vsel %vm1107, %v3008, 0.0
        %3141 = vadd.xlane.f32.xlu0 %v3140
        %v3142 = vpop.xlane.xlu0 %3141
        %v3143 = vsel %vm527, %v3009, 0.0
        %3144 = vadd.xlane.f32.xlu0 %v3143
        %v3145 = vpop.xlane.xlu0 %3144
        %v3146 = vsel %vm1114, %v3010, 0.0
        %3147 = vadd.xlane.f32.xlu0 %v3146
        %v3148 = vpop.xlane.xlu0 %3147
        %v3149 = vsel %vm1107, %v3011, 0.0
        %3150 = vadd.xlane.f32.xlu0 %v3149
        %v3151 = vpop.xlane.xlu0 %3150
        %v3152 = vsel %vm527, %v3012, 0.0
        %3153 = vadd.xlane.f32.xlu0 %v3152
        %v3154 = vpop.xlane.xlu0 %3153
        %v3155 = vsel %vm1114, %v3013, 0.0
        %3156 = vadd.xlane.f32.xlu0 %v3155
        %v3157 = vpop.xlane.xlu0 %3156
        %v3206 = vrot.slane %v3016, 2
        %v3207 = vrot.slane %v3019, 2
        %v3208 = vsel %vm1301, %v3206, %v3207
        %v3209 = vrot.slane %v3022, 2
        %v3210 = vsel %vm1301, %v3207, %v3209
        %v3211 = vrot.slane %v3025, 2
        %v3212 = vrot.slane %v3028, 2
        %v3213 = vsel %vm1301, %v3211, %v3212
        %v3214 = vrot.slane %v3031, 2
        %v3215 = vsel %vm1301, %v3212, %v3214
        %v3216 = vrot.slane %v3034, 2
        %v3217 = vrot.slane %v3037, 2
        %v3218 = vsel %vm1301, %v3216, %v3217
        %v3219 = vrot.slane %v3040, 2
        %v3220 = vsel %vm1301, %v3217, %v3219
        %v3221 = vrot.slane %v3043, 2
        %v3222 = vrot.slane %v3046, 2
        %v3223 = vsel %vm1301, %v3221, %v3222
        %v3224 = vrot.slane %v3049, 2
        %v3225 = vsel %vm1301, %v3222, %v3224
        %v3226 = vrot.slane %v3052, 2
        %v3227 = vrot.slane %v3055, 2
        %v3228 = vsel %vm1301, %v3226, %v3227
        %v3229 = vrot.slane %v3058, 2
        %v3230 = vsel %vm1301, %v3227, %v3229
        %v3231 = vrot.slane %v3061, 2
        %v3232 = vrot.slane %v3064, 2
        %v3233 = vsel %vm1301, %v3231, %v3232
        %v3234 = vrot.slane %v3067, 2
        %v3235 = vsel %vm1301, %v3232, %v3234
        %v3236 = vrot.slane %v3070, 2
        %v3237 = vrot.slane %v3073, 2
        %v3238 = vsel %vm1301, %v3236, %v3237
        %v3239 = vrot.slane %v3076, 2
        %v3240 = vsel %vm1301, %v3237, %v3239
        %v3241 = vrot.slane %v3079, 2
        %v3242 = vrot.slane %v3082, 2
        %v3243 = vsel %vm1301, %v3241, %v3242
        %v3244 = vrot.slane %v3085, 2
        %v3245 = vsel %vm1301, %v3242, %v3244
        %v3246 = vrot.slane %v3088, 2
        %v3247 = vrot.slane %v3091, 2
        %v3248 = vsel %vm1301, %v3246, %v3247
        %v3249 = vrot.slane %v3094, 2
        %v3250 = vsel %vm1301, %v3247, %v3249
        %v3251 = vrot.slane %v3097, 2
        %v3252 = vrot.slane %v3100, 2
        %v3253 = vsel %vm1301, %v3251, %v3252
        %v3254 = vrot.slane %v3103, 2
        %v3255 = vsel %vm1301, %v3252, %v3254
        %v3256 = vrot.slane %v3106, 2
        %v3257 = vrot.slane %v3109, 2
        %v3258 = vsel %vm1301, %v3256, %v3257
        %v3259 = vrot.slane %v3112, 2
        %v3260 = vsel %vm1301, %v3257, %v3259
        %v3261 = vrot.slane %v3115, 2
        %v3262 = vrot.slane %v3118, 2
        %v3263 = vsel %vm1301, %v3261, %v3262
        %v3264 = vrot.slane %v3121, 2
        %v3265 = vsel %vm1301, %v3262, %v3264
        %v3266 = vrot.slane %v3124, 2
        %v3267 = vrot.slane %v3127, 2
        %v3268 = vsel %vm1301, %v3266, %v3267
        %v3269 = vrot.slane %v3130, 2
        %v3270 = vsel %vm1301, %v3267, %v3269
        %v3271 = vrot.slane %v3133, 2
        %v3272 = vrot.slane %v3136, 2
        %v3273 = vsel %vm1301, %v3271, %v3272
        %v3274 = vrot.slane %v3139, 2
        %v3275 = vsel %vm1301, %v3272, %v3274
        %v3276 = vrot.slane %v3142, 2
        %v3277 = vrot.slane %v3145, 2
        %v3278 = vsel %vm1301, %v3276, %v3277
        %v3279 = vrot.slane %v3148, 2
        %v3280 = vsel %vm1301, %v3277, %v3279
        %v3281 = vrot.slane %v3151, 2
        %v3282 = vrot.slane %v3154, 2
        %v3283 = vsel %vm1301, %v3281, %v3282
        %v3284 = vrot.slane %v3157, 2
        %v3285 = vsel %vm1301, %v3282, %v3284
        %v3318 = vadd.f32 %v2926, %v3208
        %v3319 = vadd.f32 %v2927, %v3210
        %v3320 = vadd.f32 %v2928, %v3213
        %v3321 = vadd.f32 %v2929, %v3215
        %v3322 = vadd.f32 %v2930, %v3218
        %v3323 = vadd.f32 %v2931, %v3220
        %v3324 = vadd.f32 %v2932, %v3223
        %v3325 = vadd.f32 %v2933, %v3225
        %v3326 = vadd.f32 %v2934, %v3228
        %v3327 = vadd.f32 %v2935, %v3230
        %v3328 = vadd.f32 %v2936, %v3233
        %v3329 = vadd.f32 %v2937, %v3235
        %v3330 = vadd.f32 %v2938, %v3238
        %v3331 = vadd.f32 %v2939, %v3240
        %v3332 = vadd.f32 %v2940, %v3243
        %v3333 = vadd.f32 %v2941, %v3245
        %v3334 = vadd.f32 %v2942, %v3248
        %v3335 = vadd.f32 %v2943, %v3250
        %v3336 = vadd.f32 %v2944, %v3253
        %v3337 = vadd.f32 %v2945, %v3255
        %v3338 = vadd.f32 %v2946, %v3258
        %v3339 = vadd.f32 %v2947, %v3260
        %v3340 = vadd.f32 %v2948, %v3263
        %v3341 = vadd.f32 %v2949, %v3265
        %v3342 = vadd.f32 %v2950, %v3268
        %v3343 = vadd.f32 %v2951, %v3270
        %v3344 = vadd.f32 %v2952, %v3273
        %v3345 = vadd.f32 %v2953, %v3275
        %v3346 = vadd.f32 %v2954, %v3278
        %v3347 = vadd.f32 %v2955, %v3280
        %v3348 = vadd.f32 %v2956, %v3283
        %v3349 = vadd.f32 %v2957, %v3285
        %v3350 = vld [vmem:[#allocation2] sm:$0x1]
        %v3352 = vlaneseq
        %v3353 = vshrl.u32 %v3352, 7
        %v3354 = vsub.s32 0, %v3353
        %v3355 = vrot.slane %v3350, %v3354
        %3356 = vset.pattern.permute.xlu0 0
        %3357 = vperm.xlu0 %3356, %v3355
        %v3358 = vpop.permute.xlu0 %3357
        %v3360 = vadd.f32 %v3318, %v3358
        %v3361 = vadd.f32 %v3319, %v3358
        %v3362 = vadd.f32 %v3320, %v3358
        %v3363 = vadd.f32 %v3321, %v3358
        %v3364 = vadd.f32 %v3322, %v3358
        %v3365 = vadd.f32 %v3323, %v3358
        %v3366 = vadd.f32 %v3324, %v3358
        %v3367 = vadd.f32 %v3325, %v3358
        %v3368 = vadd.f32 %v3326, %v3358
        %v3369 = vadd.f32 %v3327, %v3358
        %v3370 = vadd.f32 %v3328, %v3358
        %v3371 = vadd.f32 %v3329, %v3358
        %v3372 = vadd.f32 %v3330, %v3358
        %v3373 = vadd.f32 %v3331, %v3358
        %v3374 = vadd.f32 %v3332, %v3358
        %v3375 = vadd.f32 %v3333, %v3358
        %v3376 = vadd.f32 %v3334, %v3358
        %v3377 = vadd.f32 %v3335, %v3358
        %v3378 = vadd.f32 %v3336, %v3358
        %v3379 = vadd.f32 %v3337, %v3358
        %v3380 = vadd.f32 %v3338, %v3358
        %v3381 = vadd.f32 %v3339, %v3358
        %v3382 = vadd.f32 %v3340, %v3358
        %v3383 = vadd.f32 %v3341, %v3358
        %v3384 = vadd.f32 %v3342, %v3358
        %v3385 = vadd.f32 %v3343, %v3358
        %v3386 = vadd.f32 %v3344, %v3358
        %v3387 = vadd.f32 %v3345, %v3358
        %v3388 = vadd.f32 %v3346, %v3358
        %v3389 = vadd.f32 %v3347, %v3358
        %v3390 = vadd.f32 %v3348, %v3358
        %v3391 = vadd.f32 %v3349, %v3358
        %3424 = vset.pattern.permute.xlu0 0
        %3425 = vperm.xlu0 %3424, %v3360
        %v3426 = vpop.permute.xlu0 %3425
        %3427 = vset.pattern.permute.xlu0 0
        %3428 = vperm.xlu0 %3427, %v3361
        %v3429 = vpop.permute.xlu0 %3428
        %3430 = vset.pattern.permute.xlu0 0
        %3431 = vperm.xlu0 %3430, %v3362
        %v3432 = vpop.permute.xlu0 %3431
        %3433 = vset.pattern.permute.xlu0 0
        %3434 = vperm.xlu0 %3433, %v3363
        %v3435 = vpop.permute.xlu0 %3434
        %3436 = vset.pattern.permute.xlu0 0
        %3437 = vperm.xlu0 %3436, %v3364
        %v3438 = vpop.permute.xlu0 %3437
        %3439 = vset.pattern.permute.xlu0 0
        %3440 = vperm.xlu0 %3439, %v3365
        %v3441 = vpop.permute.xlu0 %3440
        %3442 = vset.pattern.permute.xlu0 0
        %3443 = vperm.xlu0 %3442, %v3366
        %v3444 = vpop.permute.xlu0 %3443
        %3445 = vset.pattern.permute.xlu0 0
        %3446 = vperm.xlu0 %3445, %v3367
        %v3447 = vpop.permute.xlu0 %3446
        %3448 = vset.pattern.permute.xlu0 0
        %3449 = vperm.xlu0 %3448, %v3368
        %v3450 = vpop.permute.xlu0 %3449
        %3451 = vset.pattern.permute.xlu0 0
        %3452 = vperm.xlu0 %3451, %v3369
        %v3453 = vpop.permute.xlu0 %3452
        %3454 = vset.pattern.permute.xlu0 0
        %3455 = vperm.xlu0 %3454, %v3370
        %v3456 = vpop.permute.xlu0 %3455
        %3457 = vset.pattern.permute.xlu0 0
        %3458 = vperm.xlu0 %3457, %v3371
        %v3459 = vpop.permute.xlu0 %3458
        %3460 = vset.pattern.permute.xlu0 0
        %3461 = vperm.xlu0 %3460, %v3372
        %v3462 = vpop.permute.xlu0 %3461
        %3463 = vset.pattern.permute.xlu0 0
        %3464 = vperm.xlu0 %3463, %v3373
        %v3465 = vpop.permute.xlu0 %3464
        %3466 = vset.pattern.permute.xlu0 0
        %3467 = vperm.xlu0 %3466, %v3374
        %v3468 = vpop.permute.xlu0 %3467
        %3469 = vset.pattern.permute.xlu0 0
        %3470 = vperm.xlu0 %3469, %v3375
        %v3471 = vpop.permute.xlu0 %3470
        %3472 = vset.pattern.permute.xlu0 0
        %3473 = vperm.xlu0 %3472, %v3376
        %v3474 = vpop.permute.xlu0 %3473
        %3475 = vset.pattern.permute.xlu0 0
        %3476 = vperm.xlu0 %3475, %v3377
        %v3477 = vpop.permute.xlu0 %3476
        %3478 = vset.pattern.permute.xlu0 0
        %3479 = vperm.xlu0 %3478, %v3378
        %v3480 = vpop.permute.xlu0 %3479
        %3481 = vset.pattern.permute.xlu0 0
        %3482 = vperm.xlu0 %3481, %v3379
        %v3483 = vpop.permute.xlu0 %3482
        %3484 = vset.pattern.permute.xlu0 0
        %3485 = vperm.xlu0 %3484, %v3380
        %v3486 = vpop.permute.xlu0 %3485
        %3487 = vset.pattern.permute.xlu0 0
        %3488 = vperm.xlu0 %3487, %v3381
        %v3489 = vpop.permute.xlu0 %3488
        %3490 = vset.pattern.permute.xlu0 0
        %3491 = vperm.xlu0 %3490, %v3382
        %v3492 = vpop.permute.xlu0 %3491
        %3493 = vset.pattern.permute.xlu0 0
        %3494 = vperm.xlu0 %3493, %v3383
        %v3495 = vpop.permute.xlu0 %3494
        %3496 = vset.pattern.permute.xlu0 0
        %3497 = vperm.xlu0 %3496, %v3384
        %v3498 = vpop.permute.xlu0 %3497
        %3499 = vset.pattern.permute.xlu0 0
        %3500 = vperm.xlu0 %3499, %v3385
        %v3501 = vpop.permute.xlu0 %3500
        %3502 = vset.pattern.permute.xlu0 0
        %3503 = vperm.xlu0 %3502, %v3386
        %v3504 = vpop.permute.xlu0 %3503
        %3505 = vset.pattern.permute.xlu0 0
        %3506 = vperm.xlu0 %3505, %v3387
        %v3507 = vpop.permute.xlu0 %3506
        %3508 = vset.pattern.permute.xlu0 0
        %3509 = vperm.xlu0 %3508, %v3388
        %v3510 = vpop.permute.xlu0 %3509
        %3511 = vset.pattern.permute.xlu0 0
        %3512 = vperm.xlu0 %3511, %v3389
        %v3513 = vpop.permute.xlu0 %3512
        %3514 = vset.pattern.permute.xlu0 0
        %3515 = vperm.xlu0 %3514, %v3390
        %v3516 = vpop.permute.xlu0 %3515
        %3517 = vset.pattern.permute.xlu0 0
        %3518 = vperm.xlu0 %3517, %v3391
        %v3519 = vpop.permute.xlu0 %3518
        %v3520 = vlaneseq
        %v3521 = vand.u32 %v3520, 127
        %v3522 = vlaneseq
        %v3523 = vshrl.u32 %v3522, 7
        %v3524 = vsub.s32 %v3521, %v3523
        %v3525 = vrot.slane %v3426, %v3524
        %v3526 = vadd.s32 %v3521, 4294967288
        %v3527 = vlaneseq
        %v3528 = vshrl.u32 %v3527, 7
        %v3529 = vsub.s32 %v3526, %v3528
        %v3530 = vrot.slane %v3429, %v3529
        %vm3531 = vcmask 130112
        %v3532 = vsel %vm3531, %v3530, %v3525
        %v3533 = vlaneseq
        %v3534 = vshrl.u32 %v3533, 7
        %v3535 = vsub.s32 %v3521, %v3534
        %v3536 = vrot.slane %v3432, %v3535
        %v3537 = vlaneseq
        %v3538 = vshrl.u32 %v3537, 7
        %v3539 = vsub.s32 %v3526, %v3538
        %v3540 = vrot.slane %v3435, %v3539
        %v3541 = vsel %vm3531, %v3540, %v3536
        %v3542 = vlaneseq
        %v3543 = vshrl.u32 %v3542, 7
        %v3544 = vsub.s32 %v3521, %v3543
        %v3545 = vrot.slane %v3438, %v3544
        %v3546 = vlaneseq
        %v3547 = vshrl.u32 %v3546, 7
        %v3548 = vsub.s32 %v3526, %v3547
        %v3549 = vrot.slane %v3441, %v3548
        %v3550 = vsel %vm3531, %v3549, %v3545
        %v3551 = vlaneseq
        %v3552 = vshrl.u32 %v3551, 7
        %v3553 = vsub.s32 %v3521, %v3552
        %v3554 = vrot.slane %v3444, %v3553
        %v3555 = vlaneseq
        %v3556 = vshrl.u32 %v3555, 7
        %v3557 = vsub.s32 %v3526, %v3556
        %v3558 = vrot.slane %v3447, %v3557
        %v3559 = vsel %vm3531, %v3558, %v3554
        %v3560 = vlaneseq
        %v3561 = vshrl.u32 %v3560, 7
        %v3562 = vsub.s32 %v3521, %v3561
        %v3563 = vrot.slane %v3450, %v3562
        %v3564 = vlaneseq
        %v3565 = vshrl.u32 %v3564, 7
        %v3566 = vsub.s32 %v3526, %v3565
        %v3567 = vrot.slane %v3453, %v3566
        %v3568 = vsel %vm3531, %v3567, %v3563
        %v3569 = vlaneseq
        %v3570 = vshrl.u32 %v3569, 7
        %v3571 = vsub.s32 %v3521, %v3570
        %v3572 = vrot.slane %v3456, %v3571
        %v3573 = vlaneseq
        %v3574 = vshrl.u32 %v3573, 7
        %v3575 = vsub.s32 %v3526, %v3574
        %v3576 = vrot.slane %v3459, %v3575
        %v3577 = vsel %vm3531, %v3576, %v3572
        %v3578 = vlaneseq
        %v3579 = vshrl.u32 %v3578, 7
        %v3580 = vsub.s32 %v3521, %v3579
        %v3581 = vrot.slane %v3462, %v3580
        %v3582 = vlaneseq
        %v3583 = vshrl.u32 %v3582, 7
        %v3584 = vsub.s32 %v3526, %v3583
        %v3585 = vrot.slane %v3465, %v3584
        %v3586 = vsel %vm3531, %v3585, %v3581
        %v3587 = vlaneseq
        %v3588 = vshrl.u32 %v3587, 7
        %v3589 = vsub.s32 %v3521, %v3588
        %v3590 = vrot.slane %v3468, %v3589
        %v3591 = vlaneseq
        %v3592 = vshrl.u32 %v3591, 7
        %v3593 = vsub.s32 %v3526, %v3592
        %v3594 = vrot.slane %v3471, %v3593
        %v3595 = vsel %vm3531, %v3594, %v3590
        %v3596 = vlaneseq
        %v3597 = vshrl.u32 %v3596, 7
        %v3598 = vsub.s32 %v3521, %v3597
        %v3599 = vrot.slane %v3474, %v3598
        %v3600 = vlaneseq
        %v3601 = vshrl.u32 %v3600, 7
        %v3602 = vsub.s32 %v3526, %v3601
        %v3603 = vrot.slane %v3477, %v3602
        %v3604 = vsel %vm3531, %v3603, %v3599
        %v3605 = vlaneseq
        %v3606 = vshrl.u32 %v3605, 7
        %v3607 = vsub.s32 %v3521, %v3606
        %v3608 = vrot.slane %v3480, %v3607
        %v3609 = vlaneseq
        %v3610 = vshrl.u32 %v3609, 7
        %v3611 = vsub.s32 %v3526, %v3610
        %v3612 = vrot.slane %v3483, %v3611
        %v3613 = vsel %vm3531, %v3612, %v3608
        %v3614 = vlaneseq
        %v3615 = vshrl.u32 %v3614, 7
        %v3616 = vsub.s32 %v3521, %v3615
        %v3617 = vrot.slane %v3486, %v3616
        %v3618 = vlaneseq
        %v3619 = vshrl.u32 %v3618, 7
        %v3620 = vsub.s32 %v3526, %v3619
        %v3621 = vrot.slane %v3489, %v3620
        %v3622 = vsel %vm3531, %v3621, %v3617
        %v3623 = vlaneseq
        %v3624 = vshrl.u32 %v3623, 7
        %v3625 = vsub.s32 %v3521, %v3624
        %v3626 = vrot.slane %v3492, %v3625
        %v3627 = vlaneseq
        %v3628 = vshrl.u32 %v3627, 7
        %v3629 = vsub.s32 %v3526, %v3628
        %v3630 = vrot.slane %v3495, %v3629
        %v3631 = vsel %vm3531, %v3630, %v3626
        %v3632 = vlaneseq
        %v3633 = vshrl.u32 %v3632, 7
        %v3634 = vsub.s32 %v3521, %v3633
        %v3635 = vrot.slane %v3498, %v3634
        %v3636 = vlaneseq
        %v3637 = vshrl.u32 %v3636, 7
        %v3638 = vsub.s32 %v3526, %v3637
        %v3639 = vrot.slane %v3501, %v3638
        %v3640 = vsel %vm3531, %v3639, %v3635
        %v3641 = vlaneseq
        %v3642 = vshrl.u32 %v3641, 7
        %v3643 = vsub.s32 %v3521, %v3642
        %v3644 = vrot.slane %v3504, %v3643
        %v3645 = vlaneseq
        %v3646 = vshrl.u32 %v3645, 7
        %v3647 = vsub.s32 %v3526, %v3646
        %v3648 = vrot.slane %v3507, %v3647
        %v3649 = vsel %vm3531, %v3648, %v3644
        %v3650 = vlaneseq
        %v3651 = vshrl.u32 %v3650, 7
        %v3652 = vsub.s32 %v3521, %v3651
        %v3653 = vrot.slane %v3510, %v3652
        %v3654 = vlaneseq
        %v3655 = vshrl.u32 %v3654, 7
        %v3656 = vsub.s32 %v3526, %v3655
        %v3657 = vrot.slane %v3513, %v3656
        %v3658 = vsel %vm3531, %v3657, %v3653
        %v3659 = vlaneseq
        %v3660 = vshrl.u32 %v3659, 7
        %v3661 = vsub.s32 %v3521, %v3660
        %v3662 = vrot.slane %v3516, %v3661
        %v3663 = vlaneseq
        %v3664 = vshrl.u32 %v3663, 7
        %v3665 = vsub.s32 %v3526, %v3664
        %v3666 = vrot.slane %v3519, %v3665
        %v3667 = vsel %vm3531, %v3666, %v3662
        %vm3668 = vcmask 1041409
        %v3669 = vsel %vm3668, %v3541, %v3532
        %vm3670 = vcmask 1042434
        %v3671 = vsel %vm3670, %v3550, %v3669
        %vm3672 = vcmask 1043459
        %v3673 = vsel %vm3672, %v3559, %v3671
        %vm3674 = vcmask 1044484
        %v3675 = vsel %vm3674, %v3568, %v3673
        %vm3676 = vcmask 1045509
        %v3677 = vsel %vm3676, %v3577, %v3675
        %vm3678 = vcmask 1046534
        %v3679 = vsel %vm3678, %v3586, %v3677
        %vm3680 = vcmask 1047559
        %v3681 = vsel %vm3680, %v3595, %v3679
        %v3682 = vsel %vm3668, %v3613, %v3604
        %v3683 = vsel %vm3670, %v3622, %v3682
        %v3684 = vsel %vm3672, %v3631, %v3683
        %v3685 = vsel %vm3674, %v3640, %v3684
        %v3686 = vsel %vm3676, %v3649, %v3685
        %v3687 = vsel %vm3678, %v3658, %v3686
        %v3688 = vsel %vm3680, %v3667, %v3687
        %vm3691 = vcmask 130048
        %3692 = vst.msk [vmem:[%s207] sm:$0xff] %vm3691, %v3681
        %3693 = vst.msk [vmem:[%s207 + $0x8] sm:$0xff] %vm3691, %v3688
        %s3694 = sand.u32 %s122, 1
        %s3695 = scalar_lea.sflag [#allocation4], %s3694
        %s3696 = sand.u32 %s122, 1
        %s3697 = smul.addr %s3696, 16
        %s3698 = scalar_lea.vmem [#allocation3], %s3697
        // Predicated region
        $region37: #{similarity_regnet_forward.11} parent=35 // pred_check
          %p3699 = pneg %p132
        $region38: #{similarity_regnet_forward.11} parent=35 // pred_check_branch
          %3701 = sbr.rel (%p3699) target = $region40
        $region39: #{similarity_regnet_forward.11} parent=35 // pred_region
          %s3703 = ssub.s32 256, 256
          %3704 = vsyncadd %s3695, %s3703
          %s3705 = smul.addr %s20, 2
          %s3706 = smul.addr %s3705, 128
          %s3707 = scalar_lea.hbm %s4, %s3706
          %s3708 = sshll.u32 %s3698, 4
          %s3709 = int_to_ptr.vmem [resolvable:$true] %s3708
          %3714 = dma.vmem_to_hbm [thread:$0]  %s3709, 256, %s3707, %s3695, 128, 128, 8
        $region40: #{similarity_regnet_forward.11} parent=35 // pred_fallthru
          _
      $region36: #{similarity_regnet_forward.11} parent=5 // pred_fallthru
        _
      %p3715 = scmp.le.s32.totalorder 2, %s15
      // Predicated region
      $region41: #{similarity_regnet_forward.11} parent=5 // pred_check
        %p3716 = pneg %p3715
      $region42: #{similarity_regnet_forward.11} parent=5 // pred_check_branch
        %3718 = sbr.rel (%p3716) target = $region44
      $region43: #{similarity_regnet_forward.11} parent=5 // pred_region
        %s3719 = ssub.s32 %s15, 2
        // Predicated region
        $region45: #{similarity_regnet_forward.11} parent=43 // pred_check
          %p3720 = pneg %p138
        $region46: #{similarity_regnet_forward.11} parent=43 // pred_check_branch
          %3722 = sbr.rel (%p3720) target = $region48
        $region47: #{similarity_regnet_forward.11} parent=43 // pred_region
          %s3723 = sand.u32 %s123, 1
          %s3724 = scalar_lea.sflag [#allocation4], %s3723
          %s3725 = sand.u32 %s123, 1
          %s3726 = smul.addr %s3725, 16
          %s3727 = scalar_lea.vmem [#allocation3], %s3726
          %3728 = dma.done %s3724, 256
        $region48: #{similarity_regnet_forward.11} parent=43 // pred_fallthru
          _
      $region44: #{similarity_regnet_forward.11} parent=5 // pred_fallthru
        _
    $region6: #{similarity_regnet_forward.11} parent=1 // loop_footer
      %s19 = sadd.s32 1, %s15
    $region7: #{similarity_regnet_forward.11} parent=1 // loop_footer_branch
      %14 = sbr.rel target = $region3
    $region8: #{similarity_regnet_forward.11} parent=1 // loop_exit
      _
    %3729 = vsyncpa [#allocation4], 1
    %s3730 = scalar_lea.sflag [#allocation4], 1
    %3731 = vsyncpa %s3730, 1

</llo_original>
